<compile_context>
chip_gen: v7x
topology: tpu7x:2x2x1
jax: 0.10.0
libtpu: 0.0.40
codegen_flags: <defaults>
</compile_context>

<pallas_src>
import functools

import jax
import jax.numpy as jnp
from jax import lax
from jax.experimental import pallas as pl
from jax.experimental.pallas import tpu as pltpu


# ----------------------------------------------------------------------------
# Kernel
# ----------------------------------------------------------------------------
def _paw_kernel(m_full_ref, m_tile_ref, z_ref,
                wvT_ref, bv_ref, wg_ref, bg_ref, wbT_ref, bb_ref, wo_ref,
                out_ref, vt_scr, *, d_hid, num_heads):
    f32 = jnp.float32
    bf16 = jnp.bfloat16
    TS = m_full_ref.shape[0]
    TI, J, Dz = z_ref.shape
    C, Dm = wvT_ref.shape
    H, dh = num_heads, d_hid

    def layer_norm(x):
        # plain LN over the last dim (eps=1e-5, biased variance, like PyTorch);
        # the affine (gamma/beta) is folded into the projection weights.
        mu = jnp.mean(x, axis=-1, keepdims=True)
        var = jnp.mean(jnp.square(x - mu), axis=-1, keepdims=True)
        return (x - mu) * lax.rsqrt(var + 1e-5)

    # ---- refresh v^T scratch once per S-tile (first i-step) ----------------
    @pl.when(pl.program_id(1) == 0)
    def _():
        wvT = wvT_ref[...]                                    # (C, Dm) bf16
        bv = bv_ref[...]                                      # (C, 1)  f32
        for s in range(TS):                                   # TS small, unrolled
            m_s = layer_norm(m_full_ref[s].astype(f32))       # (J, Dm)
            vt = lax.dot_general(                             # (C, J)  A @ B^T
                wvT, m_s.astype(bf16),
                (((1,), (1,)), ((), ())),
                preferred_element_type=f32)
            vt_scr[s] = vt + bv

    # ---- pair bias -> per-head softmax weights, lane-dense over J ----------
    z_ln = layer_norm(z_ref[...].astype(f32))                 # (TI, J, Dz)
    wb_b = jnp.broadcast_to(wbT_ref[...][None], (TI, H, Dz))  # (TI, H, Dz)
    b3 = lax.dot_general(                                     # (TI, H, J)
        wb_b, z_ln, (((2,), (2,)), ((0,), (0,))),
        preferred_element_type=f32)
    b3 = b3 + bb_ref[...]
    b3 = b3 - jnp.max(b3, axis=-1, keepdims=True)             # lane reduction
    p = jnp.exp(b3)
    w3 = p * pl.reciprocal(jnp.sum(p, axis=-1, keepdims=True), approx=True)

    wo = wo_ref[...]                                          # (C, Dm) bf16
    wg = wg_ref[...]                                          # (Dm, C) bf16
    bg = bg_ref[...]                                          # (1, C)  f32

    # ---- gate + head-weighted average (MXU) + output projection ------------
    for s in range(TS):
        m_i = layer_norm(m_tile_ref[s].astype(f32)).astype(bf16)   # (TI, Dm)
        g = jax.nn.sigmoid(
            lax.dot_general(m_i, wg, (((1,), (0,)), ((), ())),
                            preferred_element_type=f32) + bg)      # (TI, C)
        vt_s = vt_scr[s]                                           # (C, J) f32
        acc = jnp.zeros((TI, Dm), f32)
        for h in range(H):                                         # H small, unrolled
            w_h = w3[:, h, :].astype(bf16)                         # (TI, J)
            vt_h = vt_s[h * dh:(h + 1) * dh, :].astype(bf16)       # (dh, J)
            o_h = lax.dot_general(                                 # (TI, dh)  A@B^T
                w_h, vt_h, (((1,), (1,)), ((), ())),
                preferred_element_type=f32)
            og_h = (g[:, h * dh:(h + 1) * dh] * o_h).astype(bf16)  # (TI, dh)
            acc = acc + lax.dot_general(                           # (TI, Dm)
                og_h, wo[h * dh:(h + 1) * dh, :],
                (((1,), (0,)), ((), ())),
                preferred_element_type=f32)
        out_ref[s] = acc.astype(out_ref.dtype)


# ----------------------------------------------------------------------------
# Host-side parameter folding (LN affines folded into the linears, channels
# permuted to head-major so the kernel's per-head slices are plain contiguous
# blocks; matches PyTorch's .view(d_hid, num_heads) flattening).
# ----------------------------------------------------------------------------
def _fold_params(params, d_hid, num_heads):
    C = d_hid * num_heads
    # new channel c' = h*d_hid + d  <-  original channel c = d*num_heads + h
    cc = jnp.arange(C)
    perm = (cc % d_hid) * num_heads + (cc // d_hid)

    wv_p = params["wv"][:, perm]
    wg_p = params["wg"][:, perm]
    wo_p = params["wo"][perm, :]
    g_m, b_m = params["m_ln_g"], params["m_ln_b"]
    g_z, b_z = params["z_ln_g"], params["z_ln_b"]

    wvT = (g_m[:, None] * wv_p).T                            # (C, Dm)
    bv = (b_m @ wv_p)[:, None]                               # (C, 1)
    wg_eff = g_m[:, None] * wg_p                             # (Dm, C)
    bg = (b_m @ wg_p)[None, :]                               # (1, C) (LN beta only;
                                                             #  m_g_linear has no bias)
    wbT = (g_z[:, None] * params["wb"]).T                    # (H, Dz)
    bb = (b_z @ params["wb"] + params["bb"])[None, :, None]  # (1, H, 1)

    return dict(
        wvT=wvT.astype(jnp.bfloat16), bv=bv.astype(jnp.float32),
        wg=wg_eff.astype(jnp.bfloat16), bg=bg.astype(jnp.float32),
        wbT=wbT.astype(jnp.float32), bb=bb.astype(jnp.float32),
        wo=wo_p.astype(jnp.bfloat16))


def _pick_s_tile(n, target=4):
    t = min(n, target)
    while n % t:
        t -= 1
    return t


def _pick_i_tile(n, target=8):
    if n <= target:
        return n
    for t in range(min(n, target), 0, -1):
        if n % t == 0 and t % 8 == 0:
            return t
    return n


# ----------------------------------------------------------------------------
# Wrapper
# ----------------------------------------------------------------------------
def pair_average_weighting_pallas(m, z, params, d_hid, num_heads,
                                  *, s_tile=None, i_tile=None):
    """m: (S, I, d_msa), z: (I, J, d_pair) -> (S, I, d_msa)."""
    S, I, Dm = m.shape
    _, J, Dz = z.shape
    C = d_hid * num_heads
    H = num_heads

    TS = s_tile or _pick_s_tile(S)
    TI = i_tile or _pick_i_tile(I)
    assert S % TS == 0 and I % TI == 0

    f = _fold_params(params, d_hid, num_heads)
    kernel = functools.partial(_paw_kernel, d_hid=d_hid, num_heads=num_heads)

    in_specs = [
        pl.BlockSpec((TS, I, Dm), lambda si, ii: (si, 0, 0)),    # m (full residues, for v)
        pl.BlockSpec((TS, TI, Dm), lambda si, ii: (si, ii, 0)),  # m (i-tile, for gate)
        pl.BlockSpec((TI, J, Dz), lambda si, ii: (ii, 0, 0)),    # z (i-tile)
        pl.BlockSpec((C, Dm), lambda si, ii: (0, 0)),            # wv^T (folded, bf16)
        pl.BlockSpec((C, 1), lambda si, ii: (0, 0)),             # bv
        pl.BlockSpec((Dm, C), lambda si, ii: (0, 0)),            # wg  (folded, bf16)
        pl.BlockSpec((1, C), lambda si, ii: (0, 0)),             # bg
        pl.BlockSpec((H, Dz), lambda si, ii: (0, 0)),            # wb^T (folded)
        pl.BlockSpec((1, H, 1), lambda si, ii: (0, 0, 0)),       # bb (folded)
        pl.BlockSpec((C, Dm), lambda si, ii: (0, 0)),            # wo (row-permuted, bf16)
    ]
    out_spec = pl.BlockSpec((TS, TI, Dm), lambda si, ii: (si, ii, 0))

    return pl.pallas_call(
        kernel,
        out_shape=jax.ShapeDtypeStruct((S, I, Dm), m.dtype),
        grid_spec=pltpu.PrefetchScalarGridSpec(
            num_scalar_prefetch=0,
            grid=(S // TS, I // TI),
            in_specs=in_specs,
            out_specs=out_spec,
            scratch_shapes=[pltpu.VMEM((TS, C, J), jnp.float32)]),
        compiler_params=pltpu.CompilerParams(
            dimension_semantics=("parallel", "arbitrary"),
            vmem_limit_bytes=32 * 1024 * 1024),
    )(m, m, z, f["wvT"], f["bv"], f["wg"], f["bg"], f["wbT"], f["bb"], f["wo"])


# ----------------------------------------------------------------------------
# Deterministic synthetic parameters.
# TODO(synk): the PyTorch o_linear uses init='final' (zeros); small random
# weights are used here so the numerical check is non-trivial.
# ----------------------------------------------------------------------------
def init_paw_params(key, d_msa, d_pair, d_hid, num_heads):
    C = d_hid * num_heads
    ks = jax.random.split(key, 9)
    s_m = 1.0 / jnp.sqrt(jnp.float32(d_msa))
    s_z = 1.0 / jnp.sqrt(jnp.float32(d_pair))
    s_c = 1.0 / jnp.sqrt(jnp.float32(C))
    return dict(
        m_ln_g=1.0 + 0.1 * jax.random.normal(ks[0], (d_msa,), jnp.float32),
        m_ln_b=0.1 * jax.random.normal(ks[1], (d_msa,), jnp.float32),
        wv=s_m * jax.random.normal(ks[2], (d_msa, C), jnp.float32),
        wg=s_m * jax.random.normal(ks[3], (d_msa, C), jnp.float32),
        z_ln_g=1.0 + 0.1 * jax.random.normal(ks[4], (d_pair,), jnp.float32),
        z_ln_b=0.1 * jax.random.normal(ks[5], (d_pair,), jnp.float32),
        wb=s_z * jax.random.normal(ks[6], (d_pair, num_heads), jnp.float32),
        bb=0.1 * jax.random.normal(ks[7], (num_heads,), jnp.float32),
        wo=s_c * jax.random.normal(ks[8], (C, d_msa), jnp.float32),
    )


# ----------------------------------------------------------------------------
# Pure-JAX reference (mirrors the PyTorch forward exactly).
# ----------------------------------------------------------------------------
def paw_reference(m, z, p, d_hid, num_heads):
    def ln(x, g, b):
        mu = x.mean(-1, keepdims=True)
        var = ((x - mu) ** 2).mean(-1, keepdims=True)
        return (x - mu) / jnp.sqrt(var + 1e-5) * g + b

    S, I, _ = m.shape
    m_ln = ln(m, p["m_ln_g"], p["m_ln_b"])
    v = (m_ln @ p["wv"]).reshape(S, I, d_hid, num_heads)
    z_ln = ln(z, p["z_ln_g"], p["z_ln_b"])
    b = z_ln @ p["wb"] + p["bb"]
    g = jax.nn.sigmoid(m_ln @ p["wg"]).reshape(S, I, d_hid, num_heads)
    w = jax.nn.softmax(b, axis=-2)
    o = g * jnp.einsum("ijh,sjdh->sidh", w, v)
    return o.reshape(S, I, d_hid * num_heads) @ p["wo"]


if __name__ == "__main__":
    d_msa, d_pair = 32, 16
    d_hid, num_heads = 8, 8
    S, n_res = 8, 16

    key = jax.random.PRNGKey(0)
    k_m, k_z, k_p = jax.random.split(key, 3)
    m = jax.random.normal(k_m, (S, n_res, d_msa), jnp.float32)
    z = jax.random.normal(k_z, (n_res, n_res, d_pair), jnp.float32)
    params = init_paw_params(k_p, d_msa, d_pair, d_hid, num_heads)

    out = jax.block_until_ready(
        pair_average_weighting_pallas(m, z, params, d_hid, num_heads))
    ref = jax.block_until_ready(paw_reference(m, z, params, d_hid, num_heads))

    assert out.shape == (S, n_res, d_msa), out.shape
    max_err = float(jnp.max(jnp.abs(out - ref)))
    # bf16 MXU operands with f32 accumulation -> tolerance relaxed vs f32-only.
    assert jnp.allclose(out, ref, atol=3e-2, rtol=3e-2), max_err
    print("KERNEL_OK")
</pallas_src>

<mosaic_0001>
module attributes {stable_mosaic.version = 11 : i64} {
  func.func @_paw_kernel(%arg0: i32, %arg1: i32, %arg2: memref<4x16x32xf32, #tpu.memory_space<vmem>>, %arg3: memref<4x8x32xf32, #tpu.memory_space<vmem>>, %arg4: memref<8x16x16xf32, #tpu.memory_space<vmem>>, %arg5: memref<64x32xbf16, #tpu.memory_space<vmem>>, %arg6: memref<64x1xf32, #tpu.memory_space<vmem>>, %arg7: memref<32x64xbf16, #tpu.memory_space<vmem>>, %arg8: memref<1x64xf32, #tpu.memory_space<vmem>>, %arg9: memref<8x16xf32, #tpu.memory_space<vmem>>, %arg10: memref<1x8x1xf32, #tpu.memory_space<vmem>>, %arg11: memref<64x32xbf16, #tpu.memory_space<vmem>>, %arg12: memref<4x8x32xf32, #tpu.memory_space<vmem>>, %arg13: memref<4x64x16xf32, #tpu.memory_space<vmem>>) attributes {dimension_semantics = [#tpu.dimension_semantics<parallel>, #tpu.dimension_semantics<arbitrary>], iteration_bounds = array<i64: 2, 2>, scalar_prefetch = 0 : i64, scratch_operands = 1 : i64, tpu.core_type = #tpu.core_type<tc>, window_params = [{transform_indices = @transform_0, window_bounds = array<i64: 4, 16, 32>}, {transform_indices = @transform_1, window_bounds = array<i64: 4, 8, 32>}, {transform_indices = @transform_2, window_bounds = array<i64: 8, 16, 16>}, {pipeline_mode = #tpu.pipeline_mode<synchronous>, transform_indices = @transform_3, window_bounds = array<i64: 64, 32>}, {pipeline_mode = #tpu.pipeline_mode<synchronous>, transform_indices = @transform_4, window_bounds = array<i64: 64, 1>}, {pipeline_mode = #tpu.pipeline_mode<synchronous>, transform_indices = @transform_5, window_bounds = array<i64: 32, 64>}, {pipeline_mode = #tpu.pipeline_mode<synchronous>, transform_indices = @transform_6, window_bounds = array<i64: 1, 64>}, {pipeline_mode = #tpu.pipeline_mode<synchronous>, transform_indices = @transform_7, window_bounds = array<i64: 8, 16>}, {pipeline_mode = #tpu.pipeline_mode<synchronous>, transform_indices = @transform_8, window_bounds = array<i64: 1, 8, 1>}, {pipeline_mode = #tpu.pipeline_mode<synchronous>, transform_indices = @transform_9, window_bounds = array<i64: 64, 32>}, {transform_indices = @transform_10, window_bounds = array<i64: 4, 8, 32>}]} {
    %c0_i32 = arith.constant 0 : i32
    %0 = arith.cmpi eq, %arg1, %c0_i32 : i32
    %1 = arith.extui %0 : i1 to i32
    %c0_i32_0 = arith.constant 0 : i32
    %2 = arith.cmpi ne, %1, %c0_i32_0 : i32
    scf.if %2 {
      %c0_150 = arith.constant 0 : index
      %c0_151 = arith.constant 0 : index
      %567 = vector.load %arg5[%c0_150, %c0_151] : memref<64x32xbf16, #tpu.memory_space<vmem>>, vector<64x32xbf16>
      %c0_152 = arith.constant 0 : index
      %c0_153 = arith.constant 0 : index
      %568 = vector.load %arg6[%c0_152, %c0_153] : memref<64x1xf32, #tpu.memory_space<vmem>>, vector<64x1xf32>
      %c0_154 = arith.constant 0 : index
      %c0_155 = arith.constant 0 : index
      %c0_156 = arith.constant 0 : index
      %569 = vector.load %arg2[%c0_154, %c0_155, %c0_156] : memref<4x16x32xf32, #tpu.memory_space<vmem>>, vector<1x16x32xf32>
      %570 = vector.shape_cast %569 : vector<1x16x32xf32> to vector<16x32xf32>
      %cst_157 = arith.constant dense<0.000000e+00> : vector<16xf32>
      %571 = vector.multi_reduction <add>, %570, %cst_157 [1] : vector<16x32xf32> to vector<16xf32>
      %572 = vector.shape_cast %571 : vector<16xf32> to vector<16x1xf32>
      %cst_158 = arith.constant 3.200000e+01 : f32
      %573 = vector.broadcast %cst_158 : f32 to vector<16x1xf32>
      %574 = arith.divf %572, %573 : vector<16x1xf32>
      %575 = vector.broadcast %574 : vector<16x1xf32> to vector<16x32xf32>
      %576 = arith.subf %570, %575 : vector<16x32xf32>
      %577 = arith.mulf %576, %576 : vector<16x32xf32>
      %cst_159 = arith.constant dense<0.000000e+00> : vector<16xf32>
      %578 = vector.multi_reduction <add>, %577, %cst_159 [1] : vector<16x32xf32> to vector<16xf32>
      %579 = vector.shape_cast %578 : vector<16xf32> to vector<16x1xf32>
      %cst_160 = arith.constant 3.200000e+01 : f32
      %580 = vector.broadcast %cst_160 : f32 to vector<16x1xf32>
      %581 = arith.divf %579, %580 : vector<16x1xf32>
      %582 = vector.broadcast %574 : vector<16x1xf32> to vector<16x32xf32>
      %583 = arith.subf %570, %582 : vector<16x32xf32>
      %cst_161 = arith.constant 9.99999974E-6 : f32
      %584 = vector.broadcast %cst_161 : f32 to vector<16x1xf32>
      %585 = arith.addf %581, %584 : vector<16x1xf32>
      %586 = math.rsqrt %585 : vector<16x1xf32>
      %587 = vector.broadcast %586 : vector<16x1xf32> to vector<16x32xf32>
      %588 = arith.mulf %583, %587 : vector<16x32xf32>
      %589 = arith.truncf %588 : vector<16x32xf32> to vector<16x32xbf16>
      %cst_162 = arith.constant dense<0.000000e+00> : vector<64x16xf32>
      %590 = tpu.matmul %567, %589, %cst_162 {dimension_numbers = #tpu.dot_dimension_numbers<[1], [1], [0], [0], [0, 0, 1, 0], [], []>} : vector<64x32xbf16>, vector<16x32xbf16>, vector<64x16xf32> -> vector<64x16xf32>
      %591 = vector.broadcast %568 : vector<64x1xf32> to vector<64x16xf32>
      %592 = arith.addf %590, %591 : vector<64x16xf32>
      %c0_163 = arith.constant 0 : index
      %c0_164 = arith.constant 0 : index
      %c0_165 = arith.constant 0 : index
      %593 = vector.load %arg13[%c0_163, %c0_164, %c0_165] : memref<4x64x16xf32, #tpu.memory_space<vmem>>, vector<1x64x16xf32>
      %594 = vector.shape_cast %593 : vector<1x64x16xf32> to vector<64x16xf32>
      %595 = vector.shape_cast %592 : vector<64x16xf32> to vector<1x64x16xf32>
      tpu.vector_store %arg13[%c0_163, %c0_164, %c0_165], %595 {strides = array<i32>} : memref<4x64x16xf32, #tpu.memory_space<vmem>>, vector<1x64x16xf32>,
      %c1_166 = arith.constant 1 : index
      %c0_167 = arith.constant 0 : index
      %c0_168 = arith.constant 0 : index
      %596 = vector.load %arg2[%c1_166, %c0_167, %c0_168] : memref<4x16x32xf32, #tpu.memory_space<vmem>>, vector<1x16x32xf32>
      %597 = vector.shape_cast %596 : vector<1x16x32xf32> to vector<16x32xf32>
      %cst_169 = arith.constant dense<0.000000e+00> : vector<16xf32>
      %598 = vector.multi_reduction <add>, %597, %cst_169 [1] : vector<16x32xf32> to vector<16xf32>
      %599 = vector.shape_cast %598 : vector<16xf32> to vector<16x1xf32>
      %cst_170 = arith.constant 3.200000e+01 : f32
      %600 = vector.broadcast %cst_170 : f32 to vector<16x1xf32>
      %601 = arith.divf %599, %600 : vector<16x1xf32>
      %602 = vector.broadcast %601 : vector<16x1xf32> to vector<16x32xf32>
      %603 = arith.subf %597, %602 : vector<16x32xf32>
      %604 = arith.mulf %603, %603 : vector<16x32xf32>
      %cst_171 = arith.constant dense<0.000000e+00> : vector<16xf32>
      %605 = vector.multi_reduction <add>, %604, %cst_171 [1] : vector<16x32xf32> to vector<16xf32>
      %606 = vector.shape_cast %605 : vector<16xf32> to vector<16x1xf32>
      %cst_172 = arith.constant 3.200000e+01 : f32
      %607 = vector.broadcast %cst_172 : f32 to vector<16x1xf32>
      %608 = arith.divf %606, %607 : vector<16x1xf32>
      %609 = vector.broadcast %601 : vector<16x1xf32> to vector<16x32xf32>
      %610 = arith.subf %597, %609 : vector<16x32xf32>
      %cst_173 = arith.constant 9.99999974E-6 : f32
      %611 = vector.broadcast %cst_173 : f32 to vector<16x1xf32>
      %612 = arith.addf %608, %611 : vector<16x1xf32>
      %613 = math.rsqrt %612 : vector<16x1xf32>
      %614 = vector.broadcast %613 : vector<16x1xf32> to vector<16x32xf32>
      %615 = arith.mulf %610, %614 : vector<16x32xf32>
      %616 = arith.truncf %615 : vector<16x32xf32> to vector<16x32xbf16>
      %cst_174 = arith.constant dense<0.000000e+00> : vector<64x16xf32>
      %617 = tpu.matmul %567, %616, %cst_174 {dimension_numbers = #tpu.dot_dimension_numbers<[1], [1], [0], [0], [0, 0, 1, 0], [], []>} : vector<64x32xbf16>, vector<16x32xbf16>, vector<64x16xf32> -> vector<64x16xf32>
      %618 = vector.broadcast %568 : vector<64x1xf32> to vector<64x16xf32>
      %619 = arith.addf %617, %618 : vector<64x16xf32>
      %c1_175 = arith.constant 1 : index
      %c0_176 = arith.constant 0 : index
      %c0_177 = arith.constant 0 : index
      %620 = vector.load %arg13[%c1_175, %c0_176, %c0_177] : memref<4x64x16xf32, #tpu.memory_space<vmem>>, vector<1x64x16xf32>
      %621 = vector.shape_cast %620 : vector<1x64x16xf32> to vector<64x16xf32>
      %622 = vector.shape_cast %619 : vector<64x16xf32> to vector<1x64x16xf32>
      tpu.vector_store %arg13[%c1_175, %c0_176, %c0_177], %622 {strides = array<i32>} : memref<4x64x16xf32, #tpu.memory_space<vmem>>, vector<1x64x16xf32>,
      %c2_178 = arith.constant 2 : index
      %c0_179 = arith.constant 0 : index
      %c0_180 = arith.constant 0 : index
      %623 = vector.load %arg2[%c2_178, %c0_179, %c0_180] : memref<4x16x32xf32, #tpu.memory_space<vmem>>, vector<1x16x32xf32>
      %624 = vector.shape_cast %623 : vector<1x16x32xf32> to vector<16x32xf32>
      %cst_181 = arith.constant dense<0.000000e+00> : vector<16xf32>
      %625 = vector.multi_reduction <add>, %624, %cst_181 [1] : vector<16x32xf32> to vector<16xf32>
      %626 = vector.shape_cast %625 : vector<16xf32> to vector<16x1xf32>
      %cst_182 = arith.constant 3.200000e+01 : f32
      %627 = vector.broadcast %cst_182 : f32 to vector<16x1xf32>
      %628 = arith.divf %626, %627 : vector<16x1xf32>
      %629 = vector.broadcast %628 : vector<16x1xf32> to vector<16x32xf32>
      %630 = arith.subf %624, %629 : vector<16x32xf32>
      %631 = arith.mulf %630, %630 : vector<16x32xf32>
      %cst_183 = arith.constant dense<0.000000e+00> : vector<16xf32>
      %632 = vector.multi_reduction <add>, %631, %cst_183 [1] : vector<16x32xf32> to vector<16xf32>
      %633 = vector.shape_cast %632 : vector<16xf32> to vector<16x1xf32>
      %cst_184 = arith.constant 3.200000e+01 : f32
      %634 = vector.broadcast %cst_184 : f32 to vector<16x1xf32>
      %635 = arith.divf %633, %634 : vector<16x1xf32>
      %636 = vector.broadcast %628 : vector<16x1xf32> to vector<16x32xf32>
      %637 = arith.subf %624, %636 : vector<16x32xf32>
      %cst_185 = arith.constant 9.99999974E-6 : f32
      %638 = vector.broadcast %cst_185 : f32 to vector<16x1xf32>
      %639 = arith.addf %635, %638 : vector<16x1xf32>
      %640 = math.rsqrt %639 : vector<16x1xf32>
      %641 = vector.broadcast %640 : vector<16x1xf32> to vector<16x32xf32>
      %642 = arith.mulf %637, %641 : vector<16x32xf32>
      %643 = arith.truncf %642 : vector<16x32xf32> to vector<16x32xbf16>
      %cst_186 = arith.constant dense<0.000000e+00> : vector<64x16xf32>
      %644 = tpu.matmul %567, %643, %cst_186 {dimension_numbers = #tpu.dot_dimension_numbers<[1], [1], [0], [0], [0, 0, 1, 0], [], []>} : vector<64x32xbf16>, vector<16x32xbf16>, vector<64x16xf32> -> vector<64x16xf32>
      %645 = vector.broadcast %568 : vector<64x1xf32> to vector<64x16xf32>
      %646 = arith.addf %644, %645 : vector<64x16xf32>
      %c2_187 = arith.constant 2 : index
      %c0_188 = arith.constant 0 : index
      %c0_189 = arith.constant 0 : index
      %647 = vector.load %arg13[%c2_187, %c0_188, %c0_189] : memref<4x64x16xf32, #tpu.memory_space<vmem>>, vector<1x64x16xf32>
      %648 = vector.shape_cast %647 : vector<1x64x16xf32> to vector<64x16xf32>
      %649 = vector.shape_cast %646 : vector<64x16xf32> to vector<1x64x16xf32>
      tpu.vector_store %arg13[%c2_187, %c0_188, %c0_189], %649 {strides = array<i32>} : memref<4x64x16xf32, #tpu.memory_space<vmem>>, vector<1x64x16xf32>,
      %c3_190 = arith.constant 3 : index
      %c0_191 = arith.constant 0 : index
      %c0_192 = arith.constant 0 : index
      %650 = vector.load %arg2[%c3_190, %c0_191, %c0_192] : memref<4x16x32xf32, #tpu.memory_space<vmem>>, vector<1x16x32xf32>
      %651 = vector.shape_cast %650 : vector<1x16x32xf32> to vector<16x32xf32>
      %cst_193 = arith.constant dense<0.000000e+00> : vector<16xf32>
      %652 = vector.multi_reduction <add>, %651, %cst_193 [1] : vector<16x32xf32> to vector<16xf32>
      %653 = vector.shape_cast %652 : vector<16xf32> to vector<16x1xf32>
      %cst_194 = arith.constant 3.200000e+01 : f32
      %654 = vector.broadcast %cst_194 : f32 to vector<16x1xf32>
      %655 = arith.divf %653, %654 : vector<16x1xf32>
      %656 = vector.broadcast %655 : vector<16x1xf32> to vector<16x32xf32>
      %657 = arith.subf %651, %656 : vector<16x32xf32>
      %658 = arith.mulf %657, %657 : vector<16x32xf32>
      %cst_195 = arith.constant dense<0.000000e+00> : vector<16xf32>
      %659 = vector.multi_reduction <add>, %658, %cst_195 [1] : vector<16x32xf32> to vector<16xf32>
      %660 = vector.shape_cast %659 : vector<16xf32> to vector<16x1xf32>
      %cst_196 = arith.constant 3.200000e+01 : f32
      %661 = vector.broadcast %cst_196 : f32 to vector<16x1xf32>
      %662 = arith.divf %660, %661 : vector<16x1xf32>
      %663 = vector.broadcast %655 : vector<16x1xf32> to vector<16x32xf32>
      %664 = arith.subf %651, %663 : vector<16x32xf32>
      %cst_197 = arith.constant 9.99999974E-6 : f32
      %665 = vector.broadcast %cst_197 : f32 to vector<16x1xf32>
      %666 = arith.addf %662, %665 : vector<16x1xf32>
      %667 = math.rsqrt %666 : vector<16x1xf32>
      %668 = vector.broadcast %667 : vector<16x1xf32> to vector<16x32xf32>
      %669 = arith.mulf %664, %668 : vector<16x32xf32>
      %670 = arith.truncf %669 : vector<16x32xf32> to vector<16x32xbf16>
      %cst_198 = arith.constant dense<0.000000e+00> : vector<64x16xf32>
      %671 = tpu.matmul %567, %670, %cst_198 {dimension_numbers = #tpu.dot_dimension_numbers<[1], [1], [0], [0], [0, 0, 1, 0], [], []>} : vector<64x32xbf16>, vector<16x32xbf16>, vector<64x16xf32> -> vector<64x16xf32>
      %672 = vector.broadcast %568 : vector<64x1xf32> to vector<64x16xf32>
      %673 = arith.addf %671, %672 : vector<64x16xf32>
      %c3_199 = arith.constant 3 : index
      %c0_200 = arith.constant 0 : index
      %c0_201 = arith.constant 0 : index
      %674 = vector.load %arg13[%c3_199, %c0_200, %c0_201] : memref<4x64x16xf32, #tpu.memory_space<vmem>>, vector<1x64x16xf32>
      %675 = vector.shape_cast %674 : vector<1x64x16xf32> to vector<64x16xf32>
      %676 = vector.shape_cast %673 : vector<64x16xf32> to vector<1x64x16xf32>
      tpu.vector_store %arg13[%c3_199, %c0_200, %c0_201], %676 {strides = array<i32>} : memref<4x64x16xf32, #tpu.memory_space<vmem>>, vector<1x64x16xf32>,
    } else {
    }
    %c0 = arith.constant 0 : index
    %c0_1 = arith.constant 0 : index
    %c0_2 = arith.constant 0 : index
    %3 = vector.load %arg4[%c0, %c0_1, %c0_2] : memref<8x16x16xf32, #tpu.memory_space<vmem>>, vector<8x16x16xf32>
    %cst = arith.constant dense<0.000000e+00> : vector<8x16xf32>
    %4 = vector.multi_reduction <add>, %3, %cst [2] : vector<8x16x16xf32> to vector<8x16xf32>
    %5 = vector.shape_cast %4 : vector<8x16xf32> to vector<8x16x1xf32>
    %cst_3 = arith.constant 1.600000e+01 : f32
    %6 = vector.broadcast %cst_3 : f32 to vector<8x16x1xf32>
    %7 = arith.divf %5, %6 : vector<8x16x1xf32>
    %8 = vector.broadcast %7 : vector<8x16x1xf32> to vector<8x16x16xf32>
    %9 = arith.subf %3, %8 : vector<8x16x16xf32>
    %10 = arith.mulf %9, %9 : vector<8x16x16xf32>
    %cst_4 = arith.constant dense<0.000000e+00> : vector<8x16xf32>
    %11 = vector.multi_reduction <add>, %10, %cst_4 [2] : vector<8x16x16xf32> to vector<8x16xf32>
    %12 = vector.shape_cast %11 : vector<8x16xf32> to vector<8x16x1xf32>
    %cst_5 = arith.constant 1.600000e+01 : f32
    %13 = vector.broadcast %cst_5 : f32 to vector<8x16x1xf32>
    %14 = arith.divf %12, %13 : vector<8x16x1xf32>
    %15 = vector.broadcast %7 : vector<8x16x1xf32> to vector<8x16x16xf32>
    %16 = arith.subf %3, %15 : vector<8x16x16xf32>
    %cst_6 = arith.constant 9.99999974E-6 : f32
    %17 = vector.broadcast %cst_6 : f32 to vector<8x16x1xf32>
    %18 = arith.addf %14, %17 : vector<8x16x1xf32>
    %19 = math.rsqrt %18 : vector<8x16x1xf32>
    %20 = vector.broadcast %19 : vector<8x16x1xf32> to vector<8x16x16xf32>
    %21 = arith.mulf %16, %20 : vector<8x16x16xf32>
    %c0_7 = arith.constant 0 : index
    %c0_8 = arith.constant 0 : index
    %22 = vector.load %arg9[%c0_7, %c0_8] : memref<8x16xf32, #tpu.memory_space<vmem>>, vector<8x16xf32>
    %23 = vector.shape_cast %22 : vector<8x16xf32> to vector<1x8x16xf32>
    %24 = vector.shape_cast %23 : vector<1x8x16xf32> to vector<1x8x16xf32>
    %25 = vector.broadcast %24 : vector<1x8x16xf32> to vector<8x8x16xf32>
    %cst_9 = arith.constant dense<0.000000e+00> : vector<8x8x16xf32>
    %26 = tpu.matmul %25, %21, %cst_9 {dimension_numbers = #tpu.dot_dimension_numbers<[2], [2], [1], [1], [0, 0, 0, 1, 1, 1], [0], [0]>} : vector<8x8x16xf32>, vector<8x16x16xf32>, vector<8x8x16xf32> -> vector<8x8x16xf32>
    %c0_10 = arith.constant 0 : index
    %c0_11 = arith.constant 0 : index
    %c0_12 = arith.constant 0 : index
    %27 = vector.load %arg10[%c0_10, %c0_11, %c0_12] : memref<1x8x1xf32, #tpu.memory_space<vmem>>, vector<1x8x1xf32>
    %28 = vector.broadcast %27 : vector<1x8x1xf32> to vector<8x8x16xf32>
    %29 = arith.addf %26, %28 : vector<8x8x16xf32>
    %cst_13 = arith.constant dense<0xFF800000> : vector<8x8xf32>
    %30 = vector.multi_reduction <maximumf>, %29, %cst_13 [2] : vector<8x8x16xf32> to vector<8x8xf32>
    %31 = vector.shape_cast %30 : vector<8x8xf32> to vector<8x8x1xf32>
    %32 = vector.broadcast %31 : vector<8x8x1xf32> to vector<8x8x16xf32>
    %33 = arith.subf %29, %32 : vector<8x8x16xf32>
    %34 = math.exp %33 : vector<8x8x16xf32>
    %cst_14 = arith.constant dense<0.000000e+00> : vector<8x8xf32>
    %35 = vector.multi_reduction <add>, %34, %cst_14 [2] : vector<8x8x16xf32> to vector<8x8xf32>
    %36 = vector.shape_cast %35 : vector<8x8xf32> to vector<8x8x1xf32>
    %37 = tpu.reciprocal %36 {approx = true} : vector<8x8x1xf32> -> vector<8x8x1xf32>
    %38 = vector.broadcast %37 : vector<8x8x1xf32> to vector<8x8x16xf32>
    %39 = arith.mulf %34, %38 : vector<8x8x16xf32>
    %c0_15 = arith.constant 0 : index
    %c0_16 = arith.constant 0 : index
    %40 = vector.load %arg11[%c0_15, %c0_16] : memref<64x32xbf16, #tpu.memory_space<vmem>>, vector<64x32xbf16>
    %c0_17 = arith.constant 0 : index
    %c0_18 = arith.constant 0 : index
    %41 = vector.load %arg7[%c0_17, %c0_18] : memref<32x64xbf16, #tpu.memory_space<vmem>>, vector<32x64xbf16>
    %c0_19 = arith.constant 0 : index
    %c0_20 = arith.constant 0 : index
    %42 = vector.load %arg8[%c0_19, %c0_20] : memref<1x64xf32, #tpu.memory_space<vmem>>, vector<1x64xf32>
    %c0_21 = arith.constant 0 : index
    %c0_22 = arith.constant 0 : index
    %c0_23 = arith.constant 0 : index
    %43 = vector.load %arg3[%c0_21, %c0_22, %c0_23] : memref<4x8x32xf32, #tpu.memory_space<vmem>>, vector<1x8x32xf32>
    %44 = vector.shape_cast %43 : vector<1x8x32xf32> to vector<8x32xf32>
    %cst_24 = arith.constant dense<0.000000e+00> : vector<8xf32>
    %45 = vector.multi_reduction <add>, %44, %cst_24 [1] : vector<8x32xf32> to vector<8xf32>
    %46 = vector.shape_cast %45 : vector<8xf32> to vector<8x1xf32>
    %cst_25 = arith.constant 3.200000e+01 : f32
    %47 = vector.broadcast %cst_25 : f32 to vector<8x1xf32>
    %48 = arith.divf %46, %47 : vector<8x1xf32>
    %49 = vector.broadcast %48 : vector<8x1xf32> to vector<8x32xf32>
    %50 = arith.subf %44, %49 : vector<8x32xf32>
    %51 = arith.mulf %50, %50 : vector<8x32xf32>
    %cst_26 = arith.constant dense<0.000000e+00> : vector<8xf32>
    %52 = vector.multi_reduction <add>, %51, %cst_26 [1] : vector<8x32xf32> to vector<8xf32>
    %53 = vector.shape_cast %52 : vector<8xf32> to vector<8x1xf32>
    %cst_27 = arith.constant 3.200000e+01 : f32
    %54 = vector.broadcast %cst_27 : f32 to vector<8x1xf32>
    %55 = arith.divf %53, %54 : vector<8x1xf32>
    %56 = vector.broadcast %48 : vector<8x1xf32> to vector<8x32xf32>
    %57 = arith.subf %44, %56 : vector<8x32xf32>
    %cst_28 = arith.constant 9.99999974E-6 : f32
    %58 = vector.broadcast %cst_28 : f32 to vector<8x1xf32>
    %59 = arith.addf %55, %58 : vector<8x1xf32>
    %60 = math.rsqrt %59 : vector<8x1xf32>
    %61 = vector.broadcast %60 : vector<8x1xf32> to vector<8x32xf32>
    %62 = arith.mulf %57, %61 : vector<8x32xf32>
    %63 = arith.truncf %62 : vector<8x32xf32> to vector<8x32xbf16>
    %cst_29 = arith.constant dense<0.000000e+00> : vector<8x64xf32>
    %64 = tpu.matmul %63, %41, %cst_29 {dimension_numbers = #tpu.dot_dimension_numbers<[1], [0], [0], [1], [0, 0, 1, 1], [], []>} : vector<8x32xbf16>, vector<32x64xbf16>, vector<8x64xf32> -> vector<8x64xf32>
    %65 = vector.broadcast %42 : vector<1x64xf32> to vector<8x64xf32>
    %66 = arith.addf %64, %65 : vector<8x64xf32>
    %67 = arith.negf %66 : vector<8x64xf32>
    %68 = math.exp %67 : vector<8x64xf32>
    %cst_30 = arith.constant 1.000000e+00 : f32
    %69 = vector.broadcast %cst_30 : f32 to vector<8x64xf32>
    %70 = arith.addf %69, %68 : vector<8x64xf32>
    %71 = arith.divf %69, %70 : vector<8x64xf32>
    %c0_31 = arith.constant 0 : index
    %c0_32 = arith.constant 0 : index
    %c0_33 = arith.constant 0 : index
    %72 = vector.load %arg13[%c0_31, %c0_32, %c0_33] : memref<4x64x16xf32, #tpu.memory_space<vmem>>, vector<1x64x16xf32>
    %73 = vector.shape_cast %72 : vector<1x64x16xf32> to vector<64x16xf32>
    %cst_34 = arith.constant 0.000000e+00 : f32
    %74 = vector.broadcast %cst_34 : f32 to vector<8x32xf32>
    %75 = vector.extract_strided_slice %39 {offsets = [0, 0, 0], sizes = [8, 1, 16], strides = [1, 1, 1]} : vector<8x8x16xf32> to vector<8x1x16xf32>
    %76 = vector.shape_cast %75 : vector<8x1x16xf32> to vector<8x16xf32>
    %77 = arith.truncf %76 : vector<8x16xf32> to vector<8x16xbf16>
    %78 = vector.extract_strided_slice %73 {offsets = [0, 0], sizes = [8, 16], strides = [1, 1]} : vector<64x16xf32> to vector<8x16xf32>
    %79 = arith.truncf %78 : vector<8x16xf32> to vector<8x16xbf16>
    %cst_35 = arith.constant dense<0.000000e+00> : vector<8x8xf32>
    %80 = tpu.matmul %77, %79, %cst_35 {dimension_numbers = #tpu.dot_dimension_numbers<[1], [1], [0], [0], [0, 0, 1, 0], [], []>} : vector<8x16xbf16>, vector<8x16xbf16>, vector<8x8xf32> -> vector<8x8xf32>
    %81 = vector.extract_strided_slice %71 {offsets = [0, 0], sizes = [8, 8], strides = [1, 1]} : vector<8x64xf32> to vector<8x8xf32>
    %82 = arith.mulf %81, %80 : vector<8x8xf32>
    %83 = arith.truncf %82 : vector<8x8xf32> to vector<8x8xbf16>
    %84 = vector.extract_strided_slice %40 {offsets = [0, 0], sizes = [8, 32], strides = [1, 1]} : vector<64x32xbf16> to vector<8x32xbf16>
    %cst_36 = arith.constant dense<0.000000e+00> : vector<8x32xf32>
    %85 = tpu.matmul %83, %84, %cst_36 {dimension_numbers = #tpu.dot_dimension_numbers<[1], [0], [0], [1], [0, 0, 1, 1], [], []>} : vector<8x8xbf16>, vector<8x32xbf16>, vector<8x32xf32> -> vector<8x32xf32>
    %86 = arith.addf %74, %85 : vector<8x32xf32>
    %87 = vector.extract_strided_slice %39 {offsets = [0, 1, 0], sizes = [8, 1, 16], strides = [1, 1, 1]} : vector<8x8x16xf32> to vector<8x1x16xf32>
    %88 = vector.shape_cast %87 : vector<8x1x16xf32> to vector<8x16xf32>
    %89 = arith.truncf %88 : vector<8x16xf32> to vector<8x16xbf16>
    %90 = vector.extract_strided_slice %73 {offsets = [8, 0], sizes = [8, 16], strides = [1, 1]} : vector<64x16xf32> to vector<8x16xf32>
    %91 = arith.truncf %90 : vector<8x16xf32> to vector<8x16xbf16>
    %cst_37 = arith.constant dense<0.000000e+00> : vector<8x8xf32>
    %92 = tpu.matmul %89, %91, %cst_37 {dimension_numbers = #tpu.dot_dimension_numbers<[1], [1], [0], [0], [0, 0, 1, 0], [], []>} : vector<8x16xbf16>, vector<8x16xbf16>, vector<8x8xf32> -> vector<8x8xf32>
    %93 = vector.extract_strided_slice %71 {offsets = [0, 8], sizes = [8, 8], strides = [1, 1]} : vector<8x64xf32> to vector<8x8xf32>
    %94 = arith.mulf %93, %92 : vector<8x8xf32>
    %95 = arith.truncf %94 : vector<8x8xf32> to vector<8x8xbf16>
    %96 = vector.extract_strided_slice %40 {offsets = [8, 0], sizes = [8, 32], strides = [1, 1]} : vector<64x32xbf16> to vector<8x32xbf16>
    %cst_38 = arith.constant dense<0.000000e+00> : vector<8x32xf32>
    %97 = tpu.matmul %95, %96, %cst_38 {dimension_numbers = #tpu.dot_dimension_numbers<[1], [0], [0], [1], [0, 0, 1, 1], [], []>} : vector<8x8xbf16>, vector<8x32xbf16>, vector<8x32xf32> -> vector<8x32xf32>
    %98 = arith.addf %86, %97 : vector<8x32xf32>
    %99 = vector.extract_strided_slice %39 {offsets = [0, 2, 0], sizes = [8, 1, 16], strides = [1, 1, 1]} : vector<8x8x16xf32> to vector<8x1x16xf32>
    %100 = vector.shape_cast %99 : vector<8x1x16xf32> to vector<8x16xf32>
    %101 = arith.truncf %100 : vector<8x16xf32> to vector<8x16xbf16>
    %102 = vector.extract_strided_slice %73 {offsets = [16, 0], sizes = [8, 16], strides = [1, 1]} : vector<64x16xf32> to vector<8x16xf32>
    %103 = arith.truncf %102 : vector<8x16xf32> to vector<8x16xbf16>
    %cst_39 = arith.constant dense<0.000000e+00> : vector<8x8xf32>
    %104 = tpu.matmul %101, %103, %cst_39 {dimension_numbers = #tpu.dot_dimension_numbers<[1], [1], [0], [0], [0, 0, 1, 0], [], []>} : vector<8x16xbf16>, vector<8x16xbf16>, vector<8x8xf32> -> vector<8x8xf32>
    %105 = vector.extract_strided_slice %71 {offsets = [0, 16], sizes = [8, 8], strides = [1, 1]} : vector<8x64xf32> to vector<8x8xf32>
    %106 = arith.mulf %105, %104 : vector<8x8xf32>
    %107 = arith.truncf %106 : vector<8x8xf32> to vector<8x8xbf16>
    %108 = vector.extract_strided_slice %40 {offsets = [16, 0], sizes = [8, 32], strides = [1, 1]} : vector<64x32xbf16> to vector<8x32xbf16>
    %cst_40 = arith.constant dense<0.000000e+00> : vector<8x32xf32>
    %109 = tpu.matmul %107, %108, %cst_40 {dimension_numbers = #tpu.dot_dimension_numbers<[1], [0], [0], [1], [0, 0, 1, 1], [], []>} : vector<8x8xbf16>, vector<8x32xbf16>, vector<8x32xf32> -> vector<8x32xf32>
    %110 = arith.addf %98, %109 : vector<8x32xf32>
    %111 = vector.extract_strided_slice %39 {offsets = [0, 3, 0], sizes = [8, 1, 16], strides = [1, 1, 1]} : vector<8x8x16xf32> to vector<8x1x16xf32>
    %112 = vector.shape_cast %111 : vector<8x1x16xf32> to vector<8x16xf32>
    %113 = arith.truncf %112 : vector<8x16xf32> to vector<8x16xbf16>
    %114 = vector.extract_strided_slice %73 {offsets = [24, 0], sizes = [8, 16], strides = [1, 1]} : vector<64x16xf32> to vector<8x16xf32>
    %115 = arith.truncf %114 : vector<8x16xf32> to vector<8x16xbf16>
    %cst_41 = arith.constant dense<0.000000e+00> : vector<8x8xf32>
    %116 = tpu.matmul %113, %115, %cst_41 {dimension_numbers = #tpu.dot_dimension_numbers<[1], [1], [0], [0], [0, 0, 1, 0], [], []>} : vector<8x16xbf16>, vector<8x16xbf16>, vector<8x8xf32> -> vector<8x8xf32>
    %117 = vector.extract_strided_slice %71 {offsets = [0, 24], sizes = [8, 8], strides = [1, 1]} : vector<8x64xf32> to vector<8x8xf32>
    %118 = arith.mulf %117, %116 : vector<8x8xf32>
    %119 = arith.truncf %118 : vector<8x8xf32> to vector<8x8xbf16>
    %120 = vector.extract_strided_slice %40 {offsets = [24, 0], sizes = [8, 32], strides = [1, 1]} : vector<64x32xbf16> to vector<8x32xbf16>
    %cst_42 = arith.constant dense<0.000000e+00> : vector<8x32xf32>
    %121 = tpu.matmul %119, %120, %cst_42 {dimension_numbers = #tpu.dot_dimension_numbers<[1], [0], [0], [1], [0, 0, 1, 1], [], []>} : vector<8x8xbf16>, vector<8x32xbf16>, vector<8x32xf32> -> vector<8x32xf32>
    %122 = arith.addf %110, %121 : vector<8x32xf32>
    %123 = vector.extract_strided_slice %39 {offsets = [0, 4, 0], sizes = [8, 1, 16], strides = [1, 1, 1]} : vector<8x8x16xf32> to vector<8x1x16xf32>
    %124 = vector.shape_cast %123 : vector<8x1x16xf32> to vector<8x16xf32>
    %125 = arith.truncf %124 : vector<8x16xf32> to vector<8x16xbf16>
    %126 = vector.extract_strided_slice %73 {offsets = [32, 0], sizes = [8, 16], strides = [1, 1]} : vector<64x16xf32> to vector<8x16xf32>
    %127 = arith.truncf %126 : vector<8x16xf32> to vector<8x16xbf16>
    %cst_43 = arith.constant dense<0.000000e+00> : vector<8x8xf32>
    %128 = tpu.matmul %125, %127, %cst_43 {dimension_numbers = #tpu.dot_dimension_numbers<[1], [1], [0], [0], [0, 0, 1, 0], [], []>} : vector<8x16xbf16>, vector<8x16xbf16>, vector<8x8xf32> -> vector<8x8xf32>
    %129 = vector.extract_strided_slice %71 {offsets = [0, 32], sizes = [8, 8], strides = [1, 1]} : vector<8x64xf32> to vector<8x8xf32>
    %130 = arith.mulf %129, %128 : vector<8x8xf32>
    %131 = arith.truncf %130 : vector<8x8xf32> to vector<8x8xbf16>
    %132 = vector.extract_strided_slice %40 {offsets = [32, 0], sizes = [8, 32], strides = [1, 1]} : vector<64x32xbf16> to vector<8x32xbf16>
    %cst_44 = arith.constant dense<0.000000e+00> : vector<8x32xf32>
    %133 = tpu.matmul %131, %132, %cst_44 {dimension_numbers = #tpu.dot_dimension_numbers<[1], [0], [0], [1], [0, 0, 1, 1], [], []>} : vector<8x8xbf16>, vector<8x32xbf16>, vector<8x32xf32> -> vector<8x32xf32>
    %134 = arith.addf %122, %133 : vector<8x32xf32>
    %135 = vector.extract_strided_slice %39 {offsets = [0, 5, 0], sizes = [8, 1, 16], strides = [1, 1, 1]} : vector<8x8x16xf32> to vector<8x1x16xf32>
    %136 = vector.shape_cast %135 : vector<8x1x16xf32> to vector<8x16xf32>
    %137 = arith.truncf %136 : vector<8x16xf32> to vector<8x16xbf16>
    %138 = vector.extract_strided_slice %73 {offsets = [40, 0], sizes = [8, 16], strides = [1, 1]} : vector<64x16xf32> to vector<8x16xf32>
    %139 = arith.truncf %138 : vector<8x16xf32> to vector<8x16xbf16>
    %cst_45 = arith.constant dense<0.000000e+00> : vector<8x8xf32>
    %140 = tpu.matmul %137, %139, %cst_45 {dimension_numbers = #tpu.dot_dimension_numbers<[1], [1], [0], [0], [0, 0, 1, 0], [], []>} : vector<8x16xbf16>, vector<8x16xbf16>, vector<8x8xf32> -> vector<8x8xf32>
    %141 = vector.extract_strided_slice %71 {offsets = [0, 40], sizes = [8, 8], strides = [1, 1]} : vector<8x64xf32> to vector<8x8xf32>
    %142 = arith.mulf %141, %140 : vector<8x8xf32>
    %143 = arith.truncf %142 : vector<8x8xf32> to vector<8x8xbf16>
    %144 = vector.extract_strided_slice %40 {offsets = [40, 0], sizes = [8, 32], strides = [1, 1]} : vector<64x32xbf16> to vector<8x32xbf16>
    %cst_46 = arith.constant dense<0.000000e+00> : vector<8x32xf32>
    %145 = tpu.matmul %143, %144, %cst_46 {dimension_numbers = #tpu.dot_dimension_numbers<[1], [0], [0], [1], [0, 0, 1, 1], [], []>} : vector<8x8xbf16>, vector<8x32xbf16>, vector<8x32xf32> -> vector<8x32xf32>
    %146 = arith.addf %134, %145 : vector<8x32xf32>
    %147 = vector.extract_strided_slice %39 {offsets = [0, 6, 0], sizes = [8, 1, 16], strides = [1, 1, 1]} : vector<8x8x16xf32> to vector<8x1x16xf32>
    %148 = vector.shape_cast %147 : vector<8x1x16xf32> to vector<8x16xf32>
    %149 = arith.truncf %148 : vector<8x16xf32> to vector<8x16xbf16>
    %150 = vector.extract_strided_slice %73 {offsets = [48, 0], sizes = [8, 16], strides = [1, 1]} : vector<64x16xf32> to vector<8x16xf32>
    %151 = arith.truncf %150 : vector<8x16xf32> to vector<8x16xbf16>
    %cst_47 = arith.constant dense<0.000000e+00> : vector<8x8xf32>
    %152 = tpu.matmul %149, %151, %cst_47 {dimension_numbers = #tpu.dot_dimension_numbers<[1], [1], [0], [0], [0, 0, 1, 0], [], []>} : vector<8x16xbf16>, vector<8x16xbf16>, vector<8x8xf32> -> vector<8x8xf32>
    %153 = vector.extract_strided_slice %71 {offsets = [0, 48], sizes = [8, 8], strides = [1, 1]} : vector<8x64xf32> to vector<8x8xf32>
    %154 = arith.mulf %153, %152 : vector<8x8xf32>
    %155 = arith.truncf %154 : vector<8x8xf32> to vector<8x8xbf16>
    %156 = vector.extract_strided_slice %40 {offsets = [48, 0], sizes = [8, 32], strides = [1, 1]} : vector<64x32xbf16> to vector<8x32xbf16>
    %cst_48 = arith.constant dense<0.000000e+00> : vector<8x32xf32>
    %157 = tpu.matmul %155, %156, %cst_48 {dimension_numbers = #tpu.dot_dimension_numbers<[1], [0], [0], [1], [0, 0, 1, 1], [], []>} : vector<8x8xbf16>, vector<8x32xbf16>, vector<8x32xf32> -> vector<8x32xf32>
    %158 = arith.addf %146, %157 : vector<8x32xf32>
    %159 = vector.extract_strided_slice %39 {offsets = [0, 7, 0], sizes = [8, 1, 16], strides = [1, 1, 1]} : vector<8x8x16xf32> to vector<8x1x16xf32>
    %160 = vector.shape_cast %159 : vector<8x1x16xf32> to vector<8x16xf32>
    %161 = arith.truncf %160 : vector<8x16xf32> to vector<8x16xbf16>
    %162 = vector.extract_strided_slice %73 {offsets = [56, 0], sizes = [8, 16], strides = [1, 1]} : vector<64x16xf32> to vector<8x16xf32>
    %163 = arith.truncf %162 : vector<8x16xf32> to vector<8x16xbf16>
    %cst_49 = arith.constant dense<0.000000e+00> : vector<8x8xf32>
    %164 = tpu.matmul %161, %163, %cst_49 {dimension_numbers = #tpu.dot_dimension_numbers<[1], [1], [0], [0], [0, 0, 1, 0], [], []>} : vector<8x16xbf16>, vector<8x16xbf16>, vector<8x8xf32> -> vector<8x8xf32>
    %165 = vector.extract_strided_slice %71 {offsets = [0, 56], sizes = [8, 8], strides = [1, 1]} : vector<8x64xf32> to vector<8x8xf32>
    %166 = arith.mulf %165, %164 : vector<8x8xf32>
    %167 = arith.truncf %166 : vector<8x8xf32> to vector<8x8xbf16>
    %168 = vector.extract_strided_slice %40 {offsets = [56, 0], sizes = [8, 32], strides = [1, 1]} : vector<64x32xbf16> to vector<8x32xbf16>
    %cst_50 = arith.constant dense<0.000000e+00> : vector<8x32xf32>
    %169 = tpu.matmul %167, %168, %cst_50 {dimension_numbers = #tpu.dot_dimension_numbers<[1], [0], [0], [1], [0, 0, 1, 1], [], []>} : vector<8x8xbf16>, vector<8x32xbf16>, vector<8x32xf32> -> vector<8x32xf32>
    %170 = arith.addf %158, %169 : vector<8x32xf32>
    %c0_51 = arith.constant 0 : index
    %c0_52 = arith.constant 0 : index
    %c0_53 = arith.constant 0 : index
    %171 = vector.load %arg12[%c0_51, %c0_52, %c0_53] : memref<4x8x32xf32, #tpu.memory_space<vmem>>, vector<1x8x32xf32>
    %172 = vector.shape_cast %171 : vector<1x8x32xf32> to vector<8x32xf32>
    %173 = vector.shape_cast %170 : vector<8x32xf32> to vector<1x8x32xf32>
    tpu.vector_store %arg12[%c0_51, %c0_52, %c0_53], %173 {strides = array<i32>} : memref<4x8x32xf32, #tpu.memory_space<vmem>>, vector<1x8x32xf32>,
    %c1 = arith.constant 1 : index
    %c0_54 = arith.constant 0 : index
    %c0_55 = arith.constant 0 : index
    %174 = vector.load %arg3[%c1, %c0_54, %c0_55] : memref<4x8x32xf32, #tpu.memory_space<vmem>>, vector<1x8x32xf32>
    %175 = vector.shape_cast %174 : vector<1x8x32xf32> to vector<8x32xf32>
    %cst_56 = arith.constant dense<0.000000e+00> : vector<8xf32>
    %176 = vector.multi_reduction <add>, %175, %cst_56 [1] : vector<8x32xf32> to vector<8xf32>
    %177 = vector.shape_cast %176 : vector<8xf32> to vector<8x1xf32>
    %cst_57 = arith.constant 3.200000e+01 : f32
    %178 = vector.broadcast %cst_57 : f32 to vector<8x1xf32>
    %179 = arith.divf %177, %178 : vector<8x1xf32>
    %180 = vector.broadcast %179 : vector<8x1xf32> to vector<8x32xf32>
    %181 = arith.subf %175, %180 : vector<8x32xf32>
    %182 = arith.mulf %181, %181 : vector<8x32xf32>
    %cst_58 = arith.constant dense<0.000000e+00> : vector<8xf32>
    %183 = vector.multi_reduction <add>, %182, %cst_58 [1] : vector<8x32xf32> to vector<8xf32>
    %184 = vector.shape_cast %183 : vector<8xf32> to vector<8x1xf32>
    %cst_59 = arith.constant 3.200000e+01 : f32
    %185 = vector.broadcast %cst_59 : f32 to vector<8x1xf32>
    %186 = arith.divf %184, %185 : vector<8x1xf32>
    %187 = vector.broadcast %179 : vector<8x1xf32> to vector<8x32xf32>
    %188 = arith.subf %175, %187 : vector<8x32xf32>
    %cst_60 = arith.constant 9.99999974E-6 : f32
    %189 = vector.broadcast %cst_60 : f32 to vector<8x1xf32>
    %190 = arith.addf %186, %189 : vector<8x1xf32>
    %191 = math.rsqrt %190 : vector<8x1xf32>
    %192 = vector.broadcast %191 : vector<8x1xf32> to vector<8x32xf32>
    %193 = arith.mulf %188, %192 : vector<8x32xf32>
    %194 = arith.truncf %193 : vector<8x32xf32> to vector<8x32xbf16>
    %cst_61 = arith.constant dense<0.000000e+00> : vector<8x64xf32>
    %195 = tpu.matmul %194, %41, %cst_61 {dimension_numbers = #tpu.dot_dimension_numbers<[1], [0], [0], [1], [0, 0, 1, 1], [], []>} : vector<8x32xbf16>, vector<32x64xbf16>, vector<8x64xf32> -> vector<8x64xf32>
    %196 = vector.broadcast %42 : vector<1x64xf32> to vector<8x64xf32>
    %197 = arith.addf %195, %196 : vector<8x64xf32>
    %198 = arith.negf %197 : vector<8x64xf32>
    %199 = math.exp %198 : vector<8x64xf32>
    %cst_62 = arith.constant 1.000000e+00 : f32
    %200 = vector.broadcast %cst_62 : f32 to vector<8x64xf32>
    %201 = arith.addf %200, %199 : vector<8x64xf32>
    %202 = arith.divf %200, %201 : vector<8x64xf32>
    %c1_63 = arith.constant 1 : index
    %c0_64 = arith.constant 0 : index
    %c0_65 = arith.constant 0 : index
    %203 = vector.load %arg13[%c1_63, %c0_64, %c0_65] : memref<4x64x16xf32, #tpu.memory_space<vmem>>, vector<1x64x16xf32>
    %204 = vector.shape_cast %203 : vector<1x64x16xf32> to vector<64x16xf32>
    %cst_66 = arith.constant 0.000000e+00 : f32
    %205 = vector.broadcast %cst_66 : f32 to vector<8x32xf32>
    %206 = vector.extract_strided_slice %39 {offsets = [0, 0, 0], sizes = [8, 1, 16], strides = [1, 1, 1]} : vector<8x8x16xf32> to vector<8x1x16xf32>
    %207 = vector.shape_cast %206 : vector<8x1x16xf32> to vector<8x16xf32>
    %208 = arith.truncf %207 : vector<8x16xf32> to vector<8x16xbf16>
    %209 = vector.extract_strided_slice %204 {offsets = [0, 0], sizes = [8, 16], strides = [1, 1]} : vector<64x16xf32> to vector<8x16xf32>
    %210 = arith.truncf %209 : vector<8x16xf32> to vector<8x16xbf16>
    %cst_67 = arith.constant dense<0.000000e+00> : vector<8x8xf32>
    %211 = tpu.matmul %208, %210, %cst_67 {dimension_numbers = #tpu.dot_dimension_numbers<[1], [1], [0], [0], [0, 0, 1, 0], [], []>} : vector<8x16xbf16>, vector<8x16xbf16>, vector<8x8xf32> -> vector<8x8xf32>
    %212 = vector.extract_strided_slice %202 {offsets = [0, 0], sizes = [8, 8], strides = [1, 1]} : vector<8x64xf32> to vector<8x8xf32>
    %213 = arith.mulf %212, %211 : vector<8x8xf32>
    %214 = arith.truncf %213 : vector<8x8xf32> to vector<8x8xbf16>
    %215 = vector.extract_strided_slice %40 {offsets = [0, 0], sizes = [8, 32], strides = [1, 1]} : vector<64x32xbf16> to vector<8x32xbf16>
    %cst_68 = arith.constant dense<0.000000e+00> : vector<8x32xf32>
    %216 = tpu.matmul %214, %215, %cst_68 {dimension_numbers = #tpu.dot_dimension_numbers<[1], [0], [0], [1], [0, 0, 1, 1], [], []>} : vector<8x8xbf16>, vector<8x32xbf16>, vector<8x32xf32> -> vector<8x32xf32>
    %217 = arith.addf %205, %216 : vector<8x32xf32>
    %218 = vector.extract_strided_slice %39 {offsets = [0, 1, 0], sizes = [8, 1, 16], strides = [1, 1, 1]} : vector<8x8x16xf32> to vector<8x1x16xf32>
    %219 = vector.shape_cast %218 : vector<8x1x16xf32> to vector<8x16xf32>
    %220 = arith.truncf %219 : vector<8x16xf32> to vector<8x16xbf16>
    %221 = vector.extract_strided_slice %204 {offsets = [8, 0], sizes = [8, 16], strides = [1, 1]} : vector<64x16xf32> to vector<8x16xf32>
    %222 = arith.truncf %221 : vector<8x16xf32> to vector<8x16xbf16>
    %cst_69 = arith.constant dense<0.000000e+00> : vector<8x8xf32>
    %223 = tpu.matmul %220, %222, %cst_69 {dimension_numbers = #tpu.dot_dimension_numbers<[1], [1], [0], [0], [0, 0, 1, 0], [], []>} : vector<8x16xbf16>, vector<8x16xbf16>, vector<8x8xf32> -> vector<8x8xf32>
    %224 = vector.extract_strided_slice %202 {offsets = [0, 8], sizes = [8, 8], strides = [1, 1]} : vector<8x64xf32> to vector<8x8xf32>
    %225 = arith.mulf %224, %223 : vector<8x8xf32>
    %226 = arith.truncf %225 : vector<8x8xf32> to vector<8x8xbf16>
    %227 = vector.extract_strided_slice %40 {offsets = [8, 0], sizes = [8, 32], strides = [1, 1]} : vector<64x32xbf16> to vector<8x32xbf16>
    %cst_70 = arith.constant dense<0.000000e+00> : vector<8x32xf32>
    %228 = tpu.matmul %226, %227, %cst_70 {dimension_numbers = #tpu.dot_dimension_numbers<[1], [0], [0], [1], [0, 0, 1, 1], [], []>} : vector<8x8xbf16>, vector<8x32xbf16>, vector<8x32xf32> -> vector<8x32xf32>
    %229 = arith.addf %217, %228 : vector<8x32xf32>
    %230 = vector.extract_strided_slice %39 {offsets = [0, 2, 0], sizes = [8, 1, 16], strides = [1, 1, 1]} : vector<8x8x16xf32> to vector<8x1x16xf32>
    %231 = vector.shape_cast %230 : vector<8x1x16xf32> to vector<8x16xf32>
    %232 = arith.truncf %231 : vector<8x16xf32> to vector<8x16xbf16>
    %233 = vector.extract_strided_slice %204 {offsets = [16, 0], sizes = [8, 16], strides = [1, 1]} : vector<64x16xf32> to vector<8x16xf32>
    %234 = arith.truncf %233 : vector<8x16xf32> to vector<8x16xbf16>
    %cst_71 = arith.constant dense<0.000000e+00> : vector<8x8xf32>
    %235 = tpu.matmul %232, %234, %cst_71 {dimension_numbers = #tpu.dot_dimension_numbers<[1], [1], [0], [0], [0, 0, 1, 0], [], []>} : vector<8x16xbf16>, vector<8x16xbf16>, vector<8x8xf32> -> vector<8x8xf32>
    %236 = vector.extract_strided_slice %202 {offsets = [0, 16], sizes = [8, 8], strides = [1, 1]} : vector<8x64xf32> to vector<8x8xf32>
    %237 = arith.mulf %236, %235 : vector<8x8xf32>
    %238 = arith.truncf %237 : vector<8x8xf32> to vector<8x8xbf16>
    %239 = vector.extract_strided_slice %40 {offsets = [16, 0], sizes = [8, 32], strides = [1, 1]} : vector<64x32xbf16> to vector<8x32xbf16>
    %cst_72 = arith.constant dense<0.000000e+00> : vector<8x32xf32>
    %240 = tpu.matmul %238, %239, %cst_72 {dimension_numbers = #tpu.dot_dimension_numbers<[1], [0], [0], [1], [0, 0, 1, 1], [], []>} : vector<8x8xbf16>, vector<8x32xbf16>, vector<8x32xf32> -> vector<8x32xf32>
    %241 = arith.addf %229, %240 : vector<8x32xf32>
    %242 = vector.extract_strided_slice %39 {offsets = [0, 3, 0], sizes = [8, 1, 16], strides = [1, 1, 1]} : vector<8x8x16xf32> to vector<8x1x16xf32>
    %243 = vector.shape_cast %242 : vector<8x1x16xf32> to vector<8x16xf32>
    %244 = arith.truncf %243 : vector<8x16xf32> to vector<8x16xbf16>
    %245 = vector.extract_strided_slice %204 {offsets = [24, 0], sizes = [8, 16], strides = [1, 1]} : vector<64x16xf32> to vector<8x16xf32>
    %246 = arith.truncf %245 : vector<8x16xf32> to vector<8x16xbf16>
    %cst_73 = arith.constant dense<0.000000e+00> : vector<8x8xf32>
    %247 = tpu.matmul %244, %246, %cst_73 {dimension_numbers = #tpu.dot_dimension_numbers<[1], [1], [0], [0], [0, 0, 1, 0], [], []>} : vector<8x16xbf16>, vector<8x16xbf16>, vector<8x8xf32> -> vector<8x8xf32>
    %248 = vector.extract_strided_slice %202 {offsets = [0, 24], sizes = [8, 8], strides = [1, 1]} : vector<8x64xf32> to vector<8x8xf32>
    %249 = arith.mulf %248, %247 : vector<8x8xf32>
    %250 = arith.truncf %249 : vector<8x8xf32> to vector<8x8xbf16>
    %251 = vector.extract_strided_slice %40 {offsets = [24, 0], sizes = [8, 32], strides = [1, 1]} : vector<64x32xbf16> to vector<8x32xbf16>
    %cst_74 = arith.constant dense<0.000000e+00> : vector<8x32xf32>
    %252 = tpu.matmul %250, %251, %cst_74 {dimension_numbers = #tpu.dot_dimension_numbers<[1], [0], [0], [1], [0, 0, 1, 1], [], []>} : vector<8x8xbf16>, vector<8x32xbf16>, vector<8x32xf32> -> vector<8x32xf32>
    %253 = arith.addf %241, %252 : vector<8x32xf32>
    %254 = vector.extract_strided_slice %39 {offsets = [0, 4, 0], sizes = [8, 1, 16], strides = [1, 1, 1]} : vector<8x8x16xf32> to vector<8x1x16xf32>
    %255 = vector.shape_cast %254 : vector<8x1x16xf32> to vector<8x16xf32>
    %256 = arith.truncf %255 : vector<8x16xf32> to vector<8x16xbf16>
    %257 = vector.extract_strided_slice %204 {offsets = [32, 0], sizes = [8, 16], strides = [1, 1]} : vector<64x16xf32> to vector<8x16xf32>
    %258 = arith.truncf %257 : vector<8x16xf32> to vector<8x16xbf16>
    %cst_75 = arith.constant dense<0.000000e+00> : vector<8x8xf32>
    %259 = tpu.matmul %256, %258, %cst_75 {dimension_numbers = #tpu.dot_dimension_numbers<[1], [1], [0], [0], [0, 0, 1, 0], [], []>} : vector<8x16xbf16>, vector<8x16xbf16>, vector<8x8xf32> -> vector<8x8xf32>
    %260 = vector.extract_strided_slice %202 {offsets = [0, 32], sizes = [8, 8], strides = [1, 1]} : vector<8x64xf32> to vector<8x8xf32>
    %261 = arith.mulf %260, %259 : vector<8x8xf32>
    %262 = arith.truncf %261 : vector<8x8xf32> to vector<8x8xbf16>
    %263 = vector.extract_strided_slice %40 {offsets = [32, 0], sizes = [8, 32], strides = [1, 1]} : vector<64x32xbf16> to vector<8x32xbf16>
    %cst_76 = arith.constant dense<0.000000e+00> : vector<8x32xf32>
    %264 = tpu.matmul %262, %263, %cst_76 {dimension_numbers = #tpu.dot_dimension_numbers<[1], [0], [0], [1], [0, 0, 1, 1], [], []>} : vector<8x8xbf16>, vector<8x32xbf16>, vector<8x32xf32> -> vector<8x32xf32>
    %265 = arith.addf %253, %264 : vector<8x32xf32>
    %266 = vector.extract_strided_slice %39 {offsets = [0, 5, 0], sizes = [8, 1, 16], strides = [1, 1, 1]} : vector<8x8x16xf32> to vector<8x1x16xf32>
    %267 = vector.shape_cast %266 : vector<8x1x16xf32> to vector<8x16xf32>
    %268 = arith.truncf %267 : vector<8x16xf32> to vector<8x16xbf16>
    %269 = vector.extract_strided_slice %204 {offsets = [40, 0], sizes = [8, 16], strides = [1, 1]} : vector<64x16xf32> to vector<8x16xf32>
    %270 = arith.truncf %269 : vector<8x16xf32> to vector<8x16xbf16>
    %cst_77 = arith.constant dense<0.000000e+00> : vector<8x8xf32>
    %271 = tpu.matmul %268, %270, %cst_77 {dimension_numbers = #tpu.dot_dimension_numbers<[1], [1], [0], [0], [0, 0, 1, 0], [], []>} : vector<8x16xbf16>, vector<8x16xbf16>, vector<8x8xf32> -> vector<8x8xf32>
    %272 = vector.extract_strided_slice %202 {offsets = [0, 40], sizes = [8, 8], strides = [1, 1]} : vector<8x64xf32> to vector<8x8xf32>
    %273 = arith.mulf %272, %271 : vector<8x8xf32>
    %274 = arith.truncf %273 : vector<8x8xf32> to vector<8x8xbf16>
    %275 = vector.extract_strided_slice %40 {offsets = [40, 0], sizes = [8, 32], strides = [1, 1]} : vector<64x32xbf16> to vector<8x32xbf16>
    %cst_78 = arith.constant dense<0.000000e+00> : vector<8x32xf32>
    %276 = tpu.matmul %274, %275, %cst_78 {dimension_numbers = #tpu.dot_dimension_numbers<[1], [0], [0], [1], [0, 0, 1, 1], [], []>} : vector<8x8xbf16>, vector<8x32xbf16>, vector<8x32xf32> -> vector<8x32xf32>
    %277 = arith.addf %265, %276 : vector<8x32xf32>
    %278 = vector.extract_strided_slice %39 {offsets = [0, 6, 0], sizes = [8, 1, 16], strides = [1, 1, 1]} : vector<8x8x16xf32> to vector<8x1x16xf32>
    %279 = vector.shape_cast %278 : vector<8x1x16xf32> to vector<8x16xf32>
    %280 = arith.truncf %279 : vector<8x16xf32> to vector<8x16xbf16>
    %281 = vector.extract_strided_slice %204 {offsets = [48, 0], sizes = [8, 16], strides = [1, 1]} : vector<64x16xf32> to vector<8x16xf32>
    %282 = arith.truncf %281 : vector<8x16xf32> to vector<8x16xbf16>
    %cst_79 = arith.constant dense<0.000000e+00> : vector<8x8xf32>
    %283 = tpu.matmul %280, %282, %cst_79 {dimension_numbers = #tpu.dot_dimension_numbers<[1], [1], [0], [0], [0, 0, 1, 0], [], []>} : vector<8x16xbf16>, vector<8x16xbf16>, vector<8x8xf32> -> vector<8x8xf32>
    %284 = vector.extract_strided_slice %202 {offsets = [0, 48], sizes = [8, 8], strides = [1, 1]} : vector<8x64xf32> to vector<8x8xf32>
    %285 = arith.mulf %284, %283 : vector<8x8xf32>
    %286 = arith.truncf %285 : vector<8x8xf32> to vector<8x8xbf16>
    %287 = vector.extract_strided_slice %40 {offsets = [48, 0], sizes = [8, 32], strides = [1, 1]} : vector<64x32xbf16> to vector<8x32xbf16>
    %cst_80 = arith.constant dense<0.000000e+00> : vector<8x32xf32>
    %288 = tpu.matmul %286, %287, %cst_80 {dimension_numbers = #tpu.dot_dimension_numbers<[1], [0], [0], [1], [0, 0, 1, 1], [], []>} : vector<8x8xbf16>, vector<8x32xbf16>, vector<8x32xf32> -> vector<8x32xf32>
    %289 = arith.addf %277, %288 : vector<8x32xf32>
    %290 = vector.extract_strided_slice %39 {offsets = [0, 7, 0], sizes = [8, 1, 16], strides = [1, 1, 1]} : vector<8x8x16xf32> to vector<8x1x16xf32>
    %291 = vector.shape_cast %290 : vector<8x1x16xf32> to vector<8x16xf32>
    %292 = arith.truncf %291 : vector<8x16xf32> to vector<8x16xbf16>
    %293 = vector.extract_strided_slice %204 {offsets = [56, 0], sizes = [8, 16], strides = [1, 1]} : vector<64x16xf32> to vector<8x16xf32>
    %294 = arith.truncf %293 : vector<8x16xf32> to vector<8x16xbf16>
    %cst_81 = arith.constant dense<0.000000e+00> : vector<8x8xf32>
    %295 = tpu.matmul %292, %294, %cst_81 {dimension_numbers = #tpu.dot_dimension_numbers<[1], [1], [0], [0], [0, 0, 1, 0], [], []>} : vector<8x16xbf16>, vector<8x16xbf16>, vector<8x8xf32> -> vector<8x8xf32>
    %296 = vector.extract_strided_slice %202 {offsets = [0, 56], sizes = [8, 8], strides = [1, 1]} : vector<8x64xf32> to vector<8x8xf32>
    %297 = arith.mulf %296, %295 : vector<8x8xf32>
    %298 = arith.truncf %297 : vector<8x8xf32> to vector<8x8xbf16>
    %299 = vector.extract_strided_slice %40 {offsets = [56, 0], sizes = [8, 32], strides = [1, 1]} : vector<64x32xbf16> to vector<8x32xbf16>
    %cst_82 = arith.constant dense<0.000000e+00> : vector<8x32xf32>
    %300 = tpu.matmul %298, %299, %cst_82 {dimension_numbers = #tpu.dot_dimension_numbers<[1], [0], [0], [1], [0, 0, 1, 1], [], []>} : vector<8x8xbf16>, vector<8x32xbf16>, vector<8x32xf32> -> vector<8x32xf32>
    %301 = arith.addf %289, %300 : vector<8x32xf32>
    %c1_83 = arith.constant 1 : index
    %c0_84 = arith.constant 0 : index
    %c0_85 = arith.constant 0 : index
    %302 = vector.load %arg12[%c1_83, %c0_84, %c0_85] : memref<4x8x32xf32, #tpu.memory_space<vmem>>, vector<1x8x32xf32>
    %303 = vector.shape_cast %302 : vector<1x8x32xf32> to vector<8x32xf32>
    %304 = vector.shape_cast %301 : vector<8x32xf32> to vector<1x8x32xf32>
    tpu.vector_store %arg12[%c1_83, %c0_84, %c0_85], %304 {strides = array<i32>} : memref<4x8x32xf32, #tpu.memory_space<vmem>>, vector<1x8x32xf32>,
    %c2 = arith.constant 2 : index
    %c0_86 = arith.constant 0 : index
    %c0_87 = arith.constant 0 : index
    %305 = vector.load %arg3[%c2, %c0_86, %c0_87] : memref<4x8x32xf32, #tpu.memory_space<vmem>>, vector<1x8x32xf32>
    %306 = vector.shape_cast %305 : vector<1x8x32xf32> to vector<8x32xf32>
    %cst_88 = arith.constant dense<0.000000e+00> : vector<8xf32>
    %307 = vector.multi_reduction <add>, %306, %cst_88 [1] : vector<8x32xf32> to vector<8xf32>
    %308 = vector.shape_cast %307 : vector<8xf32> to vector<8x1xf32>
    %cst_89 = arith.constant 3.200000e+01 : f32
    %309 = vector.broadcast %cst_89 : f32 to vector<8x1xf32>
    %310 = arith.divf %308, %309 : vector<8x1xf32>
    %311 = vector.broadcast %310 : vector<8x1xf32> to vector<8x32xf32>
    %312 = arith.subf %306, %311 : vector<8x32xf32>
    %313 = arith.mulf %312, %312 : vector<8x32xf32>
    %cst_90 = arith.constant dense<0.000000e+00> : vector<8xf32>
    %314 = vector.multi_reduction <add>, %313, %cst_90 [1] : vector<8x32xf32> to vector<8xf32>
    %315 = vector.shape_cast %314 : vector<8xf32> to vector<8x1xf32>
    %cst_91 = arith.constant 3.200000e+01 : f32
    %316 = vector.broadcast %cst_91 : f32 to vector<8x1xf32>
    %317 = arith.divf %315, %316 : vector<8x1xf32>
    %318 = vector.broadcast %310 : vector<8x1xf32> to vector<8x32xf32>
    %319 = arith.subf %306, %318 : vector<8x32xf32>
    %cst_92 = arith.constant 9.99999974E-6 : f32
    %320 = vector.broadcast %cst_92 : f32 to vector<8x1xf32>
    %321 = arith.addf %317, %320 : vector<8x1xf32>
    %322 = math.rsqrt %321 : vector<8x1xf32>
    %323 = vector.broadcast %322 : vector<8x1xf32> to vector<8x32xf32>
    %324 = arith.mulf %319, %323 : vector<8x32xf32>
    %325 = arith.truncf %324 : vector<8x32xf32> to vector<8x32xbf16>
    %cst_93 = arith.constant dense<0.000000e+00> : vector<8x64xf32>
    %326 = tpu.matmul %325, %41, %cst_93 {dimension_numbers = #tpu.dot_dimension_numbers<[1], [0], [0], [1], [0, 0, 1, 1], [], []>} : vector<8x32xbf16>, vector<32x64xbf16>, vector<8x64xf32> -> vector<8x64xf32>
    %327 = vector.broadcast %42 : vector<1x64xf32> to vector<8x64xf32>
    %328 = arith.addf %326, %327 : vector<8x64xf32>
    %329 = arith.negf %328 : vector<8x64xf32>
    %330 = math.exp %329 : vector<8x64xf32>
    %cst_94 = arith.constant 1.000000e+00 : f32
    %331 = vector.broadcast %cst_94 : f32 to vector<8x64xf32>
    %332 = arith.addf %331, %330 : vector<8x64xf32>
    %333 = arith.divf %331, %332 : vector<8x64xf32>
    %c2_95 = arith.constant 2 : index
    %c0_96 = arith.constant 0 : index
    %c0_97 = arith.constant 0 : index
    %334 = vector.load %arg13[%c2_95, %c0_96, %c0_97] : memref<4x64x16xf32, #tpu.memory_space<vmem>>, vector<1x64x16xf32>
    %335 = vector.shape_cast %334 : vector<1x64x16xf32> to vector<64x16xf32>
    %cst_98 = arith.constant 0.000000e+00 : f32
    %336 = vector.broadcast %cst_98 : f32 to vector<8x32xf32>
    %337 = vector.extract_strided_slice %39 {offsets = [0, 0, 0], sizes = [8, 1, 16], strides = [1, 1, 1]} : vector<8x8x16xf32> to vector<8x1x16xf32>
    %338 = vector.shape_cast %337 : vector<8x1x16xf32> to vector<8x16xf32>
    %339 = arith.truncf %338 : vector<8x16xf32> to vector<8x16xbf16>
    %340 = vector.extract_strided_slice %335 {offsets = [0, 0], sizes = [8, 16], strides = [1, 1]} : vector<64x16xf32> to vector<8x16xf32>
    %341 = arith.truncf %340 : vector<8x16xf32> to vector<8x16xbf16>
    %cst_99 = arith.constant dense<0.000000e+00> : vector<8x8xf32>
    %342 = tpu.matmul %339, %341, %cst_99 {dimension_numbers = #tpu.dot_dimension_numbers<[1], [1], [0], [0], [0, 0, 1, 0], [], []>} : vector<8x16xbf16>, vector<8x16xbf16>, vector<8x8xf32> -> vector<8x8xf32>
    %343 = vector.extract_strided_slice %333 {offsets = [0, 0], sizes = [8, 8], strides = [1, 1]} : vector<8x64xf32> to vector<8x8xf32>
    %344 = arith.mulf %343, %342 : vector<8x8xf32>
    %345 = arith.truncf %344 : vector<8x8xf32> to vector<8x8xbf16>
    %346 = vector.extract_strided_slice %40 {offsets = [0, 0], sizes = [8, 32], strides = [1, 1]} : vector<64x32xbf16> to vector<8x32xbf16>
    %cst_100 = arith.constant dense<0.000000e+00> : vector<8x32xf32>
    %347 = tpu.matmul %345, %346, %cst_100 {dimension_numbers = #tpu.dot_dimension_numbers<[1], [0], [0], [1], [0, 0, 1, 1], [], []>} : vector<8x8xbf16>, vector<8x32xbf16>, vector<8x32xf32> -> vector<8x32xf32>
    %348 = arith.addf %336, %347 : vector<8x32xf32>
    %349 = vector.extract_strided_slice %39 {offsets = [0, 1, 0], sizes = [8, 1, 16], strides = [1, 1, 1]} : vector<8x8x16xf32> to vector<8x1x16xf32>
    %350 = vector.shape_cast %349 : vector<8x1x16xf32> to vector<8x16xf32>
    %351 = arith.truncf %350 : vector<8x16xf32> to vector<8x16xbf16>
    %352 = vector.extract_strided_slice %335 {offsets = [8, 0], sizes = [8, 16], strides = [1, 1]} : vector<64x16xf32> to vector<8x16xf32>
    %353 = arith.truncf %352 : vector<8x16xf32> to vector<8x16xbf16>
    %cst_101 = arith.constant dense<0.000000e+00> : vector<8x8xf32>
    %354 = tpu.matmul %351, %353, %cst_101 {dimension_numbers = #tpu.dot_dimension_numbers<[1], [1], [0], [0], [0, 0, 1, 0], [], []>} : vector<8x16xbf16>, vector<8x16xbf16>, vector<8x8xf32> -> vector<8x8xf32>
    %355 = vector.extract_strided_slice %333 {offsets = [0, 8], sizes = [8, 8], strides = [1, 1]} : vector<8x64xf32> to vector<8x8xf32>
    %356 = arith.mulf %355, %354 : vector<8x8xf32>
    %357 = arith.truncf %356 : vector<8x8xf32> to vector<8x8xbf16>
    %358 = vector.extract_strided_slice %40 {offsets = [8, 0], sizes = [8, 32], strides = [1, 1]} : vector<64x32xbf16> to vector<8x32xbf16>
    %cst_102 = arith.constant dense<0.000000e+00> : vector<8x32xf32>
    %359 = tpu.matmul %357, %358, %cst_102 {dimension_numbers = #tpu.dot_dimension_numbers<[1], [0], [0], [1], [0, 0, 1, 1], [], []>} : vector<8x8xbf16>, vector<8x32xbf16>, vector<8x32xf32> -> vector<8x32xf32>
    %360 = arith.addf %348, %359 : vector<8x32xf32>
    %361 = vector.extract_strided_slice %39 {offsets = [0, 2, 0], sizes = [8, 1, 16], strides = [1, 1, 1]} : vector<8x8x16xf32> to vector<8x1x16xf32>
    %362 = vector.shape_cast %361 : vector<8x1x16xf32> to vector<8x16xf32>
    %363 = arith.truncf %362 : vector<8x16xf32> to vector<8x16xbf16>
    %364 = vector.extract_strided_slice %335 {offsets = [16, 0], sizes = [8, 16], strides = [1, 1]} : vector<64x16xf32> to vector<8x16xf32>
    %365 = arith.truncf %364 : vector<8x16xf32> to vector<8x16xbf16>
    %cst_103 = arith.constant dense<0.000000e+00> : vector<8x8xf32>
    %366 = tpu.matmul %363, %365, %cst_103 {dimension_numbers = #tpu.dot_dimension_numbers<[1], [1], [0], [0], [0, 0, 1, 0], [], []>} : vector<8x16xbf16>, vector<8x16xbf16>, vector<8x8xf32> -> vector<8x8xf32>
    %367 = vector.extract_strided_slice %333 {offsets = [0, 16], sizes = [8, 8], strides = [1, 1]} : vector<8x64xf32> to vector<8x8xf32>
    %368 = arith.mulf %367, %366 : vector<8x8xf32>
    %369 = arith.truncf %368 : vector<8x8xf32> to vector<8x8xbf16>
    %370 = vector.extract_strided_slice %40 {offsets = [16, 0], sizes = [8, 32], strides = [1, 1]} : vector<64x32xbf16> to vector<8x32xbf16>
    %cst_104 = arith.constant dense<0.000000e+00> : vector<8x32xf32>
    %371 = tpu.matmul %369, %370, %cst_104 {dimension_numbers = #tpu.dot_dimension_numbers<[1], [0], [0], [1], [0, 0, 1, 1], [], []>} : vector<8x8xbf16>, vector<8x32xbf16>, vector<8x32xf32> -> vector<8x32xf32>
    %372 = arith.addf %360, %371 : vector<8x32xf32>
    %373 = vector.extract_strided_slice %39 {offsets = [0, 3, 0], sizes = [8, 1, 16], strides = [1, 1, 1]} : vector<8x8x16xf32> to vector<8x1x16xf32>
    %374 = vector.shape_cast %373 : vector<8x1x16xf32> to vector<8x16xf32>
    %375 = arith.truncf %374 : vector<8x16xf32> to vector<8x16xbf16>
    %376 = vector.extract_strided_slice %335 {offsets = [24, 0], sizes = [8, 16], strides = [1, 1]} : vector<64x16xf32> to vector<8x16xf32>
    %377 = arith.truncf %376 : vector<8x16xf32> to vector<8x16xbf16>
    %cst_105 = arith.constant dense<0.000000e+00> : vector<8x8xf32>
    %378 = tpu.matmul %375, %377, %cst_105 {dimension_numbers = #tpu.dot_dimension_numbers<[1], [1], [0], [0], [0, 0, 1, 0], [], []>} : vector<8x16xbf16>, vector<8x16xbf16>, vector<8x8xf32> -> vector<8x8xf32>
    %379 = vector.extract_strided_slice %333 {offsets = [0, 24], sizes = [8, 8], strides = [1, 1]} : vector<8x64xf32> to vector<8x8xf32>
    %380 = arith.mulf %379, %378 : vector<8x8xf32>
    %381 = arith.truncf %380 : vector<8x8xf32> to vector<8x8xbf16>
    %382 = vector.extract_strided_slice %40 {offsets = [24, 0], sizes = [8, 32], strides = [1, 1]} : vector<64x32xbf16> to vector<8x32xbf16>
    %cst_106 = arith.constant dense<0.000000e+00> : vector<8x32xf32>
    %383 = tpu.matmul %381, %382, %cst_106 {dimension_numbers = #tpu.dot_dimension_numbers<[1], [0], [0], [1], [0, 0, 1, 1], [], []>} : vector<8x8xbf16>, vector<8x32xbf16>, vector<8x32xf32> -> vector<8x32xf32>
    %384 = arith.addf %372, %383 : vector<8x32xf32>
    %385 = vector.extract_strided_slice %39 {offsets = [0, 4, 0], sizes = [8, 1, 16], strides = [1, 1, 1]} : vector<8x8x16xf32> to vector<8x1x16xf32>
    %386 = vector.shape_cast %385 : vector<8x1x16xf32> to vector<8x16xf32>
    %387 = arith.truncf %386 : vector<8x16xf32> to vector<8x16xbf16>
    %388 = vector.extract_strided_slice %335 {offsets = [32, 0], sizes = [8, 16], strides = [1, 1]} : vector<64x16xf32> to vector<8x16xf32>
    %389 = arith.truncf %388 : vector<8x16xf32> to vector<8x16xbf16>
    %cst_107 = arith.constant dense<0.000000e+00> : vector<8x8xf32>
    %390 = tpu.matmul %387, %389, %cst_107 {dimension_numbers = #tpu.dot_dimension_numbers<[1], [1], [0], [0], [0, 0, 1, 0], [], []>} : vector<8x16xbf16>, vector<8x16xbf16>, vector<8x8xf32> -> vector<8x8xf32>
    %391 = vector.extract_strided_slice %333 {offsets = [0, 32], sizes = [8, 8], strides = [1, 1]} : vector<8x64xf32> to vector<8x8xf32>
    %392 = arith.mulf %391, %390 : vector<8x8xf32>
    %393 = arith.truncf %392 : vector<8x8xf32> to vector<8x8xbf16>
    %394 = vector.extract_strided_slice %40 {offsets = [32, 0], sizes = [8, 32], strides = [1, 1]} : vector<64x32xbf16> to vector<8x32xbf16>
    %cst_108 = arith.constant dense<0.000000e+00> : vector<8x32xf32>
    %395 = tpu.matmul %393, %394, %cst_108 {dimension_numbers = #tpu.dot_dimension_numbers<[1], [0], [0], [1], [0, 0, 1, 1], [], []>} : vector<8x8xbf16>, vector<8x32xbf16>, vector<8x32xf32> -> vector<8x32xf32>
    %396 = arith.addf %384, %395 : vector<8x32xf32>
    %397 = vector.extract_strided_slice %39 {offsets = [0, 5, 0], sizes = [8, 1, 16], strides = [1, 1, 1]} : vector<8x8x16xf32> to vector<8x1x16xf32>
    %398 = vector.shape_cast %397 : vector<8x1x16xf32> to vector<8x16xf32>
    %399 = arith.truncf %398 : vector<8x16xf32> to vector<8x16xbf16>
    %400 = vector.extract_strided_slice %335 {offsets = [40, 0], sizes = [8, 16], strides = [1, 1]} : vector<64x16xf32> to vector<8x16xf32>
    %401 = arith.truncf %400 : vector<8x16xf32> to vector<8x16xbf16>
    %cst_109 = arith.constant dense<0.000000e+00> : vector<8x8xf32>
    %402 = tpu.matmul %399, %401, %cst_109 {dimension_numbers = #tpu.dot_dimension_numbers<[1], [1], [0], [0], [0, 0, 1, 0], [], []>} : vector<8x16xbf16>, vector<8x16xbf16>, vector<8x8xf32> -> vector<8x8xf32>
    %403 = vector.extract_strided_slice %333 {offsets = [0, 40], sizes = [8, 8], strides = [1, 1]} : vector<8x64xf32> to vector<8x8xf32>
    %404 = arith.mulf %403, %402 : vector<8x8xf32>
    %405 = arith.truncf %404 : vector<8x8xf32> to vector<8x8xbf16>
    %406 = vector.extract_strided_slice %40 {offsets = [40, 0], sizes = [8, 32], strides = [1, 1]} : vector<64x32xbf16> to vector<8x32xbf16>
    %cst_110 = arith.constant dense<0.000000e+00> : vector<8x32xf32>
    %407 = tpu.matmul %405, %406, %cst_110 {dimension_numbers = #tpu.dot_dimension_numbers<[1], [0], [0], [1], [0, 0, 1, 1], [], []>} : vector<8x8xbf16>, vector<8x32xbf16>, vector<8x32xf32> -> vector<8x32xf32>
    %408 = arith.addf %396, %407 : vector<8x32xf32>
    %409 = vector.extract_strided_slice %39 {offsets = [0, 6, 0], sizes = [8, 1, 16], strides = [1, 1, 1]} : vector<8x8x16xf32> to vector<8x1x16xf32>
    %410 = vector.shape_cast %409 : vector<8x1x16xf32> to vector<8x16xf32>
    %411 = arith.truncf %410 : vector<8x16xf32> to vector<8x16xbf16>
    %412 = vector.extract_strided_slice %335 {offsets = [48, 0], sizes = [8, 16], strides = [1, 1]} : vector<64x16xf32> to vector<8x16xf32>
    %413 = arith.truncf %412 : vector<8x16xf32> to vector<8x16xbf16>
    %cst_111 = arith.constant dense<0.000000e+00> : vector<8x8xf32>
    %414 = tpu.matmul %411, %413, %cst_111 {dimension_numbers = #tpu.dot_dimension_numbers<[1], [1], [0], [0], [0, 0, 1, 0], [], []>} : vector<8x16xbf16>, vector<8x16xbf16>, vector<8x8xf32> -> vector<8x8xf32>
    %415 = vector.extract_strided_slice %333 {offsets = [0, 48], sizes = [8, 8], strides = [1, 1]} : vector<8x64xf32> to vector<8x8xf32>
    %416 = arith.mulf %415, %414 : vector<8x8xf32>
    %417 = arith.truncf %416 : vector<8x8xf32> to vector<8x8xbf16>
    %418 = vector.extract_strided_slice %40 {offsets = [48, 0], sizes = [8, 32], strides = [1, 1]} : vector<64x32xbf16> to vector<8x32xbf16>
    %cst_112 = arith.constant dense<0.000000e+00> : vector<8x32xf32>
    %419 = tpu.matmul %417, %418, %cst_112 {dimension_numbers = #tpu.dot_dimension_numbers<[1], [0], [0], [1], [0, 0, 1, 1], [], []>} : vector<8x8xbf16>, vector<8x32xbf16>, vector<8x32xf32> -> vector<8x32xf32>
    %420 = arith.addf %408, %419 : vector<8x32xf32>
    %421 = vector.extract_strided_slice %39 {offsets = [0, 7, 0], sizes = [8, 1, 16], strides = [1, 1, 1]} : vector<8x8x16xf32> to vector<8x1x16xf32>
    %422 = vector.shape_cast %421 : vector<8x1x16xf32> to vector<8x16xf32>
    %423 = arith.truncf %422 : vector<8x16xf32> to vector<8x16xbf16>
    %424 = vector.extract_strided_slice %335 {offsets = [56, 0], sizes = [8, 16], strides = [1, 1]} : vector<64x16xf32> to vector<8x16xf32>
    %425 = arith.truncf %424 : vector<8x16xf32> to vector<8x16xbf16>
    %cst_113 = arith.constant dense<0.000000e+00> : vector<8x8xf32>
    %426 = tpu.matmul %423, %425, %cst_113 {dimension_numbers = #tpu.dot_dimension_numbers<[1], [1], [0], [0], [0, 0, 1, 0], [], []>} : vector<8x16xbf16>, vector<8x16xbf16>, vector<8x8xf32> -> vector<8x8xf32>
    %427 = vector.extract_strided_slice %333 {offsets = [0, 56], sizes = [8, 8], strides = [1, 1]} : vector<8x64xf32> to vector<8x8xf32>
    %428 = arith.mulf %427, %426 : vector<8x8xf32>
    %429 = arith.truncf %428 : vector<8x8xf32> to vector<8x8xbf16>
    %430 = vector.extract_strided_slice %40 {offsets = [56, 0], sizes = [8, 32], strides = [1, 1]} : vector<64x32xbf16> to vector<8x32xbf16>
    %cst_114 = arith.constant dense<0.000000e+00> : vector<8x32xf32>
    %431 = tpu.matmul %429, %430, %cst_114 {dimension_numbers = #tpu.dot_dimension_numbers<[1], [0], [0], [1], [0, 0, 1, 1], [], []>} : vector<8x8xbf16>, vector<8x32xbf16>, vector<8x32xf32> -> vector<8x32xf32>
    %432 = arith.addf %420, %431 : vector<8x32xf32>
    %c2_115 = arith.constant 2 : index
    %c0_116 = arith.constant 0 : index
    %c0_117 = arith.constant 0 : index
    %433 = vector.load %arg12[%c2_115, %c0_116, %c0_117] : memref<4x8x32xf32, #tpu.memory_space<vmem>>, vector<1x8x32xf32>
    %434 = vector.shape_cast %433 : vector<1x8x32xf32> to vector<8x32xf32>
    %435 = vector.shape_cast %432 : vector<8x32xf32> to vector<1x8x32xf32>
    tpu.vector_store %arg12[%c2_115, %c0_116, %c0_117], %435 {strides = array<i32>} : memref<4x8x32xf32, #tpu.memory_space<vmem>>, vector<1x8x32xf32>,
    %c3 = arith.constant 3 : index
    %c0_118 = arith.constant 0 : index
    %c0_119 = arith.constant 0 : index
    %436 = vector.load %arg3[%c3, %c0_118, %c0_119] : memref<4x8x32xf32, #tpu.memory_space<vmem>>, vector<1x8x32xf32>
    %437 = vector.shape_cast %436 : vector<1x8x32xf32> to vector<8x32xf32>
    %cst_120 = arith.constant dense<0.000000e+00> : vector<8xf32>
    %438 = vector.multi_reduction <add>, %437, %cst_120 [1] : vector<8x32xf32> to vector<8xf32>
    %439 = vector.shape_cast %438 : vector<8xf32> to vector<8x1xf32>
    %cst_121 = arith.constant 3.200000e+01 : f32
    %440 = vector.broadcast %cst_121 : f32 to vector<8x1xf32>
    %441 = arith.divf %439, %440 : vector<8x1xf32>
    %442 = vector.broadcast %441 : vector<8x1xf32> to vector<8x32xf32>
    %443 = arith.subf %437, %442 : vector<8x32xf32>
    %444 = arith.mulf %443, %443 : vector<8x32xf32>
    %cst_122 = arith.constant dense<0.000000e+00> : vector<8xf32>
    %445 = vector.multi_reduction <add>, %444, %cst_122 [1] : vector<8x32xf32> to vector<8xf32>
    %446 = vector.shape_cast %445 : vector<8xf32> to vector<8x1xf32>
    %cst_123 = arith.constant 3.200000e+01 : f32
    %447 = vector.broadcast %cst_123 : f32 to vector<8x1xf32>
    %448 = arith.divf %446, %447 : vector<8x1xf32>
    %449 = vector.broadcast %441 : vector<8x1xf32> to vector<8x32xf32>
    %450 = arith.subf %437, %449 : vector<8x32xf32>
    %cst_124 = arith.constant 9.99999974E-6 : f32
    %451 = vector.broadcast %cst_124 : f32 to vector<8x1xf32>
    %452 = arith.addf %448, %451 : vector<8x1xf32>
    %453 = math.rsqrt %452 : vector<8x1xf32>
    %454 = vector.broadcast %453 : vector<8x1xf32> to vector<8x32xf32>
    %455 = arith.mulf %450, %454 : vector<8x32xf32>
    %456 = arith.truncf %455 : vector<8x32xf32> to vector<8x32xbf16>
    %cst_125 = arith.constant dense<0.000000e+00> : vector<8x64xf32>
    %457 = tpu.matmul %456, %41, %cst_125 {dimension_numbers = #tpu.dot_dimension_numbers<[1], [0], [0], [1], [0, 0, 1, 1], [], []>} : vector<8x32xbf16>, vector<32x64xbf16>, vector<8x64xf32> -> vector<8x64xf32>
    %458 = vector.broadcast %42 : vector<1x64xf32> to vector<8x64xf32>
    %459 = arith.addf %457, %458 : vector<8x64xf32>
    %460 = arith.negf %459 : vector<8x64xf32>
    %461 = math.exp %460 : vector<8x64xf32>
    %cst_126 = arith.constant 1.000000e+00 : f32
    %462 = vector.broadcast %cst_126 : f32 to vector<8x64xf32>
    %463 = arith.addf %462, %461 : vector<8x64xf32>
    %464 = arith.divf %462, %463 : vector<8x64xf32>
    %c3_127 = arith.constant 3 : index
    %c0_128 = arith.constant 0 : index
    %c0_129 = arith.constant 0 : index
    %465 = vector.load %arg13[%c3_127, %c0_128, %c0_129] : memref<4x64x16xf32, #tpu.memory_space<vmem>>, vector<1x64x16xf32>
    %466 = vector.shape_cast %465 : vector<1x64x16xf32> to vector<64x16xf32>
    %cst_130 = arith.constant 0.000000e+00 : f32
    %467 = vector.broadcast %cst_130 : f32 to vector<8x32xf32>
    %468 = vector.extract_strided_slice %39 {offsets = [0, 0, 0], sizes = [8, 1, 16], strides = [1, 1, 1]} : vector<8x8x16xf32> to vector<8x1x16xf32>
    %469 = vector.shape_cast %468 : vector<8x1x16xf32> to vector<8x16xf32>
    %470 = arith.truncf %469 : vector<8x16xf32> to vector<8x16xbf16>
    %471 = vector.extract_strided_slice %466 {offsets = [0, 0], sizes = [8, 16], strides = [1, 1]} : vector<64x16xf32> to vector<8x16xf32>
    %472 = arith.truncf %471 : vector<8x16xf32> to vector<8x16xbf16>
    %cst_131 = arith.constant dense<0.000000e+00> : vector<8x8xf32>
    %473 = tpu.matmul %470, %472, %cst_131 {dimension_numbers = #tpu.dot_dimension_numbers<[1], [1], [0], [0], [0, 0, 1, 0], [], []>} : vector<8x16xbf16>, vector<8x16xbf16>, vector<8x8xf32> -> vector<8x8xf32>
    %474 = vector.extract_strided_slice %464 {offsets = [0, 0], sizes = [8, 8], strides = [1, 1]} : vector<8x64xf32> to vector<8x8xf32>
    %475 = arith.mulf %474, %473 : vector<8x8xf32>
    %476 = arith.truncf %475 : vector<8x8xf32> to vector<8x8xbf16>
    %477 = vector.extract_strided_slice %40 {offsets = [0, 0], sizes = [8, 32], strides = [1, 1]} : vector<64x32xbf16> to vector<8x32xbf16>
    %cst_132 = arith.constant dense<0.000000e+00> : vector<8x32xf32>
    %478 = tpu.matmul %476, %477, %cst_132 {dimension_numbers = #tpu.dot_dimension_numbers<[1], [0], [0], [1], [0, 0, 1, 1], [], []>} : vector<8x8xbf16>, vector<8x32xbf16>, vector<8x32xf32> -> vector<8x32xf32>
    %479 = arith.addf %467, %478 : vector<8x32xf32>
    %480 = vector.extract_strided_slice %39 {offsets = [0, 1, 0], sizes = [8, 1, 16], strides = [1, 1, 1]} : vector<8x8x16xf32> to vector<8x1x16xf32>
    %481 = vector.shape_cast %480 : vector<8x1x16xf32> to vector<8x16xf32>
    %482 = arith.truncf %481 : vector<8x16xf32> to vector<8x16xbf16>
    %483 = vector.extract_strided_slice %466 {offsets = [8, 0], sizes = [8, 16], strides = [1, 1]} : vector<64x16xf32> to vector<8x16xf32>
    %484 = arith.truncf %483 : vector<8x16xf32> to vector<8x16xbf16>
    %cst_133 = arith.constant dense<0.000000e+00> : vector<8x8xf32>
    %485 = tpu.matmul %482, %484, %cst_133 {dimension_numbers = #tpu.dot_dimension_numbers<[1], [1], [0], [0], [0, 0, 1, 0], [], []>} : vector<8x16xbf16>, vector<8x16xbf16>, vector<8x8xf32> -> vector<8x8xf32>
    %486 = vector.extract_strided_slice %464 {offsets = [0, 8], sizes = [8, 8], strides = [1, 1]} : vector<8x64xf32> to vector<8x8xf32>
    %487 = arith.mulf %486, %485 : vector<8x8xf32>
    %488 = arith.truncf %487 : vector<8x8xf32> to vector<8x8xbf16>
    %489 = vector.extract_strided_slice %40 {offsets = [8, 0], sizes = [8, 32], strides = [1, 1]} : vector<64x32xbf16> to vector<8x32xbf16>
    %cst_134 = arith.constant dense<0.000000e+00> : vector<8x32xf32>
    %490 = tpu.matmul %488, %489, %cst_134 {dimension_numbers = #tpu.dot_dimension_numbers<[1], [0], [0], [1], [0, 0, 1, 1], [], []>} : vector<8x8xbf16>, vector<8x32xbf16>, vector<8x32xf32> -> vector<8x32xf32>
    %491 = arith.addf %479, %490 : vector<8x32xf32>
    %492 = vector.extract_strided_slice %39 {offsets = [0, 2, 0], sizes = [8, 1, 16], strides = [1, 1, 1]} : vector<8x8x16xf32> to vector<8x1x16xf32>
    %493 = vector.shape_cast %492 : vector<8x1x16xf32> to vector<8x16xf32>
    %494 = arith.truncf %493 : vector<8x16xf32> to vector<8x16xbf16>
    %495 = vector.extract_strided_slice %466 {offsets = [16, 0], sizes = [8, 16], strides = [1, 1]} : vector<64x16xf32> to vector<8x16xf32>
    %496 = arith.truncf %495 : vector<8x16xf32> to vector<8x16xbf16>
    %cst_135 = arith.constant dense<0.000000e+00> : vector<8x8xf32>
    %497 = tpu.matmul %494, %496, %cst_135 {dimension_numbers = #tpu.dot_dimension_numbers<[1], [1], [0], [0], [0, 0, 1, 0], [], []>} : vector<8x16xbf16>, vector<8x16xbf16>, vector<8x8xf32> -> vector<8x8xf32>
    %498 = vector.extract_strided_slice %464 {offsets = [0, 16], sizes = [8, 8], strides = [1, 1]} : vector<8x64xf32> to vector<8x8xf32>
    %499 = arith.mulf %498, %497 : vector<8x8xf32>
    %500 = arith.truncf %499 : vector<8x8xf32> to vector<8x8xbf16>
    %501 = vector.extract_strided_slice %40 {offsets = [16, 0], sizes = [8, 32], strides = [1, 1]} : vector<64x32xbf16> to vector<8x32xbf16>
    %cst_136 = arith.constant dense<0.000000e+00> : vector<8x32xf32>
    %502 = tpu.matmul %500, %501, %cst_136 {dimension_numbers = #tpu.dot_dimension_numbers<[1], [0], [0], [1], [0, 0, 1, 1], [], []>} : vector<8x8xbf16>, vector<8x32xbf16>, vector<8x32xf32> -> vector<8x32xf32>
    %503 = arith.addf %491, %502 : vector<8x32xf32>
    %504 = vector.extract_strided_slice %39 {offsets = [0, 3, 0], sizes = [8, 1, 16], strides = [1, 1, 1]} : vector<8x8x16xf32> to vector<8x1x16xf32>
    %505 = vector.shape_cast %504 : vector<8x1x16xf32> to vector<8x16xf32>
    %506 = arith.truncf %505 : vector<8x16xf32> to vector<8x16xbf16>
    %507 = vector.extract_strided_slice %466 {offsets = [24, 0], sizes = [8, 16], strides = [1, 1]} : vector<64x16xf32> to vector<8x16xf32>
    %508 = arith.truncf %507 : vector<8x16xf32> to vector<8x16xbf16>
    %cst_137 = arith.constant dense<0.000000e+00> : vector<8x8xf32>
    %509 = tpu.matmul %506, %508, %cst_137 {dimension_numbers = #tpu.dot_dimension_numbers<[1], [1], [0], [0], [0, 0, 1, 0], [], []>} : vector<8x16xbf16>, vector<8x16xbf16>, vector<8x8xf32> -> vector<8x8xf32>
    %510 = vector.extract_strided_slice %464 {offsets = [0, 24], sizes = [8, 8], strides = [1, 1]} : vector<8x64xf32> to vector<8x8xf32>
    %511 = arith.mulf %510, %509 : vector<8x8xf32>
    %512 = arith.truncf %511 : vector<8x8xf32> to vector<8x8xbf16>
    %513 = vector.extract_strided_slice %40 {offsets = [24, 0], sizes = [8, 32], strides = [1, 1]} : vector<64x32xbf16> to vector<8x32xbf16>
    %cst_138 = arith.constant dense<0.000000e+00> : vector<8x32xf32>
    %514 = tpu.matmul %512, %513, %cst_138 {dimension_numbers = #tpu.dot_dimension_numbers<[1], [0], [0], [1], [0, 0, 1, 1], [], []>} : vector<8x8xbf16>, vector<8x32xbf16>, vector<8x32xf32> -> vector<8x32xf32>
    %515 = arith.addf %503, %514 : vector<8x32xf32>
    %516 = vector.extract_strided_slice %39 {offsets = [0, 4, 0], sizes = [8, 1, 16], strides = [1, 1, 1]} : vector<8x8x16xf32> to vector<8x1x16xf32>
    %517 = vector.shape_cast %516 : vector<8x1x16xf32> to vector<8x16xf32>
    %518 = arith.truncf %517 : vector<8x16xf32> to vector<8x16xbf16>
    %519 = vector.extract_strided_slice %466 {offsets = [32, 0], sizes = [8, 16], strides = [1, 1]} : vector<64x16xf32> to vector<8x16xf32>
    %520 = arith.truncf %519 : vector<8x16xf32> to vector<8x16xbf16>
    %cst_139 = arith.constant dense<0.000000e+00> : vector<8x8xf32>
    %521 = tpu.matmul %518, %520, %cst_139 {dimension_numbers = #tpu.dot_dimension_numbers<[1], [1], [0], [0], [0, 0, 1, 0], [], []>} : vector<8x16xbf16>, vector<8x16xbf16>, vector<8x8xf32> -> vector<8x8xf32>
    %522 = vector.extract_strided_slice %464 {offsets = [0, 32], sizes = [8, 8], strides = [1, 1]} : vector<8x64xf32> to vector<8x8xf32>
    %523 = arith.mulf %522, %521 : vector<8x8xf32>
    %524 = arith.truncf %523 : vector<8x8xf32> to vector<8x8xbf16>
    %525 = vector.extract_strided_slice %40 {offsets = [32, 0], sizes = [8, 32], strides = [1, 1]} : vector<64x32xbf16> to vector<8x32xbf16>
    %cst_140 = arith.constant dense<0.000000e+00> : vector<8x32xf32>
    %526 = tpu.matmul %524, %525, %cst_140 {dimension_numbers = #tpu.dot_dimension_numbers<[1], [0], [0], [1], [0, 0, 1, 1], [], []>} : vector<8x8xbf16>, vector<8x32xbf16>, vector<8x32xf32> -> vector<8x32xf32>
    %527 = arith.addf %515, %526 : vector<8x32xf32>
    %528 = vector.extract_strided_slice %39 {offsets = [0, 5, 0], sizes = [8, 1, 16], strides = [1, 1, 1]} : vector<8x8x16xf32> to vector<8x1x16xf32>
    %529 = vector.shape_cast %528 : vector<8x1x16xf32> to vector<8x16xf32>
    %530 = arith.truncf %529 : vector<8x16xf32> to vector<8x16xbf16>
    %531 = vector.extract_strided_slice %466 {offsets = [40, 0], sizes = [8, 16], strides = [1, 1]} : vector<64x16xf32> to vector<8x16xf32>
    %532 = arith.truncf %531 : vector<8x16xf32> to vector<8x16xbf16>
    %cst_141 = arith.constant dense<0.000000e+00> : vector<8x8xf32>
    %533 = tpu.matmul %530, %532, %cst_141 {dimension_numbers = #tpu.dot_dimension_numbers<[1], [1], [0], [0], [0, 0, 1, 0], [], []>} : vector<8x16xbf16>, vector<8x16xbf16>, vector<8x8xf32> -> vector<8x8xf32>
    %534 = vector.extract_strided_slice %464 {offsets = [0, 40], sizes = [8, 8], strides = [1, 1]} : vector<8x64xf32> to vector<8x8xf32>
    %535 = arith.mulf %534, %533 : vector<8x8xf32>
    %536 = arith.truncf %535 : vector<8x8xf32> to vector<8x8xbf16>
    %537 = vector.extract_strided_slice %40 {offsets = [40, 0], sizes = [8, 32], strides = [1, 1]} : vector<64x32xbf16> to vector<8x32xbf16>
    %cst_142 = arith.constant dense<0.000000e+00> : vector<8x32xf32>
    %538 = tpu.matmul %536, %537, %cst_142 {dimension_numbers = #tpu.dot_dimension_numbers<[1], [0], [0], [1], [0, 0, 1, 1], [], []>} : vector<8x8xbf16>, vector<8x32xbf16>, vector<8x32xf32> -> vector<8x32xf32>
    %539 = arith.addf %527, %538 : vector<8x32xf32>
    %540 = vector.extract_strided_slice %39 {offsets = [0, 6, 0], sizes = [8, 1, 16], strides = [1, 1, 1]} : vector<8x8x16xf32> to vector<8x1x16xf32>
    %541 = vector.shape_cast %540 : vector<8x1x16xf32> to vector<8x16xf32>
    %542 = arith.truncf %541 : vector<8x16xf32> to vector<8x16xbf16>
    %543 = vector.extract_strided_slice %466 {offsets = [48, 0], sizes = [8, 16], strides = [1, 1]} : vector<64x16xf32> to vector<8x16xf32>
    %544 = arith.truncf %543 : vector<8x16xf32> to vector<8x16xbf16>
    %cst_143 = arith.constant dense<0.000000e+00> : vector<8x8xf32>
    %545 = tpu.matmul %542, %544, %cst_143 {dimension_numbers = #tpu.dot_dimension_numbers<[1], [1], [0], [0], [0, 0, 1, 0], [], []>} : vector<8x16xbf16>, vector<8x16xbf16>, vector<8x8xf32> -> vector<8x8xf32>
    %546 = vector.extract_strided_slice %464 {offsets = [0, 48], sizes = [8, 8], strides = [1, 1]} : vector<8x64xf32> to vector<8x8xf32>
    %547 = arith.mulf %546, %545 : vector<8x8xf32>
    %548 = arith.truncf %547 : vector<8x8xf32> to vector<8x8xbf16>
    %549 = vector.extract_strided_slice %40 {offsets = [48, 0], sizes = [8, 32], strides = [1, 1]} : vector<64x32xbf16> to vector<8x32xbf16>
    %cst_144 = arith.constant dense<0.000000e+00> : vector<8x32xf32>
    %550 = tpu.matmul %548, %549, %cst_144 {dimension_numbers = #tpu.dot_dimension_numbers<[1], [0], [0], [1], [0, 0, 1, 1], [], []>} : vector<8x8xbf16>, vector<8x32xbf16>, vector<8x32xf32> -> vector<8x32xf32>
    %551 = arith.addf %539, %550 : vector<8x32xf32>
    %552 = vector.extract_strided_slice %39 {offsets = [0, 7, 0], sizes = [8, 1, 16], strides = [1, 1, 1]} : vector<8x8x16xf32> to vector<8x1x16xf32>
    %553 = vector.shape_cast %552 : vector<8x1x16xf32> to vector<8x16xf32>
    %554 = arith.truncf %553 : vector<8x16xf32> to vector<8x16xbf16>
    %555 = vector.extract_strided_slice %466 {offsets = [56, 0], sizes = [8, 16], strides = [1, 1]} : vector<64x16xf32> to vector<8x16xf32>
    %556 = arith.truncf %555 : vector<8x16xf32> to vector<8x16xbf16>
    %cst_145 = arith.constant dense<0.000000e+00> : vector<8x8xf32>
    %557 = tpu.matmul %554, %556, %cst_145 {dimension_numbers = #tpu.dot_dimension_numbers<[1], [1], [0], [0], [0, 0, 1, 0], [], []>} : vector<8x16xbf16>, vector<8x16xbf16>, vector<8x8xf32> -> vector<8x8xf32>
    %558 = vector.extract_strided_slice %464 {offsets = [0, 56], sizes = [8, 8], strides = [1, 1]} : vector<8x64xf32> to vector<8x8xf32>
    %559 = arith.mulf %558, %557 : vector<8x8xf32>
    %560 = arith.truncf %559 : vector<8x8xf32> to vector<8x8xbf16>
    %561 = vector.extract_strided_slice %40 {offsets = [56, 0], sizes = [8, 32], strides = [1, 1]} : vector<64x32xbf16> to vector<8x32xbf16>
    %cst_146 = arith.constant dense<0.000000e+00> : vector<8x32xf32>
    %562 = tpu.matmul %560, %561, %cst_146 {dimension_numbers = #tpu.dot_dimension_numbers<[1], [0], [0], [1], [0, 0, 1, 1], [], []>} : vector<8x8xbf16>, vector<8x32xbf16>, vector<8x32xf32> -> vector<8x32xf32>
    %563 = arith.addf %551, %562 : vector<8x32xf32>
    %c3_147 = arith.constant 3 : index
    %c0_148 = arith.constant 0 : index
    %c0_149 = arith.constant 0 : index
    %564 = vector.load %arg12[%c3_147, %c0_148, %c0_149] : memref<4x8x32xf32, #tpu.memory_space<vmem>>, vector<1x8x32xf32>
    %565 = vector.shape_cast %564 : vector<1x8x32xf32> to vector<8x32xf32>
    %566 = vector.shape_cast %563 : vector<8x32xf32> to vector<1x8x32xf32>
    tpu.vector_store %arg12[%c3_147, %c0_148, %c0_149], %566 {strides = array<i32>} : memref<4x8x32xf32, #tpu.memory_space<vmem>>, vector<1x8x32xf32>,
    return
  }
  func.func @transform_0(%arg0: i32, %arg1: i32) -> (i32, i32, i32) {
    %c0_i32 = arith.constant 0 : i32
    %c0_i32_0 = arith.constant 0 : i32
    %c0_i32_1 = arith.constant 0 : i32
    return %arg0, %c0_i32, %c0_i32_0 : i32, i32, i32
  }
  func.func @transform_1(%arg0: i32, %arg1: i32) -> (i32, i32, i32) {
    %c0_i32 = arith.constant 0 : i32
    %c0_i32_0 = arith.constant 0 : i32
    return %arg0, %arg1, %c0_i32 : i32, i32, i32
  }
  func.func @transform_2(%arg0: i32, %arg1: i32) -> (i32, i32, i32) {
    %c0_i32 = arith.constant 0 : i32
    %c0_i32_0 = arith.constant 0 : i32
    %c0_i32_1 = arith.constant 0 : i32
    return %arg1, %c0_i32, %c0_i32_0 : i32, i32, i32
  }
  func.func @transform_3(%arg0: i32, %arg1: i32) -> (i32, i32) {
    %c0_i32 = arith.constant 0 : i32
    %c0_i32_0 = arith.constant 0 : i32
    %c0_i32_1 = arith.constant 0 : i32
    return %c0_i32, %c0_i32_0 : i32, i32
  }
  func.func @transform_4(%arg0: i32, %arg1: i32) -> (i32, i32) {
    %c0_i32 = arith.constant 0 : i32
    %c0_i32_0 = arith.constant 0 : i32
    %c0_i32_1 = arith.constant 0 : i32
    return %c0_i32, %c0_i32_0 : i32, i32
  }
  func.func @transform_5(%arg0: i32, %arg1: i32) -> (i32, i32) {
    %c0_i32 = arith.constant 0 : i32
    %c0_i32_0 = arith.constant 0 : i32
    %c0_i32_1 = arith.constant 0 : i32
    return %c0_i32, %c0_i32_0 : i32, i32
  }
  func.func @transform_6(%arg0: i32, %arg1: i32) -> (i32, i32) {
    %c0_i32 = arith.constant 0 : i32
    %c0_i32_0 = arith.constant 0 : i32
    %c0_i32_1 = arith.constant 0 : i32
    return %c0_i32, %c0_i32_0 : i32, i32
  }
  func.func @transform_7(%arg0: i32, %arg1: i32) -> (i32, i32) {
    %c0_i32 = arith.constant 0 : i32
    %c0_i32_0 = arith.constant 0 : i32
    %c0_i32_1 = arith.constant 0 : i32
    return %c0_i32, %c0_i32_0 : i32, i32
  }
  func.func @transform_8(%arg0: i32, %arg1: i32) -> (i32, i32, i32) {
    %c0_i32 = arith.constant 0 : i32
    %c0_i32_0 = arith.constant 0 : i32
    %c0_i32_1 = arith.constant 0 : i32
    %c0_i32_2 = arith.constant 0 : i32
    return %c0_i32, %c0_i32_0, %c0_i32_1 : i32, i32, i32
  }
  func.func @transform_9(%arg0: i32, %arg1: i32) -> (i32, i32) {
    %c0_i32 = arith.constant 0 : i32
    %c0_i32_0 = arith.constant 0 : i32
    %c0_i32_1 = arith.constant 0 : i32
    return %c0_i32, %c0_i32_0 : i32, i32
  }
  func.func @transform_10(%arg0: i32, %arg1: i32) -> (i32, i32, i32) {
    %c0_i32 = arith.constant 0 : i32
    %c0_i32_0 = arith.constant 0 : i32
    return %arg0, %arg1, %c0_i32 : i32, i32, i32
  }
}

</mosaic_0001>

<llo_original>
// kernel: tpu_custom_call.1
$region0: #{tpu_custom_call.1}
  #allocation0 [shape = 'u32[]', space=smem, size = 0x4, offset = 0x4, fixed_abs, tag = 'smem constant byte address 0x4 - core index']
  #allocation1 [shape = 'u32[144,128]{1,0:T(1,128)}', space=vmem, size = 0x12000, scoped, tag = 'internal scratch']
  #allocation2 [shape = 'f32[4,64,16]{2,1,0:T(8,128)}', space=vmem, size = 0x20000, scoped, tag = 'scratch operand']
  %s0 = inlined_call_operand.vmem [shape: f32[8,16,32], index: 0, kind: input, shape index: {}]
  %s1 = inlined_call_operand.hbm [shape: f32[8,16,32], index: 1, kind: input, shape index: {}]
  %s2 = inlined_call_operand.hbm [shape: f32[16,16,16], index: 2, kind: input, shape index: {}]
  %s3 = inlined_call_operand.vmem [shape: bf16[64,32], index: 3, kind: input, shape index: {}]
  %s4 = inlined_call_operand.vmem [shape: f32[64,1], index: 4, kind: input, shape index: {}]
  %s5 = inlined_call_operand.vmem [shape: bf16[32,64], index: 5, kind: input, shape index: {}]
  %s6 = inlined_call_operand.vmem [shape: f32[1,64], index: 6, kind: input, shape index: {}]
  %s7 = inlined_call_operand.vmem [shape: f32[8,16], index: 7, kind: input, shape index: {}]
  %s8 = inlined_call_operand.vmem [shape: f32[1,8,1], index: 8, kind: input, shape index: {}]
  %s9 = inlined_call_operand.vmem [shape: bf16[64,32], index: 9, kind: input, shape index: {}]
  %s10 = inlined_call_operand.hbm [shape: f32[8,16,32], index: 10, kind: output, shape index: {}]
  %s11 = sld [smem:[#allocation0]]
  $region85: #{tpu_custom_call.1} parent=0
    _
  %s13 = ssub.s32 1, %s11
  %s14 = scalar_select 0, %s13, %s11
  $region1: #{tpu_custom_call.1} parent=0
    #allocation3 [shape = 'u8[32768]{0}', space=vmem, size = 0x8000, scoped, tag = 'input window, operand 1']
    #allocation4 [shape = 's32[2]{0}', space=sflag, size = 0x8, scoped, tag = 'scoped memory for tpu_custom_call.1']
    #allocation5 [shape = 's32[2]{0}', space=sflag, size = 0x8, scoped, tag = 'scoped memory for tpu_custom_call.1']
    #allocation6 [shape = 'u8[131072]{0}', space=vmem, size = 0x20000, scoped, tag = 'input window, operand 2']
    #allocation7 [shape = 's32[2]{0}', space=sflag, size = 0x8, scoped, tag = 'scoped memory for tpu_custom_call.1']
    #allocation8 [shape = 'u8[32768]{0}', space=vmem, size = 0x8000, scoped, tag = 'output window, operand 0']
    %15 = vsyncpa [#allocation4], 0
    %s16 = scalar_lea.sflag [#allocation4], 1
    %17 = vsyncpa %s16, 0
    %18 = vsyncpa [#allocation7], 0
    %s19 = scalar_lea.sflag [#allocation7], 1
    %20 = vsyncpa %s19, 0
    %21 = vsyncpa [#allocation5], 0
    %s22 = scalar_lea.sflag [#allocation5], 1
    %23 = vsyncpa %s22, 0
    loop: start=0, step=1, limit=6
    $region2: #{tpu_custom_call.1} parent=1 // loop_pre_header
      _
    $region3: #{tpu_custom_call.1} parent=1 // loop_header
      %s25 = sphi 0, %s29
      %p26 = scmp.ge.s32.totalorder %s25, 6
      %s32 = sphi 0, %s44
      %s33 = sphi 0, %s40
      %s34 = sphi 0, %s32
      %s35 = sphi 0, %s33
      %s36 = sphi 0, %s34
      %s37 = sphi 0, %s35
      %s47 = sphi 0, %s49
      %s50 = sphi 0, %s47
      %s51 = sphi 0, %s50
      %s67 = sphi 0, %s51
      %s75 = sphi 0, %s77
      %s78 = sphi 0, %s75
      %s79 = sphi 0, %s78
      %s95 = sphi 0, %s79
      %s101 = sphi 0, %s103
      %s104 = sphi 0, %s101
      %s105 = sphi 0, %s104
      %s121 = sphi 0, %s105
      %s125 = sphi 0, %s125
      %s127 = sphi 0, %s125
      %s128 = sphi 0, %s127
      %s142 = sphi 0, %s128
      %s146 = sphi 0, %s146
      %s148 = sphi 0, %s146
      %s149 = sphi 0, %s148
      %s163 = sphi 0, %s149
      %s167 = sphi 0, %s167
      %s169 = sphi 0, %s167
      %s170 = sphi 0, %s169
      %s184 = sphi 0, %s170
      %s188 = sphi 0, %s188
      %s190 = sphi 0, %s188
      %s191 = sphi 0, %s190
      %s205 = sphi 0, %s191
      %s209 = sphi 0, %s209
      %s211 = sphi 0, %s209
      %s212 = sphi 0, %s211
      %s226 = sphi 0, %s212
      %s230 = sphi 0, %s230
      %s232 = sphi 0, %s230
      %s233 = sphi 0, %s232
      %s247 = sphi 0, %s233
      %s251 = sphi 0, %s251
      %s253 = sphi 0, %s251
      %s254 = sphi 0, %s253
      %s268 = sphi 0, %s254
      %s276 = sphi 0, %s278
      %s279 = sphi 0, %s276
      %s280 = sphi 0, %s279
      %s296 = sphi 0, %s280
    $region4: #{tpu_custom_call.1} parent=1 // loop_header_branch
      %28 = sbr.rel (%p26) target = $region8
    $region5: #{tpu_custom_call.1} parent=1 // loop_body
      %s30 = ssub.s32 %s25, 1
      %s31 = ssub.s32 %s25, 2
      %s38 = sadd.s32 1, %s33
      %p39 = scmp.ge.s32.totalorder %s38, 2
      %s40 = scalar_select %p39, 0, %s38
      %s41 = sadd.s32 1, %s32
      %s42 = scalar_select %p39, %s41, %s32
      %p43 = scmp.ge.s32.totalorder %s42, 2
      %s44 = scalar_select %p43, 0, %s42
      %s45 = ssub.s32 %s32, %s44
      %p46 = scmp.eq.s32.totalorder %s45, 0
      %s48 = sadd.s32 %s47, 1
      %s49 = scalar_select %p46, %s47, %s48
      %p52 = pneg %p46
      %p53 = scmp.eq.s32.totalorder %s25, 3
      %p54 = por %p52, %p53
      %p55 = scmp.ne.s32.totalorder %s47, %s50
      %p56 = scmp.eq.s32.totalorder %s25, 0
      %p57 = por %p55, %p56
      %p58 = scmp.ne.s32.totalorder %s47, %s50
      %p59 = scmp.eq.s32.totalorder %s30, 3
      %p60 = por %p58, %p59
      %p61 = scmp.ne.s32.totalorder %s50, %s51
      %p62 = scmp.eq.s32.totalorder %s30, 0
      %p63 = por %p61, %p62
      %p64 = scmp.ne.s32.totalorder %s50, %s51
      %p65 = scmp.eq.s32.totalorder %s31, 3
      %p66 = por %p64, %p65
      %p68 = scmp.ne.s32.totalorder %s51, %s67
      %p69 = scmp.eq.s32.totalorder %s31, 0
      %p70 = por %p68, %p69
      %s71 = ssub.s32 %s32, %s44
      %s72 = ssub.s32 %s33, %s40
      %s73 = sor.u32 %s71, %s72
      %p74 = scmp.eq.s32.totalorder %s73, 0
      %s76 = sadd.s32 %s75, 1
      %s77 = scalar_select %p74, %s75, %s76
      %p80 = pneg %p74
      %p81 = scmp.eq.s32.totalorder %s25, 3
      %p82 = por %p80, %p81
      %p83 = scmp.ne.s32.totalorder %s75, %s78
      %p84 = scmp.eq.s32.totalorder %s25, 0
      %p85 = por %p83, %p84
      %p86 = scmp.ne.s32.totalorder %s75, %s78
      %p87 = scmp.eq.s32.totalorder %s30, 3
      %p88 = por %p86, %p87
      %p89 = scmp.ne.s32.totalorder %s78, %s79
      %p90 = scmp.eq.s32.totalorder %s30, 0
      %p91 = por %p89, %p90
      %p92 = scmp.ne.s32.totalorder %s78, %s79
      %p93 = scmp.eq.s32.totalorder %s31, 3
      %p94 = por %p92, %p93
      %p96 = scmp.ne.s32.totalorder %s79, %s95
      %p97 = scmp.eq.s32.totalorder %s31, 0
      %p98 = por %p96, %p97
      %s99 = ssub.s32 %s33, %s40
      %p100 = scmp.eq.s32.totalorder %s99, 0
      %s102 = sadd.s32 %s101, 1
      %s103 = scalar_select %p100, %s101, %s102
      %p106 = pneg %p100
      %p107 = scmp.eq.s32.totalorder %s25, 3
      %p108 = por %p106, %p107
      %p109 = scmp.ne.s32.totalorder %s101, %s104
      %p110 = scmp.eq.s32.totalorder %s25, 0
      %p111 = por %p109, %p110
      %p112 = scmp.ne.s32.totalorder %s101, %s104
      %p113 = scmp.eq.s32.totalorder %s30, 3
      %p114 = por %p112, %p113
      %p115 = scmp.ne.s32.totalorder %s104, %s105
      %p116 = scmp.eq.s32.totalorder %s30, 0
      %p117 = por %p115, %p116
      %p118 = scmp.ne.s32.totalorder %s104, %s105
      %p119 = scmp.eq.s32.totalorder %s31, 3
      %p120 = por %p118, %p119
      %p122 = scmp.ne.s32.totalorder %s105, %s121
      %p123 = scmp.eq.s32.totalorder %s31, 0
      %p124 = por %p122, %p123
      %s126 = sadd.s32 %s125, 1
      %p129 = scmp.eq.s32.totalorder %s25, 3
      %p130 = scmp.ne.s32.totalorder %s125, %s127
      %p131 = scmp.eq.s32.totalorder %s25, 0
      %p132 = por %p130, %p131
      %p133 = scmp.ne.s32.totalorder %s125, %s127
      %p134 = scmp.eq.s32.totalorder %s30, 3
      %p135 = por %p133, %p134
      %p136 = scmp.ne.s32.totalorder %s127, %s128
      %p137 = scmp.eq.s32.totalorder %s30, 0
      %p138 = por %p136, %p137
      %p139 = scmp.ne.s32.totalorder %s127, %s128
      %p140 = scmp.eq.s32.totalorder %s31, 3
      %p141 = por %p139, %p140
      %p143 = scmp.ne.s32.totalorder %s128, %s142
      %p144 = scmp.eq.s32.totalorder %s31, 0
      %p145 = por %p143, %p144
      %s147 = sadd.s32 %s146, 1
      %p150 = scmp.eq.s32.totalorder %s25, 3
      %p151 = scmp.ne.s32.totalorder %s146, %s148
      %p152 = scmp.eq.s32.totalorder %s25, 0
      %p153 = por %p151, %p152
      %p154 = scmp.ne.s32.totalorder %s146, %s148
      %p155 = scmp.eq.s32.totalorder %s30, 3
      %p156 = por %p154, %p155
      %p157 = scmp.ne.s32.totalorder %s148, %s149
      %p158 = scmp.eq.s32.totalorder %s30, 0
      %p159 = por %p157, %p158
      %p160 = scmp.ne.s32.totalorder %s148, %s149
      %p161 = scmp.eq.s32.totalorder %s31, 3
      %p162 = por %p160, %p161
      %p164 = scmp.ne.s32.totalorder %s149, %s163
      %p165 = scmp.eq.s32.totalorder %s31, 0
      %p166 = por %p164, %p165
      %s168 = sadd.s32 %s167, 1
      %p171 = scmp.eq.s32.totalorder %s25, 3
      %p172 = scmp.ne.s32.totalorder %s167, %s169
      %p173 = scmp.eq.s32.totalorder %s25, 0
      %p174 = por %p172, %p173
      %p175 = scmp.ne.s32.totalorder %s167, %s169
      %p176 = scmp.eq.s32.totalorder %s30, 3
      %p177 = por %p175, %p176
      %p178 = scmp.ne.s32.totalorder %s169, %s170
      %p179 = scmp.eq.s32.totalorder %s30, 0
      %p180 = por %p178, %p179
      %p181 = scmp.ne.s32.totalorder %s169, %s170
      %p182 = scmp.eq.s32.totalorder %s31, 3
      %p183 = por %p181, %p182
      %p185 = scmp.ne.s32.totalorder %s170, %s184
      %p186 = scmp.eq.s32.totalorder %s31, 0
      %p187 = por %p185, %p186
      %s189 = sadd.s32 %s188, 1
      %p192 = scmp.eq.s32.totalorder %s25, 3
      %p193 = scmp.ne.s32.totalorder %s188, %s190
      %p194 = scmp.eq.s32.totalorder %s25, 0
      %p195 = por %p193, %p194
      %p196 = scmp.ne.s32.totalorder %s188, %s190
      %p197 = scmp.eq.s32.totalorder %s30, 3
      %p198 = por %p196, %p197
      %p199 = scmp.ne.s32.totalorder %s190, %s191
      %p200 = scmp.eq.s32.totalorder %s30, 0
      %p201 = por %p199, %p200
      %p202 = scmp.ne.s32.totalorder %s190, %s191
      %p203 = scmp.eq.s32.totalorder %s31, 3
      %p204 = por %p202, %p203
      %p206 = scmp.ne.s32.totalorder %s191, %s205
      %p207 = scmp.eq.s32.totalorder %s31, 0
      %p208 = por %p206, %p207
      %s210 = sadd.s32 %s209, 1
      %p213 = scmp.eq.s32.totalorder %s25, 3
      %p214 = scmp.ne.s32.totalorder %s209, %s211
      %p215 = scmp.eq.s32.totalorder %s25, 0
      %p216 = por %p214, %p215
      %p217 = scmp.ne.s32.totalorder %s209, %s211
      %p218 = scmp.eq.s32.totalorder %s30, 3
      %p219 = por %p217, %p218
      %p220 = scmp.ne.s32.totalorder %s211, %s212
      %p221 = scmp.eq.s32.totalorder %s30, 0
      %p222 = por %p220, %p221
      %p223 = scmp.ne.s32.totalorder %s211, %s212
      %p224 = scmp.eq.s32.totalorder %s31, 3
      %p225 = por %p223, %p224
      %p227 = scmp.ne.s32.totalorder %s212, %s226
      %p228 = scmp.eq.s32.totalorder %s31, 0
      %p229 = por %p227, %p228
      %s231 = sadd.s32 %s230, 1
      %p234 = scmp.eq.s32.totalorder %s25, 3
      %p235 = scmp.ne.s32.totalorder %s230, %s232
      %p236 = scmp.eq.s32.totalorder %s25, 0
      %p237 = por %p235, %p236
      %p238 = scmp.ne.s32.totalorder %s230, %s232
      %p239 = scmp.eq.s32.totalorder %s30, 3
      %p240 = por %p238, %p239
      %p241 = scmp.ne.s32.totalorder %s232, %s233
      %p242 = scmp.eq.s32.totalorder %s30, 0
      %p243 = por %p241, %p242
      %p244 = scmp.ne.s32.totalorder %s232, %s233
      %p245 = scmp.eq.s32.totalorder %s31, 3
      %p246 = por %p244, %p245
      %p248 = scmp.ne.s32.totalorder %s233, %s247
      %p249 = scmp.eq.s32.totalorder %s31, 0
      %p250 = por %p248, %p249
      %s252 = sadd.s32 %s251, 1
      %p255 = scmp.eq.s32.totalorder %s25, 3
      %p256 = scmp.ne.s32.totalorder %s251, %s253
      %p257 = scmp.eq.s32.totalorder %s25, 0
      %p258 = por %p256, %p257
      %p259 = scmp.ne.s32.totalorder %s251, %s253
      %p260 = scmp.eq.s32.totalorder %s30, 3
      %p261 = por %p259, %p260
      %p262 = scmp.ne.s32.totalorder %s253, %s254
      %p263 = scmp.eq.s32.totalorder %s30, 0
      %p264 = por %p262, %p263
      %p265 = scmp.ne.s32.totalorder %s253, %s254
      %p266 = scmp.eq.s32.totalorder %s31, 3
      %p267 = por %p265, %p266
      %p269 = scmp.ne.s32.totalorder %s254, %s268
      %p270 = scmp.eq.s32.totalorder %s31, 0
      %p271 = por %p269, %p270
      %s272 = ssub.s32 %s32, %s44
      %s273 = ssub.s32 %s33, %s40
      %s274 = sor.u32 %s272, %s273
      %p275 = scmp.eq.s32.totalorder %s274, 0
      %s277 = sadd.s32 %s276, 1
      %s278 = scalar_select %p275, %s276, %s277
      %p281 = pneg %p275
      %p282 = scmp.eq.s32.totalorder %s25, 3
      %p283 = por %p281, %p282
      %p284 = scmp.ne.s32.totalorder %s276, %s279
      %p285 = scmp.eq.s32.totalorder %s25, 0
      %p286 = por %p284, %p285
      %p287 = scmp.ne.s32.totalorder %s276, %s279
      %p288 = scmp.eq.s32.totalorder %s30, 3
      %p289 = por %p287, %p288
      %p290 = scmp.ne.s32.totalorder %s279, %s280
      %p291 = scmp.eq.s32.totalorder %s30, 0
      %p292 = por %p290, %p291
      %p293 = scmp.ne.s32.totalorder %s279, %s280
      %p294 = scmp.eq.s32.totalorder %s31, 3
      %p295 = por %p293, %p294
      %p297 = scmp.ne.s32.totalorder %s280, %s296
      %p298 = scmp.eq.s32.totalorder %s31, 0
      %p299 = por %p297, %p298
      %p300 = scmp.le.s32.totalorder 1, %s25
      %p301 = scmp.lt.s32.totalorder %s25, 5
      %p302 = pnand %p300, %p301
      %p303 = pneg %p302
      // Predicated region
      $region9: #{tpu_custom_call.1} parent=5 // pred_check
        _
      $region10: #{tpu_custom_call.1} parent=5 // pred_check_branch
        %305 = sbr.rel (%p302) target = $region12
      $region11: #{tpu_custom_call.1} parent=5 // pred_region
        %s306 = ssub.s32 %s25, 1
        // Predicated region
        $region13: #{tpu_custom_call.1} parent=11 // pred_check
          %p307 = pneg %p138
        $region14: #{tpu_custom_call.1} parent=11 // pred_check_branch
          %309 = sbr.rel (%p307) target = $region16
        $region15: #{tpu_custom_call.1} parent=11 // pred_region
          _
        $region16: #{tpu_custom_call.1} parent=11 // pred_fallthru
          _
        // Predicated region
        $region17: #{tpu_custom_call.1} parent=11 // pred_check
          %p310 = pneg %p159
        $region18: #{tpu_custom_call.1} parent=11 // pred_check_branch
          %312 = sbr.rel (%p310) target = $region20
        $region19: #{tpu_custom_call.1} parent=11 // pred_region
          _
        $region20: #{tpu_custom_call.1} parent=11 // pred_fallthru
          _
        // Predicated region
        $region21: #{tpu_custom_call.1} parent=11 // pred_check
          %p313 = pneg %p180
        $region22: #{tpu_custom_call.1} parent=11 // pred_check_branch
          %315 = sbr.rel (%p313) target = $region24
        $region23: #{tpu_custom_call.1} parent=11 // pred_region
          _
        $region24: #{tpu_custom_call.1} parent=11 // pred_fallthru
          _
        // Predicated region
        $region25: #{tpu_custom_call.1} parent=11 // pred_check
          %p316 = pneg %p201
        $region26: #{tpu_custom_call.1} parent=11 // pred_check_branch
          %318 = sbr.rel (%p316) target = $region28
        $region27: #{tpu_custom_call.1} parent=11 // pred_region
          _
        $region28: #{tpu_custom_call.1} parent=11 // pred_fallthru
          _
        // Predicated region
        $region29: #{tpu_custom_call.1} parent=11 // pred_check
          %p319 = pneg %p222
        $region30: #{tpu_custom_call.1} parent=11 // pred_check_branch
          %321 = sbr.rel (%p319) target = $region32
        $region31: #{tpu_custom_call.1} parent=11 // pred_region
          _
        $region32: #{tpu_custom_call.1} parent=11 // pred_fallthru
          _
        // Predicated region
        $region33: #{tpu_custom_call.1} parent=11 // pred_check
          %p322 = pneg %p243
        $region34: #{tpu_custom_call.1} parent=11 // pred_check_branch
          %324 = sbr.rel (%p322) target = $region36
        $region35: #{tpu_custom_call.1} parent=11 // pred_region
          _
        $region36: #{tpu_custom_call.1} parent=11 // pred_fallthru
          _
        // Predicated region
        $region37: #{tpu_custom_call.1} parent=11 // pred_check
          %p325 = pneg %p264
        $region38: #{tpu_custom_call.1} parent=11 // pred_check_branch
          %327 = sbr.rel (%p325) target = $region40
        $region39: #{tpu_custom_call.1} parent=11 // pred_region
          _
        $region40: #{tpu_custom_call.1} parent=11 // pred_fallthru
          _
      $region12: #{tpu_custom_call.1} parent=5 // pred_fallthru
        _
      %p328 = scmp.lt.s32.totalorder %s25, 4
      // Predicated region
      $region41: #{tpu_custom_call.1} parent=5 // pred_check
        %p329 = pneg %p328
      $region42: #{tpu_custom_call.1} parent=5 // pred_check_branch
        %331 = sbr.rel (%p329) target = $region44
      $region43: #{tpu_custom_call.1} parent=5 // pred_region
        // Predicated region
        $region45: #{tpu_custom_call.1} parent=43 // pred_check
          %p332 = pneg %p57
        $region46: #{tpu_custom_call.1} parent=43 // pred_check_branch
          %334 = sbr.rel (%p332) target = $region48
        $region47: #{tpu_custom_call.1} parent=43 // pred_region
          %s335 = smul.u32 4, %s32
          %p336 = scmp.lt.s32.totalorder %s335, 7
          %s337 = scalar_select %p336, %s335, 7
          %s338 = smul.addr %s337, 2
          %s339 = smul.addr %s338, 8
          %s340 = scalar_lea.vmem %s0, %s339
          %s341 = smul.u32 4, %s32
        $region48: #{tpu_custom_call.1} parent=43 // pred_fallthru
          _
        // Predicated region
        $region49: #{tpu_custom_call.1} parent=43 // pred_check
          %p342 = pneg %p85
        $region50: #{tpu_custom_call.1} parent=43 // pred_check_branch
          %344 = sbr.rel (%p342) target = $region52
        $region51: #{tpu_custom_call.1} parent=43 // pred_region
          %s345 = sand.u32 %s75, 1
          %s346 = scalar_lea.sflag [#allocation4], %s345
          %s347 = sand.u32 %s75, 1
          %s348 = smul.addr %s347, 32
          %s349 = scalar_lea.vmem [#allocation3], %s348
          %s350 = smul.u32 4, %s32
          %s352 = ssub.s32 512, 512
          %353 = vsyncadd %s346, %s352
          %s354 = smul.addr %s350, 2
          %s355 = sadd.s32 %s33, %s354
          %s356 = smul.addr %s355, 128
          %s357 = scalar_lea.hbm %s1, %s356
          %s358 = sshll.u32 %s349, 4
          %s359 = int_to_ptr.vmem [resolvable:$true] %s358
          %364 = dma.hbm_to_vmem [thread:$0]  %s357, 512, %s359, %s346, 256, 128, 8
        $region52: #{tpu_custom_call.1} parent=43 // pred_fallthru
          _
        // Predicated region
        $region53: #{tpu_custom_call.1} parent=43 // pred_check
          %p365 = pneg %p111
        $region54: #{tpu_custom_call.1} parent=43 // pred_check_branch
          %367 = sbr.rel (%p365) target = $region56
        $region55: #{tpu_custom_call.1} parent=43 // pred_region
          %s368 = sand.u32 %s101, 1
          %s369 = scalar_lea.sflag [#allocation7], %s368
          %s370 = sand.u32 %s101, 1
          %s371 = smul.addr %s370, 128
          %s372 = scalar_lea.vmem [#allocation6], %s371
          %s373 = smul.u32 8, %s33
          %s375 = ssub.s32 2048, 2048
          %376 = vsyncadd %s369, %s375
          %s377 = smul.addr %s373, 2
          %s378 = smul.addr %s377, 128
          %s379 = scalar_lea.hbm %s2, %s378
          %s380 = sshll.u32 %s372, 4
          %s381 = int_to_ptr.vmem [resolvable:$true] %s380
          %386 = dma.hbm_to_vmem [thread:$0]  %s379, 2048, %s381, %s369, 128, 128, 8
        $region56: #{tpu_custom_call.1} parent=43 // pred_fallthru
          _
      $region44: #{tpu_custom_call.1} parent=5 // pred_fallthru
        _
      %p387 = scmp.le.s32.totalorder 1, %s25
      %p388 = scmp.lt.s32.totalorder %s25, 5
      %p389 = pnand %p387, %p388
      %p390 = pneg %p389
      // Predicated region
      $region57: #{tpu_custom_call.1} parent=5 // pred_check
        _
      $region58: #{tpu_custom_call.1} parent=5 // pred_check_branch
        %392 = sbr.rel (%p389) target = $region60
      $region59: #{tpu_custom_call.1} parent=5 // pred_region
        %s393 = ssub.s32 %s25, 1
        %s394 = sand.u32 %s78, 1
        %s395 = scalar_lea.sflag [#allocation4], %s394
        %s396 = sand.u32 %s78, 1
        %s397 = smul.addr %s396, 32
        %s398 = scalar_lea.vmem [#allocation3], %s397
        // Predicated region
        $region61: #{tpu_custom_call.1} parent=59 // pred_check
          %p399 = pneg %p91
        $region62: #{tpu_custom_call.1} parent=59 // pred_check_branch
          %401 = sbr.rel (%p399) target = $region64
        $region63: #{tpu_custom_call.1} parent=59 // pred_region
          %402 = dma.done %s395, 512
        $region64: #{tpu_custom_call.1} parent=59 // pred_fallthru
          _
        %s403 = sand.u32 %s104, 1
        %s404 = scalar_lea.sflag [#allocation7], %s403
        %s405 = sand.u32 %s104, 1
        %s406 = smul.addr %s405, 128
        %s407 = scalar_lea.vmem [#allocation6], %s406
        // Predicated region
        $region65: #{tpu_custom_call.1} parent=59 // pred_check
          %p408 = pneg %p117
        $region66: #{tpu_custom_call.1} parent=59 // pred_check_branch
          %410 = sbr.rel (%p408) target = $region68
        $region67: #{tpu_custom_call.1} parent=59 // pred_region
          %411 = dma.done %s404, 2048
        $region68: #{tpu_custom_call.1} parent=59 // pred_fallthru
          _
        %s412 = smul.u32 4, %s34
        %p413 = scmp.lt.s32.totalorder %s412, 7
        %s414 = scalar_select %p413, %s412, 7
        %s415 = smul.addr %s414, 2
        %s416 = smul.addr %s415, 8
        %s417 = scalar_lea.vmem %s0, %s416
        %p418 = pneg %p63
        %p419 = pneg %p60
        %s420 = sand.u32 %s78, 1
        %s421 = scalar_lea.sflag [#allocation4], %s420
        %s422 = sand.u32 %s78, 1
        %s423 = smul.addr %s422, 32
        %s424 = scalar_lea.vmem [#allocation3], %s423
        %p425 = pneg %p91
        %p426 = pneg %p88
        %s427 = sand.u32 %s104, 1
        %s428 = scalar_lea.sflag [#allocation7], %s427
        %s429 = sand.u32 %s104, 1
        %s430 = smul.addr %s429, 128
        %s431 = scalar_lea.vmem [#allocation6], %s430
        %p432 = pneg %p117
        %p433 = pneg %p114
        %p434 = pneg %p138
        %p435 = pneg %p135
        %p436 = pneg %p159
        %p437 = pneg %p156
        %p438 = pneg %p180
        %p439 = pneg %p177
        %p440 = pneg %p201
        %p441 = pneg %p198
        %p442 = pneg %p222
        %p443 = pneg %p219
        %p444 = pneg %p243
        %p445 = pneg %p240
        %p446 = pneg %p264
        %p447 = pneg %p261
        %p448 = pneg %p292
        %p449 = pneg %p289
        %s450 = sand.u32 %s279, 1
        %s451 = scalar_lea.sflag [#allocation5], %s450
        %s452 = sand.u32 %s279, 1
        %s453 = smul.addr %s452, 32
        %s454 = scalar_lea.vmem [#allocation8], %s453
        %s455 = smul.u32 4, %s34
        %p456 = scmp.lt.s32.totalorder %s455, 7
        %s457 = scalar_select %p456, %s455, 7
        %s458 = smul.addr %s457, 2
        %s459 = smul.addr %s458, 8
        %s460 = scalar_lea.vmem %s0, %s459
        %s461 = smul.u32 4, %s34
        %s462 = smul.u32 4, %s34
        %s463 = smul.u32 8, %s35
        %s464 = smul.u32 4, %s34
        %p466 = scmp.eq.s32.totalorder %s35, 0
        // Predicated region
        $region69: #{tpu_custom_call.1} parent=59 // pred_check
          %p467 = pneg %p466
        $region70: #{tpu_custom_call.1} parent=59 // pred_check_branch
          %469 = sbr.rel (%p467) target = $region72
        $region71: #{tpu_custom_call.1} parent=59 // pred_region
          %v470 = vld [vmem:[%s3] sm:$0xf]
          %v471 = vld [vmem:[%s3 + $0x4] sm:$0xf]
          %v472 = vld [vmem:[%s3 + $0x8] sm:$0xf]
          %v473 = vld [vmem:[%s3 + $0xc] sm:$0xf]
          %v474 = vld [vmem:[%s3 + $0x10] sm:$0xf]
          %v475 = vld [vmem:[%s3 + $0x14] sm:$0xf]
          %v476 = vld [vmem:[%s3 + $0x18] sm:$0xf]
          %v477 = vld [vmem:[%s3 + $0x1c] sm:$0xf]
          %v478 = vld [vmem:[%s4] sm:$0xff]
          %v479 = vld [vmem:[%s4 + $0x8] sm:$0xff]
          %v480 = vld [vmem:[%s4 + $0x10] sm:$0xff]
          %v481 = vld [vmem:[%s4 + $0x18] sm:$0xff]
          %v482 = vld [vmem:[%s4 + $0x20] sm:$0xff]
          %v483 = vld [vmem:[%s4 + $0x28] sm:$0xff]
          %v484 = vld [vmem:[%s4 + $0x30] sm:$0xff]
          %v485 = vld [vmem:[%s4 + $0x38] sm:$0xff]
          %v486 = vld [vmem:[%s460] sm:$0xff]
          %v487 = vld [vmem:[%s460 + $0x8] sm:$0xff]
          %vm488 = vcmask 261120
          %v489 = vsel %vm488, %v486, 0.0
          %490 = vadd.xlane.f32.xlu0 %v489
          %v491 = vpop.xlane.xlu0 %490
          %v492 = vsel %vm488, %v487, 0.0
          %493 = vadd.xlane.f32.xlu0 %v492
          %v494 = vpop.xlane.xlu0 %493
          %v495 = vrcp.pop 32.0
          %v496 = vmul.f32 %v491, %v495
          %v497 = vmul.f32 %v494, %v495
          %v498 = vsub.f32 %v486, %v496
          %v499 = vsub.f32 %v487, %v497
          %v500 = vmul.f32 %v498, %v498
          %v501 = vmul.f32 %v499, %v499
          %v502 = vsel %vm488, %v500, 0.0
          %503 = vadd.xlane.f32.xlu0 %v502
          %v504 = vpop.xlane.xlu0 %503
          %v505 = vsel %vm488, %v501, 0.0
          %506 = vadd.xlane.f32.xlu0 %v505
          %v507 = vpop.xlane.xlu0 %506
          %v508 = vmul.f32 %v504, %v495
          %v509 = vmul.f32 %v507, %v495
          %v510 = vadd.f32 %v508, 1e-05
          %v511 = vadd.f32 %v509, 1e-05
          %v512 = vrsqrt.pop %v510
          %v513 = vrsqrt.pop %v511
          %v514 = vmul.f32 %v498, %v512
          %v515 = vmul.f32 %v499, %v513
          %v516 = vpack.c.bf16 %v515, %v514
          %518 = vset.pattern.permute.xlu0 0
          %519 = vperm.xlu0 %518, %v478
          %v520 = vpop.permute.xlu0 %519
          %523 = vset.pattern.permute.xlu0 0
          %524 = vperm.xlu0 %523, %v479
          %v525 = vpop.permute.xlu0 %524
          %528 = vset.pattern.permute.xlu0 0
          %529 = vperm.xlu0 %528, %v480
          %v530 = vpop.permute.xlu0 %529
          %533 = vset.pattern.permute.xlu0 0
          %534 = vperm.xlu0 %533, %v481
          %v535 = vpop.permute.xlu0 %534
          %538 = vset.pattern.permute.xlu0 0
          %539 = vperm.xlu0 %538, %v482
          %v540 = vpop.permute.xlu0 %539
          %543 = vset.pattern.permute.xlu0 0
          %544 = vperm.xlu0 %543, %v483
          %v545 = vpop.permute.xlu0 %544
          %548 = vset.pattern.permute.xlu0 0
          %549 = vperm.xlu0 %548, %v484
          %v550 = vpop.permute.xlu0 %549
          %553 = vset.pattern.permute.xlu0 0
          %554 = vperm.xlu0 %553, %v485
          %v555 = vpop.permute.xlu0 %554
          %v565 = vunpack.c.l.b16 %v470
          %v566 = vunpack.c.l.b16 %v471
          %v567 = vunpack.c.l.b16 %v472
          %v568 = vunpack.c.l.b16 %v473
          %v569 = vunpack.c.l.b16 %v474
          %v570 = vunpack.c.l.b16 %v475
          %v571 = vunpack.c.l.b16 %v476
          %v572 = vunpack.c.l.b16 %v477
          %v573 = vpack.c.b16 %v566, %v565
          %v574 = vpack.c.b16 %v568, %v567
          %v575 = vpack.c.b16 %v570, %v569
          %v576 = vpack.c.b16 %v572, %v571
          %v578 = vsel %vm488, %v573, 0
          %v581 = vsel %vm488, %v574, 0
          %v584 = vsel %vm488, %v575, 0
          %v587 = vsel %vm488, %v576, 0
          %v590 = vsel %vm488, %v516, 0
          %592 = vmatprep.subr.bf16.mxu0 0
          %593 = vmatpush1.bf16.xpose.msra.mxu0 %v590
          %594 = vmatprep.subr.bf16.mxu0 0
          %595 = vmatpush1.bf16.xpose.msra.mxu0 0
          %596 = vmatprep.subr.bf16.mxu0 0
          %597 = vmatpush1.bf16.xpose.msra.mxu0 0
          %598 = vmatprep.subr.bf16.mxu0 0
          %599 = vmatpush1.bf16.xpose.msra.mxu0 0
          %600 = vmatprep.subr.bf16.mxu0 0
          %601 = vmatpush1.bf16.xpose.msra.mxu0 0
          %602 = vmatprep.subr.bf16.mxu0 0
          %603 = vmatpush1.bf16.xpose.msra.mxu0 0
          %604 = vmatprep.subr.bf16.mxu0 0
          %605 = vmatpush1.bf16.xpose.msra.mxu0 0
          %606 = vmatprep.subr.bf16.mxu0 0
          %607 = vmatpush1.bf16.xpose.msra.mxu0 0
          %608 = vmatprep.subr.bf16.mxu0 0
          %609 = vmatpush1.bf16.xpose.msra.mxu0 0
          %610 = vmatprep.subr.bf16.mxu0 0
          %611 = vmatpush1.bf16.xpose.msra.mxu0 0
          %612 = vmatprep.subr.bf16.mxu0 0
          %613 = vmatpush1.bf16.xpose.msra.mxu0 0
          %614 = vmatprep.subr.bf16.mxu0 0
          %615 = vmatpush1.bf16.xpose.msra.mxu0 0
          %616 = vmatprep.subr.bf16.mxu0 0
          %617 = vmatpush1.bf16.xpose.msra.mxu0 0
          %618 = vmatprep.subr.bf16.mxu0 0
          %619 = vmatpush1.bf16.xpose.msra.mxu0 0
          %620 = vmatprep.subr.bf16.mxu0 0
          %621 = vmatpush1.bf16.xpose.msra.mxu0 0
          %622 = vmatprep.subr.bf16.mxu0 0
          %623 = vmatpush1.bf16.xpose.msra.mxu0 0
          %624 = vmatprep.mubr.bf16.mxu0 0
          %625 = vmatmul.mubr.bf16.gmra.mrb[0].mxu0 %v578
          %v626 = vpop.f32.mrb[0].mxu0
          %v627 = vadd.f32 %v520, %v626
          %v628 = vpop.f32.mrb[0].mxu0
          %v629 = vpop.f32.mrb[0].mxu0
          %v630 = vadd.f32 %v525, %v629
          %v631 = vpop.f32.mrb[0].mxu0
          %632 = vmatprep.mubr.bf16.mxu0 0
          %633 = vmatmul.mubr.bf16.gmra.mrb[0].mxu0 %v581
          %v634 = vpop.f32.mrb[0].mxu0
          %v635 = vadd.f32 %v530, %v634
          %v636 = vpop.f32.mrb[0].mxu0
          %v637 = vpop.f32.mrb[0].mxu0
          %v638 = vadd.f32 %v535, %v637
          %v639 = vpop.f32.mrb[0].mxu0
          %640 = vmatprep.mubr.bf16.mxu0 0
          %641 = vmatmul.mubr.bf16.gmra.mrb[0].mxu0 %v584
          %v642 = vpop.f32.mrb[0].mxu0
          %v643 = vadd.f32 %v540, %v642
          %v644 = vpop.f32.mrb[0].mxu0
          %v645 = vpop.f32.mrb[0].mxu0
          %v646 = vadd.f32 %v545, %v645
          %v647 = vpop.f32.mrb[0].mxu0
          %648 = vmatprep.mubr.bf16.mxu0 0
          %649 = vmatmul.mubr.bf16.gmra.mrb[0].mxu0 %v587
          %v650 = vpop.f32.mrb[0].mxu0
          %v651 = vadd.f32 %v550, %v650
          %v652 = vpop.f32.mrb[0].mxu0
          %v653 = vpop.f32.mrb[0].mxu0
          %v654 = vadd.f32 %v555, %v653
          %v655 = vpop.f32.mrb[0].mxu0
          %656 = vdwg.mxu0
          %vm657 = vcmask 130048
          %658 = vst.msk [vmem:[#allocation2] sm:$0xff] %vm657, %v627
          %659 = vst.msk [vmem:[#allocation2 + $0x8] sm:$0xff] %vm657, %v630
          %660 = vst.msk [vmem:[#allocation2 + $0x10] sm:$0xff] %vm657, %v635
          %661 = vst.msk [vmem:[#allocation2 + $0x18] sm:$0xff] %vm657, %v638
          %662 = vst.msk [vmem:[#allocation2 + $0x20] sm:$0xff] %vm657, %v643
          %663 = vst.msk [vmem:[#allocation2 + $0x28] sm:$0xff] %vm657, %v646
          %664 = vst.msk [vmem:[#allocation2 + $0x30] sm:$0xff] %vm657, %v651
          %665 = vst.msk [vmem:[#allocation2 + $0x38] sm:$0xff] %vm657, %v654
          %s666 = scalar_lea.vmem %s460, 16
          %v667 = vld [vmem:[%s666] sm:$0xff]
          %v668 = vld [vmem:[%s666 + $0x8] sm:$0xff]
          %v669 = vsel %vm488, %v667, 0.0
          %670 = vadd.xlane.f32.xlu0 %v669
          %v671 = vpop.xlane.xlu0 %670
          %v672 = vsel %vm488, %v668, 0.0
          %673 = vadd.xlane.f32.xlu0 %v672
          %v674 = vpop.xlane.xlu0 %673
          %v675 = vmul.f32 %v671, %v495
          %v676 = vmul.f32 %v674, %v495
          %v677 = vsub.f32 %v667, %v675
          %v678 = vsub.f32 %v668, %v676
          %v679 = vmul.f32 %v677, %v677
          %v680 = vmul.f32 %v678, %v678
          %v681 = vsel %vm488, %v679, 0.0
          %682 = vadd.xlane.f32.xlu0 %v681
          %v683 = vpop.xlane.xlu0 %682
          %v684 = vsel %vm488, %v680, 0.0
          %685 = vadd.xlane.f32.xlu0 %v684
          %v686 = vpop.xlane.xlu0 %685
          %v687 = vmul.f32 %v683, %v495
          %v688 = vmul.f32 %v686, %v495
          %v689 = vadd.f32 %v687, 1e-05
          %v690 = vadd.f32 %v688, 1e-05
          %v691 = vrsqrt.pop %v689
          %v692 = vrsqrt.pop %v690
          %v693 = vmul.f32 %v677, %v691
          %v694 = vmul.f32 %v678, %v692
          %v695 = vpack.c.bf16 %v694, %v693
          %v697 = vsel %vm488, %v695, 0
          %699 = vmatprep.subr.bf16.mxu0 0
          %700 = vmatpush1.bf16.xpose.msra.mxu0 %v697
          %701 = vmatprep.subr.bf16.mxu0 0
          %702 = vmatpush1.bf16.xpose.msra.mxu0 0
          %703 = vmatprep.subr.bf16.mxu0 0
          %704 = vmatpush1.bf16.xpose.msra.mxu0 0
          %705 = vmatprep.subr.bf16.mxu0 0
          %706 = vmatpush1.bf16.xpose.msra.mxu0 0
          %707 = vmatprep.subr.bf16.mxu0 0
          %708 = vmatpush1.bf16.xpose.msra.mxu0 0
          %709 = vmatprep.subr.bf16.mxu0 0
          %710 = vmatpush1.bf16.xpose.msra.mxu0 0
          %711 = vmatprep.subr.bf16.mxu0 0
          %712 = vmatpush1.bf16.xpose.msra.mxu0 0
          %713 = vmatprep.subr.bf16.mxu0 0
          %714 = vmatpush1.bf16.xpose.msra.mxu0 0
          %715 = vmatprep.subr.bf16.mxu0 0
          %716 = vmatpush1.bf16.xpose.msra.mxu0 0
          %717 = vmatprep.subr.bf16.mxu0 0
          %718 = vmatpush1.bf16.xpose.msra.mxu0 0
          %719 = vmatprep.subr.bf16.mxu0 0
          %720 = vmatpush1.bf16.xpose.msra.mxu0 0
          %721 = vmatprep.subr.bf16.mxu0 0
          %722 = vmatpush1.bf16.xpose.msra.mxu0 0
          %723 = vmatprep.subr.bf16.mxu0 0
          %724 = vmatpush1.bf16.xpose.msra.mxu0 0
          %725 = vmatprep.subr.bf16.mxu0 0
          %726 = vmatpush1.bf16.xpose.msra.mxu0 0
          %727 = vmatprep.subr.bf16.mxu0 0
          %728 = vmatpush1.bf16.xpose.msra.mxu0 0
          %729 = vmatprep.subr.bf16.mxu0 0
          %730 = vmatpush1.bf16.xpose.msra.mxu0 0
          %731 = vmatprep.mubr.bf16.mxu0 0
          %732 = vmatmul.mubr.bf16.gmra.mrb[0].mxu0 %v578
          %v733 = vpop.f32.mrb[0].mxu0
          %v734 = vadd.f32 %v520, %v733
          %v735 = vpop.f32.mrb[0].mxu0
          %v736 = vpop.f32.mrb[0].mxu0
          %v737 = vadd.f32 %v525, %v736
          %v738 = vpop.f32.mrb[0].mxu0
          %739 = vmatprep.mubr.bf16.mxu0 0
          %740 = vmatmul.mubr.bf16.gmra.mrb[0].mxu0 %v581
          %v741 = vpop.f32.mrb[0].mxu0
          %v742 = vadd.f32 %v530, %v741
          %v743 = vpop.f32.mrb[0].mxu0
          %v744 = vpop.f32.mrb[0].mxu0
          %v745 = vadd.f32 %v535, %v744
          %v746 = vpop.f32.mrb[0].mxu0
          %747 = vmatprep.mubr.bf16.mxu0 0
          %748 = vmatmul.mubr.bf16.gmra.mrb[0].mxu0 %v584
          %v749 = vpop.f32.mrb[0].mxu0
          %v750 = vadd.f32 %v540, %v749
          %v751 = vpop.f32.mrb[0].mxu0
          %v752 = vpop.f32.mrb[0].mxu0
          %v753 = vadd.f32 %v545, %v752
          %v754 = vpop.f32.mrb[0].mxu0
          %755 = vmatprep.mubr.bf16.mxu0 0
          %756 = vmatmul.mubr.bf16.gmra.mrb[0].mxu0 %v587
          %v757 = vpop.f32.mrb[0].mxu0
          %v758 = vadd.f32 %v550, %v757
          %v759 = vpop.f32.mrb[0].mxu0
          %v760 = vpop.f32.mrb[0].mxu0
          %v761 = vadd.f32 %v555, %v760
          %v762 = vpop.f32.mrb[0].mxu0
          %763 = vdwg.mxu0
          %s764 = scalar_lea.vmem [#allocation2], 64
          %765 = vst.msk [vmem:[%s764] sm:$0xff] %vm657, %v734
          %766 = vst.msk [vmem:[%s764 + $0x8] sm:$0xff] %vm657, %v737
          %767 = vst.msk [vmem:[%s764 + $0x10] sm:$0xff] %vm657, %v742
          %768 = vst.msk [vmem:[%s764 + $0x18] sm:$0xff] %vm657, %v745
          %769 = vst.msk [vmem:[%s764 + $0x20] sm:$0xff] %vm657, %v750
          %770 = vst.msk [vmem:[%s764 + $0x28] sm:$0xff] %vm657, %v753
          %771 = vst.msk [vmem:[%s764 + $0x30] sm:$0xff] %vm657, %v758
          %772 = vst.msk [vmem:[%s764 + $0x38] sm:$0xff] %vm657, %v761
          %s773 = scalar_lea.vmem %s460, 32
          %v774 = vld [vmem:[%s773] sm:$0xff]
          %v775 = vld [vmem:[%s773 + $0x8] sm:$0xff]
          %v776 = vsel %vm488, %v774, 0.0
          %777 = vadd.xlane.f32.xlu0 %v776
          %v778 = vpop.xlane.xlu0 %777
          %v779 = vsel %vm488, %v775, 0.0
          %780 = vadd.xlane.f32.xlu0 %v779
          %v781 = vpop.xlane.xlu0 %780
          %v782 = vmul.f32 %v778, %v495
          %v783 = vmul.f32 %v781, %v495
          %v784 = vsub.f32 %v774, %v782
          %v785 = vsub.f32 %v775, %v783
          %v786 = vmul.f32 %v784, %v784
          %v787 = vmul.f32 %v785, %v785
          %v788 = vsel %vm488, %v786, 0.0
          %789 = vadd.xlane.f32.xlu0 %v788
          %v790 = vpop.xlane.xlu0 %789
          %v791 = vsel %vm488, %v787, 0.0
          %792 = vadd.xlane.f32.xlu0 %v791
          %v793 = vpop.xlane.xlu0 %792
          %v794 = vmul.f32 %v790, %v495
          %v795 = vmul.f32 %v793, %v495
          %v796 = vadd.f32 %v794, 1e-05
          %v797 = vadd.f32 %v795, 1e-05
          %v798 = vrsqrt.pop %v796
          %v799 = vrsqrt.pop %v797
          %v800 = vmul.f32 %v784, %v798
          %v801 = vmul.f32 %v785, %v799
          %v802 = vpack.c.bf16 %v801, %v800
          %v804 = vsel %vm488, %v802, 0
          %806 = vmatprep.subr.bf16.mxu0 0
          %807 = vmatpush1.bf16.xpose.msra.mxu0 %v804
          %808 = vmatprep.subr.bf16.mxu0 0
          %809 = vmatpush1.bf16.xpose.msra.mxu0 0
          %810 = vmatprep.subr.bf16.mxu0 0
          %811 = vmatpush1.bf16.xpose.msra.mxu0 0
          %812 = vmatprep.subr.bf16.mxu0 0
          %813 = vmatpush1.bf16.xpose.msra.mxu0 0
          %814 = vmatprep.subr.bf16.mxu0 0
          %815 = vmatpush1.bf16.xpose.msra.mxu0 0
          %816 = vmatprep.subr.bf16.mxu0 0
          %817 = vmatpush1.bf16.xpose.msra.mxu0 0
          %818 = vmatprep.subr.bf16.mxu0 0
          %819 = vmatpush1.bf16.xpose.msra.mxu0 0
          %820 = vmatprep.subr.bf16.mxu0 0
          %821 = vmatpush1.bf16.xpose.msra.mxu0 0
          %822 = vmatprep.subr.bf16.mxu0 0
          %823 = vmatpush1.bf16.xpose.msra.mxu0 0
          %824 = vmatprep.subr.bf16.mxu0 0
          %825 = vmatpush1.bf16.xpose.msra.mxu0 0
          %826 = vmatprep.subr.bf16.mxu0 0
          %827 = vmatpush1.bf16.xpose.msra.mxu0 0
          %828 = vmatprep.subr.bf16.mxu0 0
          %829 = vmatpush1.bf16.xpose.msra.mxu0 0
          %830 = vmatprep.subr.bf16.mxu0 0
          %831 = vmatpush1.bf16.xpose.msra.mxu0 0
          %832 = vmatprep.subr.bf16.mxu0 0
          %833 = vmatpush1.bf16.xpose.msra.mxu0 0
          %834 = vmatprep.subr.bf16.mxu0 0
          %835 = vmatpush1.bf16.xpose.msra.mxu0 0
          %836 = vmatprep.subr.bf16.mxu0 0
          %837 = vmatpush1.bf16.xpose.msra.mxu0 0
          %838 = vmatprep.mubr.bf16.mxu0 0
          %839 = vmatmul.mubr.bf16.gmra.mrb[0].mxu0 %v578
          %v840 = vpop.f32.mrb[0].mxu0
          %v841 = vadd.f32 %v520, %v840
          %v842 = vpop.f32.mrb[0].mxu0
          %v843 = vpop.f32.mrb[0].mxu0
          %v844 = vadd.f32 %v525, %v843
          %v845 = vpop.f32.mrb[0].mxu0
          %846 = vmatprep.mubr.bf16.mxu0 0
          %847 = vmatmul.mubr.bf16.gmra.mrb[0].mxu0 %v581
          %v848 = vpop.f32.mrb[0].mxu0
          %v849 = vadd.f32 %v530, %v848
          %v850 = vpop.f32.mrb[0].mxu0
          %v851 = vpop.f32.mrb[0].mxu0
          %v852 = vadd.f32 %v535, %v851
          %v853 = vpop.f32.mrb[0].mxu0
          %854 = vmatprep.mubr.bf16.mxu0 0
          %855 = vmatmul.mubr.bf16.gmra.mrb[0].mxu0 %v584
          %v856 = vpop.f32.mrb[0].mxu0
          %v857 = vadd.f32 %v540, %v856
          %v858 = vpop.f32.mrb[0].mxu0
          %v859 = vpop.f32.mrb[0].mxu0
          %v860 = vadd.f32 %v545, %v859
          %v861 = vpop.f32.mrb[0].mxu0
          %862 = vmatprep.mubr.bf16.mxu0 0
          %863 = vmatmul.mubr.bf16.gmra.mrb[0].mxu0 %v587
          %v864 = vpop.f32.mrb[0].mxu0
          %v865 = vadd.f32 %v550, %v864
          %v866 = vpop.f32.mrb[0].mxu0
          %v867 = vpop.f32.mrb[0].mxu0
          %v868 = vadd.f32 %v555, %v867
          %v869 = vpop.f32.mrb[0].mxu0
          %870 = vdwg.mxu0
          %s871 = scalar_lea.vmem [#allocation2], 128
          %872 = vst.msk [vmem:[%s871] sm:$0xff] %vm657, %v841
          %873 = vst.msk [vmem:[%s871 + $0x8] sm:$0xff] %vm657, %v844
          %874 = vst.msk [vmem:[%s871 + $0x10] sm:$0xff] %vm657, %v849
          %875 = vst.msk [vmem:[%s871 + $0x18] sm:$0xff] %vm657, %v852
          %876 = vst.msk [vmem:[%s871 + $0x20] sm:$0xff] %vm657, %v857
          %877 = vst.msk [vmem:[%s871 + $0x28] sm:$0xff] %vm657, %v860
          %878 = vst.msk [vmem:[%s871 + $0x30] sm:$0xff] %vm657, %v865
          %879 = vst.msk [vmem:[%s871 + $0x38] sm:$0xff] %vm657, %v868
          %s880 = scalar_lea.vmem %s460, 48
          %v881 = vld [vmem:[%s880] sm:$0xff]
          %v882 = vld [vmem:[%s880 + $0x8] sm:$0xff]
          %v883 = vsel %vm488, %v881, 0.0
          %884 = vadd.xlane.f32.xlu0 %v883
          %v885 = vpop.xlane.xlu0 %884
          %v886 = vsel %vm488, %v882, 0.0
          %887 = vadd.xlane.f32.xlu0 %v886
          %v888 = vpop.xlane.xlu0 %887
          %v889 = vmul.f32 %v885, %v495
          %v890 = vmul.f32 %v888, %v495
          %v891 = vsub.f32 %v881, %v889
          %v892 = vsub.f32 %v882, %v890
          %v893 = vmul.f32 %v891, %v891
          %v894 = vmul.f32 %v892, %v892
          %v895 = vsel %vm488, %v893, 0.0
          %896 = vadd.xlane.f32.xlu0 %v895
          %v897 = vpop.xlane.xlu0 %896
          %v898 = vsel %vm488, %v894, 0.0
          %899 = vadd.xlane.f32.xlu0 %v898
          %v900 = vpop.xlane.xlu0 %899
          %v901 = vmul.f32 %v897, %v495
          %v902 = vmul.f32 %v900, %v495
          %v903 = vadd.f32 %v901, 1e-05
          %v904 = vadd.f32 %v902, 1e-05
          %v905 = vrsqrt.pop %v903
          %v906 = vrsqrt.pop %v904
          %v907 = vmul.f32 %v891, %v905
          %v908 = vmul.f32 %v892, %v906
          %v909 = vpack.c.bf16 %v908, %v907
          %v911 = vsel %vm488, %v909, 0
          %913 = vmatprep.subr.bf16.mxu0 0
          %914 = vmatpush1.bf16.xpose.msra.mxu0 %v911
          %915 = vmatprep.subr.bf16.mxu0 0
          %916 = vmatpush1.bf16.xpose.msra.mxu0 0
          %917 = vmatprep.subr.bf16.mxu0 0
          %918 = vmatpush1.bf16.xpose.msra.mxu0 0
          %919 = vmatprep.subr.bf16.mxu0 0
          %920 = vmatpush1.bf16.xpose.msra.mxu0 0
          %921 = vmatprep.subr.bf16.mxu0 0
          %922 = vmatpush1.bf16.xpose.msra.mxu0 0
          %923 = vmatprep.subr.bf16.mxu0 0
          %924 = vmatpush1.bf16.xpose.msra.mxu0 0
          %925 = vmatprep.subr.bf16.mxu0 0
          %926 = vmatpush1.bf16.xpose.msra.mxu0 0
          %927 = vmatprep.subr.bf16.mxu0 0
          %928 = vmatpush1.bf16.xpose.msra.mxu0 0
          %929 = vmatprep.subr.bf16.mxu0 0
          %930 = vmatpush1.bf16.xpose.msra.mxu0 0
          %931 = vmatprep.subr.bf16.mxu0 0
          %932 = vmatpush1.bf16.xpose.msra.mxu0 0
          %933 = vmatprep.subr.bf16.mxu0 0
          %934 = vmatpush1.bf16.xpose.msra.mxu0 0
          %935 = vmatprep.subr.bf16.mxu0 0
          %936 = vmatpush1.bf16.xpose.msra.mxu0 0
          %937 = vmatprep.subr.bf16.mxu0 0
          %938 = vmatpush1.bf16.xpose.msra.mxu0 0
          %939 = vmatprep.subr.bf16.mxu0 0
          %940 = vmatpush1.bf16.xpose.msra.mxu0 0
          %941 = vmatprep.subr.bf16.mxu0 0
          %942 = vmatpush1.bf16.xpose.msra.mxu0 0
          %943 = vmatprep.subr.bf16.mxu0 0
          %944 = vmatpush1.bf16.xpose.msra.mxu0 0
          %945 = vmatprep.mubr.bf16.mxu0 0
          %946 = vmatmul.mubr.bf16.gmra.mrb[0].mxu0 %v578
          %v947 = vpop.f32.mrb[0].mxu0
          %v948 = vadd.f32 %v520, %v947
          %v949 = vpop.f32.mrb[0].mxu0
          %v950 = vpop.f32.mrb[0].mxu0
          %v951 = vadd.f32 %v525, %v950
          %v952 = vpop.f32.mrb[0].mxu0
          %953 = vmatprep.mubr.bf16.mxu0 0
          %954 = vmatmul.mubr.bf16.gmra.mrb[0].mxu0 %v581
          %v955 = vpop.f32.mrb[0].mxu0
          %v956 = vadd.f32 %v530, %v955
          %v957 = vpop.f32.mrb[0].mxu0
          %v958 = vpop.f32.mrb[0].mxu0
          %v959 = vadd.f32 %v535, %v958
          %v960 = vpop.f32.mrb[0].mxu0
          %961 = vmatprep.mubr.bf16.mxu0 0
          %962 = vmatmul.mubr.bf16.gmra.mrb[0].mxu0 %v584
          %v963 = vpop.f32.mrb[0].mxu0
          %v964 = vadd.f32 %v540, %v963
          %v965 = vpop.f32.mrb[0].mxu0
          %v966 = vpop.f32.mrb[0].mxu0
          %v967 = vadd.f32 %v545, %v966
          %v968 = vpop.f32.mrb[0].mxu0
          %969 = vmatprep.mubr.bf16.mxu0 0
          %970 = vmatmul.mubr.bf16.gmra.mrb[0].mxu0 %v587
          %v971 = vpop.f32.mrb[0].mxu0
          %v972 = vadd.f32 %v550, %v971
          %v973 = vpop.f32.mrb[0].mxu0
          %v974 = vpop.f32.mrb[0].mxu0
          %v975 = vadd.f32 %v555, %v974
          %v976 = vpop.f32.mrb[0].mxu0
          %977 = vdwg.mxu0
          %s978 = scalar_lea.vmem [#allocation2], 192
          %979 = vst.msk [vmem:[%s978] sm:$0xff] %vm657, %v948
          %980 = vst.msk [vmem:[%s978 + $0x8] sm:$0xff] %vm657, %v951
          %981 = vst.msk [vmem:[%s978 + $0x10] sm:$0xff] %vm657, %v956
          %982 = vst.msk [vmem:[%s978 + $0x18] sm:$0xff] %vm657, %v959
          %983 = vst.msk [vmem:[%s978 + $0x20] sm:$0xff] %vm657, %v964
          %984 = vst.msk [vmem:[%s978 + $0x28] sm:$0xff] %vm657, %v967
          %985 = vst.msk [vmem:[%s978 + $0x30] sm:$0xff] %vm657, %v972
          %986 = vst.msk [vmem:[%s978 + $0x38] sm:$0xff] %vm657, %v975
        $region72: #{tpu_custom_call.1} parent=59 // pred_fallthru
          _
        %v987 = vld [vmem:[%s407] sm:$0xff]
        %v988 = vld [vmem:[%s407 + $0x8] sm:$0xff]
        %v989 = vld [vmem:[%s407 + $0x10] sm:$0xff]
        %v990 = vld [vmem:[%s407 + $0x18] sm:$0xff]
        %v991 = vld [vmem:[%s407 + $0x20] sm:$0xff]
        %v992 = vld [vmem:[%s407 + $0x28] sm:$0xff]
        %v993 = vld [vmem:[%s407 + $0x30] sm:$0xff]
        %v994 = vld [vmem:[%s407 + $0x38] sm:$0xff]
        %v995 = vld [vmem:[%s407 + $0x40] sm:$0xff]
        %v996 = vld [vmem:[%s407 + $0x48] sm:$0xff]
        %v997 = vld [vmem:[%s407 + $0x50] sm:$0xff]
        %v998 = vld [vmem:[%s407 + $0x58] sm:$0xff]
        %v999 = vld [vmem:[%s407 + $0x60] sm:$0xff]
        %v1000 = vld [vmem:[%s407 + $0x68] sm:$0xff]
        %v1001 = vld [vmem:[%s407 + $0x70] sm:$0xff]
        %v1002 = vld [vmem:[%s407 + $0x78] sm:$0xff]
        %vm1003 = vcmask 130048
        %v1004 = vsel %vm1003, %v987, 0.0
        %1005 = vadd.xlane.f32.xlu0 %v1004
        %v1006 = vpop.xlane.xlu0 %1005
        %v1007 = vsel %vm1003, %v988, 0.0
        %1008 = vadd.xlane.f32.xlu0 %v1007
        %v1009 = vpop.xlane.xlu0 %1008
        %v1010 = vsel %vm1003, %v989, 0.0
        %1011 = vadd.xlane.f32.xlu0 %v1010
        %v1012 = vpop.xlane.xlu0 %1011
        %v1013 = vsel %vm1003, %v990, 0.0
        %1014 = vadd.xlane.f32.xlu0 %v1013
        %v1015 = vpop.xlane.xlu0 %1014
        %v1016 = vsel %vm1003, %v991, 0.0
        %1017 = vadd.xlane.f32.xlu0 %v1016
        %v1018 = vpop.xlane.xlu0 %1017
        %v1019 = vsel %vm1003, %v992, 0.0
        %1020 = vadd.xlane.f32.xlu0 %v1019
        %v1021 = vpop.xlane.xlu0 %1020
        %v1022 = vsel %vm1003, %v993, 0.0
        %1023 = vadd.xlane.f32.xlu0 %v1022
        %v1024 = vpop.xlane.xlu0 %1023
        %v1025 = vsel %vm1003, %v994, 0.0
        %1026 = vadd.xlane.f32.xlu0 %v1025
        %v1027 = vpop.xlane.xlu0 %1026
        %v1028 = vsel %vm1003, %v995, 0.0
        %1029 = vadd.xlane.f32.xlu0 %v1028
        %v1030 = vpop.xlane.xlu0 %1029
        %v1031 = vsel %vm1003, %v996, 0.0
        %1032 = vadd.xlane.f32.xlu0 %v1031
        %v1033 = vpop.xlane.xlu0 %1032
        %v1034 = vsel %vm1003, %v997, 0.0
        %1035 = vadd.xlane.f32.xlu0 %v1034
        %v1036 = vpop.xlane.xlu0 %1035
        %v1037 = vsel %vm1003, %v998, 0.0
        %1038 = vadd.xlane.f32.xlu0 %v1037
        %v1039 = vpop.xlane.xlu0 %1038
        %v1040 = vsel %vm1003, %v999, 0.0
        %1041 = vadd.xlane.f32.xlu0 %v1040
        %v1042 = vpop.xlane.xlu0 %1041
        %v1043 = vsel %vm1003, %v1000, 0.0
        %1044 = vadd.xlane.f32.xlu0 %v1043
        %v1045 = vpop.xlane.xlu0 %1044
        %v1046 = vsel %vm1003, %v1001, 0.0
        %1047 = vadd.xlane.f32.xlu0 %v1046
        %v1048 = vpop.xlane.xlu0 %1047
        %v1049 = vsel %vm1003, %v1002, 0.0
        %1050 = vadd.xlane.f32.xlu0 %v1049
        %v1051 = vpop.xlane.xlu0 %1050
        %v1052 = vrcp.pop 16.0
        %v1053 = vmul.f32 %v1006, %v1052
        %v1054 = vmul.f32 %v1009, %v1052
        %v1055 = vmul.f32 %v1012, %v1052
        %v1056 = vmul.f32 %v1015, %v1052
        %v1057 = vmul.f32 %v1018, %v1052
        %v1058 = vmul.f32 %v1021, %v1052
        %v1059 = vmul.f32 %v1024, %v1052
        %v1060 = vmul.f32 %v1027, %v1052
        %v1061 = vmul.f32 %v1030, %v1052
        %v1062 = vmul.f32 %v1033, %v1052
        %v1063 = vmul.f32 %v1036, %v1052
        %v1064 = vmul.f32 %v1039, %v1052
        %v1065 = vmul.f32 %v1042, %v1052
        %v1066 = vmul.f32 %v1045, %v1052
        %v1067 = vmul.f32 %v1048, %v1052
        %v1068 = vmul.f32 %v1051, %v1052
        %v1069 = vsub.f32 %v987, %v1053
        %v1070 = vsub.f32 %v988, %v1054
        %v1071 = vsub.f32 %v989, %v1055
        %v1072 = vsub.f32 %v990, %v1056
        %v1073 = vsub.f32 %v991, %v1057
        %v1074 = vsub.f32 %v992, %v1058
        %v1075 = vsub.f32 %v993, %v1059
        %v1076 = vsub.f32 %v994, %v1060
        %v1077 = vsub.f32 %v995, %v1061
        %v1078 = vsub.f32 %v996, %v1062
        %v1079 = vsub.f32 %v997, %v1063
        %v1080 = vsub.f32 %v998, %v1064
        %v1081 = vsub.f32 %v999, %v1065
        %v1082 = vsub.f32 %v1000, %v1066
        %v1083 = vsub.f32 %v1001, %v1067
        %v1084 = vsub.f32 %v1002, %v1068
        %v1085 = vmul.f32 %v1069, %v1069
        %v1086 = vmul.f32 %v1070, %v1070
        %v1087 = vmul.f32 %v1071, %v1071
        %v1088 = vmul.f32 %v1072, %v1072
        %v1089 = vmul.f32 %v1073, %v1073
        %v1090 = vmul.f32 %v1074, %v1074
        %v1091 = vmul.f32 %v1075, %v1075
        %v1092 = vmul.f32 %v1076, %v1076
        %v1093 = vmul.f32 %v1077, %v1077
        %v1094 = vmul.f32 %v1078, %v1078
        %v1095 = vmul.f32 %v1079, %v1079
        %v1096 = vmul.f32 %v1080, %v1080
        %v1097 = vmul.f32 %v1081, %v1081
        %v1098 = vmul.f32 %v1082, %v1082
        %v1099 = vmul.f32 %v1083, %v1083
        %v1100 = vmul.f32 %v1084, %v1084
        %v1101 = vsel %vm1003, %v1085, 0.0
        %1102 = vadd.xlane.f32.xlu0 %v1101
        %v1103 = vpop.xlane.xlu0 %1102
        %v1104 = vsel %vm1003, %v1086, 0.0
        %1105 = vadd.xlane.f32.xlu0 %v1104
        %v1106 = vpop.xlane.xlu0 %1105
        %v1107 = vsel %vm1003, %v1087, 0.0
        %1108 = vadd.xlane.f32.xlu0 %v1107
        %v1109 = vpop.xlane.xlu0 %1108
        %v1110 = vsel %vm1003, %v1088, 0.0
        %1111 = vadd.xlane.f32.xlu0 %v1110
        %v1112 = vpop.xlane.xlu0 %1111
        %v1113 = vsel %vm1003, %v1089, 0.0
        %1114 = vadd.xlane.f32.xlu0 %v1113
        %v1115 = vpop.xlane.xlu0 %1114
        %v1116 = vsel %vm1003, %v1090, 0.0
        %1117 = vadd.xlane.f32.xlu0 %v1116
        %v1118 = vpop.xlane.xlu0 %1117
        %v1119 = vsel %vm1003, %v1091, 0.0
        %1120 = vadd.xlane.f32.xlu0 %v1119
        %v1121 = vpop.xlane.xlu0 %1120
        %v1122 = vsel %vm1003, %v1092, 0.0
        %1123 = vadd.xlane.f32.xlu0 %v1122
        %v1124 = vpop.xlane.xlu0 %1123
        %v1125 = vsel %vm1003, %v1093, 0.0
        %1126 = vadd.xlane.f32.xlu0 %v1125
        %v1127 = vpop.xlane.xlu0 %1126
        %v1128 = vsel %vm1003, %v1094, 0.0
        %1129 = vadd.xlane.f32.xlu0 %v1128
        %v1130 = vpop.xlane.xlu0 %1129
        %v1131 = vsel %vm1003, %v1095, 0.0
        %1132 = vadd.xlane.f32.xlu0 %v1131
        %v1133 = vpop.xlane.xlu0 %1132
        %v1134 = vsel %vm1003, %v1096, 0.0
        %1135 = vadd.xlane.f32.xlu0 %v1134
        %v1136 = vpop.xlane.xlu0 %1135
        %v1137 = vsel %vm1003, %v1097, 0.0
        %1138 = vadd.xlane.f32.xlu0 %v1137
        %v1139 = vpop.xlane.xlu0 %1138
        %v1140 = vsel %vm1003, %v1098, 0.0
        %1141 = vadd.xlane.f32.xlu0 %v1140
        %v1142 = vpop.xlane.xlu0 %1141
        %v1143 = vsel %vm1003, %v1099, 0.0
        %1144 = vadd.xlane.f32.xlu0 %v1143
        %v1145 = vpop.xlane.xlu0 %1144
        %v1146 = vsel %vm1003, %v1100, 0.0
        %1147 = vadd.xlane.f32.xlu0 %v1146
        %v1148 = vpop.xlane.xlu0 %1147
        %v1149 = vmul.f32 %v1103, %v1052
        %v1150 = vmul.f32 %v1106, %v1052
        %v1151 = vmul.f32 %v1109, %v1052
        %v1152 = vmul.f32 %v1112, %v1052
        %v1153 = vmul.f32 %v1115, %v1052
        %v1154 = vmul.f32 %v1118, %v1052
        %v1155 = vmul.f32 %v1121, %v1052
        %v1156 = vmul.f32 %v1124, %v1052
        %v1157 = vmul.f32 %v1127, %v1052
        %v1158 = vmul.f32 %v1130, %v1052
        %v1159 = vmul.f32 %v1133, %v1052
        %v1160 = vmul.f32 %v1136, %v1052
        %v1161 = vmul.f32 %v1139, %v1052
        %v1162 = vmul.f32 %v1142, %v1052
        %v1163 = vmul.f32 %v1145, %v1052
        %v1164 = vmul.f32 %v1148, %v1052
        %v1165 = vadd.f32 %v1149, 1e-05
        %v1166 = vadd.f32 %v1150, 1e-05
        %v1167 = vadd.f32 %v1151, 1e-05
        %v1168 = vadd.f32 %v1152, 1e-05
        %v1169 = vadd.f32 %v1153, 1e-05
        %v1170 = vadd.f32 %v1154, 1e-05
        %v1171 = vadd.f32 %v1155, 1e-05
        %v1172 = vadd.f32 %v1156, 1e-05
        %v1173 = vadd.f32 %v1157, 1e-05
        %v1174 = vadd.f32 %v1158, 1e-05
        %v1175 = vadd.f32 %v1159, 1e-05
        %v1176 = vadd.f32 %v1160, 1e-05
        %v1177 = vadd.f32 %v1161, 1e-05
        %v1178 = vadd.f32 %v1162, 1e-05
        %v1179 = vadd.f32 %v1163, 1e-05
        %v1180 = vadd.f32 %v1164, 1e-05
        %v1181 = vrsqrt.pop %v1165
        %v1182 = vrsqrt.pop %v1166
        %v1183 = vrsqrt.pop %v1167
        %v1184 = vrsqrt.pop %v1168
        %v1185 = vrsqrt.pop %v1169
        %v1186 = vrsqrt.pop %v1170
        %v1187 = vrsqrt.pop %v1171
        %v1188 = vrsqrt.pop %v1172
        %v1189 = vrsqrt.pop %v1173
        %v1190 = vrsqrt.pop %v1174
        %v1191 = vrsqrt.pop %v1175
        %v1192 = vrsqrt.pop %v1176
        %v1193 = vrsqrt.pop %v1177
        %v1194 = vrsqrt.pop %v1178
        %v1195 = vrsqrt.pop %v1179
        %v1196 = vrsqrt.pop %v1180
        %v1197 = vmul.f32 %v1069, %v1181
        %v1198 = vmul.f32 %v1070, %v1182
        %v1199 = vmul.f32 %v1071, %v1183
        %v1200 = vmul.f32 %v1072, %v1184
        %v1201 = vmul.f32 %v1073, %v1185
        %v1202 = vmul.f32 %v1074, %v1186
        %v1203 = vmul.f32 %v1075, %v1187
        %v1204 = vmul.f32 %v1076, %v1188
        %v1205 = vmul.f32 %v1077, %v1189
        %v1206 = vmul.f32 %v1078, %v1190
        %v1207 = vmul.f32 %v1079, %v1191
        %v1208 = vmul.f32 %v1080, %v1192
        %v1209 = vmul.f32 %v1081, %v1193
        %v1210 = vmul.f32 %v1082, %v1194
        %v1211 = vmul.f32 %v1083, %v1195
        %v1212 = vmul.f32 %v1084, %v1196
        %v1213 = vld [vmem:[%s7] sm:$0xff]
        %v1214 = vld [vmem:[%s8] sm:$0xff]
        %1216 = vset.pattern.permute.xlu0 0
        %1217 = vperm.xlu0 %1216, %v1214
        %v1218 = vpop.permute.xlu0 %1217
        %v1221 = vsel %vm1003, %v1213, 0
        %v1224 = vsel %vm1003, %v1197, 0
        %v1227 = vsel %vm1003, %v1198, 0
        %1229 = vmatprep.subr.mxu0 0.0
        %1230 = vmatpush1.xpose.msra.mxu0 %v1224
        %1231 = vmatprep.subr.mxu0 0.0
        %1232 = vmatpush1.xpose.msra.mxu0 %v1227
        %1233 = vmatprep.subr.mxu0 0.0
        %1234 = vmatpush1.xpose.msra.mxu0 0.0
        %1235 = vmatprep.subr.mxu0 0.0
        %1236 = vmatpush1.xpose.msra.mxu0 0.0
        %1237 = vmatprep.subr.mxu0 0.0
        %1238 = vmatpush1.xpose.msra.mxu0 0.0
        %1239 = vmatprep.subr.mxu0 0.0
        %1240 = vmatpush1.xpose.msra.mxu0 0.0
        %1241 = vmatprep.subr.mxu0 0.0
        %1242 = vmatpush1.xpose.msra.mxu0 0.0
        %1243 = vmatprep.subr.mxu0 0.0
        %1244 = vmatpush1.xpose.msra.mxu0 0.0
        %1245 = vmatprep.subr.mxu0 0.0
        %1246 = vmatpush1.xpose.msra.mxu0 0.0
        %1247 = vmatprep.subr.mxu0 0.0
        %1248 = vmatpush1.xpose.msra.mxu0 0.0
        %1249 = vmatprep.subr.mxu0 0.0
        %1250 = vmatpush1.xpose.msra.mxu0 0.0
        %1251 = vmatprep.subr.mxu0 0.0
        %1252 = vmatpush1.xpose.msra.mxu0 0.0
        %1253 = vmatprep.subr.mxu0 0.0
        %1254 = vmatpush1.xpose.msra.mxu0 0.0
        %1255 = vmatprep.subr.mxu0 0.0
        %1256 = vmatpush1.xpose.msra.mxu0 0.0
        %1257 = vmatprep.subr.mxu0 0.0
        %1258 = vmatpush1.xpose.msra.mxu0 0.0
        %1259 = vmatprep.subr.mxu0 0.0
        %1260 = vmatpush1.xpose.msra.mxu0 0.0
        %1261 = vmatprep.subr.mxu0 0.0
        %1262 = vmatpush1.xpose.msra.mxu0 0.0
        %1263 = vmatprep.subr.mxu0 0.0
        %1264 = vmatpush1.xpose.msra.mxu0 0.0
        %1265 = vmatprep.subr.mxu0 0.0
        %1266 = vmatpush1.xpose.msra.mxu0 0.0
        %1267 = vmatprep.subr.mxu0 0.0
        %1268 = vmatpush1.xpose.msra.mxu0 0.0
        %1269 = vmatprep.subr.mxu0 0.0
        %1270 = vmatpush1.xpose.msra.mxu0 0.0
        %1271 = vmatprep.subr.mxu0 0.0
        %1272 = vmatpush1.xpose.msra.mxu0 0.0
        %1273 = vmatprep.subr.mxu0 0.0
        %1274 = vmatpush1.xpose.msra.mxu0 0.0
        %1275 = vmatprep.subr.mxu0 0.0
        %1276 = vmatpush1.xpose.msra.mxu0 0.0
        %1277 = vmatprep.subr.mxu0 0.0
        %1278 = vmatpush1.xpose.msra.mxu0 0.0
        %1279 = vmatprep.subr.mxu0 0.0
        %1280 = vmatpush1.xpose.msra.mxu0 0.0
        %1281 = vmatprep.subr.mxu0 0.0
        %1282 = vmatpush1.xpose.msra.mxu0 0.0
        %1283 = vmatprep.subr.mxu0 0.0
        %1284 = vmatpush1.xpose.msra.mxu0 0.0
        %1285 = vmatprep.subr.mxu0 0.0
        %1286 = vmatpush1.xpose.msra.mxu0 0.0
        %1287 = vmatprep.subr.mxu0 0.0
        %1288 = vmatpush1.xpose.msra.mxu0 0.0
        %1289 = vmatprep.subr.mxu0 0.0
        %1290 = vmatpush1.xpose.msra.mxu0 0.0
        %1291 = vmatprep.subr.mxu0 0.0
        %1292 = vmatpush1.xpose.msra.mxu0 0.0
        %1293 = vmatprep.mubr.f32.mxu0 0.0
        %1294 = vmatmul.mubr.f32.gmra.mrb[0].mxu0 %v1221
        %v1295 = vpop.f32.mrb[0].mxu0
        %v1296 = vadd.f32 %v1218, %v1295
        %v1297 = vpop.f32.mrb[0].mxu0
        %1298 = vdwg.mxu0
        %v1300 = vsel %vm1003, %v1199, 0
        %v1303 = vsel %vm1003, %v1200, 0
        %1305 = vmatprep.subr.mxu0 0.0
        %1306 = vmatpush1.xpose.msra.mxu0 %v1300
        %1307 = vmatprep.subr.mxu0 0.0
        %1308 = vmatpush1.xpose.msra.mxu0 %v1303
        %1309 = vmatprep.subr.mxu0 0.0
        %1310 = vmatpush1.xpose.msra.mxu0 0.0
        %1311 = vmatprep.subr.mxu0 0.0
        %1312 = vmatpush1.xpose.msra.mxu0 0.0
        %1313 = vmatprep.subr.mxu0 0.0
        %1314 = vmatpush1.xpose.msra.mxu0 0.0
        %1315 = vmatprep.subr.mxu0 0.0
        %1316 = vmatpush1.xpose.msra.mxu0 0.0
        %1317 = vmatprep.subr.mxu0 0.0
        %1318 = vmatpush1.xpose.msra.mxu0 0.0
        %1319 = vmatprep.subr.mxu0 0.0
        %1320 = vmatpush1.xpose.msra.mxu0 0.0
        %1321 = vmatprep.subr.mxu0 0.0
        %1322 = vmatpush1.xpose.msra.mxu0 0.0
        %1323 = vmatprep.subr.mxu0 0.0
        %1324 = vmatpush1.xpose.msra.mxu0 0.0
        %1325 = vmatprep.subr.mxu0 0.0
        %1326 = vmatpush1.xpose.msra.mxu0 0.0
        %1327 = vmatprep.subr.mxu0 0.0
        %1328 = vmatpush1.xpose.msra.mxu0 0.0
        %1329 = vmatprep.subr.mxu0 0.0
        %1330 = vmatpush1.xpose.msra.mxu0 0.0
        %1331 = vmatprep.subr.mxu0 0.0
        %1332 = vmatpush1.xpose.msra.mxu0 0.0
        %1333 = vmatprep.subr.mxu0 0.0
        %1334 = vmatpush1.xpose.msra.mxu0 0.0
        %1335 = vmatprep.subr.mxu0 0.0
        %1336 = vmatpush1.xpose.msra.mxu0 0.0
        %1337 = vmatprep.subr.mxu0 0.0
        %1338 = vmatpush1.xpose.msra.mxu0 0.0
        %1339 = vmatprep.subr.mxu0 0.0
        %1340 = vmatpush1.xpose.msra.mxu0 0.0
        %1341 = vmatprep.subr.mxu0 0.0
        %1342 = vmatpush1.xpose.msra.mxu0 0.0
        %1343 = vmatprep.subr.mxu0 0.0
        %1344 = vmatpush1.xpose.msra.mxu0 0.0
        %1345 = vmatprep.subr.mxu0 0.0
        %1346 = vmatpush1.xpose.msra.mxu0 0.0
        %1347 = vmatprep.subr.mxu0 0.0
        %1348 = vmatpush1.xpose.msra.mxu0 0.0
        %1349 = vmatprep.subr.mxu0 0.0
        %1350 = vmatpush1.xpose.msra.mxu0 0.0
        %1351 = vmatprep.subr.mxu0 0.0
        %1352 = vmatpush1.xpose.msra.mxu0 0.0
        %1353 = vmatprep.subr.mxu0 0.0
        %1354 = vmatpush1.xpose.msra.mxu0 0.0
        %1355 = vmatprep.subr.mxu0 0.0
        %1356 = vmatpush1.xpose.msra.mxu0 0.0
        %1357 = vmatprep.subr.mxu0 0.0
        %1358 = vmatpush1.xpose.msra.mxu0 0.0
        %1359 = vmatprep.subr.mxu0 0.0
        %1360 = vmatpush1.xpose.msra.mxu0 0.0
        %1361 = vmatprep.subr.mxu0 0.0
        %1362 = vmatpush1.xpose.msra.mxu0 0.0
        %1363 = vmatprep.subr.mxu0 0.0
        %1364 = vmatpush1.xpose.msra.mxu0 0.0
        %1365 = vmatprep.subr.mxu0 0.0
        %1366 = vmatpush1.xpose.msra.mxu0 0.0
        %1367 = vmatprep.subr.mxu0 0.0
        %1368 = vmatpush1.xpose.msra.mxu0 0.0
        %1369 = vmatprep.mubr.f32.mxu0 0.0
        %1370 = vmatmul.mubr.f32.gmra.mrb[0].mxu0 %v1221
        %v1371 = vpop.f32.mrb[0].mxu0
        %v1372 = vadd.f32 %v1218, %v1371
        %v1373 = vpop.f32.mrb[0].mxu0
        %1374 = vdwg.mxu0
        %v1376 = vsel %vm1003, %v1201, 0
        %v1379 = vsel %vm1003, %v1202, 0
        %1381 = vmatprep.subr.mxu0 0.0
        %1382 = vmatpush1.xpose.msra.mxu0 %v1376
        %1383 = vmatprep.subr.mxu0 0.0
        %1384 = vmatpush1.xpose.msra.mxu0 %v1379
        %1385 = vmatprep.subr.mxu0 0.0
        %1386 = vmatpush1.xpose.msra.mxu0 0.0
        %1387 = vmatprep.subr.mxu0 0.0
        %1388 = vmatpush1.xpose.msra.mxu0 0.0
        %1389 = vmatprep.subr.mxu0 0.0
        %1390 = vmatpush1.xpose.msra.mxu0 0.0
        %1391 = vmatprep.subr.mxu0 0.0
        %1392 = vmatpush1.xpose.msra.mxu0 0.0
        %1393 = vmatprep.subr.mxu0 0.0
        %1394 = vmatpush1.xpose.msra.mxu0 0.0
        %1395 = vmatprep.subr.mxu0 0.0
        %1396 = vmatpush1.xpose.msra.mxu0 0.0
        %1397 = vmatprep.subr.mxu0 0.0
        %1398 = vmatpush1.xpose.msra.mxu0 0.0
        %1399 = vmatprep.subr.mxu0 0.0
        %1400 = vmatpush1.xpose.msra.mxu0 0.0
        %1401 = vmatprep.subr.mxu0 0.0
        %1402 = vmatpush1.xpose.msra.mxu0 0.0
        %1403 = vmatprep.subr.mxu0 0.0
        %1404 = vmatpush1.xpose.msra.mxu0 0.0
        %1405 = vmatprep.subr.mxu0 0.0
        %1406 = vmatpush1.xpose.msra.mxu0 0.0
        %1407 = vmatprep.subr.mxu0 0.0
        %1408 = vmatpush1.xpose.msra.mxu0 0.0
        %1409 = vmatprep.subr.mxu0 0.0
        %1410 = vmatpush1.xpose.msra.mxu0 0.0
        %1411 = vmatprep.subr.mxu0 0.0
        %1412 = vmatpush1.xpose.msra.mxu0 0.0
        %1413 = vmatprep.subr.mxu0 0.0
        %1414 = vmatpush1.xpose.msra.mxu0 0.0
        %1415 = vmatprep.subr.mxu0 0.0
        %1416 = vmatpush1.xpose.msra.mxu0 0.0
        %1417 = vmatprep.subr.mxu0 0.0
        %1418 = vmatpush1.xpose.msra.mxu0 0.0
        %1419 = vmatprep.subr.mxu0 0.0
        %1420 = vmatpush1.xpose.msra.mxu0 0.0
        %1421 = vmatprep.subr.mxu0 0.0
        %1422 = vmatpush1.xpose.msra.mxu0 0.0
        %1423 = vmatprep.subr.mxu0 0.0
        %1424 = vmatpush1.xpose.msra.mxu0 0.0
        %1425 = vmatprep.subr.mxu0 0.0
        %1426 = vmatpush1.xpose.msra.mxu0 0.0
        %1427 = vmatprep.subr.mxu0 0.0
        %1428 = vmatpush1.xpose.msra.mxu0 0.0
        %1429 = vmatprep.subr.mxu0 0.0
        %1430 = vmatpush1.xpose.msra.mxu0 0.0
        %1431 = vmatprep.subr.mxu0 0.0
        %1432 = vmatpush1.xpose.msra.mxu0 0.0
        %1433 = vmatprep.subr.mxu0 0.0
        %1434 = vmatpush1.xpose.msra.mxu0 0.0
        %1435 = vmatprep.subr.mxu0 0.0
        %1436 = vmatpush1.xpose.msra.mxu0 0.0
        %1437 = vmatprep.subr.mxu0 0.0
        %1438 = vmatpush1.xpose.msra.mxu0 0.0
        %1439 = vmatprep.subr.mxu0 0.0
        %1440 = vmatpush1.xpose.msra.mxu0 0.0
        %1441 = vmatprep.subr.mxu0 0.0
        %1442 = vmatpush1.xpose.msra.mxu0 0.0
        %1443 = vmatprep.subr.mxu0 0.0
        %1444 = vmatpush1.xpose.msra.mxu0 0.0
        %1445 = vmatprep.mubr.f32.mxu0 0.0
        %1446 = vmatmul.mubr.f32.gmra.mrb[0].mxu0 %v1221
        %v1447 = vpop.f32.mrb[0].mxu0
        %v1448 = vadd.f32 %v1218, %v1447
        %v1449 = vpop.f32.mrb[0].mxu0
        %1450 = vdwg.mxu0
        %v1452 = vsel %vm1003, %v1203, 0
        %v1455 = vsel %vm1003, %v1204, 0
        %1457 = vmatprep.subr.mxu0 0.0
        %1458 = vmatpush1.xpose.msra.mxu0 %v1452
        %1459 = vmatprep.subr.mxu0 0.0
        %1460 = vmatpush1.xpose.msra.mxu0 %v1455
        %1461 = vmatprep.subr.mxu0 0.0
        %1462 = vmatpush1.xpose.msra.mxu0 0.0
        %1463 = vmatprep.subr.mxu0 0.0
        %1464 = vmatpush1.xpose.msra.mxu0 0.0
        %1465 = vmatprep.subr.mxu0 0.0
        %1466 = vmatpush1.xpose.msra.mxu0 0.0
        %1467 = vmatprep.subr.mxu0 0.0
        %1468 = vmatpush1.xpose.msra.mxu0 0.0
        %1469 = vmatprep.subr.mxu0 0.0
        %1470 = vmatpush1.xpose.msra.mxu0 0.0
        %1471 = vmatprep.subr.mxu0 0.0
        %1472 = vmatpush1.xpose.msra.mxu0 0.0
        %1473 = vmatprep.subr.mxu0 0.0
        %1474 = vmatpush1.xpose.msra.mxu0 0.0
        %1475 = vmatprep.subr.mxu0 0.0
        %1476 = vmatpush1.xpose.msra.mxu0 0.0
        %1477 = vmatprep.subr.mxu0 0.0
        %1478 = vmatpush1.xpose.msra.mxu0 0.0
        %1479 = vmatprep.subr.mxu0 0.0
        %1480 = vmatpush1.xpose.msra.mxu0 0.0
        %1481 = vmatprep.subr.mxu0 0.0
        %1482 = vmatpush1.xpose.msra.mxu0 0.0
        %1483 = vmatprep.subr.mxu0 0.0
        %1484 = vmatpush1.xpose.msra.mxu0 0.0
        %1485 = vmatprep.subr.mxu0 0.0
        %1486 = vmatpush1.xpose.msra.mxu0 0.0
        %1487 = vmatprep.subr.mxu0 0.0
        %1488 = vmatpush1.xpose.msra.mxu0 0.0
        %1489 = vmatprep.subr.mxu0 0.0
        %1490 = vmatpush1.xpose.msra.mxu0 0.0
        %1491 = vmatprep.subr.mxu0 0.0
        %1492 = vmatpush1.xpose.msra.mxu0 0.0
        %1493 = vmatprep.subr.mxu0 0.0
        %1494 = vmatpush1.xpose.msra.mxu0 0.0
        %1495 = vmatprep.subr.mxu0 0.0
        %1496 = vmatpush1.xpose.msra.mxu0 0.0
        %1497 = vmatprep.subr.mxu0 0.0
        %1498 = vmatpush1.xpose.msra.mxu0 0.0
        %1499 = vmatprep.subr.mxu0 0.0
        %1500 = vmatpush1.xpose.msra.mxu0 0.0
        %1501 = vmatprep.subr.mxu0 0.0
        %1502 = vmatpush1.xpose.msra.mxu0 0.0
        %1503 = vmatprep.subr.mxu0 0.0
        %1504 = vmatpush1.xpose.msra.mxu0 0.0
        %1505 = vmatprep.subr.mxu0 0.0
        %1506 = vmatpush1.xpose.msra.mxu0 0.0
        %1507 = vmatprep.subr.mxu0 0.0
        %1508 = vmatpush1.xpose.msra.mxu0 0.0
        %1509 = vmatprep.subr.mxu0 0.0
        %1510 = vmatpush1.xpose.msra.mxu0 0.0
        %1511 = vmatprep.subr.mxu0 0.0
        %1512 = vmatpush1.xpose.msra.mxu0 0.0
        %1513 = vmatprep.subr.mxu0 0.0
        %1514 = vmatpush1.xpose.msra.mxu0 0.0
        %1515 = vmatprep.subr.mxu0 0.0
        %1516 = vmatpush1.xpose.msra.mxu0 0.0
        %1517 = vmatprep.subr.mxu0 0.0
        %1518 = vmatpush1.xpose.msra.mxu0 0.0
        %1519 = vmatprep.subr.mxu0 0.0
        %1520 = vmatpush1.xpose.msra.mxu0 0.0
        %1521 = vmatprep.mubr.f32.mxu0 0.0
        %1522 = vmatmul.mubr.f32.gmra.mrb[0].mxu0 %v1221
        %v1523 = vpop.f32.mrb[0].mxu0
        %v1524 = vadd.f32 %v1218, %v1523
        %v1525 = vpop.f32.mrb[0].mxu0
        %1526 = vdwg.mxu0
        %v1528 = vsel %vm1003, %v1205, 0
        %v1531 = vsel %vm1003, %v1206, 0
        %1533 = vmatprep.subr.mxu0 0.0
        %1534 = vmatpush1.xpose.msra.mxu0 %v1528
        %1535 = vmatprep.subr.mxu0 0.0
        %1536 = vmatpush1.xpose.msra.mxu0 %v1531
        %1537 = vmatprep.subr.mxu0 0.0
        %1538 = vmatpush1.xpose.msra.mxu0 0.0
        %1539 = vmatprep.subr.mxu0 0.0
        %1540 = vmatpush1.xpose.msra.mxu0 0.0
        %1541 = vmatprep.subr.mxu0 0.0
        %1542 = vmatpush1.xpose.msra.mxu0 0.0
        %1543 = vmatprep.subr.mxu0 0.0
        %1544 = vmatpush1.xpose.msra.mxu0 0.0
        %1545 = vmatprep.subr.mxu0 0.0
        %1546 = vmatpush1.xpose.msra.mxu0 0.0
        %1547 = vmatprep.subr.mxu0 0.0
        %1548 = vmatpush1.xpose.msra.mxu0 0.0
        %1549 = vmatprep.subr.mxu0 0.0
        %1550 = vmatpush1.xpose.msra.mxu0 0.0
        %1551 = vmatprep.subr.mxu0 0.0
        %1552 = vmatpush1.xpose.msra.mxu0 0.0
        %1553 = vmatprep.subr.mxu0 0.0
        %1554 = vmatpush1.xpose.msra.mxu0 0.0
        %1555 = vmatprep.subr.mxu0 0.0
        %1556 = vmatpush1.xpose.msra.mxu0 0.0
        %1557 = vmatprep.subr.mxu0 0.0
        %1558 = vmatpush1.xpose.msra.mxu0 0.0
        %1559 = vmatprep.subr.mxu0 0.0
        %1560 = vmatpush1.xpose.msra.mxu0 0.0
        %1561 = vmatprep.subr.mxu0 0.0
        %1562 = vmatpush1.xpose.msra.mxu0 0.0
        %1563 = vmatprep.subr.mxu0 0.0
        %1564 = vmatpush1.xpose.msra.mxu0 0.0
        %1565 = vmatprep.subr.mxu0 0.0
        %1566 = vmatpush1.xpose.msra.mxu0 0.0
        %1567 = vmatprep.subr.mxu0 0.0
        %1568 = vmatpush1.xpose.msra.mxu0 0.0
        %1569 = vmatprep.subr.mxu0 0.0
        %1570 = vmatpush1.xpose.msra.mxu0 0.0
        %1571 = vmatprep.subr.mxu0 0.0
        %1572 = vmatpush1.xpose.msra.mxu0 0.0
        %1573 = vmatprep.subr.mxu0 0.0
        %1574 = vmatpush1.xpose.msra.mxu0 0.0
        %1575 = vmatprep.subr.mxu0 0.0
        %1576 = vmatpush1.xpose.msra.mxu0 0.0
        %1577 = vmatprep.subr.mxu0 0.0
        %1578 = vmatpush1.xpose.msra.mxu0 0.0
        %1579 = vmatprep.subr.mxu0 0.0
        %1580 = vmatpush1.xpose.msra.mxu0 0.0
        %1581 = vmatprep.subr.mxu0 0.0
        %1582 = vmatpush1.xpose.msra.mxu0 0.0
        %1583 = vmatprep.subr.mxu0 0.0
        %1584 = vmatpush1.xpose.msra.mxu0 0.0
        %1585 = vmatprep.subr.mxu0 0.0
        %1586 = vmatpush1.xpose.msra.mxu0 0.0
        %1587 = vmatprep.subr.mxu0 0.0
        %1588 = vmatpush1.xpose.msra.mxu0 0.0
        %1589 = vmatprep.subr.mxu0 0.0
        %1590 = vmatpush1.xpose.msra.mxu0 0.0
        %1591 = vmatprep.subr.mxu0 0.0
        %1592 = vmatpush1.xpose.msra.mxu0 0.0
        %1593 = vmatprep.subr.mxu0 0.0
        %1594 = vmatpush1.xpose.msra.mxu0 0.0
        %1595 = vmatprep.subr.mxu0 0.0
        %1596 = vmatpush1.xpose.msra.mxu0 0.0
        %1597 = vmatprep.mubr.f32.mxu0 0.0
        %1598 = vmatmul.mubr.f32.gmra.mrb[0].mxu0 %v1221
        %v1599 = vpop.f32.mrb[0].mxu0
        %v1600 = vadd.f32 %v1218, %v1599
        %v1601 = vpop.f32.mrb[0].mxu0
        %1602 = vdwg.mxu0
        %v1604 = vsel %vm1003, %v1207, 0
        %v1607 = vsel %vm1003, %v1208, 0
        %1609 = vmatprep.subr.mxu0 0.0
        %1610 = vmatpush1.xpose.msra.mxu0 %v1604
        %1611 = vmatprep.subr.mxu0 0.0
        %1612 = vmatpush1.xpose.msra.mxu0 %v1607
        %1613 = vmatprep.subr.mxu0 0.0
        %1614 = vmatpush1.xpose.msra.mxu0 0.0
        %1615 = vmatprep.subr.mxu0 0.0
        %1616 = vmatpush1.xpose.msra.mxu0 0.0
        %1617 = vmatprep.subr.mxu0 0.0
        %1618 = vmatpush1.xpose.msra.mxu0 0.0
        %1619 = vmatprep.subr.mxu0 0.0
        %1620 = vmatpush1.xpose.msra.mxu0 0.0
        %1621 = vmatprep.subr.mxu0 0.0
        %1622 = vmatpush1.xpose.msra.mxu0 0.0
        %1623 = vmatprep.subr.mxu0 0.0
        %1624 = vmatpush1.xpose.msra.mxu0 0.0
        %1625 = vmatprep.subr.mxu0 0.0
        %1626 = vmatpush1.xpose.msra.mxu0 0.0
        %1627 = vmatprep.subr.mxu0 0.0
        %1628 = vmatpush1.xpose.msra.mxu0 0.0
        %1629 = vmatprep.subr.mxu0 0.0
        %1630 = vmatpush1.xpose.msra.mxu0 0.0
        %1631 = vmatprep.subr.mxu0 0.0
        %1632 = vmatpush1.xpose.msra.mxu0 0.0
        %1633 = vmatprep.subr.mxu0 0.0
        %1634 = vmatpush1.xpose.msra.mxu0 0.0
        %1635 = vmatprep.subr.mxu0 0.0
        %1636 = vmatpush1.xpose.msra.mxu0 0.0
        %1637 = vmatprep.subr.mxu0 0.0
        %1638 = vmatpush1.xpose.msra.mxu0 0.0
        %1639 = vmatprep.subr.mxu0 0.0
        %1640 = vmatpush1.xpose.msra.mxu0 0.0
        %1641 = vmatprep.subr.mxu0 0.0
        %1642 = vmatpush1.xpose.msra.mxu0 0.0
        %1643 = vmatprep.subr.mxu0 0.0
        %1644 = vmatpush1.xpose.msra.mxu0 0.0
        %1645 = vmatprep.subr.mxu0 0.0
        %1646 = vmatpush1.xpose.msra.mxu0 0.0
        %1647 = vmatprep.subr.mxu0 0.0
        %1648 = vmatpush1.xpose.msra.mxu0 0.0
        %1649 = vmatprep.subr.mxu0 0.0
        %1650 = vmatpush1.xpose.msra.mxu0 0.0
        %1651 = vmatprep.subr.mxu0 0.0
        %1652 = vmatpush1.xpose.msra.mxu0 0.0
        %1653 = vmatprep.subr.mxu0 0.0
        %1654 = vmatpush1.xpose.msra.mxu0 0.0
        %1655 = vmatprep.subr.mxu0 0.0
        %1656 = vmatpush1.xpose.msra.mxu0 0.0
        %1657 = vmatprep.subr.mxu0 0.0
        %1658 = vmatpush1.xpose.msra.mxu0 0.0
        %1659 = vmatprep.subr.mxu0 0.0
        %1660 = vmatpush1.xpose.msra.mxu0 0.0
        %1661 = vmatprep.subr.mxu0 0.0
        %1662 = vmatpush1.xpose.msra.mxu0 0.0
        %1663 = vmatprep.subr.mxu0 0.0
        %1664 = vmatpush1.xpose.msra.mxu0 0.0
        %1665 = vmatprep.subr.mxu0 0.0
        %1666 = vmatpush1.xpose.msra.mxu0 0.0
        %1667 = vmatprep.subr.mxu0 0.0
        %1668 = vmatpush1.xpose.msra.mxu0 0.0
        %1669 = vmatprep.subr.mxu0 0.0
        %1670 = vmatpush1.xpose.msra.mxu0 0.0
        %1671 = vmatprep.subr.mxu0 0.0
        %1672 = vmatpush1.xpose.msra.mxu0 0.0
        %1673 = vmatprep.mubr.f32.mxu0 0.0
        %1674 = vmatmul.mubr.f32.gmra.mrb[0].mxu0 %v1221
        %v1675 = vpop.f32.mrb[0].mxu0
        %v1676 = vadd.f32 %v1218, %v1675
        %v1677 = vpop.f32.mrb[0].mxu0
        %1678 = vdwg.mxu0
        %v1680 = vsel %vm1003, %v1209, 0
        %v1683 = vsel %vm1003, %v1210, 0
        %1685 = vmatprep.subr.mxu0 0.0
        %1686 = vmatpush1.xpose.msra.mxu0 %v1680
        %1687 = vmatprep.subr.mxu0 0.0
        %1688 = vmatpush1.xpose.msra.mxu0 %v1683
        %1689 = vmatprep.subr.mxu0 0.0
        %1690 = vmatpush1.xpose.msra.mxu0 0.0
        %1691 = vmatprep.subr.mxu0 0.0
        %1692 = vmatpush1.xpose.msra.mxu0 0.0
        %1693 = vmatprep.subr.mxu0 0.0
        %1694 = vmatpush1.xpose.msra.mxu0 0.0
        %1695 = vmatprep.subr.mxu0 0.0
        %1696 = vmatpush1.xpose.msra.mxu0 0.0
        %1697 = vmatprep.subr.mxu0 0.0
        %1698 = vmatpush1.xpose.msra.mxu0 0.0
        %1699 = vmatprep.subr.mxu0 0.0
        %1700 = vmatpush1.xpose.msra.mxu0 0.0
        %1701 = vmatprep.subr.mxu0 0.0
        %1702 = vmatpush1.xpose.msra.mxu0 0.0
        %1703 = vmatprep.subr.mxu0 0.0
        %1704 = vmatpush1.xpose.msra.mxu0 0.0
        %1705 = vmatprep.subr.mxu0 0.0
        %1706 = vmatpush1.xpose.msra.mxu0 0.0
        %1707 = vmatprep.subr.mxu0 0.0
        %1708 = vmatpush1.xpose.msra.mxu0 0.0
        %1709 = vmatprep.subr.mxu0 0.0
        %1710 = vmatpush1.xpose.msra.mxu0 0.0
        %1711 = vmatprep.subr.mxu0 0.0
        %1712 = vmatpush1.xpose.msra.mxu0 0.0
        %1713 = vmatprep.subr.mxu0 0.0
        %1714 = vmatpush1.xpose.msra.mxu0 0.0
        %1715 = vmatprep.subr.mxu0 0.0
        %1716 = vmatpush1.xpose.msra.mxu0 0.0
        %1717 = vmatprep.subr.mxu0 0.0
        %1718 = vmatpush1.xpose.msra.mxu0 0.0
        %1719 = vmatprep.subr.mxu0 0.0
        %1720 = vmatpush1.xpose.msra.mxu0 0.0
        %1721 = vmatprep.subr.mxu0 0.0
        %1722 = vmatpush1.xpose.msra.mxu0 0.0
        %1723 = vmatprep.subr.mxu0 0.0
        %1724 = vmatpush1.xpose.msra.mxu0 0.0
        %1725 = vmatprep.subr.mxu0 0.0
        %1726 = vmatpush1.xpose.msra.mxu0 0.0
        %1727 = vmatprep.subr.mxu0 0.0
        %1728 = vmatpush1.xpose.msra.mxu0 0.0
        %1729 = vmatprep.subr.mxu0 0.0
        %1730 = vmatpush1.xpose.msra.mxu0 0.0
        %1731 = vmatprep.subr.mxu0 0.0
        %1732 = vmatpush1.xpose.msra.mxu0 0.0
        %1733 = vmatprep.subr.mxu0 0.0
        %1734 = vmatpush1.xpose.msra.mxu0 0.0
        %1735 = vmatprep.subr.mxu0 0.0
        %1736 = vmatpush1.xpose.msra.mxu0 0.0
        %1737 = vmatprep.subr.mxu0 0.0
        %1738 = vmatpush1.xpose.msra.mxu0 0.0
        %1739 = vmatprep.subr.mxu0 0.0
        %1740 = vmatpush1.xpose.msra.mxu0 0.0
        %1741 = vmatprep.subr.mxu0 0.0
        %1742 = vmatpush1.xpose.msra.mxu0 0.0
        %1743 = vmatprep.subr.mxu0 0.0
        %1744 = vmatpush1.xpose.msra.mxu0 0.0
        %1745 = vmatprep.subr.mxu0 0.0
        %1746 = vmatpush1.xpose.msra.mxu0 0.0
        %1747 = vmatprep.subr.mxu0 0.0
        %1748 = vmatpush1.xpose.msra.mxu0 0.0
        %1749 = vmatprep.mubr.f32.mxu0 0.0
        %1750 = vmatmul.mubr.f32.gmra.mrb[0].mxu0 %v1221
        %v1751 = vpop.f32.mrb[0].mxu0
        %v1752 = vadd.f32 %v1218, %v1751
        %v1753 = vpop.f32.mrb[0].mxu0
        %1754 = vdwg.mxu0
        %v1756 = vsel %vm1003, %v1211, 0
        %v1759 = vsel %vm1003, %v1212, 0
        %1761 = vmatprep.subr.mxu0 0.0
        %1762 = vmatpush1.xpose.msra.mxu0 %v1756
        %1763 = vmatprep.subr.mxu0 0.0
        %1764 = vmatpush1.xpose.msra.mxu0 %v1759
        %1765 = vmatprep.subr.mxu0 0.0
        %1766 = vmatpush1.xpose.msra.mxu0 0.0
        %1767 = vmatprep.subr.mxu0 0.0
        %1768 = vmatpush1.xpose.msra.mxu0 0.0
        %1769 = vmatprep.subr.mxu0 0.0
        %1770 = vmatpush1.xpose.msra.mxu0 0.0
        %1771 = vmatprep.subr.mxu0 0.0
        %1772 = vmatpush1.xpose.msra.mxu0 0.0
        %1773 = vmatprep.subr.mxu0 0.0
        %1774 = vmatpush1.xpose.msra.mxu0 0.0
        %1775 = vmatprep.subr.mxu0 0.0
        %1776 = vmatpush1.xpose.msra.mxu0 0.0
        %1777 = vmatprep.subr.mxu0 0.0
        %1778 = vmatpush1.xpose.msra.mxu0 0.0
        %1779 = vmatprep.subr.mxu0 0.0
        %1780 = vmatpush1.xpose.msra.mxu0 0.0
        %1781 = vmatprep.subr.mxu0 0.0
        %1782 = vmatpush1.xpose.msra.mxu0 0.0
        %1783 = vmatprep.subr.mxu0 0.0
        %1784 = vmatpush1.xpose.msra.mxu0 0.0
        %1785 = vmatprep.subr.mxu0 0.0
        %1786 = vmatpush1.xpose.msra.mxu0 0.0
        %1787 = vmatprep.subr.mxu0 0.0
        %1788 = vmatpush1.xpose.msra.mxu0 0.0
        %1789 = vmatprep.subr.mxu0 0.0
        %1790 = vmatpush1.xpose.msra.mxu0 0.0
        %1791 = vmatprep.subr.mxu0 0.0
        %1792 = vmatpush1.xpose.msra.mxu0 0.0
        %1793 = vmatprep.subr.mxu0 0.0
        %1794 = vmatpush1.xpose.msra.mxu0 0.0
        %1795 = vmatprep.subr.mxu0 0.0
        %1796 = vmatpush1.xpose.msra.mxu0 0.0
        %1797 = vmatprep.subr.mxu0 0.0
        %1798 = vmatpush1.xpose.msra.mxu0 0.0
        %1799 = vmatprep.subr.mxu0 0.0
        %1800 = vmatpush1.xpose.msra.mxu0 0.0
        %1801 = vmatprep.subr.mxu0 0.0
        %1802 = vmatpush1.xpose.msra.mxu0 0.0
        %1803 = vmatprep.subr.mxu0 0.0
        %1804 = vmatpush1.xpose.msra.mxu0 0.0
        %1805 = vmatprep.subr.mxu0 0.0
        %1806 = vmatpush1.xpose.msra.mxu0 0.0
        %1807 = vmatprep.subr.mxu0 0.0
        %1808 = vmatpush1.xpose.msra.mxu0 0.0
        %1809 = vmatprep.subr.mxu0 0.0
        %1810 = vmatpush1.xpose.msra.mxu0 0.0
        %1811 = vmatprep.subr.mxu0 0.0
        %1812 = vmatpush1.xpose.msra.mxu0 0.0
        %1813 = vmatprep.subr.mxu0 0.0
        %1814 = vmatpush1.xpose.msra.mxu0 0.0
        %1815 = vmatprep.subr.mxu0 0.0
        %1816 = vmatpush1.xpose.msra.mxu0 0.0
        %1817 = vmatprep.subr.mxu0 0.0
        %1818 = vmatpush1.xpose.msra.mxu0 0.0
        %1819 = vmatprep.subr.mxu0 0.0
        %1820 = vmatpush1.xpose.msra.mxu0 0.0
        %1821 = vmatprep.subr.mxu0 0.0
        %1822 = vmatpush1.xpose.msra.mxu0 0.0
        %1823 = vmatprep.subr.mxu0 0.0
        %1824 = vmatpush1.xpose.msra.mxu0 0.0
        %1825 = vmatprep.mubr.f32.mxu0 0.0
        %1826 = vmatmul.mubr.f32.gmra.mrb[0].mxu0 %v1221
        %v1827 = vpop.f32.mrb[0].mxu0
        %v1828 = vadd.f32 %v1218, %v1827
        %v1829 = vpop.f32.mrb[0].mxu0
        %1830 = vdwg.mxu0
        %v1831 = vsel %vm1003, %v1296, -inf
        %1832 = vmax.xlane.f32.xlu0 %v1831
        %v1833 = vpop.xlane.xlu0 %1832
        %v1834 = vsel %vm1003, %v1372, -inf
        %1835 = vmax.xlane.f32.xlu0 %v1834
        %v1836 = vpop.xlane.xlu0 %1835
        %v1837 = vsel %vm1003, %v1448, -inf
        %1838 = vmax.xlane.f32.xlu0 %v1837
        %v1839 = vpop.xlane.xlu0 %1838
        %v1840 = vsel %vm1003, %v1524, -inf
        %1841 = vmax.xlane.f32.xlu0 %v1840
        %v1842 = vpop.xlane.xlu0 %1841
        %v1843 = vsel %vm1003, %v1600, -inf
        %1844 = vmax.xlane.f32.xlu0 %v1843
        %v1845 = vpop.xlane.xlu0 %1844
        %v1846 = vsel %vm1003, %v1676, -inf
        %1847 = vmax.xlane.f32.xlu0 %v1846
        %v1848 = vpop.xlane.xlu0 %1847
        %v1849 = vsel %vm1003, %v1752, -inf
        %1850 = vmax.xlane.f32.xlu0 %v1849
        %v1851 = vpop.xlane.xlu0 %1850
        %v1852 = vsel %vm1003, %v1828, -inf
        %1853 = vmax.xlane.f32.xlu0 %v1852
        %v1854 = vpop.xlane.xlu0 %1853
        %v1855 = vsub.f32 %v1296, %v1833
        %v1856 = vsub.f32 %v1372, %v1836
        %v1857 = vsub.f32 %v1448, %v1839
        %v1858 = vsub.f32 %v1524, %v1842
        %v1859 = vsub.f32 %v1600, %v1845
        %v1860 = vsub.f32 %v1676, %v1848
        %v1861 = vsub.f32 %v1752, %v1851
        %v1862 = vsub.f32 %v1828, %v1854
        %v1863 = vmul.f32 %v1855, 1.442695
        %v1864 = vpow.pop %v1863
        %v1865 = vmul.f32 %v1856, 1.442695
        %v1866 = vpow.pop %v1865
        %v1867 = vmul.f32 %v1857, 1.442695
        %v1868 = vpow.pop %v1867
        %v1869 = vmul.f32 %v1858, 1.442695
        %v1870 = vpow.pop %v1869
        %v1871 = vmul.f32 %v1859, 1.442695
        %v1872 = vpow.pop %v1871
        %v1873 = vmul.f32 %v1860, 1.442695
        %v1874 = vpow.pop %v1873
        %v1875 = vmul.f32 %v1861, 1.442695
        %v1876 = vpow.pop %v1875
        %v1877 = vmul.f32 %v1862, 1.442695
        %v1878 = vpow.pop %v1877
        %v1879 = vsel %vm1003, %v1864, 0.0
        %1880 = vadd.xlane.f32.xlu0 %v1879
        %v1881 = vpop.xlane.xlu0 %1880
        %v1882 = vsel %vm1003, %v1866, 0.0
        %1883 = vadd.xlane.f32.xlu0 %v1882
        %v1884 = vpop.xlane.xlu0 %1883
        %v1885 = vsel %vm1003, %v1868, 0.0
        %1886 = vadd.xlane.f32.xlu0 %v1885
        %v1887 = vpop.xlane.xlu0 %1886
        %v1888 = vsel %vm1003, %v1870, 0.0
        %1889 = vadd.xlane.f32.xlu0 %v1888
        %v1890 = vpop.xlane.xlu0 %1889
        %v1891 = vsel %vm1003, %v1872, 0.0
        %1892 = vadd.xlane.f32.xlu0 %v1891
        %v1893 = vpop.xlane.xlu0 %1892
        %v1894 = vsel %vm1003, %v1874, 0.0
        %1895 = vadd.xlane.f32.xlu0 %v1894
        %v1896 = vpop.xlane.xlu0 %1895
        %v1897 = vsel %vm1003, %v1876, 0.0
        %1898 = vadd.xlane.f32.xlu0 %v1897
        %v1899 = vpop.xlane.xlu0 %1898
        %v1900 = vsel %vm1003, %v1878, 0.0
        %1901 = vadd.xlane.f32.xlu0 %v1900
        %v1902 = vpop.xlane.xlu0 %1901
        %v1903 = vrcp.pop %v1881
        %v1904 = vrcp.pop %v1884
        %v1905 = vrcp.pop %v1887
        %v1906 = vrcp.pop %v1890
        %v1907 = vrcp.pop %v1893
        %v1908 = vrcp.pop %v1896
        %v1909 = vrcp.pop %v1899
        %v1910 = vrcp.pop %v1902
        %v1911 = vmul.f32 %v1864, %v1903
        %v1912 = vmul.f32 %v1866, %v1904
        %v1913 = vmul.f32 %v1868, %v1905
        %v1914 = vmul.f32 %v1870, %v1906
        %v1915 = vmul.f32 %v1872, %v1907
        %v1916 = vmul.f32 %v1874, %v1908
        %v1917 = vmul.f32 %v1876, %v1909
        %v1918 = vmul.f32 %v1878, %v1910
        %v1919 = vld [vmem:[%s9] sm:$0xf]
        %v1920 = vld [vmem:[%s9 + $0x4] sm:$0xf]
        %v1921 = vld [vmem:[%s9 + $0x8] sm:$0xf]
        %v1922 = vld [vmem:[%s9 + $0xc] sm:$0xf]
        %v1923 = vld [vmem:[%s9 + $0x10] sm:$0xf]
        %v1924 = vld [vmem:[%s9 + $0x14] sm:$0xf]
        %v1925 = vld [vmem:[%s9 + $0x18] sm:$0xf]
        %v1926 = vld [vmem:[%s9 + $0x1c] sm:$0xf]
        %v1927 = vld [vmem:[%s5] sm:$0xf]
        %v1928 = vld [vmem:[%s5 + $0x4] sm:$0xf]
        %v1929 = vld [vmem:[%s5 + $0x8] sm:$0xf]
        %v1930 = vld [vmem:[%s5 + $0xc] sm:$0xf]
        %v1931 = vld [vmem:[%s6] sm:$0x1]
        %v1932 = vld [vmem:[%s398] sm:$0xff]
        %vm1933 = vcmask 261120
        %v1934 = vsel %vm1933, %v1932, 0.0
        %1935 = vadd.xlane.f32.xlu0 %v1934
        %v1936 = vpop.xlane.xlu0 %1935
        %v1937 = vrcp.pop 32.0
        %v1938 = vmul.f32 %v1936, %v1937
        %v1939 = vsub.f32 %v1932, %v1938
        %v1940 = vmul.f32 %v1939, %v1939
        %v1941 = vsel %vm1933, %v1940, 0.0
        %1942 = vadd.xlane.f32.xlu0 %v1941
        %v1943 = vpop.xlane.xlu0 %1942
        %v1944 = vmul.f32 %v1943, %v1937
        %v1945 = vadd.f32 %v1944, 1e-05
        %v1946 = vrsqrt.pop %v1945
        %v1947 = vmul.f32 %v1939, %v1946
        %v1948 = vpack.c.bf16 %v1947, %v1947
        %v1950 = vlaneseq
        %v1951 = vshrl.u32 %v1950, 7
        %v1952 = vsub.s32 0, %v1951
        %v1953 = vrot.slane %v1931, %v1952
        %v1959 = vunpack.c.l.b16 %v1927
        %v1960 = vunpack.c.l.b16 %v1928
        %v1961 = vunpack.c.l.b16 %v1929
        %v1962 = vunpack.c.l.b16 %v1930
        %v1963 = vpack.c.b16 %v1960, %v1959
        %v1964 = vpack.c.b16 %v1962, %v1961
        %v1968 = vsel %vm1933, %v1948, 0
        %1970 = vmatprep.subr.bf16.mxu0 0
        %1971 = vmatpush1.bf16.msra.mxu0 %v1963
        %1972 = vmatprep.subr.bf16.mxu0 0
        %1973 = vmatpush1.bf16.msra.mxu0 %v1964
        %1974 = vmatprep.subr.bf16.mxu0 0
        %1975 = vmatpush1.bf16.msra.mxu0 0
        %1976 = vmatprep.subr.bf16.mxu0 0
        %1977 = vmatpush1.bf16.msra.mxu0 0
        %1978 = vmatprep.subr.bf16.mxu0 0
        %1979 = vmatpush1.bf16.msra.mxu0 0
        %1980 = vmatprep.subr.bf16.mxu0 0
        %1981 = vmatpush1.bf16.msra.mxu0 0
        %1982 = vmatprep.subr.bf16.mxu0 0
        %1983 = vmatpush1.bf16.msra.mxu0 0
        %1984 = vmatprep.subr.bf16.mxu0 0
        %1985 = vmatpush1.bf16.msra.mxu0 0
        %1986 = vmatprep.subr.bf16.mxu0 0
        %1987 = vmatpush1.bf16.msra.mxu0 0
        %1988 = vmatprep.subr.bf16.mxu0 0
        %1989 = vmatpush1.bf16.msra.mxu0 0
        %1990 = vmatprep.subr.bf16.mxu0 0
        %1991 = vmatpush1.bf16.msra.mxu0 0
        %1992 = vmatprep.subr.bf16.mxu0 0
        %1993 = vmatpush1.bf16.msra.mxu0 0
        %1994 = vmatprep.subr.bf16.mxu0 0
        %1995 = vmatpush1.bf16.msra.mxu0 0
        %1996 = vmatprep.subr.bf16.mxu0 0
        %1997 = vmatpush1.bf16.msra.mxu0 0
        %1998 = vmatprep.subr.bf16.mxu0 0
        %1999 = vmatpush1.bf16.msra.mxu0 0
        %2000 = vmatprep.subr.bf16.mxu0 0
        %2001 = vmatpush1.bf16.msra.mxu0 0
        %2002 = vmatprep.mubr.bf16.mxu0 0
        %2003 = vmatmul.mubr.bf16.gmra.mrb[0].mxu0 %v1968
        %v2004 = vpop.f32.mrb[0].mxu0
        %v2005 = vadd.f32 %v1953, %v2004
        %v2006 = vpop.f32.mrb[0].mxu0
        %v2007 = vpop.f32.mrb[0].mxu0
        %v2008 = vpop.f32.mrb[0].mxu0
        %2009 = vdwg.mxu0
        %v2010 = vxor.u32 %v2005, 2147483648
        %v2011 = vmul.f32 %v2010, 1.442695
        %v2012 = vpow.pop %v2011
        %v2013 = vadd.f32 %v2012, 1.0
        %v2014 = vrcp.pop %v2013
        %v2015 = vmul.f32 1.0, %v2014
        %v2016 = vld [vmem:[#allocation2] sm:$0xff]
        %v2017 = vld [vmem:[#allocation2 + $0x8] sm:$0xff]
        %v2018 = vld [vmem:[#allocation2 + $0x10] sm:$0xff]
        %v2019 = vld [vmem:[#allocation2 + $0x18] sm:$0xff]
        %v2020 = vld [vmem:[#allocation2 + $0x20] sm:$0xff]
        %v2021 = vld [vmem:[#allocation2 + $0x28] sm:$0xff]
        %v2022 = vld [vmem:[#allocation2 + $0x30] sm:$0xff]
        %v2023 = vld [vmem:[#allocation2 + $0x38] sm:$0xff]
        %v2024 = vpack.c.bf16 %v1911, %v1911
        %v2025 = vpack.c.bf16 %v1912, %v1912
        %v2026 = vpack.c.bf16 %v1913, %v1913
        %v2027 = vpack.c.bf16 %v1914, %v1914
        %v2028 = vpack.c.bf16 %v1915, %v1915
        %v2029 = vpack.c.bf16 %v1916, %v1916
        %v2030 = vpack.c.bf16 %v1917, %v1917
        %v2031 = vpack.c.bf16 %v1918, %v1918
        %v2032 = vpack.c.bf16 %v2016, %v2016
        %v2041 = vunpack.c.l.b16 %v2024
        %v2042 = vunpack.c.l.b16 %v2025
        %v2043 = vunpack.c.l.b16 %v2026
        %v2044 = vunpack.c.l.b16 %v2027
        %v2045 = vunpack.c.l.b16 %v2028
        %v2046 = vunpack.c.l.b16 %v2029
        %v2047 = vunpack.c.l.b16 %v2030
        %v2048 = vunpack.c.l.b16 %v2031
        %v2049 = vrot.slane %v2042, 7
        %vm2050 = vcmask 1041409
        %v2051 = vsel %vm2050, %v2049, %v2041
        %v2052 = vrot.slane %v2043, 6
        %vm2053 = vcmask 1042434
        %v2054 = vsel %vm2053, %v2052, %v2051
        %v2055 = vrot.slane %v2044, 5
        %vm2056 = vcmask 1043459
        %v2057 = vsel %vm2056, %v2055, %v2054
        %v2058 = vrot.slane %v2045, 4
        %vm2059 = vcmask 1044484
        %v2060 = vsel %vm2059, %v2058, %v2057
        %v2061 = vrot.slane %v2046, 3
        %vm2062 = vcmask 1045509
        %v2063 = vsel %vm2062, %v2061, %v2060
        %v2064 = vrot.slane %v2047, 2
        %vm2065 = vcmask 1046534
        %v2066 = vsel %vm2065, %v2064, %v2063
        %v2067 = vrot.slane %v2048, 1
        %vm2068 = vcmask 1047559
        %v2069 = vsel %vm2068, %v2067, %v2066
        %v2070 = vpack.c.b16 %v2069, %v2069
        %v2072 = vsel %vm1003, %v2070, 0
        %v2075 = vsel %vm1003, %v2032, 0
        %2077 = vmatprep.subr.bf16.mxu0 0
        %2078 = vmatpush1.bf16.xpose.msra.mxu0 %v2075
        %2079 = vmatprep.subr.bf16.mxu0 0
        %2080 = vmatpush1.bf16.xpose.msra.mxu0 0
        %2081 = vmatprep.subr.bf16.mxu0 0
        %2082 = vmatpush1.bf16.xpose.msra.mxu0 0
        %2083 = vmatprep.subr.bf16.mxu0 0
        %2084 = vmatpush1.bf16.xpose.msra.mxu0 0
        %2085 = vmatprep.subr.bf16.mxu0 0
        %2086 = vmatpush1.bf16.xpose.msra.mxu0 0
        %2087 = vmatprep.subr.bf16.mxu0 0
        %2088 = vmatpush1.bf16.xpose.msra.mxu0 0
        %2089 = vmatprep.subr.bf16.mxu0 0
        %2090 = vmatpush1.bf16.xpose.msra.mxu0 0
        %2091 = vmatprep.subr.bf16.mxu0 0
        %2092 = vmatpush1.bf16.xpose.msra.mxu0 0
        %2093 = vmatprep.subr.bf16.mxu0 0
        %2094 = vmatpush1.bf16.xpose.msra.mxu0 0
        %2095 = vmatprep.subr.bf16.mxu0 0
        %2096 = vmatpush1.bf16.xpose.msra.mxu0 0
        %2097 = vmatprep.subr.bf16.mxu0 0
        %2098 = vmatpush1.bf16.xpose.msra.mxu0 0
        %2099 = vmatprep.subr.bf16.mxu0 0
        %2100 = vmatpush1.bf16.xpose.msra.mxu0 0
        %2101 = vmatprep.subr.bf16.mxu0 0
        %2102 = vmatpush1.bf16.xpose.msra.mxu0 0
        %2103 = vmatprep.subr.bf16.mxu0 0
        %2104 = vmatpush1.bf16.xpose.msra.mxu0 0
        %2105 = vmatprep.subr.bf16.mxu0 0
        %2106 = vmatpush1.bf16.xpose.msra.mxu0 0
        %2107 = vmatprep.subr.bf16.mxu0 0
        %2108 = vmatpush1.bf16.xpose.msra.mxu0 0
        %2109 = vmatprep.mubr.bf16.mxu0 0
        %2110 = vmatmul.mubr.bf16.gmra.mrb[0].mxu0 %v2072
        %v2111 = vpop.f32.mrb[0].mxu0
        %v2112 = vadd.f32 0.0, %v2111
        %v2113 = vpop.f32.mrb[0].mxu0
        %v2114 = vpop.f32.mrb[0].mxu0
        %v2115 = vpop.f32.mrb[0].mxu0
        %2116 = vdwg.mxu0
        %v2117 = vmul.f32 %v2015, %v2112
        %v2118 = vpack.c.bf16 %v2117, %v2117
        %v2119 = vpack.c.bf16 %v2017, %v2017
        %v2120 = vrot.slane %v2041, 1
        %v2121 = vsel %vm2050, %v2042, %v2120
        %v2122 = vrot.slane %v2043, 7
        %v2123 = vsel %vm2053, %v2122, %v2121
        %v2124 = vrot.slane %v2044, 6
        %v2125 = vsel %vm2056, %v2124, %v2123
        %v2126 = vrot.slane %v2045, 5
        %v2127 = vsel %vm2059, %v2126, %v2125
        %v2128 = vrot.slane %v2046, 4
        %v2129 = vsel %vm2062, %v2128, %v2127
        %v2130 = vrot.slane %v2047, 3
        %v2131 = vsel %vm2065, %v2130, %v2129
        %v2132 = vrot.slane %v2048, 2
        %v2133 = vsel %vm2068, %v2132, %v2131
        %v2134 = vpack.c.b16 %v2133, %v2133
        %v2136 = vsel %vm1003, %v2134, 0
        %v2139 = vsel %vm1003, %v2119, 0
        %2141 = vmatprep.subr.bf16.mxu0 0
        %2142 = vmatpush1.bf16.xpose.msra.mxu0 %v2139
        %2143 = vmatprep.subr.bf16.mxu0 0
        %2144 = vmatpush1.bf16.xpose.msra.mxu0 0
        %2145 = vmatprep.subr.bf16.mxu0 0
        %2146 = vmatpush1.bf16.xpose.msra.mxu0 0
        %2147 = vmatprep.subr.bf16.mxu0 0
        %2148 = vmatpush1.bf16.xpose.msra.mxu0 0
        %2149 = vmatprep.subr.bf16.mxu0 0
        %2150 = vmatpush1.bf16.xpose.msra.mxu0 0
        %2151 = vmatprep.subr.bf16.mxu0 0
        %2152 = vmatpush1.bf16.xpose.msra.mxu0 0
        %2153 = vmatprep.subr.bf16.mxu0 0
        %2154 = vmatpush1.bf16.xpose.msra.mxu0 0
        %2155 = vmatprep.subr.bf16.mxu0 0
        %2156 = vmatpush1.bf16.xpose.msra.mxu0 0
        %2157 = vmatprep.subr.bf16.mxu0 0
        %2158 = vmatpush1.bf16.xpose.msra.mxu0 0
        %2159 = vmatprep.subr.bf16.mxu0 0
        %2160 = vmatpush1.bf16.xpose.msra.mxu0 0
        %2161 = vmatprep.subr.bf16.mxu0 0
        %2162 = vmatpush1.bf16.xpose.msra.mxu0 0
        %2163 = vmatprep.subr.bf16.mxu0 0
        %2164 = vmatpush1.bf16.xpose.msra.mxu0 0
        %2165 = vmatprep.subr.bf16.mxu0 0
        %2166 = vmatpush1.bf16.xpose.msra.mxu0 0
        %2167 = vmatprep.subr.bf16.mxu0 0
        %2168 = vmatpush1.bf16.xpose.msra.mxu0 0
        %2169 = vmatprep.subr.bf16.mxu0 0
        %2170 = vmatpush1.bf16.xpose.msra.mxu0 0
        %2171 = vmatprep.subr.bf16.mxu0 0
        %2172 = vmatpush1.bf16.xpose.msra.mxu0 0
        %2173 = vmatprep.mubr.bf16.mxu0 0
        %2174 = vmatmul.mubr.bf16.gmra.mrb[0].mxu0 %v2136
        %v2175 = vpop.f32.mrb[0].mxu0
        %v2176 = vadd.f32 0.0, %v2175
        %v2177 = vpop.f32.mrb[0].mxu0
        %v2178 = vpop.f32.mrb[0].mxu0
        %v2179 = vpop.f32.mrb[0].mxu0
        %2180 = vdwg.mxu0
        %2182 = vrot.lane.b32.xlu0 %v2176, 8
        %v2183 = vpop.permute.xlu0 %2182
        %v2185 = vmul.f32 %v2015, %v2183
        %v2186 = vpack.c.bf16 %v2185, %v2185
        %2188 = vrot.lane.b32.xlu0 %v2186, 120
        %v2189 = vpop.permute.xlu0 %2188
        %vm2190 = vcmask 64512
        %v2192 = vsel %vm2190, %v2189, 0
        %vm2194 = vcmask 1043456
        %v2196 = vsel %vm2194, %v1920, 0
        %2198 = vmatprep.subr.bf16.mxu0 0
        %2199 = vmatpush1.bf16.msra.mxu0 %v2196
        %2200 = vmatprep.subr.bf16.mxu0 0
        %2201 = vmatpush1.bf16.msra.mxu0 0
        %2202 = vmatprep.subr.bf16.mxu0 0
        %2203 = vmatpush1.bf16.msra.mxu0 0
        %2204 = vmatprep.subr.bf16.mxu0 0
        %2205 = vmatpush1.bf16.msra.mxu0 0
        %2206 = vmatprep.subr.bf16.mxu0 0
        %2207 = vmatpush1.bf16.msra.mxu0 0
        %2208 = vmatprep.subr.bf16.mxu0 0
        %2209 = vmatpush1.bf16.msra.mxu0 0
        %2210 = vmatprep.subr.bf16.mxu0 0
        %2211 = vmatpush1.bf16.msra.mxu0 0
        %2212 = vmatprep.subr.bf16.mxu0 0
        %2213 = vmatpush1.bf16.msra.mxu0 0
        %2214 = vmatprep.subr.bf16.mxu0 0
        %2215 = vmatpush1.bf16.msra.mxu0 0
        %2216 = vmatprep.subr.bf16.mxu0 0
        %2217 = vmatpush1.bf16.msra.mxu0 0
        %2218 = vmatprep.subr.bf16.mxu0 0
        %2219 = vmatpush1.bf16.msra.mxu0 0
        %2220 = vmatprep.subr.bf16.mxu0 0
        %2221 = vmatpush1.bf16.msra.mxu0 0
        %2222 = vmatprep.subr.bf16.mxu0 0
        %2223 = vmatpush1.bf16.msra.mxu0 0
        %2224 = vmatprep.subr.bf16.mxu0 0
        %2225 = vmatpush1.bf16.msra.mxu0 0
        %2226 = vmatprep.subr.bf16.mxu0 0
        %2227 = vmatpush1.bf16.msra.mxu0 0
        %2228 = vmatprep.subr.bf16.mxu0 0
        %2229 = vmatpush1.bf16.msra.mxu0 0
        %2230 = vmatprep.mubr.bf16.mxu0 0
        %2231 = vmatmul.mubr.bf16.gmra.mrb[0].mxu0 %v2192
        %v2232 = vpop.f32.mrb[0].mxu0
        %v2233 = vadd.f32 0.0, %v2232
        %v2234 = vpop.f32.mrb[0].mxu0
        %v2235 = vpop.f32.mrb[0].mxu0
        %v2236 = vpop.f32.mrb[0].mxu0
        %2237 = vdwg.mxu0
        %v2239 = vsel %vm2190, %v2118, 0
        %v2242 = vsel %vm2194, %v1919, 0
        %2244 = vmatprep.subr.bf16.mxu0 0
        %2245 = vmatpush1.bf16.msra.mxu0 %v2242
        %2246 = vmatprep.subr.bf16.mxu0 0
        %2247 = vmatpush1.bf16.msra.mxu0 0
        %2248 = vmatprep.subr.bf16.mxu0 0
        %2249 = vmatpush1.bf16.msra.mxu0 0
        %2250 = vmatprep.subr.bf16.mxu0 0
        %2251 = vmatpush1.bf16.msra.mxu0 0
        %2252 = vmatprep.subr.bf16.mxu0 0
        %2253 = vmatpush1.bf16.msra.mxu0 0
        %2254 = vmatprep.subr.bf16.mxu0 0
        %2255 = vmatpush1.bf16.msra.mxu0 0
        %2256 = vmatprep.subr.bf16.mxu0 0
        %2257 = vmatpush1.bf16.msra.mxu0 0
        %2258 = vmatprep.subr.bf16.mxu0 0
        %2259 = vmatpush1.bf16.msra.mxu0 0
        %2260 = vmatprep.subr.bf16.mxu0 0
        %2261 = vmatpush1.bf16.msra.mxu0 0
        %2262 = vmatprep.subr.bf16.mxu0 0
        %2263 = vmatpush1.bf16.msra.mxu0 0
        %2264 = vmatprep.subr.bf16.mxu0 0
        %2265 = vmatpush1.bf16.msra.mxu0 0
        %2266 = vmatprep.subr.bf16.mxu0 0
        %2267 = vmatpush1.bf16.msra.mxu0 0
        %2268 = vmatprep.subr.bf16.mxu0 0
        %2269 = vmatpush1.bf16.msra.mxu0 0
        %2270 = vmatprep.subr.bf16.mxu0 0
        %2271 = vmatpush1.bf16.msra.mxu0 0
        %2272 = vmatprep.subr.bf16.mxu0 0
        %2273 = vmatpush1.bf16.msra.mxu0 0
        %2274 = vmatprep.subr.bf16.mxu0 0
        %2275 = vmatpush1.bf16.msra.mxu0 0
        %2276 = vmatprep.mubr.bf16.mxu0 0
        %2277 = vmatmul.mubr.bf16.gmra.mrb[0].mxu0 %v2239
        %v2278 = vpop.f32.mrb[0].mxu0
        %v2279 = vadd.f32 %v2233, %v2278
        %v2280 = vpop.f32.mrb[0].mxu0
        %v2281 = vpop.f32.mrb[0].mxu0
        %v2282 = vpop.f32.mrb[0].mxu0
        %2283 = vdwg.mxu0
        %v2284 = vpack.c.bf16 %v2018, %v2018
        %v2285 = vrot.slane %v2041, 2
        %v2286 = vrot.slane %v2042, 1
        %v2287 = vsel %vm2050, %v2286, %v2285
        %v2288 = vsel %vm2053, %v2043, %v2287
        %v2289 = vrot.slane %v2044, 7
        %v2290 = vsel %vm2056, %v2289, %v2288
        %v2291 = vrot.slane %v2045, 6
        %v2292 = vsel %vm2059, %v2291, %v2290
        %v2293 = vrot.slane %v2046, 5
        %v2294 = vsel %vm2062, %v2293, %v2292
        %v2295 = vrot.slane %v2047, 4
        %v2296 = vsel %vm2065, %v2295, %v2294
        %v2297 = vrot.slane %v2048, 3
        %v2298 = vsel %vm2068, %v2297, %v2296
        %v2299 = vpack.c.b16 %v2298, %v2298
        %v2301 = vsel %vm1003, %v2299, 0
        %v2304 = vsel %vm1003, %v2284, 0
        %2306 = vmatprep.subr.bf16.mxu0 0
        %2307 = vmatpush1.bf16.xpose.msra.mxu0 %v2304
        %2308 = vmatprep.subr.bf16.mxu0 0
        %2309 = vmatpush1.bf16.xpose.msra.mxu0 0
        %2310 = vmatprep.subr.bf16.mxu0 0
        %2311 = vmatpush1.bf16.xpose.msra.mxu0 0
        %2312 = vmatprep.subr.bf16.mxu0 0
        %2313 = vmatpush1.bf16.xpose.msra.mxu0 0
        %2314 = vmatprep.subr.bf16.mxu0 0
        %2315 = vmatpush1.bf16.xpose.msra.mxu0 0
        %2316 = vmatprep.subr.bf16.mxu0 0
        %2317 = vmatpush1.bf16.xpose.msra.mxu0 0
        %2318 = vmatprep.subr.bf16.mxu0 0
        %2319 = vmatpush1.bf16.xpose.msra.mxu0 0
        %2320 = vmatprep.subr.bf16.mxu0 0
        %2321 = vmatpush1.bf16.xpose.msra.mxu0 0
        %2322 = vmatprep.subr.bf16.mxu0 0
        %2323 = vmatpush1.bf16.xpose.msra.mxu0 0
        %2324 = vmatprep.subr.bf16.mxu0 0
        %2325 = vmatpush1.bf16.xpose.msra.mxu0 0
        %2326 = vmatprep.subr.bf16.mxu0 0
        %2327 = vmatpush1.bf16.xpose.msra.mxu0 0
        %2328 = vmatprep.subr.bf16.mxu0 0
        %2329 = vmatpush1.bf16.xpose.msra.mxu0 0
        %2330 = vmatprep.subr.bf16.mxu0 0
        %2331 = vmatpush1.bf16.xpose.msra.mxu0 0
        %2332 = vmatprep.subr.bf16.mxu0 0
        %2333 = vmatpush1.bf16.xpose.msra.mxu0 0
        %2334 = vmatprep.subr.bf16.mxu0 0
        %2335 = vmatpush1.bf16.xpose.msra.mxu0 0
        %2336 = vmatprep.subr.bf16.mxu0 0
        %2337 = vmatpush1.bf16.xpose.msra.mxu0 0
        %2338 = vmatprep.mubr.bf16.mxu0 0
        %2339 = vmatmul.mubr.bf16.gmra.mrb[0].mxu0 %v2301
        %v2340 = vpop.f32.mrb[0].mxu0
        %v2341 = vadd.f32 0.0, %v2340
        %v2342 = vpop.f32.mrb[0].mxu0
        %v2343 = vpop.f32.mrb[0].mxu0
        %v2344 = vpop.f32.mrb[0].mxu0
        %2345 = vdwg.mxu0
        %2347 = vrot.lane.b32.xlu0 %v2341, 16
        %v2348 = vpop.permute.xlu0 %2347
        %v2350 = vmul.f32 %v2015, %v2348
        %v2351 = vpack.c.bf16 %v2350, %v2350
        %2353 = vrot.lane.b32.xlu0 %v2351, 112
        %v2354 = vpop.permute.xlu0 %2353
        %v2356 = vsel %vm2190, %v2354, 0
        %v2359 = vsel %vm2194, %v1921, 0
        %2361 = vmatprep.subr.bf16.mxu0 0
        %2362 = vmatpush1.bf16.msra.mxu0 %v2359
        %2363 = vmatprep.subr.bf16.mxu0 0
        %2364 = vmatpush1.bf16.msra.mxu0 0
        %2365 = vmatprep.subr.bf16.mxu0 0
        %2366 = vmatpush1.bf16.msra.mxu0 0
        %2367 = vmatprep.subr.bf16.mxu0 0
        %2368 = vmatpush1.bf16.msra.mxu0 0
        %2369 = vmatprep.subr.bf16.mxu0 0
        %2370 = vmatpush1.bf16.msra.mxu0 0
        %2371 = vmatprep.subr.bf16.mxu0 0
        %2372 = vmatpush1.bf16.msra.mxu0 0
        %2373 = vmatprep.subr.bf16.mxu0 0
        %2374 = vmatpush1.bf16.msra.mxu0 0
        %2375 = vmatprep.subr.bf16.mxu0 0
        %2376 = vmatpush1.bf16.msra.mxu0 0
        %2377 = vmatprep.subr.bf16.mxu0 0
        %2378 = vmatpush1.bf16.msra.mxu0 0
        %2379 = vmatprep.subr.bf16.mxu0 0
        %2380 = vmatpush1.bf16.msra.mxu0 0
        %2381 = vmatprep.subr.bf16.mxu0 0
        %2382 = vmatpush1.bf16.msra.mxu0 0
        %2383 = vmatprep.subr.bf16.mxu0 0
        %2384 = vmatpush1.bf16.msra.mxu0 0
        %2385 = vmatprep.subr.bf16.mxu0 0
        %2386 = vmatpush1.bf16.msra.mxu0 0
        %2387 = vmatprep.subr.bf16.mxu0 0
        %2388 = vmatpush1.bf16.msra.mxu0 0
        %2389 = vmatprep.subr.bf16.mxu0 0
        %2390 = vmatpush1.bf16.msra.mxu0 0
        %2391 = vmatprep.subr.bf16.mxu0 0
        %2392 = vmatpush1.bf16.msra.mxu0 0
        %2393 = vmatprep.mubr.bf16.mxu0 0
        %2394 = vmatmul.mubr.bf16.gmra.mrb[0].mxu0 %v2356
        %v2395 = vpop.f32.mrb[0].mxu0
        %v2396 = vadd.f32 0.0, %v2395
        %v2397 = vpop.f32.mrb[0].mxu0
        %v2398 = vpop.f32.mrb[0].mxu0
        %v2399 = vpop.f32.mrb[0].mxu0
        %2400 = vdwg.mxu0
        %v2401 = vadd.f32 %v2279, %v2396
        %v2402 = vpack.c.bf16 %v2019, %v2019
        %v2403 = vrot.slane %v2041, 3
        %v2404 = vrot.slane %v2042, 2
        %v2405 = vsel %vm2050, %v2404, %v2403
        %v2406 = vrot.slane %v2043, 1
        %v2407 = vsel %vm2053, %v2406, %v2405
        %v2408 = vsel %vm2056, %v2044, %v2407
        %v2409 = vrot.slane %v2045, 7
        %v2410 = vsel %vm2059, %v2409, %v2408
        %v2411 = vrot.slane %v2046, 6
        %v2412 = vsel %vm2062, %v2411, %v2410
        %v2413 = vrot.slane %v2047, 5
        %v2414 = vsel %vm2065, %v2413, %v2412
        %v2415 = vrot.slane %v2048, 4
        %v2416 = vsel %vm2068, %v2415, %v2414
        %v2417 = vpack.c.b16 %v2416, %v2416
        %v2419 = vsel %vm1003, %v2417, 0
        %v2422 = vsel %vm1003, %v2402, 0
        %2424 = vmatprep.subr.bf16.mxu0 0
        %2425 = vmatpush1.bf16.xpose.msra.mxu0 %v2422
        %2426 = vmatprep.subr.bf16.mxu0 0
        %2427 = vmatpush1.bf16.xpose.msra.mxu0 0
        %2428 = vmatprep.subr.bf16.mxu0 0
        %2429 = vmatpush1.bf16.xpose.msra.mxu0 0
        %2430 = vmatprep.subr.bf16.mxu0 0
        %2431 = vmatpush1.bf16.xpose.msra.mxu0 0
        %2432 = vmatprep.subr.bf16.mxu0 0
        %2433 = vmatpush1.bf16.xpose.msra.mxu0 0
        %2434 = vmatprep.subr.bf16.mxu0 0
        %2435 = vmatpush1.bf16.xpose.msra.mxu0 0
        %2436 = vmatprep.subr.bf16.mxu0 0
        %2437 = vmatpush1.bf16.xpose.msra.mxu0 0
        %2438 = vmatprep.subr.bf16.mxu0 0
        %2439 = vmatpush1.bf16.xpose.msra.mxu0 0
        %2440 = vmatprep.subr.bf16.mxu0 0
        %2441 = vmatpush1.bf16.xpose.msra.mxu0 0
        %2442 = vmatprep.subr.bf16.mxu0 0
        %2443 = vmatpush1.bf16.xpose.msra.mxu0 0
        %2444 = vmatprep.subr.bf16.mxu0 0
        %2445 = vmatpush1.bf16.xpose.msra.mxu0 0
        %2446 = vmatprep.subr.bf16.mxu0 0
        %2447 = vmatpush1.bf16.xpose.msra.mxu0 0
        %2448 = vmatprep.subr.bf16.mxu0 0
        %2449 = vmatpush1.bf16.xpose.msra.mxu0 0
        %2450 = vmatprep.subr.bf16.mxu0 0
        %2451 = vmatpush1.bf16.xpose.msra.mxu0 0
        %2452 = vmatprep.subr.bf16.mxu0 0
        %2453 = vmatpush1.bf16.xpose.msra.mxu0 0
        %2454 = vmatprep.subr.bf16.mxu0 0
        %2455 = vmatpush1.bf16.xpose.msra.mxu0 0
        %2456 = vmatprep.mubr.bf16.mxu0 0
        %2457 = vmatmul.mubr.bf16.gmra.mrb[0].mxu0 %v2419
        %v2458 = vpop.f32.mrb[0].mxu0
        %v2459 = vadd.f32 0.0, %v2458
        %v2460 = vpop.f32.mrb[0].mxu0
        %v2461 = vpop.f32.mrb[0].mxu0
        %v2462 = vpop.f32.mrb[0].mxu0
        %2463 = vdwg.mxu0
        %2465 = vrot.lane.b32.xlu0 %v2459, 24
        %v2466 = vpop.permute.xlu0 %2465
        %v2468 = vmul.f32 %v2015, %v2466
        %v2469 = vpack.c.bf16 %v2468, %v2468
        %2471 = vrot.lane.b32.xlu0 %v2469, 104
        %v2472 = vpop.permute.xlu0 %2471
        %v2474 = vsel %vm2190, %v2472, 0
        %v2477 = vsel %vm2194, %v1922, 0
        %2479 = vmatprep.subr.bf16.mxu0 0
        %2480 = vmatpush1.bf16.msra.mxu0 %v2477
        %2481 = vmatprep.subr.bf16.mxu0 0
        %2482 = vmatpush1.bf16.msra.mxu0 0
        %2483 = vmatprep.subr.bf16.mxu0 0
        %2484 = vmatpush1.bf16.msra.mxu0 0
        %2485 = vmatprep.subr.bf16.mxu0 0
        %2486 = vmatpush1.bf16.msra.mxu0 0
        %2487 = vmatprep.subr.bf16.mxu0 0
        %2488 = vmatpush1.bf16.msra.mxu0 0
        %2489 = vmatprep.subr.bf16.mxu0 0
        %2490 = vmatpush1.bf16.msra.mxu0 0
        %2491 = vmatprep.subr.bf16.mxu0 0
        %2492 = vmatpush1.bf16.msra.mxu0 0
        %2493 = vmatprep.subr.bf16.mxu0 0
        %2494 = vmatpush1.bf16.msra.mxu0 0
        %2495 = vmatprep.subr.bf16.mxu0 0
        %2496 = vmatpush1.bf16.msra.mxu0 0
        %2497 = vmatprep.subr.bf16.mxu0 0
        %2498 = vmatpush1.bf16.msra.mxu0 0
        %2499 = vmatprep.subr.bf16.mxu0 0
        %2500 = vmatpush1.bf16.msra.mxu0 0
        %2501 = vmatprep.subr.bf16.mxu0 0
        %2502 = vmatpush1.bf16.msra.mxu0 0
        %2503 = vmatprep.subr.bf16.mxu0 0
        %2504 = vmatpush1.bf16.msra.mxu0 0
        %2505 = vmatprep.subr.bf16.mxu0 0
        %2506 = vmatpush1.bf16.msra.mxu0 0
        %2507 = vmatprep.subr.bf16.mxu0 0
        %2508 = vmatpush1.bf16.msra.mxu0 0
        %2509 = vmatprep.subr.bf16.mxu0 0
        %2510 = vmatpush1.bf16.msra.mxu0 0
        %2511 = vmatprep.mubr.bf16.mxu0 0
        %2512 = vmatmul.mubr.bf16.gmra.mrb[0].mxu0 %v2474
        %v2513 = vpop.f32.mrb[0].mxu0
        %v2514 = vadd.f32 0.0, %v2513
        %v2515 = vpop.f32.mrb[0].mxu0
        %v2516 = vpop.f32.mrb[0].mxu0
        %v2517 = vpop.f32.mrb[0].mxu0
        %2518 = vdwg.mxu0
        %v2519 = vadd.f32 %v2401, %v2514
        %v2520 = vpack.c.bf16 %v2020, %v2020
        %v2521 = vrot.slane %v2041, 4
        %v2522 = vrot.slane %v2042, 3
        %v2523 = vsel %vm2050, %v2522, %v2521
        %v2524 = vrot.slane %v2043, 2
        %v2525 = vsel %vm2053, %v2524, %v2523
        %v2526 = vrot.slane %v2044, 1
        %v2527 = vsel %vm2056, %v2526, %v2525
        %v2528 = vsel %vm2059, %v2045, %v2527
        %v2529 = vrot.slane %v2046, 7
        %v2530 = vsel %vm2062, %v2529, %v2528
        %v2531 = vrot.slane %v2047, 6
        %v2532 = vsel %vm2065, %v2531, %v2530
        %v2533 = vrot.slane %v2048, 5
        %v2534 = vsel %vm2068, %v2533, %v2532
        %v2535 = vpack.c.b16 %v2534, %v2534
        %v2537 = vsel %vm1003, %v2535, 0
        %v2540 = vsel %vm1003, %v2520, 0
        %2542 = vmatprep.subr.bf16.mxu0 0
        %2543 = vmatpush1.bf16.xpose.msra.mxu0 %v2540
        %2544 = vmatprep.subr.bf16.mxu0 0
        %2545 = vmatpush1.bf16.xpose.msra.mxu0 0
        %2546 = vmatprep.subr.bf16.mxu0 0
        %2547 = vmatpush1.bf16.xpose.msra.mxu0 0
        %2548 = vmatprep.subr.bf16.mxu0 0
        %2549 = vmatpush1.bf16.xpose.msra.mxu0 0
        %2550 = vmatprep.subr.bf16.mxu0 0
        %2551 = vmatpush1.bf16.xpose.msra.mxu0 0
        %2552 = vmatprep.subr.bf16.mxu0 0
        %2553 = vmatpush1.bf16.xpose.msra.mxu0 0
        %2554 = vmatprep.subr.bf16.mxu0 0
        %2555 = vmatpush1.bf16.xpose.msra.mxu0 0
        %2556 = vmatprep.subr.bf16.mxu0 0
        %2557 = vmatpush1.bf16.xpose.msra.mxu0 0
        %2558 = vmatprep.subr.bf16.mxu0 0
        %2559 = vmatpush1.bf16.xpose.msra.mxu0 0
        %2560 = vmatprep.subr.bf16.mxu0 0
        %2561 = vmatpush1.bf16.xpose.msra.mxu0 0
        %2562 = vmatprep.subr.bf16.mxu0 0
        %2563 = vmatpush1.bf16.xpose.msra.mxu0 0
        %2564 = vmatprep.subr.bf16.mxu0 0
        %2565 = vmatpush1.bf16.xpose.msra.mxu0 0
        %2566 = vmatprep.subr.bf16.mxu0 0
        %2567 = vmatpush1.bf16.xpose.msra.mxu0 0
        %2568 = vmatprep.subr.bf16.mxu0 0
        %2569 = vmatpush1.bf16.xpose.msra.mxu0 0
        %2570 = vmatprep.subr.bf16.mxu0 0
        %2571 = vmatpush1.bf16.xpose.msra.mxu0 0
        %2572 = vmatprep.subr.bf16.mxu0 0
        %2573 = vmatpush1.bf16.xpose.msra.mxu0 0
        %2574 = vmatprep.mubr.bf16.mxu0 0
        %2575 = vmatmul.mubr.bf16.gmra.mrb[0].mxu0 %v2537
        %v2576 = vpop.f32.mrb[0].mxu0
        %v2577 = vadd.f32 0.0, %v2576
        %v2578 = vpop.f32.mrb[0].mxu0
        %v2579 = vpop.f32.mrb[0].mxu0
        %v2580 = vpop.f32.mrb[0].mxu0
        %2581 = vdwg.mxu0
        %2583 = vrot.lane.b32.xlu0 %v2577, 32
        %v2584 = vpop.permute.xlu0 %2583
        %v2586 = vmul.f32 %v2015, %v2584
        %v2587 = vpack.c.bf16 %v2586, %v2586
        %2589 = vrot.lane.b32.xlu0 %v2587, 96
        %v2590 = vpop.permute.xlu0 %2589
        %v2592 = vsel %vm2190, %v2590, 0
        %v2595 = vsel %vm2194, %v1923, 0
        %2597 = vmatprep.subr.bf16.mxu0 0
        %2598 = vmatpush1.bf16.msra.mxu0 %v2595
        %2599 = vmatprep.subr.bf16.mxu0 0
        %2600 = vmatpush1.bf16.msra.mxu0 0
        %2601 = vmatprep.subr.bf16.mxu0 0
        %2602 = vmatpush1.bf16.msra.mxu0 0
        %2603 = vmatprep.subr.bf16.mxu0 0
        %2604 = vmatpush1.bf16.msra.mxu0 0
        %2605 = vmatprep.subr.bf16.mxu0 0
        %2606 = vmatpush1.bf16.msra.mxu0 0
        %2607 = vmatprep.subr.bf16.mxu0 0
        %2608 = vmatpush1.bf16.msra.mxu0 0
        %2609 = vmatprep.subr.bf16.mxu0 0
        %2610 = vmatpush1.bf16.msra.mxu0 0
        %2611 = vmatprep.subr.bf16.mxu0 0
        %2612 = vmatpush1.bf16.msra.mxu0 0
        %2613 = vmatprep.subr.bf16.mxu0 0
        %2614 = vmatpush1.bf16.msra.mxu0 0
        %2615 = vmatprep.subr.bf16.mxu0 0
        %2616 = vmatpush1.bf16.msra.mxu0 0
        %2617 = vmatprep.subr.bf16.mxu0 0
        %2618 = vmatpush1.bf16.msra.mxu0 0
        %2619 = vmatprep.subr.bf16.mxu0 0
        %2620 = vmatpush1.bf16.msra.mxu0 0
        %2621 = vmatprep.subr.bf16.mxu0 0
        %2622 = vmatpush1.bf16.msra.mxu0 0
        %2623 = vmatprep.subr.bf16.mxu0 0
        %2624 = vmatpush1.bf16.msra.mxu0 0
        %2625 = vmatprep.subr.bf16.mxu0 0
        %2626 = vmatpush1.bf16.msra.mxu0 0
        %2627 = vmatprep.subr.bf16.mxu0 0
        %2628 = vmatpush1.bf16.msra.mxu0 0
        %2629 = vmatprep.mubr.bf16.mxu0 0
        %2630 = vmatmul.mubr.bf16.gmra.mrb[0].mxu0 %v2592
        %v2631 = vpop.f32.mrb[0].mxu0
        %v2632 = vadd.f32 0.0, %v2631
        %v2633 = vpop.f32.mrb[0].mxu0
        %v2634 = vpop.f32.mrb[0].mxu0
        %v2635 = vpop.f32.mrb[0].mxu0
        %2636 = vdwg.mxu0
        %v2637 = vadd.f32 %v2519, %v2632
        %v2638 = vpack.c.bf16 %v2021, %v2021
        %v2639 = vrot.slane %v2041, 5
        %v2640 = vrot.slane %v2042, 4
        %v2641 = vsel %vm2050, %v2640, %v2639
        %v2642 = vrot.slane %v2043, 3
        %v2643 = vsel %vm2053, %v2642, %v2641
        %v2644 = vrot.slane %v2044, 2
        %v2645 = vsel %vm2056, %v2644, %v2643
        %v2646 = vrot.slane %v2045, 1
        %v2647 = vsel %vm2059, %v2646, %v2645
        %v2648 = vsel %vm2062, %v2046, %v2647
        %v2649 = vrot.slane %v2047, 7
        %v2650 = vsel %vm2065, %v2649, %v2648
        %v2651 = vrot.slane %v2048, 6
        %v2652 = vsel %vm2068, %v2651, %v2650
        %v2653 = vpack.c.b16 %v2652, %v2652
        %v2655 = vsel %vm1003, %v2653, 0
        %v2658 = vsel %vm1003, %v2638, 0
        %2660 = vmatprep.subr.bf16.mxu0 0
        %2661 = vmatpush1.bf16.xpose.msra.mxu0 %v2658
        %2662 = vmatprep.subr.bf16.mxu0 0
        %2663 = vmatpush1.bf16.xpose.msra.mxu0 0
        %2664 = vmatprep.subr.bf16.mxu0 0
        %2665 = vmatpush1.bf16.xpose.msra.mxu0 0
        %2666 = vmatprep.subr.bf16.mxu0 0
        %2667 = vmatpush1.bf16.xpose.msra.mxu0 0
        %2668 = vmatprep.subr.bf16.mxu0 0
        %2669 = vmatpush1.bf16.xpose.msra.mxu0 0
        %2670 = vmatprep.subr.bf16.mxu0 0
        %2671 = vmatpush1.bf16.xpose.msra.mxu0 0
        %2672 = vmatprep.subr.bf16.mxu0 0
        %2673 = vmatpush1.bf16.xpose.msra.mxu0 0
        %2674 = vmatprep.subr.bf16.mxu0 0
        %2675 = vmatpush1.bf16.xpose.msra.mxu0 0
        %2676 = vmatprep.subr.bf16.mxu0 0
        %2677 = vmatpush1.bf16.xpose.msra.mxu0 0
        %2678 = vmatprep.subr.bf16.mxu0 0
        %2679 = vmatpush1.bf16.xpose.msra.mxu0 0
        %2680 = vmatprep.subr.bf16.mxu0 0
        %2681 = vmatpush1.bf16.xpose.msra.mxu0 0
        %2682 = vmatprep.subr.bf16.mxu0 0
        %2683 = vmatpush1.bf16.xpose.msra.mxu0 0
        %2684 = vmatprep.subr.bf16.mxu0 0
        %2685 = vmatpush1.bf16.xpose.msra.mxu0 0
        %2686 = vmatprep.subr.bf16.mxu0 0
        %2687 = vmatpush1.bf16.xpose.msra.mxu0 0
        %2688 = vmatprep.subr.bf16.mxu0 0
        %2689 = vmatpush1.bf16.xpose.msra.mxu0 0
        %2690 = vmatprep.subr.bf16.mxu0 0
        %2691 = vmatpush1.bf16.xpose.msra.mxu0 0
        %2692 = vmatprep.mubr.bf16.mxu0 0
        %2693 = vmatmul.mubr.bf16.gmra.mrb[0].mxu0 %v2655
        %v2694 = vpop.f32.mrb[0].mxu0
        %v2695 = vadd.f32 0.0, %v2694
        %v2696 = vpop.f32.mrb[0].mxu0
        %v2697 = vpop.f32.mrb[0].mxu0
        %v2698 = vpop.f32.mrb[0].mxu0
        %2699 = vdwg.mxu0
        %2701 = vrot.lane.b32.xlu0 %v2695, 40
        %v2702 = vpop.permute.xlu0 %2701
        %v2704 = vmul.f32 %v2015, %v2702
        %v2705 = vpack.c.bf16 %v2704, %v2704
        %2707 = vrot.lane.b32.xlu0 %v2705, 88
        %v2708 = vpop.permute.xlu0 %2707
        %v2710 = vsel %vm2190, %v2708, 0
        %v2713 = vsel %vm2194, %v1924, 0
        %2715 = vmatprep.subr.bf16.mxu0 0
        %2716 = vmatpush1.bf16.msra.mxu0 %v2713
        %2717 = vmatprep.subr.bf16.mxu0 0
        %2718 = vmatpush1.bf16.msra.mxu0 0
        %2719 = vmatprep.subr.bf16.mxu0 0
        %2720 = vmatpush1.bf16.msra.mxu0 0
        %2721 = vmatprep.subr.bf16.mxu0 0
        %2722 = vmatpush1.bf16.msra.mxu0 0
        %2723 = vmatprep.subr.bf16.mxu0 0
        %2724 = vmatpush1.bf16.msra.mxu0 0
        %2725 = vmatprep.subr.bf16.mxu0 0
        %2726 = vmatpush1.bf16.msra.mxu0 0
        %2727 = vmatprep.subr.bf16.mxu0 0
        %2728 = vmatpush1.bf16.msra.mxu0 0
        %2729 = vmatprep.subr.bf16.mxu0 0
        %2730 = vmatpush1.bf16.msra.mxu0 0
        %2731 = vmatprep.subr.bf16.mxu0 0
        %2732 = vmatpush1.bf16.msra.mxu0 0
        %2733 = vmatprep.subr.bf16.mxu0 0
        %2734 = vmatpush1.bf16.msra.mxu0 0
        %2735 = vmatprep.subr.bf16.mxu0 0
        %2736 = vmatpush1.bf16.msra.mxu0 0
        %2737 = vmatprep.subr.bf16.mxu0 0
        %2738 = vmatpush1.bf16.msra.mxu0 0
        %2739 = vmatprep.subr.bf16.mxu0 0
        %2740 = vmatpush1.bf16.msra.mxu0 0
        %2741 = vmatprep.subr.bf16.mxu0 0
        %2742 = vmatpush1.bf16.msra.mxu0 0
        %2743 = vmatprep.subr.bf16.mxu0 0
        %2744 = vmatpush1.bf16.msra.mxu0 0
        %2745 = vmatprep.subr.bf16.mxu0 0
        %2746 = vmatpush1.bf16.msra.mxu0 0
        %2747 = vmatprep.mubr.bf16.mxu0 0
        %2748 = vmatmul.mubr.bf16.gmra.mrb[0].mxu0 %v2710
        %v2749 = vpop.f32.mrb[0].mxu0
        %v2750 = vadd.f32 0.0, %v2749
        %v2751 = vpop.f32.mrb[0].mxu0
        %v2752 = vpop.f32.mrb[0].mxu0
        %v2753 = vpop.f32.mrb[0].mxu0
        %2754 = vdwg.mxu0
        %v2755 = vadd.f32 %v2637, %v2750
        %v2756 = vpack.c.bf16 %v2022, %v2022
        %v2757 = vrot.slane %v2041, 6
        %v2758 = vrot.slane %v2042, 5
        %v2759 = vsel %vm2050, %v2758, %v2757
        %v2760 = vrot.slane %v2043, 4
        %v2761 = vsel %vm2053, %v2760, %v2759
        %v2762 = vrot.slane %v2044, 3
        %v2763 = vsel %vm2056, %v2762, %v2761
        %v2764 = vrot.slane %v2045, 2
        %v2765 = vsel %vm2059, %v2764, %v2763
        %v2766 = vrot.slane %v2046, 1
        %v2767 = vsel %vm2062, %v2766, %v2765
        %v2768 = vsel %vm2065, %v2047, %v2767
        %v2769 = vrot.slane %v2048, 7
        %v2770 = vsel %vm2068, %v2769, %v2768
        %v2771 = vpack.c.b16 %v2770, %v2770
        %v2773 = vsel %vm1003, %v2771, 0
        %v2776 = vsel %vm1003, %v2756, 0
        %2778 = vmatprep.subr.bf16.mxu0 0
        %2779 = vmatpush1.bf16.xpose.msra.mxu0 %v2776
        %2780 = vmatprep.subr.bf16.mxu0 0
        %2781 = vmatpush1.bf16.xpose.msra.mxu0 0
        %2782 = vmatprep.subr.bf16.mxu0 0
        %2783 = vmatpush1.bf16.xpose.msra.mxu0 0
        %2784 = vmatprep.subr.bf16.mxu0 0
        %2785 = vmatpush1.bf16.xpose.msra.mxu0 0
        %2786 = vmatprep.subr.bf16.mxu0 0
        %2787 = vmatpush1.bf16.xpose.msra.mxu0 0
        %2788 = vmatprep.subr.bf16.mxu0 0
        %2789 = vmatpush1.bf16.xpose.msra.mxu0 0
        %2790 = vmatprep.subr.bf16.mxu0 0
        %2791 = vmatpush1.bf16.xpose.msra.mxu0 0
        %2792 = vmatprep.subr.bf16.mxu0 0
        %2793 = vmatpush1.bf16.xpose.msra.mxu0 0
        %2794 = vmatprep.subr.bf16.mxu0 0
        %2795 = vmatpush1.bf16.xpose.msra.mxu0 0
        %2796 = vmatprep.subr.bf16.mxu0 0
        %2797 = vmatpush1.bf16.xpose.msra.mxu0 0
        %2798 = vmatprep.subr.bf16.mxu0 0
        %2799 = vmatpush1.bf16.xpose.msra.mxu0 0
        %2800 = vmatprep.subr.bf16.mxu0 0
        %2801 = vmatpush1.bf16.xpose.msra.mxu0 0
        %2802 = vmatprep.subr.bf16.mxu0 0
        %2803 = vmatpush1.bf16.xpose.msra.mxu0 0
        %2804 = vmatprep.subr.bf16.mxu0 0
        %2805 = vmatpush1.bf16.xpose.msra.mxu0 0
        %2806 = vmatprep.subr.bf16.mxu0 0
        %2807 = vmatpush1.bf16.xpose.msra.mxu0 0
        %2808 = vmatprep.subr.bf16.mxu0 0
        %2809 = vmatpush1.bf16.xpose.msra.mxu0 0
        %2810 = vmatprep.mubr.bf16.mxu0 0
        %2811 = vmatmul.mubr.bf16.gmra.mrb[0].mxu0 %v2773
        %v2812 = vpop.f32.mrb[0].mxu0
        %v2813 = vadd.f32 0.0, %v2812
        %v2814 = vpop.f32.mrb[0].mxu0
        %v2815 = vpop.f32.mrb[0].mxu0
        %v2816 = vpop.f32.mrb[0].mxu0
        %2817 = vdwg.mxu0
        %2819 = vrot.lane.b32.xlu0 %v2813, 48
        %v2820 = vpop.permute.xlu0 %2819
        %v2822 = vmul.f32 %v2015, %v2820
        %v2823 = vpack.c.bf16 %v2822, %v2822
        %2825 = vrot.lane.b32.xlu0 %v2823, 80
        %v2826 = vpop.permute.xlu0 %2825
        %v2828 = vsel %vm2190, %v2826, 0
        %v2831 = vsel %vm2194, %v1925, 0
        %2833 = vmatprep.subr.bf16.mxu0 0
        %2834 = vmatpush1.bf16.msra.mxu0 %v2831
        %2835 = vmatprep.subr.bf16.mxu0 0
        %2836 = vmatpush1.bf16.msra.mxu0 0
        %2837 = vmatprep.subr.bf16.mxu0 0
        %2838 = vmatpush1.bf16.msra.mxu0 0
        %2839 = vmatprep.subr.bf16.mxu0 0
        %2840 = vmatpush1.bf16.msra.mxu0 0
        %2841 = vmatprep.subr.bf16.mxu0 0
        %2842 = vmatpush1.bf16.msra.mxu0 0
        %2843 = vmatprep.subr.bf16.mxu0 0
        %2844 = vmatpush1.bf16.msra.mxu0 0
        %2845 = vmatprep.subr.bf16.mxu0 0
        %2846 = vmatpush1.bf16.msra.mxu0 0
        %2847 = vmatprep.subr.bf16.mxu0 0
        %2848 = vmatpush1.bf16.msra.mxu0 0
        %2849 = vmatprep.subr.bf16.mxu0 0
        %2850 = vmatpush1.bf16.msra.mxu0 0
        %2851 = vmatprep.subr.bf16.mxu0 0
        %2852 = vmatpush1.bf16.msra.mxu0 0
        %2853 = vmatprep.subr.bf16.mxu0 0
        %2854 = vmatpush1.bf16.msra.mxu0 0
        %2855 = vmatprep.subr.bf16.mxu0 0
        %2856 = vmatpush1.bf16.msra.mxu0 0
        %2857 = vmatprep.subr.bf16.mxu0 0
        %2858 = vmatpush1.bf16.msra.mxu0 0
        %2859 = vmatprep.subr.bf16.mxu0 0
        %2860 = vmatpush1.bf16.msra.mxu0 0
        %2861 = vmatprep.subr.bf16.mxu0 0
        %2862 = vmatpush1.bf16.msra.mxu0 0
        %2863 = vmatprep.subr.bf16.mxu0 0
        %2864 = vmatpush1.bf16.msra.mxu0 0
        %2865 = vmatprep.mubr.bf16.mxu0 0
        %2866 = vmatmul.mubr.bf16.gmra.mrb[0].mxu0 %v2828
        %v2867 = vpop.f32.mrb[0].mxu0
        %v2868 = vadd.f32 0.0, %v2867
        %v2869 = vpop.f32.mrb[0].mxu0
        %v2870 = vpop.f32.mrb[0].mxu0
        %v2871 = vpop.f32.mrb[0].mxu0
        %2872 = vdwg.mxu0
        %v2873 = vadd.f32 %v2755, %v2868
        %v2874 = vpack.c.bf16 %v2023, %v2023
        %v2875 = vrot.slane %v2041, 7
        %v2876 = vrot.slane %v2042, 6
        %v2877 = vsel %vm2050, %v2876, %v2875
        %v2878 = vrot.slane %v2043, 5
        %v2879 = vsel %vm2053, %v2878, %v2877
        %v2880 = vrot.slane %v2044, 4
        %v2881 = vsel %vm2056, %v2880, %v2879
        %v2882 = vrot.slane %v2045, 3
        %v2883 = vsel %vm2059, %v2882, %v2881
        %v2884 = vrot.slane %v2046, 2
        %v2885 = vsel %vm2062, %v2884, %v2883
        %v2886 = vrot.slane %v2047, 1
        %v2887 = vsel %vm2065, %v2886, %v2885
        %v2888 = vsel %vm2068, %v2048, %v2887
        %v2889 = vpack.c.b16 %v2888, %v2888
        %v2891 = vsel %vm1003, %v2889, 0
        %v2894 = vsel %vm1003, %v2874, 0
        %2896 = vmatprep.subr.bf16.mxu0 0
        %2897 = vmatpush1.bf16.xpose.msra.mxu0 %v2894
        %2898 = vmatprep.subr.bf16.mxu0 0
        %2899 = vmatpush1.bf16.xpose.msra.mxu0 0
        %2900 = vmatprep.subr.bf16.mxu0 0
        %2901 = vmatpush1.bf16.xpose.msra.mxu0 0
        %2902 = vmatprep.subr.bf16.mxu0 0
        %2903 = vmatpush1.bf16.xpose.msra.mxu0 0
        %2904 = vmatprep.subr.bf16.mxu0 0
        %2905 = vmatpush1.bf16.xpose.msra.mxu0 0
        %2906 = vmatprep.subr.bf16.mxu0 0
        %2907 = vmatpush1.bf16.xpose.msra.mxu0 0
        %2908 = vmatprep.subr.bf16.mxu0 0
        %2909 = vmatpush1.bf16.xpose.msra.mxu0 0
        %2910 = vmatprep.subr.bf16.mxu0 0
        %2911 = vmatpush1.bf16.xpose.msra.mxu0 0
        %2912 = vmatprep.subr.bf16.mxu0 0
        %2913 = vmatpush1.bf16.xpose.msra.mxu0 0
        %2914 = vmatprep.subr.bf16.mxu0 0
        %2915 = vmatpush1.bf16.xpose.msra.mxu0 0
        %2916 = vmatprep.subr.bf16.mxu0 0
        %2917 = vmatpush1.bf16.xpose.msra.mxu0 0
        %2918 = vmatprep.subr.bf16.mxu0 0
        %2919 = vmatpush1.bf16.xpose.msra.mxu0 0
        %2920 = vmatprep.subr.bf16.mxu0 0
        %2921 = vmatpush1.bf16.xpose.msra.mxu0 0
        %2922 = vmatprep.subr.bf16.mxu0 0
        %2923 = vmatpush1.bf16.xpose.msra.mxu0 0
        %2924 = vmatprep.subr.bf16.mxu0 0
        %2925 = vmatpush1.bf16.xpose.msra.mxu0 0
        %2926 = vmatprep.subr.bf16.mxu0 0
        %2927 = vmatpush1.bf16.xpose.msra.mxu0 0
        %2928 = vmatprep.mubr.bf16.mxu0 0
        %2929 = vmatmul.mubr.bf16.gmra.mrb[0].mxu0 %v2891
        %v2930 = vpop.f32.mrb[0].mxu0
        %v2931 = vadd.f32 0.0, %v2930
        %v2932 = vpop.f32.mrb[0].mxu0
        %v2933 = vpop.f32.mrb[0].mxu0
        %v2934 = vpop.f32.mrb[0].mxu0
        %2935 = vdwg.mxu0
        %2937 = vrot.lane.b32.xlu0 %v2931, 56
        %v2938 = vpop.permute.xlu0 %2937
        %v2940 = vmul.f32 %v2015, %v2938
        %v2941 = vpack.c.bf16 %v2940, %v2940
        %2943 = vrot.lane.b32.xlu0 %v2941, 72
        %v2944 = vpop.permute.xlu0 %2943
        %v2946 = vsel %vm2190, %v2944, 0
        %v2949 = vsel %vm2194, %v1926, 0
        %2951 = vmatprep.subr.bf16.mxu0 0
        %2952 = vmatpush1.bf16.msra.mxu0 %v2949
        %2953 = vmatprep.subr.bf16.mxu0 0
        %2954 = vmatpush1.bf16.msra.mxu0 0
        %2955 = vmatprep.subr.bf16.mxu0 0
        %2956 = vmatpush1.bf16.msra.mxu0 0
        %2957 = vmatprep.subr.bf16.mxu0 0
        %2958 = vmatpush1.bf16.msra.mxu0 0
        %2959 = vmatprep.subr.bf16.mxu0 0
        %2960 = vmatpush1.bf16.msra.mxu0 0
        %2961 = vmatprep.subr.bf16.mxu0 0
        %2962 = vmatpush1.bf16.msra.mxu0 0
        %2963 = vmatprep.subr.bf16.mxu0 0
        %2964 = vmatpush1.bf16.msra.mxu0 0
        %2965 = vmatprep.subr.bf16.mxu0 0
        %2966 = vmatpush1.bf16.msra.mxu0 0
        %2967 = vmatprep.subr.bf16.mxu0 0
        %2968 = vmatpush1.bf16.msra.mxu0 0
        %2969 = vmatprep.subr.bf16.mxu0 0
        %2970 = vmatpush1.bf16.msra.mxu0 0
        %2971 = vmatprep.subr.bf16.mxu0 0
        %2972 = vmatpush1.bf16.msra.mxu0 0
        %2973 = vmatprep.subr.bf16.mxu0 0
        %2974 = vmatpush1.bf16.msra.mxu0 0
        %2975 = vmatprep.subr.bf16.mxu0 0
        %2976 = vmatpush1.bf16.msra.mxu0 0
        %2977 = vmatprep.subr.bf16.mxu0 0
        %2978 = vmatpush1.bf16.msra.mxu0 0
        %2979 = vmatprep.subr.bf16.mxu0 0
        %2980 = vmatpush1.bf16.msra.mxu0 0
        %2981 = vmatprep.subr.bf16.mxu0 0
        %2982 = vmatpush1.bf16.msra.mxu0 0
        %2983 = vmatprep.mubr.bf16.mxu0 0
        %2984 = vmatmul.mubr.bf16.gmra.mrb[0].mxu0 %v2946
        %v2985 = vpop.f32.mrb[0].mxu0
        %v2986 = vadd.f32 0.0, %v2985
        %v2987 = vpop.f32.mrb[0].mxu0
        %v2988 = vpop.f32.mrb[0].mxu0
        %v2989 = vpop.f32.mrb[0].mxu0
        %2990 = vdwg.mxu0
        %v2991 = vadd.f32 %v2873, %v2986
        %2992 = vst.msk [vmem:[%s454] sm:$0xff] %vm1933, %v2991
        %s2993 = scalar_lea.vmem %s398, 8 [#allocation3]
        %v2994 = vld [vmem:[%s2993] sm:$0xff]
        %v2995 = vsel %vm1933, %v2994, 0.0
        %2996 = vadd.xlane.f32.xlu0 %v2995
        %v2997 = vpop.xlane.xlu0 %2996
        %v2998 = vmul.f32 %v2997, %v1937
        %v2999 = vsub.f32 %v2994, %v2998
        %v3000 = vmul.f32 %v2999, %v2999
        %v3001 = vsel %vm1933, %v3000, 0.0
        %3002 = vadd.xlane.f32.xlu0 %v3001
        %v3003 = vpop.xlane.xlu0 %3002
        %v3004 = vmul.f32 %v3003, %v1937
        %v3005 = vadd.f32 %v3004, 1e-05
        %v3006 = vrsqrt.pop %v3005
        %v3007 = vmul.f32 %v2999, %v3006
        %v3008 = vpack.c.bf16 %v3007, %v3007
        %v3010 = vsel %vm1933, %v3008, 0
        %3012 = vmatprep.subr.bf16.mxu0 0
        %3013 = vmatpush1.bf16.msra.mxu0 %v1963
        %3014 = vmatprep.subr.bf16.mxu0 0
        %3015 = vmatpush1.bf16.msra.mxu0 %v1964
        %3016 = vmatprep.subr.bf16.mxu0 0
        %3017 = vmatpush1.bf16.msra.mxu0 0
        %3018 = vmatprep.subr.bf16.mxu0 0
        %3019 = vmatpush1.bf16.msra.mxu0 0
        %3020 = vmatprep.subr.bf16.mxu0 0
        %3021 = vmatpush1.bf16.msra.mxu0 0
        %3022 = vmatprep.subr.bf16.mxu0 0
        %3023 = vmatpush1.bf16.msra.mxu0 0
        %3024 = vmatprep.subr.bf16.mxu0 0
        %3025 = vmatpush1.bf16.msra.mxu0 0
        %3026 = vmatprep.subr.bf16.mxu0 0
        %3027 = vmatpush1.bf16.msra.mxu0 0
        %3028 = vmatprep.subr.bf16.mxu0 0
        %3029 = vmatpush1.bf16.msra.mxu0 0
        %3030 = vmatprep.subr.bf16.mxu0 0
        %3031 = vmatpush1.bf16.msra.mxu0 0
        %3032 = vmatprep.subr.bf16.mxu0 0
        %3033 = vmatpush1.bf16.msra.mxu0 0
        %3034 = vmatprep.subr.bf16.mxu0 0
        %3035 = vmatpush1.bf16.msra.mxu0 0
        %3036 = vmatprep.subr.bf16.mxu0 0
        %3037 = vmatpush1.bf16.msra.mxu0 0
        %3038 = vmatprep.subr.bf16.mxu0 0
        %3039 = vmatpush1.bf16.msra.mxu0 0
        %3040 = vmatprep.subr.bf16.mxu0 0
        %3041 = vmatpush1.bf16.msra.mxu0 0
        %3042 = vmatprep.subr.bf16.mxu0 0
        %3043 = vmatpush1.bf16.msra.mxu0 0
        %3044 = vmatprep.mubr.bf16.mxu0 0
        %3045 = vmatmul.mubr.bf16.gmra.mrb[0].mxu0 %v3010
        %v3046 = vpop.f32.mrb[0].mxu0
        %v3047 = vadd.f32 %v1953, %v3046
        %v3048 = vpop.f32.mrb[0].mxu0
        %v3049 = vpop.f32.mrb[0].mxu0
        %v3050 = vpop.f32.mrb[0].mxu0
        %3051 = vdwg.mxu0
        %v3052 = vxor.u32 %v3047, 2147483648
        %v3053 = vmul.f32 %v3052, 1.442695
        %v3054 = vpow.pop %v3053
        %v3055 = vadd.f32 %v3054, 1.0
        %v3056 = vrcp.pop %v3055
        %v3057 = vmul.f32 1.0, %v3056
        %s3058 = scalar_lea.vmem [#allocation2], 64
        %v3059 = vld [vmem:[%s3058] sm:$0xff]
        %v3060 = vld [vmem:[%s3058 + $0x8] sm:$0xff]
        %v3061 = vld [vmem:[%s3058 + $0x10] sm:$0xff]
        %v3062 = vld [vmem:[%s3058 + $0x18] sm:$0xff]
        %v3063 = vld [vmem:[%s3058 + $0x20] sm:$0xff]
        %v3064 = vld [vmem:[%s3058 + $0x28] sm:$0xff]
        %v3065 = vld [vmem:[%s3058 + $0x30] sm:$0xff]
        %v3066 = vld [vmem:[%s3058 + $0x38] sm:$0xff]
        %v3067 = vpack.c.bf16 %v3059, %v3059
        %v3069 = vsel %vm1003, %v3067, 0
        %3071 = vmatprep.subr.bf16.mxu0 0
        %3072 = vmatpush1.bf16.xpose.msra.mxu0 %v3069
        %3073 = vmatprep.subr.bf16.mxu0 0
        %3074 = vmatpush1.bf16.xpose.msra.mxu0 0
        %3075 = vmatprep.subr.bf16.mxu0 0
        %3076 = vmatpush1.bf16.xpose.msra.mxu0 0
        %3077 = vmatprep.subr.bf16.mxu0 0
        %3078 = vmatpush1.bf16.xpose.msra.mxu0 0
        %3079 = vmatprep.subr.bf16.mxu0 0
        %3080 = vmatpush1.bf16.xpose.msra.mxu0 0
        %3081 = vmatprep.subr.bf16.mxu0 0
        %3082 = vmatpush1.bf16.xpose.msra.mxu0 0
        %3083 = vmatprep.subr.bf16.mxu0 0
        %3084 = vmatpush1.bf16.xpose.msra.mxu0 0
        %3085 = vmatprep.subr.bf16.mxu0 0
        %3086 = vmatpush1.bf16.xpose.msra.mxu0 0
        %3087 = vmatprep.subr.bf16.mxu0 0
        %3088 = vmatpush1.bf16.xpose.msra.mxu0 0
        %3089 = vmatprep.subr.bf16.mxu0 0
        %3090 = vmatpush1.bf16.xpose.msra.mxu0 0
        %3091 = vmatprep.subr.bf16.mxu0 0
        %3092 = vmatpush1.bf16.xpose.msra.mxu0 0
        %3093 = vmatprep.subr.bf16.mxu0 0
        %3094 = vmatpush1.bf16.xpose.msra.mxu0 0
        %3095 = vmatprep.subr.bf16.mxu0 0
        %3096 = vmatpush1.bf16.xpose.msra.mxu0 0
        %3097 = vmatprep.subr.bf16.mxu0 0
        %3098 = vmatpush1.bf16.xpose.msra.mxu0 0
        %3099 = vmatprep.subr.bf16.mxu0 0
        %3100 = vmatpush1.bf16.xpose.msra.mxu0 0
        %3101 = vmatprep.subr.bf16.mxu0 0
        %3102 = vmatpush1.bf16.xpose.msra.mxu0 0
        %3103 = vmatprep.mubr.bf16.mxu0 0
        %3104 = vmatmul.mubr.bf16.gmra.mrb[0].mxu0 %v2072
        %v3105 = vpop.f32.mrb[0].mxu0
        %v3106 = vadd.f32 0.0, %v3105
        %v3107 = vpop.f32.mrb[0].mxu0
        %v3108 = vpop.f32.mrb[0].mxu0
        %v3109 = vpop.f32.mrb[0].mxu0
        %3110 = vdwg.mxu0
        %v3111 = vmul.f32 %v3057, %v3106
        %v3112 = vpack.c.bf16 %v3111, %v3111
        %v3113 = vpack.c.bf16 %v3060, %v3060
        %v3115 = vsel %vm1003, %v3113, 0
        %3117 = vmatprep.subr.bf16.mxu0 0
        %3118 = vmatpush1.bf16.xpose.msra.mxu0 %v3115
        %3119 = vmatprep.subr.bf16.mxu0 0
        %3120 = vmatpush1.bf16.xpose.msra.mxu0 0
        %3121 = vmatprep.subr.bf16.mxu0 0
        %3122 = vmatpush1.bf16.xpose.msra.mxu0 0
        %3123 = vmatprep.subr.bf16.mxu0 0
        %3124 = vmatpush1.bf16.xpose.msra.mxu0 0
        %3125 = vmatprep.subr.bf16.mxu0 0
        %3126 = vmatpush1.bf16.xpose.msra.mxu0 0
        %3127 = vmatprep.subr.bf16.mxu0 0
        %3128 = vmatpush1.bf16.xpose.msra.mxu0 0
        %3129 = vmatprep.subr.bf16.mxu0 0
        %3130 = vmatpush1.bf16.xpose.msra.mxu0 0
        %3131 = vmatprep.subr.bf16.mxu0 0
        %3132 = vmatpush1.bf16.xpose.msra.mxu0 0
        %3133 = vmatprep.subr.bf16.mxu0 0
        %3134 = vmatpush1.bf16.xpose.msra.mxu0 0
        %3135 = vmatprep.subr.bf16.mxu0 0
        %3136 = vmatpush1.bf16.xpose.msra.mxu0 0
        %3137 = vmatprep.subr.bf16.mxu0 0
        %3138 = vmatpush1.bf16.xpose.msra.mxu0 0
        %3139 = vmatprep.subr.bf16.mxu0 0
        %3140 = vmatpush1.bf16.xpose.msra.mxu0 0
        %3141 = vmatprep.subr.bf16.mxu0 0
        %3142 = vmatpush1.bf16.xpose.msra.mxu0 0
        %3143 = vmatprep.subr.bf16.mxu0 0
        %3144 = vmatpush1.bf16.xpose.msra.mxu0 0
        %3145 = vmatprep.subr.bf16.mxu0 0
        %3146 = vmatpush1.bf16.xpose.msra.mxu0 0
        %3147 = vmatprep.subr.bf16.mxu0 0
        %3148 = vmatpush1.bf16.xpose.msra.mxu0 0
        %3149 = vmatprep.mubr.bf16.mxu0 0
        %3150 = vmatmul.mubr.bf16.gmra.mrb[0].mxu0 %v2136
        %v3151 = vpop.f32.mrb[0].mxu0
        %v3152 = vadd.f32 0.0, %v3151
        %v3153 = vpop.f32.mrb[0].mxu0
        %v3154 = vpop.f32.mrb[0].mxu0
        %v3155 = vpop.f32.mrb[0].mxu0
        %3156 = vdwg.mxu0
        %3158 = vrot.lane.b32.xlu0 %v3152, 8
        %v3159 = vpop.permute.xlu0 %3158
        %v3161 = vmul.f32 %v3057, %v3159
        %v3162 = vpack.c.bf16 %v3161, %v3161
        %3164 = vrot.lane.b32.xlu0 %v3162, 120
        %v3165 = vpop.permute.xlu0 %3164
        %v3167 = vsel %vm2190, %v3165, 0
        %3169 = vmatprep.subr.bf16.mxu0 0
        %3170 = vmatpush1.bf16.msra.mxu0 %v2196
        %3171 = vmatprep.subr.bf16.mxu0 0
        %3172 = vmatpush1.bf16.msra.mxu0 0
        %3173 = vmatprep.subr.bf16.mxu0 0
        %3174 = vmatpush1.bf16.msra.mxu0 0
        %3175 = vmatprep.subr.bf16.mxu0 0
        %3176 = vmatpush1.bf16.msra.mxu0 0
        %3177 = vmatprep.subr.bf16.mxu0 0
        %3178 = vmatpush1.bf16.msra.mxu0 0
        %3179 = vmatprep.subr.bf16.mxu0 0
        %3180 = vmatpush1.bf16.msra.mxu0 0
        %3181 = vmatprep.subr.bf16.mxu0 0
        %3182 = vmatpush1.bf16.msra.mxu0 0
        %3183 = vmatprep.subr.bf16.mxu0 0
        %3184 = vmatpush1.bf16.msra.mxu0 0
        %3185 = vmatprep.subr.bf16.mxu0 0
        %3186 = vmatpush1.bf16.msra.mxu0 0
        %3187 = vmatprep.subr.bf16.mxu0 0
        %3188 = vmatpush1.bf16.msra.mxu0 0
        %3189 = vmatprep.subr.bf16.mxu0 0
        %3190 = vmatpush1.bf16.msra.mxu0 0
        %3191 = vmatprep.subr.bf16.mxu0 0
        %3192 = vmatpush1.bf16.msra.mxu0 0
        %3193 = vmatprep.subr.bf16.mxu0 0
        %3194 = vmatpush1.bf16.msra.mxu0 0
        %3195 = vmatprep.subr.bf16.mxu0 0
        %3196 = vmatpush1.bf16.msra.mxu0 0
        %3197 = vmatprep.subr.bf16.mxu0 0
        %3198 = vmatpush1.bf16.msra.mxu0 0
        %3199 = vmatprep.subr.bf16.mxu0 0
        %3200 = vmatpush1.bf16.msra.mxu0 0
        %3201 = vmatprep.mubr.bf16.mxu0 0
        %3202 = vmatmul.mubr.bf16.gmra.mrb[0].mxu0 %v3167
        %v3203 = vpop.f32.mrb[0].mxu0
        %v3204 = vadd.f32 0.0, %v3203
        %v3205 = vpop.f32.mrb[0].mxu0
        %v3206 = vpop.f32.mrb[0].mxu0
        %v3207 = vpop.f32.mrb[0].mxu0
        %3208 = vdwg.mxu0
        %v3210 = vsel %vm2190, %v3112, 0
        %3212 = vmatprep.subr.bf16.mxu0 0
        %3213 = vmatpush1.bf16.msra.mxu0 %v2242
        %3214 = vmatprep.subr.bf16.mxu0 0
        %3215 = vmatpush1.bf16.msra.mxu0 0
        %3216 = vmatprep.subr.bf16.mxu0 0
        %3217 = vmatpush1.bf16.msra.mxu0 0
        %3218 = vmatprep.subr.bf16.mxu0 0
        %3219 = vmatpush1.bf16.msra.mxu0 0
        %3220 = vmatprep.subr.bf16.mxu0 0
        %3221 = vmatpush1.bf16.msra.mxu0 0
        %3222 = vmatprep.subr.bf16.mxu0 0
        %3223 = vmatpush1.bf16.msra.mxu0 0
        %3224 = vmatprep.subr.bf16.mxu0 0
        %3225 = vmatpush1.bf16.msra.mxu0 0
        %3226 = vmatprep.subr.bf16.mxu0 0
        %3227 = vmatpush1.bf16.msra.mxu0 0
        %3228 = vmatprep.subr.bf16.mxu0 0
        %3229 = vmatpush1.bf16.msra.mxu0 0
        %3230 = vmatprep.subr.bf16.mxu0 0
        %3231 = vmatpush1.bf16.msra.mxu0 0
        %3232 = vmatprep.subr.bf16.mxu0 0
        %3233 = vmatpush1.bf16.msra.mxu0 0
        %3234 = vmatprep.subr.bf16.mxu0 0
        %3235 = vmatpush1.bf16.msra.mxu0 0
        %3236 = vmatprep.subr.bf16.mxu0 0
        %3237 = vmatpush1.bf16.msra.mxu0 0
        %3238 = vmatprep.subr.bf16.mxu0 0
        %3239 = vmatpush1.bf16.msra.mxu0 0
        %3240 = vmatprep.subr.bf16.mxu0 0
        %3241 = vmatpush1.bf16.msra.mxu0 0
        %3242 = vmatprep.subr.bf16.mxu0 0
        %3243 = vmatpush1.bf16.msra.mxu0 0
        %3244 = vmatprep.mubr.bf16.mxu0 0
        %3245 = vmatmul.mubr.bf16.gmra.mrb[0].mxu0 %v3210
        %v3246 = vpop.f32.mrb[0].mxu0
        %v3247 = vadd.f32 %v3204, %v3246
        %v3248 = vpop.f32.mrb[0].mxu0
        %v3249 = vpop.f32.mrb[0].mxu0
        %v3250 = vpop.f32.mrb[0].mxu0
        %3251 = vdwg.mxu0
        %v3252 = vpack.c.bf16 %v3061, %v3061
        %v3254 = vsel %vm1003, %v3252, 0
        %3256 = vmatprep.subr.bf16.mxu0 0
        %3257 = vmatpush1.bf16.xpose.msra.mxu0 %v3254
        %3258 = vmatprep.subr.bf16.mxu0 0
        %3259 = vmatpush1.bf16.xpose.msra.mxu0 0
        %3260 = vmatprep.subr.bf16.mxu0 0
        %3261 = vmatpush1.bf16.xpose.msra.mxu0 0
        %3262 = vmatprep.subr.bf16.mxu0 0
        %3263 = vmatpush1.bf16.xpose.msra.mxu0 0
        %3264 = vmatprep.subr.bf16.mxu0 0
        %3265 = vmatpush1.bf16.xpose.msra.mxu0 0
        %3266 = vmatprep.subr.bf16.mxu0 0
        %3267 = vmatpush1.bf16.xpose.msra.mxu0 0
        %3268 = vmatprep.subr.bf16.mxu0 0
        %3269 = vmatpush1.bf16.xpose.msra.mxu0 0
        %3270 = vmatprep.subr.bf16.mxu0 0
        %3271 = vmatpush1.bf16.xpose.msra.mxu0 0
        %3272 = vmatprep.subr.bf16.mxu0 0
        %3273 = vmatpush1.bf16.xpose.msra.mxu0 0
        %3274 = vmatprep.subr.bf16.mxu0 0
        %3275 = vmatpush1.bf16.xpose.msra.mxu0 0
        %3276 = vmatprep.subr.bf16.mxu0 0
        %3277 = vmatpush1.bf16.xpose.msra.mxu0 0
        %3278 = vmatprep.subr.bf16.mxu0 0
        %3279 = vmatpush1.bf16.xpose.msra.mxu0 0
        %3280 = vmatprep.subr.bf16.mxu0 0
        %3281 = vmatpush1.bf16.xpose.msra.mxu0 0
        %3282 = vmatprep.subr.bf16.mxu0 0
        %3283 = vmatpush1.bf16.xpose.msra.mxu0 0
        %3284 = vmatprep.subr.bf16.mxu0 0
        %3285 = vmatpush1.bf16.xpose.msra.mxu0 0
        %3286 = vmatprep.subr.bf16.mxu0 0
        %3287 = vmatpush1.bf16.xpose.msra.mxu0 0
        %3288 = vmatprep.mubr.bf16.mxu0 0
        %3289 = vmatmul.mubr.bf16.gmra.mrb[0].mxu0 %v2301
        %v3290 = vpop.f32.mrb[0].mxu0
        %v3291 = vadd.f32 0.0, %v3290
        %v3292 = vpop.f32.mrb[0].mxu0
        %v3293 = vpop.f32.mrb[0].mxu0
        %v3294 = vpop.f32.mrb[0].mxu0
        %3295 = vdwg.mxu0
        %3297 = vrot.lane.b32.xlu0 %v3291, 16
        %v3298 = vpop.permute.xlu0 %3297
        %v3300 = vmul.f32 %v3057, %v3298
        %v3301 = vpack.c.bf16 %v3300, %v3300
        %3303 = vrot.lane.b32.xlu0 %v3301, 112
        %v3304 = vpop.permute.xlu0 %3303
        %v3306 = vsel %vm2190, %v3304, 0
        %3308 = vmatprep.subr.bf16.mxu0 0
        %3309 = vmatpush1.bf16.msra.mxu0 %v2359
        %3310 = vmatprep.subr.bf16.mxu0 0
        %3311 = vmatpush1.bf16.msra.mxu0 0
        %3312 = vmatprep.subr.bf16.mxu0 0
        %3313 = vmatpush1.bf16.msra.mxu0 0
        %3314 = vmatprep.subr.bf16.mxu0 0
        %3315 = vmatpush1.bf16.msra.mxu0 0
        %3316 = vmatprep.subr.bf16.mxu0 0
        %3317 = vmatpush1.bf16.msra.mxu0 0
        %3318 = vmatprep.subr.bf16.mxu0 0
        %3319 = vmatpush1.bf16.msra.mxu0 0
        %3320 = vmatprep.subr.bf16.mxu0 0
        %3321 = vmatpush1.bf16.msra.mxu0 0
        %3322 = vmatprep.subr.bf16.mxu0 0
        %3323 = vmatpush1.bf16.msra.mxu0 0
        %3324 = vmatprep.subr.bf16.mxu0 0
        %3325 = vmatpush1.bf16.msra.mxu0 0
        %3326 = vmatprep.subr.bf16.mxu0 0
        %3327 = vmatpush1.bf16.msra.mxu0 0
        %3328 = vmatprep.subr.bf16.mxu0 0
        %3329 = vmatpush1.bf16.msra.mxu0 0
        %3330 = vmatprep.subr.bf16.mxu0 0
        %3331 = vmatpush1.bf16.msra.mxu0 0
        %3332 = vmatprep.subr.bf16.mxu0 0
        %3333 = vmatpush1.bf16.msra.mxu0 0
        %3334 = vmatprep.subr.bf16.mxu0 0
        %3335 = vmatpush1.bf16.msra.mxu0 0
        %3336 = vmatprep.subr.bf16.mxu0 0
        %3337 = vmatpush1.bf16.msra.mxu0 0
        %3338 = vmatprep.subr.bf16.mxu0 0
        %3339 = vmatpush1.bf16.msra.mxu0 0
        %3340 = vmatprep.mubr.bf16.mxu0 0
        %3341 = vmatmul.mubr.bf16.gmra.mrb[0].mxu0 %v3306
        %v3342 = vpop.f32.mrb[0].mxu0
        %v3343 = vadd.f32 0.0, %v3342
        %v3344 = vpop.f32.mrb[0].mxu0
        %v3345 = vpop.f32.mrb[0].mxu0
        %v3346 = vpop.f32.mrb[0].mxu0
        %3347 = vdwg.mxu0
        %v3348 = vadd.f32 %v3247, %v3343
        %v3349 = vpack.c.bf16 %v3062, %v3062
        %v3351 = vsel %vm1003, %v3349, 0
        %3353 = vmatprep.subr.bf16.mxu0 0
        %3354 = vmatpush1.bf16.xpose.msra.mxu0 %v3351
        %3355 = vmatprep.subr.bf16.mxu0 0
        %3356 = vmatpush1.bf16.xpose.msra.mxu0 0
        %3357 = vmatprep.subr.bf16.mxu0 0
        %3358 = vmatpush1.bf16.xpose.msra.mxu0 0
        %3359 = vmatprep.subr.bf16.mxu0 0
        %3360 = vmatpush1.bf16.xpose.msra.mxu0 0
        %3361 = vmatprep.subr.bf16.mxu0 0
        %3362 = vmatpush1.bf16.xpose.msra.mxu0 0
        %3363 = vmatprep.subr.bf16.mxu0 0
        %3364 = vmatpush1.bf16.xpose.msra.mxu0 0
        %3365 = vmatprep.subr.bf16.mxu0 0
        %3366 = vmatpush1.bf16.xpose.msra.mxu0 0
        %3367 = vmatprep.subr.bf16.mxu0 0
        %3368 = vmatpush1.bf16.xpose.msra.mxu0 0
        %3369 = vmatprep.subr.bf16.mxu0 0
        %3370 = vmatpush1.bf16.xpose.msra.mxu0 0
        %3371 = vmatprep.subr.bf16.mxu0 0
        %3372 = vmatpush1.bf16.xpose.msra.mxu0 0
        %3373 = vmatprep.subr.bf16.mxu0 0
        %3374 = vmatpush1.bf16.xpose.msra.mxu0 0
        %3375 = vmatprep.subr.bf16.mxu0 0
        %3376 = vmatpush1.bf16.xpose.msra.mxu0 0
        %3377 = vmatprep.subr.bf16.mxu0 0
        %3378 = vmatpush1.bf16.xpose.msra.mxu0 0
        %3379 = vmatprep.subr.bf16.mxu0 0
        %3380 = vmatpush1.bf16.xpose.msra.mxu0 0
        %3381 = vmatprep.subr.bf16.mxu0 0
        %3382 = vmatpush1.bf16.xpose.msra.mxu0 0
        %3383 = vmatprep.subr.bf16.mxu0 0
        %3384 = vmatpush1.bf16.xpose.msra.mxu0 0
        %3385 = vmatprep.mubr.bf16.mxu0 0
        %3386 = vmatmul.mubr.bf16.gmra.mrb[0].mxu0 %v2419
        %v3387 = vpop.f32.mrb[0].mxu0
        %v3388 = vadd.f32 0.0, %v3387
        %v3389 = vpop.f32.mrb[0].mxu0
        %v3390 = vpop.f32.mrb[0].mxu0
        %v3391 = vpop.f32.mrb[0].mxu0
        %3392 = vdwg.mxu0
        %3394 = vrot.lane.b32.xlu0 %v3388, 24
        %v3395 = vpop.permute.xlu0 %3394
        %v3397 = vmul.f32 %v3057, %v3395
        %v3398 = vpack.c.bf16 %v3397, %v3397
        %3400 = vrot.lane.b32.xlu0 %v3398, 104
        %v3401 = vpop.permute.xlu0 %3400
        %v3403 = vsel %vm2190, %v3401, 0
        %3405 = vmatprep.subr.bf16.mxu0 0
        %3406 = vmatpush1.bf16.msra.mxu0 %v2477
        %3407 = vmatprep.subr.bf16.mxu0 0
        %3408 = vmatpush1.bf16.msra.mxu0 0
        %3409 = vmatprep.subr.bf16.mxu0 0
        %3410 = vmatpush1.bf16.msra.mxu0 0
        %3411 = vmatprep.subr.bf16.mxu0 0
        %3412 = vmatpush1.bf16.msra.mxu0 0
        %3413 = vmatprep.subr.bf16.mxu0 0
        %3414 = vmatpush1.bf16.msra.mxu0 0
        %3415 = vmatprep.subr.bf16.mxu0 0
        %3416 = vmatpush1.bf16.msra.mxu0 0
        %3417 = vmatprep.subr.bf16.mxu0 0
        %3418 = vmatpush1.bf16.msra.mxu0 0
        %3419 = vmatprep.subr.bf16.mxu0 0
        %3420 = vmatpush1.bf16.msra.mxu0 0
        %3421 = vmatprep.subr.bf16.mxu0 0
        %3422 = vmatpush1.bf16.msra.mxu0 0
        %3423 = vmatprep.subr.bf16.mxu0 0
        %3424 = vmatpush1.bf16.msra.mxu0 0
        %3425 = vmatprep.subr.bf16.mxu0 0
        %3426 = vmatpush1.bf16.msra.mxu0 0
        %3427 = vmatprep.subr.bf16.mxu0 0
        %3428 = vmatpush1.bf16.msra.mxu0 0
        %3429 = vmatprep.subr.bf16.mxu0 0
        %3430 = vmatpush1.bf16.msra.mxu0 0
        %3431 = vmatprep.subr.bf16.mxu0 0
        %3432 = vmatpush1.bf16.msra.mxu0 0
        %3433 = vmatprep.subr.bf16.mxu0 0
        %3434 = vmatpush1.bf16.msra.mxu0 0
        %3435 = vmatprep.subr.bf16.mxu0 0
        %3436 = vmatpush1.bf16.msra.mxu0 0
        %3437 = vmatprep.mubr.bf16.mxu0 0
        %3438 = vmatmul.mubr.bf16.gmra.mrb[0].mxu0 %v3403
        %v3439 = vpop.f32.mrb[0].mxu0
        %v3440 = vadd.f32 0.0, %v3439
        %v3441 = vpop.f32.mrb[0].mxu0
        %v3442 = vpop.f32.mrb[0].mxu0
        %v3443 = vpop.f32.mrb[0].mxu0
        %3444 = vdwg.mxu0
        %v3445 = vadd.f32 %v3348, %v3440
        %v3446 = vpack.c.bf16 %v3063, %v3063
        %v3448 = vsel %vm1003, %v3446, 0
        %3450 = vmatprep.subr.bf16.mxu0 0
        %3451 = vmatpush1.bf16.xpose.msra.mxu0 %v3448
        %3452 = vmatprep.subr.bf16.mxu0 0
        %3453 = vmatpush1.bf16.xpose.msra.mxu0 0
        %3454 = vmatprep.subr.bf16.mxu0 0
        %3455 = vmatpush1.bf16.xpose.msra.mxu0 0
        %3456 = vmatprep.subr.bf16.mxu0 0
        %3457 = vmatpush1.bf16.xpose.msra.mxu0 0
        %3458 = vmatprep.subr.bf16.mxu0 0
        %3459 = vmatpush1.bf16.xpose.msra.mxu0 0
        %3460 = vmatprep.subr.bf16.mxu0 0
        %3461 = vmatpush1.bf16.xpose.msra.mxu0 0
        %3462 = vmatprep.subr.bf16.mxu0 0
        %3463 = vmatpush1.bf16.xpose.msra.mxu0 0
        %3464 = vmatprep.subr.bf16.mxu0 0
        %3465 = vmatpush1.bf16.xpose.msra.mxu0 0
        %3466 = vmatprep.subr.bf16.mxu0 0
        %3467 = vmatpush1.bf16.xpose.msra.mxu0 0
        %3468 = vmatprep.subr.bf16.mxu0 0
        %3469 = vmatpush1.bf16.xpose.msra.mxu0 0
        %3470 = vmatprep.subr.bf16.mxu0 0
        %3471 = vmatpush1.bf16.xpose.msra.mxu0 0
        %3472 = vmatprep.subr.bf16.mxu0 0
        %3473 = vmatpush1.bf16.xpose.msra.mxu0 0
        %3474 = vmatprep.subr.bf16.mxu0 0
        %3475 = vmatpush1.bf16.xpose.msra.mxu0 0
        %3476 = vmatprep.subr.bf16.mxu0 0
        %3477 = vmatpush1.bf16.xpose.msra.mxu0 0
        %3478 = vmatprep.subr.bf16.mxu0 0
        %3479 = vmatpush1.bf16.xpose.msra.mxu0 0
        %3480 = vmatprep.subr.bf16.mxu0 0
        %3481 = vmatpush1.bf16.xpose.msra.mxu0 0
        %3482 = vmatprep.mubr.bf16.mxu0 0
        %3483 = vmatmul.mubr.bf16.gmra.mrb[0].mxu0 %v2537
        %v3484 = vpop.f32.mrb[0].mxu0
        %v3485 = vadd.f32 0.0, %v3484
        %v3486 = vpop.f32.mrb[0].mxu0
        %v3487 = vpop.f32.mrb[0].mxu0
        %v3488 = vpop.f32.mrb[0].mxu0
        %3489 = vdwg.mxu0
        %3491 = vrot.lane.b32.xlu0 %v3485, 32
        %v3492 = vpop.permute.xlu0 %3491
        %v3494 = vmul.f32 %v3057, %v3492
        %v3495 = vpack.c.bf16 %v3494, %v3494
        %3497 = vrot.lane.b32.xlu0 %v3495, 96
        %v3498 = vpop.permute.xlu0 %3497
        %v3500 = vsel %vm2190, %v3498, 0
        %3502 = vmatprep.subr.bf16.mxu0 0
        %3503 = vmatpush1.bf16.msra.mxu0 %v2595
        %3504 = vmatprep.subr.bf16.mxu0 0
        %3505 = vmatpush1.bf16.msra.mxu0 0
        %3506 = vmatprep.subr.bf16.mxu0 0
        %3507 = vmatpush1.bf16.msra.mxu0 0
        %3508 = vmatprep.subr.bf16.mxu0 0
        %3509 = vmatpush1.bf16.msra.mxu0 0
        %3510 = vmatprep.subr.bf16.mxu0 0
        %3511 = vmatpush1.bf16.msra.mxu0 0
        %3512 = vmatprep.subr.bf16.mxu0 0
        %3513 = vmatpush1.bf16.msra.mxu0 0
        %3514 = vmatprep.subr.bf16.mxu0 0
        %3515 = vmatpush1.bf16.msra.mxu0 0
        %3516 = vmatprep.subr.bf16.mxu0 0
        %3517 = vmatpush1.bf16.msra.mxu0 0
        %3518 = vmatprep.subr.bf16.mxu0 0
        %3519 = vmatpush1.bf16.msra.mxu0 0
        %3520 = vmatprep.subr.bf16.mxu0 0
        %3521 = vmatpush1.bf16.msra.mxu0 0
        %3522 = vmatprep.subr.bf16.mxu0 0
        %3523 = vmatpush1.bf16.msra.mxu0 0
        %3524 = vmatprep.subr.bf16.mxu0 0
        %3525 = vmatpush1.bf16.msra.mxu0 0
        %3526 = vmatprep.subr.bf16.mxu0 0
        %3527 = vmatpush1.bf16.msra.mxu0 0
        %3528 = vmatprep.subr.bf16.mxu0 0
        %3529 = vmatpush1.bf16.msra.mxu0 0
        %3530 = vmatprep.subr.bf16.mxu0 0
        %3531 = vmatpush1.bf16.msra.mxu0 0
        %3532 = vmatprep.subr.bf16.mxu0 0
        %3533 = vmatpush1.bf16.msra.mxu0 0
        %3534 = vmatprep.mubr.bf16.mxu0 0
        %3535 = vmatmul.mubr.bf16.gmra.mrb[0].mxu0 %v3500
        %v3536 = vpop.f32.mrb[0].mxu0
        %v3537 = vadd.f32 0.0, %v3536
        %v3538 = vpop.f32.mrb[0].mxu0
        %v3539 = vpop.f32.mrb[0].mxu0
        %v3540 = vpop.f32.mrb[0].mxu0
        %3541 = vdwg.mxu0
        %v3542 = vadd.f32 %v3445, %v3537
        %v3543 = vpack.c.bf16 %v3064, %v3064
        %v3545 = vsel %vm1003, %v3543, 0
        %3547 = vmatprep.subr.bf16.mxu0 0
        %3548 = vmatpush1.bf16.xpose.msra.mxu0 %v3545
        %3549 = vmatprep.subr.bf16.mxu0 0
        %3550 = vmatpush1.bf16.xpose.msra.mxu0 0
        %3551 = vmatprep.subr.bf16.mxu0 0
        %3552 = vmatpush1.bf16.xpose.msra.mxu0 0
        %3553 = vmatprep.subr.bf16.mxu0 0
        %3554 = vmatpush1.bf16.xpose.msra.mxu0 0
        %3555 = vmatprep.subr.bf16.mxu0 0
        %3556 = vmatpush1.bf16.xpose.msra.mxu0 0
        %3557 = vmatprep.subr.bf16.mxu0 0
        %3558 = vmatpush1.bf16.xpose.msra.mxu0 0
        %3559 = vmatprep.subr.bf16.mxu0 0
        %3560 = vmatpush1.bf16.xpose.msra.mxu0 0
        %3561 = vmatprep.subr.bf16.mxu0 0
        %3562 = vmatpush1.bf16.xpose.msra.mxu0 0
        %3563 = vmatprep.subr.bf16.mxu0 0
        %3564 = vmatpush1.bf16.xpose.msra.mxu0 0
        %3565 = vmatprep.subr.bf16.mxu0 0
        %3566 = vmatpush1.bf16.xpose.msra.mxu0 0
        %3567 = vmatprep.subr.bf16.mxu0 0
        %3568 = vmatpush1.bf16.xpose.msra.mxu0 0
        %3569 = vmatprep.subr.bf16.mxu0 0
        %3570 = vmatpush1.bf16.xpose.msra.mxu0 0
        %3571 = vmatprep.subr.bf16.mxu0 0
        %3572 = vmatpush1.bf16.xpose.msra.mxu0 0
        %3573 = vmatprep.subr.bf16.mxu0 0
        %3574 = vmatpush1.bf16.xpose.msra.mxu0 0
        %3575 = vmatprep.subr.bf16.mxu0 0
        %3576 = vmatpush1.bf16.xpose.msra.mxu0 0
        %3577 = vmatprep.subr.bf16.mxu0 0
        %3578 = vmatpush1.bf16.xpose.msra.mxu0 0
        %3579 = vmatprep.mubr.bf16.mxu0 0
        %3580 = vmatmul.mubr.bf16.gmra.mrb[0].mxu0 %v2655
        %v3581 = vpop.f32.mrb[0].mxu0
        %v3582 = vadd.f32 0.0, %v3581
        %v3583 = vpop.f32.mrb[0].mxu0
        %v3584 = vpop.f32.mrb[0].mxu0
        %v3585 = vpop.f32.mrb[0].mxu0
        %3586 = vdwg.mxu0
        %3588 = vrot.lane.b32.xlu0 %v3582, 40
        %v3589 = vpop.permute.xlu0 %3588
        %v3591 = vmul.f32 %v3057, %v3589
        %v3592 = vpack.c.bf16 %v3591, %v3591
        %3594 = vrot.lane.b32.xlu0 %v3592, 88
        %v3595 = vpop.permute.xlu0 %3594
        %v3597 = vsel %vm2190, %v3595, 0
        %3599 = vmatprep.subr.bf16.mxu0 0
        %3600 = vmatpush1.bf16.msra.mxu0 %v2713
        %3601 = vmatprep.subr.bf16.mxu0 0
        %3602 = vmatpush1.bf16.msra.mxu0 0
        %3603 = vmatprep.subr.bf16.mxu0 0
        %3604 = vmatpush1.bf16.msra.mxu0 0
        %3605 = vmatprep.subr.bf16.mxu0 0
        %3606 = vmatpush1.bf16.msra.mxu0 0
        %3607 = vmatprep.subr.bf16.mxu0 0
        %3608 = vmatpush1.bf16.msra.mxu0 0
        %3609 = vmatprep.subr.bf16.mxu0 0
        %3610 = vmatpush1.bf16.msra.mxu0 0
        %3611 = vmatprep.subr.bf16.mxu0 0
        %3612 = vmatpush1.bf16.msra.mxu0 0
        %3613 = vmatprep.subr.bf16.mxu0 0
        %3614 = vmatpush1.bf16.msra.mxu0 0
        %3615 = vmatprep.subr.bf16.mxu0 0
        %3616 = vmatpush1.bf16.msra.mxu0 0
        %3617 = vmatprep.subr.bf16.mxu0 0
        %3618 = vmatpush1.bf16.msra.mxu0 0
        %3619 = vmatprep.subr.bf16.mxu0 0
        %3620 = vmatpush1.bf16.msra.mxu0 0
        %3621 = vmatprep.subr.bf16.mxu0 0
        %3622 = vmatpush1.bf16.msra.mxu0 0
        %3623 = vmatprep.subr.bf16.mxu0 0
        %3624 = vmatpush1.bf16.msra.mxu0 0
        %3625 = vmatprep.subr.bf16.mxu0 0
        %3626 = vmatpush1.bf16.msra.mxu0 0
        %3627 = vmatprep.subr.bf16.mxu0 0
        %3628 = vmatpush1.bf16.msra.mxu0 0
        %3629 = vmatprep.subr.bf16.mxu0 0
        %3630 = vmatpush1.bf16.msra.mxu0 0
        %3631 = vmatprep.mubr.bf16.mxu0 0
        %3632 = vmatmul.mubr.bf16.gmra.mrb[0].mxu0 %v3597
        %v3633 = vpop.f32.mrb[0].mxu0
        %v3634 = vadd.f32 0.0, %v3633
        %v3635 = vpop.f32.mrb[0].mxu0
        %v3636 = vpop.f32.mrb[0].mxu0
        %v3637 = vpop.f32.mrb[0].mxu0
        %3638 = vdwg.mxu0
        %v3639 = vadd.f32 %v3542, %v3634
        %v3640 = vpack.c.bf16 %v3065, %v3065
        %v3642 = vsel %vm1003, %v3640, 0
        %3644 = vmatprep.subr.bf16.mxu0 0
        %3645 = vmatpush1.bf16.xpose.msra.mxu0 %v3642
        %3646 = vmatprep.subr.bf16.mxu0 0
        %3647 = vmatpush1.bf16.xpose.msra.mxu0 0
        %3648 = vmatprep.subr.bf16.mxu0 0
        %3649 = vmatpush1.bf16.xpose.msra.mxu0 0
        %3650 = vmatprep.subr.bf16.mxu0 0
        %3651 = vmatpush1.bf16.xpose.msra.mxu0 0
        %3652 = vmatprep.subr.bf16.mxu0 0
        %3653 = vmatpush1.bf16.xpose.msra.mxu0 0
        %3654 = vmatprep.subr.bf16.mxu0 0
        %3655 = vmatpush1.bf16.xpose.msra.mxu0 0
        %3656 = vmatprep.subr.bf16.mxu0 0
        %3657 = vmatpush1.bf16.xpose.msra.mxu0 0
        %3658 = vmatprep.subr.bf16.mxu0 0
        %3659 = vmatpush1.bf16.xpose.msra.mxu0 0
        %3660 = vmatprep.subr.bf16.mxu0 0
        %3661 = vmatpush1.bf16.xpose.msra.mxu0 0
        %3662 = vmatprep.subr.bf16.mxu0 0
        %3663 = vmatpush1.bf16.xpose.msra.mxu0 0
        %3664 = vmatprep.subr.bf16.mxu0 0
        %3665 = vmatpush1.bf16.xpose.msra.mxu0 0
        %3666 = vmatprep.subr.bf16.mxu0 0
        %3667 = vmatpush1.bf16.xpose.msra.mxu0 0
        %3668 = vmatprep.subr.bf16.mxu0 0
        %3669 = vmatpush1.bf16.xpose.msra.mxu0 0
        %3670 = vmatprep.subr.bf16.mxu0 0
        %3671 = vmatpush1.bf16.xpose.msra.mxu0 0
        %3672 = vmatprep.subr.bf16.mxu0 0
        %3673 = vmatpush1.bf16.xpose.msra.mxu0 0
        %3674 = vmatprep.subr.bf16.mxu0 0
        %3675 = vmatpush1.bf16.xpose.msra.mxu0 0
        %3676 = vmatprep.mubr.bf16.mxu0 0
        %3677 = vmatmul.mubr.bf16.gmra.mrb[0].mxu0 %v2773
        %v3678 = vpop.f32.mrb[0].mxu0
        %v3679 = vadd.f32 0.0, %v3678
        %v3680 = vpop.f32.mrb[0].mxu0
        %v3681 = vpop.f32.mrb[0].mxu0
        %v3682 = vpop.f32.mrb[0].mxu0
        %3683 = vdwg.mxu0
        %3685 = vrot.lane.b32.xlu0 %v3679, 48
        %v3686 = vpop.permute.xlu0 %3685
        %v3688 = vmul.f32 %v3057, %v3686
        %v3689 = vpack.c.bf16 %v3688, %v3688
        %3691 = vrot.lane.b32.xlu0 %v3689, 80
        %v3692 = vpop.permute.xlu0 %3691
        %v3694 = vsel %vm2190, %v3692, 0
        %3696 = vmatprep.subr.bf16.mxu0 0
        %3697 = vmatpush1.bf16.msra.mxu0 %v2831
        %3698 = vmatprep.subr.bf16.mxu0 0
        %3699 = vmatpush1.bf16.msra.mxu0 0
        %3700 = vmatprep.subr.bf16.mxu0 0
        %3701 = vmatpush1.bf16.msra.mxu0 0
        %3702 = vmatprep.subr.bf16.mxu0 0
        %3703 = vmatpush1.bf16.msra.mxu0 0
        %3704 = vmatprep.subr.bf16.mxu0 0
        %3705 = vmatpush1.bf16.msra.mxu0 0
        %3706 = vmatprep.subr.bf16.mxu0 0
        %3707 = vmatpush1.bf16.msra.mxu0 0
        %3708 = vmatprep.subr.bf16.mxu0 0
        %3709 = vmatpush1.bf16.msra.mxu0 0
        %3710 = vmatprep.subr.bf16.mxu0 0
        %3711 = vmatpush1.bf16.msra.mxu0 0
        %3712 = vmatprep.subr.bf16.mxu0 0
        %3713 = vmatpush1.bf16.msra.mxu0 0
        %3714 = vmatprep.subr.bf16.mxu0 0
        %3715 = vmatpush1.bf16.msra.mxu0 0
        %3716 = vmatprep.subr.bf16.mxu0 0
        %3717 = vmatpush1.bf16.msra.mxu0 0
        %3718 = vmatprep.subr.bf16.mxu0 0
        %3719 = vmatpush1.bf16.msra.mxu0 0
        %3720 = vmatprep.subr.bf16.mxu0 0
        %3721 = vmatpush1.bf16.msra.mxu0 0
        %3722 = vmatprep.subr.bf16.mxu0 0
        %3723 = vmatpush1.bf16.msra.mxu0 0
        %3724 = vmatprep.subr.bf16.mxu0 0
        %3725 = vmatpush1.bf16.msra.mxu0 0
        %3726 = vmatprep.subr.bf16.mxu0 0
        %3727 = vmatpush1.bf16.msra.mxu0 0
        %3728 = vmatprep.mubr.bf16.mxu0 0
        %3729 = vmatmul.mubr.bf16.gmra.mrb[0].mxu0 %v3694
        %v3730 = vpop.f32.mrb[0].mxu0
        %v3731 = vadd.f32 0.0, %v3730
        %v3732 = vpop.f32.mrb[0].mxu0
        %v3733 = vpop.f32.mrb[0].mxu0
        %v3734 = vpop.f32.mrb[0].mxu0
        %3735 = vdwg.mxu0
        %v3736 = vadd.f32 %v3639, %v3731
        %v3737 = vpack.c.bf16 %v3066, %v3066
        %v3739 = vsel %vm1003, %v3737, 0
        %3741 = vmatprep.subr.bf16.mxu0 0
        %3742 = vmatpush1.bf16.xpose.msra.mxu0 %v3739
        %3743 = vmatprep.subr.bf16.mxu0 0
        %3744 = vmatpush1.bf16.xpose.msra.mxu0 0
        %3745 = vmatprep.subr.bf16.mxu0 0
        %3746 = vmatpush1.bf16.xpose.msra.mxu0 0
        %3747 = vmatprep.subr.bf16.mxu0 0
        %3748 = vmatpush1.bf16.xpose.msra.mxu0 0
        %3749 = vmatprep.subr.bf16.mxu0 0
        %3750 = vmatpush1.bf16.xpose.msra.mxu0 0
        %3751 = vmatprep.subr.bf16.mxu0 0
        %3752 = vmatpush1.bf16.xpose.msra.mxu0 0
        %3753 = vmatprep.subr.bf16.mxu0 0
        %3754 = vmatpush1.bf16.xpose.msra.mxu0 0
        %3755 = vmatprep.subr.bf16.mxu0 0
        %3756 = vmatpush1.bf16.xpose.msra.mxu0 0
        %3757 = vmatprep.subr.bf16.mxu0 0
        %3758 = vmatpush1.bf16.xpose.msra.mxu0 0
        %3759 = vmatprep.subr.bf16.mxu0 0
        %3760 = vmatpush1.bf16.xpose.msra.mxu0 0
        %3761 = vmatprep.subr.bf16.mxu0 0
        %3762 = vmatpush1.bf16.xpose.msra.mxu0 0
        %3763 = vmatprep.subr.bf16.mxu0 0
        %3764 = vmatpush1.bf16.xpose.msra.mxu0 0
        %3765 = vmatprep.subr.bf16.mxu0 0
        %3766 = vmatpush1.bf16.xpose.msra.mxu0 0
        %3767 = vmatprep.subr.bf16.mxu0 0
        %3768 = vmatpush1.bf16.xpose.msra.mxu0 0
        %3769 = vmatprep.subr.bf16.mxu0 0
        %3770 = vmatpush1.bf16.xpose.msra.mxu0 0
        %3771 = vmatprep.subr.bf16.mxu0 0
        %3772 = vmatpush1.bf16.xpose.msra.mxu0 0
        %3773 = vmatprep.mubr.bf16.mxu0 0
        %3774 = vmatmul.mubr.bf16.gmra.mrb[0].mxu0 %v2891
        %v3775 = vpop.f32.mrb[0].mxu0
        %v3776 = vadd.f32 0.0, %v3775
        %v3777 = vpop.f32.mrb[0].mxu0
        %v3778 = vpop.f32.mrb[0].mxu0
        %v3779 = vpop.f32.mrb[0].mxu0
        %3780 = vdwg.mxu0
        %3782 = vrot.lane.b32.xlu0 %v3776, 56
        %v3783 = vpop.permute.xlu0 %3782
        %v3785 = vmul.f32 %v3057, %v3783
        %v3786 = vpack.c.bf16 %v3785, %v3785
        %3788 = vrot.lane.b32.xlu0 %v3786, 72
        %v3789 = vpop.permute.xlu0 %3788
        %v3791 = vsel %vm2190, %v3789, 0
        %3793 = vmatprep.subr.bf16.mxu0 0
        %3794 = vmatpush1.bf16.msra.mxu0 %v2949
        %3795 = vmatprep.subr.bf16.mxu0 0
        %3796 = vmatpush1.bf16.msra.mxu0 0
        %3797 = vmatprep.subr.bf16.mxu0 0
        %3798 = vmatpush1.bf16.msra.mxu0 0
        %3799 = vmatprep.subr.bf16.mxu0 0
        %3800 = vmatpush1.bf16.msra.mxu0 0
        %3801 = vmatprep.subr.bf16.mxu0 0
        %3802 = vmatpush1.bf16.msra.mxu0 0
        %3803 = vmatprep.subr.bf16.mxu0 0
        %3804 = vmatpush1.bf16.msra.mxu0 0
        %3805 = vmatprep.subr.bf16.mxu0 0
        %3806 = vmatpush1.bf16.msra.mxu0 0
        %3807 = vmatprep.subr.bf16.mxu0 0
        %3808 = vmatpush1.bf16.msra.mxu0 0
        %3809 = vmatprep.subr.bf16.mxu0 0
        %3810 = vmatpush1.bf16.msra.mxu0 0
        %3811 = vmatprep.subr.bf16.mxu0 0
        %3812 = vmatpush1.bf16.msra.mxu0 0
        %3813 = vmatprep.subr.bf16.mxu0 0
        %3814 = vmatpush1.bf16.msra.mxu0 0
        %3815 = vmatprep.subr.bf16.mxu0 0
        %3816 = vmatpush1.bf16.msra.mxu0 0
        %3817 = vmatprep.subr.bf16.mxu0 0
        %3818 = vmatpush1.bf16.msra.mxu0 0
        %3819 = vmatprep.subr.bf16.mxu0 0
        %3820 = vmatpush1.bf16.msra.mxu0 0
        %3821 = vmatprep.subr.bf16.mxu0 0
        %3822 = vmatpush1.bf16.msra.mxu0 0
        %3823 = vmatprep.subr.bf16.mxu0 0
        %3824 = vmatpush1.bf16.msra.mxu0 0
        %3825 = vmatprep.mubr.bf16.mxu0 0
        %3826 = vmatmul.mubr.bf16.gmra.mrb[0].mxu0 %v3791
        %v3827 = vpop.f32.mrb[0].mxu0
        %v3828 = vadd.f32 0.0, %v3827
        %v3829 = vpop.f32.mrb[0].mxu0
        %v3830 = vpop.f32.mrb[0].mxu0
        %v3831 = vpop.f32.mrb[0].mxu0
        %3832 = vdwg.mxu0
        %v3833 = vadd.f32 %v3736, %v3828
        %s3834 = scalar_lea.vmem %s454, 8 [#allocation8]
        %3835 = vst.msk [vmem:[%s3834] sm:$0xff] %vm1933, %v3833
        %s3836 = scalar_lea.vmem %s398, 16 [#allocation3]
        %v3837 = vld [vmem:[%s3836] sm:$0xff]
        %v3838 = vsel %vm1933, %v3837, 0.0
        %3839 = vadd.xlane.f32.xlu0 %v3838
        %v3840 = vpop.xlane.xlu0 %3839
        %v3841 = vmul.f32 %v3840, %v1937
        %v3842 = vsub.f32 %v3837, %v3841
        %v3843 = vmul.f32 %v3842, %v3842
        %v3844 = vsel %vm1933, %v3843, 0.0
        %3845 = vadd.xlane.f32.xlu0 %v3844
        %v3846 = vpop.xlane.xlu0 %3845
        %v3847 = vmul.f32 %v3846, %v1937
        %v3848 = vadd.f32 %v3847, 1e-05
        %v3849 = vrsqrt.pop %v3848
        %v3850 = vmul.f32 %v3842, %v3849
        %v3851 = vpack.c.bf16 %v3850, %v3850
        %v3853 = vsel %vm1933, %v3851, 0
        %3855 = vmatprep.subr.bf16.mxu0 0
        %3856 = vmatpush1.bf16.msra.mxu0 %v1963
        %3857 = vmatprep.subr.bf16.mxu0 0
        %3858 = vmatpush1.bf16.msra.mxu0 %v1964
        %3859 = vmatprep.subr.bf16.mxu0 0
        %3860 = vmatpush1.bf16.msra.mxu0 0
        %3861 = vmatprep.subr.bf16.mxu0 0
        %3862 = vmatpush1.bf16.msra.mxu0 0
        %3863 = vmatprep.subr.bf16.mxu0 0
        %3864 = vmatpush1.bf16.msra.mxu0 0
        %3865 = vmatprep.subr.bf16.mxu0 0
        %3866 = vmatpush1.bf16.msra.mxu0 0
        %3867 = vmatprep.subr.bf16.mxu0 0
        %3868 = vmatpush1.bf16.msra.mxu0 0
        %3869 = vmatprep.subr.bf16.mxu0 0
        %3870 = vmatpush1.bf16.msra.mxu0 0
        %3871 = vmatprep.subr.bf16.mxu0 0
        %3872 = vmatpush1.bf16.msra.mxu0 0
        %3873 = vmatprep.subr.bf16.mxu0 0
        %3874 = vmatpush1.bf16.msra.mxu0 0
        %3875 = vmatprep.subr.bf16.mxu0 0
        %3876 = vmatpush1.bf16.msra.mxu0 0
        %3877 = vmatprep.subr.bf16.mxu0 0
        %3878 = vmatpush1.bf16.msra.mxu0 0
        %3879 = vmatprep.subr.bf16.mxu0 0
        %3880 = vmatpush1.bf16.msra.mxu0 0
        %3881 = vmatprep.subr.bf16.mxu0 0
        %3882 = vmatpush1.bf16.msra.mxu0 0
        %3883 = vmatprep.subr.bf16.mxu0 0
        %3884 = vmatpush1.bf16.msra.mxu0 0
        %3885 = vmatprep.subr.bf16.mxu0 0
        %3886 = vmatpush1.bf16.msra.mxu0 0
        %3887 = vmatprep.mubr.bf16.mxu0 0
        %3888 = vmatmul.mubr.bf16.gmra.mrb[0].mxu0 %v3853
        %v3889 = vpop.f32.mrb[0].mxu0
        %v3890 = vadd.f32 %v1953, %v3889
        %v3891 = vpop.f32.mrb[0].mxu0
        %v3892 = vpop.f32.mrb[0].mxu0
        %v3893 = vpop.f32.mrb[0].mxu0
        %3894 = vdwg.mxu0
        %v3895 = vxor.u32 %v3890, 2147483648
        %v3896 = vmul.f32 %v3895, 1.442695
        %v3897 = vpow.pop %v3896
        %v3898 = vadd.f32 %v3897, 1.0
        %v3899 = vrcp.pop %v3898
        %v3900 = vmul.f32 1.0, %v3899
        %s3901 = scalar_lea.vmem [#allocation2], 128
        %v3902 = vld [vmem:[%s3901] sm:$0xff]
        %v3903 = vld [vmem:[%s3901 + $0x8] sm:$0xff]
        %v3904 = vld [vmem:[%s3901 + $0x10] sm:$0xff]
        %v3905 = vld [vmem:[%s3901 + $0x18] sm:$0xff]
        %v3906 = vld [vmem:[%s3901 + $0x20] sm:$0xff]
        %v3907 = vld [vmem:[%s3901 + $0x28] sm:$0xff]
        %v3908 = vld [vmem:[%s3901 + $0x30] sm:$0xff]
        %v3909 = vld [vmem:[%s3901 + $0x38] sm:$0xff]
        %v3910 = vpack.c.bf16 %v3902, %v3902
        %v3912 = vsel %vm1003, %v3910, 0
        %3914 = vmatprep.subr.bf16.mxu0 0
        %3915 = vmatpush1.bf16.xpose.msra.mxu0 %v3912
        %3916 = vmatprep.subr.bf16.mxu0 0
        %3917 = vmatpush1.bf16.xpose.msra.mxu0 0
        %3918 = vmatprep.subr.bf16.mxu0 0
        %3919 = vmatpush1.bf16.xpose.msra.mxu0 0
        %3920 = vmatprep.subr.bf16.mxu0 0
        %3921 = vmatpush1.bf16.xpose.msra.mxu0 0
        %3922 = vmatprep.subr.bf16.mxu0 0
        %3923 = vmatpush1.bf16.xpose.msra.mxu0 0
        %3924 = vmatprep.subr.bf16.mxu0 0
        %3925 = vmatpush1.bf16.xpose.msra.mxu0 0
        %3926 = vmatprep.subr.bf16.mxu0 0
        %3927 = vmatpush1.bf16.xpose.msra.mxu0 0
        %3928 = vmatprep.subr.bf16.mxu0 0
        %3929 = vmatpush1.bf16.xpose.msra.mxu0 0
        %3930 = vmatprep.subr.bf16.mxu0 0
        %3931 = vmatpush1.bf16.xpose.msra.mxu0 0
        %3932 = vmatprep.subr.bf16.mxu0 0
        %3933 = vmatpush1.bf16.xpose.msra.mxu0 0
        %3934 = vmatprep.subr.bf16.mxu0 0
        %3935 = vmatpush1.bf16.xpose.msra.mxu0 0
        %3936 = vmatprep.subr.bf16.mxu0 0
        %3937 = vmatpush1.bf16.xpose.msra.mxu0 0
        %3938 = vmatprep.subr.bf16.mxu0 0
        %3939 = vmatpush1.bf16.xpose.msra.mxu0 0
        %3940 = vmatprep.subr.bf16.mxu0 0
        %3941 = vmatpush1.bf16.xpose.msra.mxu0 0
        %3942 = vmatprep.subr.bf16.mxu0 0
        %3943 = vmatpush1.bf16.xpose.msra.mxu0 0
        %3944 = vmatprep.subr.bf16.mxu0 0
        %3945 = vmatpush1.bf16.xpose.msra.mxu0 0
        %3946 = vmatprep.mubr.bf16.mxu0 0
        %3947 = vmatmul.mubr.bf16.gmra.mrb[0].mxu0 %v2072
        %v3948 = vpop.f32.mrb[0].mxu0
        %v3949 = vadd.f32 0.0, %v3948
        %v3950 = vpop.f32.mrb[0].mxu0
        %v3951 = vpop.f32.mrb[0].mxu0
        %v3952 = vpop.f32.mrb[0].mxu0
        %3953 = vdwg.mxu0
        %v3954 = vmul.f32 %v3900, %v3949
        %v3955 = vpack.c.bf16 %v3954, %v3954
        %v3956 = vpack.c.bf16 %v3903, %v3903
        %v3958 = vsel %vm1003, %v3956, 0
        %3960 = vmatprep.subr.bf16.mxu0 0
        %3961 = vmatpush1.bf16.xpose.msra.mxu0 %v3958
        %3962 = vmatprep.subr.bf16.mxu0 0
        %3963 = vmatpush1.bf16.xpose.msra.mxu0 0
        %3964 = vmatprep.subr.bf16.mxu0 0
        %3965 = vmatpush1.bf16.xpose.msra.mxu0 0
        %3966 = vmatprep.subr.bf16.mxu0 0
        %3967 = vmatpush1.bf16.xpose.msra.mxu0 0
        %3968 = vmatprep.subr.bf16.mxu0 0
        %3969 = vmatpush1.bf16.xpose.msra.mxu0 0
        %3970 = vmatprep.subr.bf16.mxu0 0
        %3971 = vmatpush1.bf16.xpose.msra.mxu0 0
        %3972 = vmatprep.subr.bf16.mxu0 0
        %3973 = vmatpush1.bf16.xpose.msra.mxu0 0
        %3974 = vmatprep.subr.bf16.mxu0 0
        %3975 = vmatpush1.bf16.xpose.msra.mxu0 0
        %3976 = vmatprep.subr.bf16.mxu0 0
        %3977 = vmatpush1.bf16.xpose.msra.mxu0 0
        %3978 = vmatprep.subr.bf16.mxu0 0
        %3979 = vmatpush1.bf16.xpose.msra.mxu0 0
        %3980 = vmatprep.subr.bf16.mxu0 0
        %3981 = vmatpush1.bf16.xpose.msra.mxu0 0
        %3982 = vmatprep.subr.bf16.mxu0 0
        %3983 = vmatpush1.bf16.xpose.msra.mxu0 0
        %3984 = vmatprep.subr.bf16.mxu0 0
        %3985 = vmatpush1.bf16.xpose.msra.mxu0 0
        %3986 = vmatprep.subr.bf16.mxu0 0
        %3987 = vmatpush1.bf16.xpose.msra.mxu0 0
        %3988 = vmatprep.subr.bf16.mxu0 0
        %3989 = vmatpush1.bf16.xpose.msra.mxu0 0
        %3990 = vmatprep.subr.bf16.mxu0 0
        %3991 = vmatpush1.bf16.xpose.msra.mxu0 0
        %3992 = vmatprep.mubr.bf16.mxu0 0
        %3993 = vmatmul.mubr.bf16.gmra.mrb[0].mxu0 %v2136
        %v3994 = vpop.f32.mrb[0].mxu0
        %v3995 = vadd.f32 0.0, %v3994
        %v3996 = vpop.f32.mrb[0].mxu0
        %v3997 = vpop.f32.mrb[0].mxu0
        %v3998 = vpop.f32.mrb[0].mxu0
        %3999 = vdwg.mxu0
        %4001 = vrot.lane.b32.xlu0 %v3995, 8
        %v4002 = vpop.permute.xlu0 %4001
        %v4004 = vmul.f32 %v3900, %v4002
        %v4005 = vpack.c.bf16 %v4004, %v4004
        %4007 = vrot.lane.b32.xlu0 %v4005, 120
        %v4008 = vpop.permute.xlu0 %4007
        %v4010 = vsel %vm2190, %v4008, 0
        %4012 = vmatprep.subr.bf16.mxu0 0
        %4013 = vmatpush1.bf16.msra.mxu0 %v2196
        %4014 = vmatprep.subr.bf16.mxu0 0
        %4015 = vmatpush1.bf16.msra.mxu0 0
        %4016 = vmatprep.subr.bf16.mxu0 0
        %4017 = vmatpush1.bf16.msra.mxu0 0
        %4018 = vmatprep.subr.bf16.mxu0 0
        %4019 = vmatpush1.bf16.msra.mxu0 0
        %4020 = vmatprep.subr.bf16.mxu0 0
        %4021 = vmatpush1.bf16.msra.mxu0 0
        %4022 = vmatprep.subr.bf16.mxu0 0
        %4023 = vmatpush1.bf16.msra.mxu0 0
        %4024 = vmatprep.subr.bf16.mxu0 0
        %4025 = vmatpush1.bf16.msra.mxu0 0
        %4026 = vmatprep.subr.bf16.mxu0 0
        %4027 = vmatpush1.bf16.msra.mxu0 0
        %4028 = vmatprep.subr.bf16.mxu0 0
        %4029 = vmatpush1.bf16.msra.mxu0 0
        %4030 = vmatprep.subr.bf16.mxu0 0
        %4031 = vmatpush1.bf16.msra.mxu0 0
        %4032 = vmatprep.subr.bf16.mxu0 0
        %4033 = vmatpush1.bf16.msra.mxu0 0
        %4034 = vmatprep.subr.bf16.mxu0 0
        %4035 = vmatpush1.bf16.msra.mxu0 0
        %4036 = vmatprep.subr.bf16.mxu0 0
        %4037 = vmatpush1.bf16.msra.mxu0 0
        %4038 = vmatprep.subr.bf16.mxu0 0
        %4039 = vmatpush1.bf16.msra.mxu0 0
        %4040 = vmatprep.subr.bf16.mxu0 0
        %4041 = vmatpush1.bf16.msra.mxu0 0
        %4042 = vmatprep.subr.bf16.mxu0 0
        %4043 = vmatpush1.bf16.msra.mxu0 0
        %4044 = vmatprep.mubr.bf16.mxu0 0
        %4045 = vmatmul.mubr.bf16.gmra.mrb[0].mxu0 %v4010
        %v4046 = vpop.f32.mrb[0].mxu0
        %v4047 = vadd.f32 0.0, %v4046
        %v4048 = vpop.f32.mrb[0].mxu0
        %v4049 = vpop.f32.mrb[0].mxu0
        %v4050 = vpop.f32.mrb[0].mxu0
        %4051 = vdwg.mxu0
        %v4053 = vsel %vm2190, %v3955, 0
        %4055 = vmatprep.subr.bf16.mxu0 0
        %4056 = vmatpush1.bf16.msra.mxu0 %v2242
        %4057 = vmatprep.subr.bf16.mxu0 0
        %4058 = vmatpush1.bf16.msra.mxu0 0
        %4059 = vmatprep.subr.bf16.mxu0 0
        %4060 = vmatpush1.bf16.msra.mxu0 0
        %4061 = vmatprep.subr.bf16.mxu0 0
        %4062 = vmatpush1.bf16.msra.mxu0 0
        %4063 = vmatprep.subr.bf16.mxu0 0
        %4064 = vmatpush1.bf16.msra.mxu0 0
        %4065 = vmatprep.subr.bf16.mxu0 0
        %4066 = vmatpush1.bf16.msra.mxu0 0
        %4067 = vmatprep.subr.bf16.mxu0 0
        %4068 = vmatpush1.bf16.msra.mxu0 0
        %4069 = vmatprep.subr.bf16.mxu0 0
        %4070 = vmatpush1.bf16.msra.mxu0 0
        %4071 = vmatprep.subr.bf16.mxu0 0
        %4072 = vmatpush1.bf16.msra.mxu0 0
        %4073 = vmatprep.subr.bf16.mxu0 0
        %4074 = vmatpush1.bf16.msra.mxu0 0
        %4075 = vmatprep.subr.bf16.mxu0 0
        %4076 = vmatpush1.bf16.msra.mxu0 0
        %4077 = vmatprep.subr.bf16.mxu0 0
        %4078 = vmatpush1.bf16.msra.mxu0 0
        %4079 = vmatprep.subr.bf16.mxu0 0
        %4080 = vmatpush1.bf16.msra.mxu0 0
        %4081 = vmatprep.subr.bf16.mxu0 0
        %4082 = vmatpush1.bf16.msra.mxu0 0
        %4083 = vmatprep.subr.bf16.mxu0 0
        %4084 = vmatpush1.bf16.msra.mxu0 0
        %4085 = vmatprep.subr.bf16.mxu0 0
        %4086 = vmatpush1.bf16.msra.mxu0 0
        %4087 = vmatprep.mubr.bf16.mxu0 0
        %4088 = vmatmul.mubr.bf16.gmra.mrb[0].mxu0 %v4053
        %v4089 = vpop.f32.mrb[0].mxu0
        %v4090 = vadd.f32 %v4047, %v4089
        %v4091 = vpop.f32.mrb[0].mxu0
        %v4092 = vpop.f32.mrb[0].mxu0
        %v4093 = vpop.f32.mrb[0].mxu0
        %4094 = vdwg.mxu0
        %v4095 = vpack.c.bf16 %v3904, %v3904
        %v4097 = vsel %vm1003, %v4095, 0
        %4099 = vmatprep.subr.bf16.mxu0 0
        %4100 = vmatpush1.bf16.xpose.msra.mxu0 %v4097
        %4101 = vmatprep.subr.bf16.mxu0 0
        %4102 = vmatpush1.bf16.xpose.msra.mxu0 0
        %4103 = vmatprep.subr.bf16.mxu0 0
        %4104 = vmatpush1.bf16.xpose.msra.mxu0 0
        %4105 = vmatprep.subr.bf16.mxu0 0
        %4106 = vmatpush1.bf16.xpose.msra.mxu0 0
        %4107 = vmatprep.subr.bf16.mxu0 0
        %4108 = vmatpush1.bf16.xpose.msra.mxu0 0
        %4109 = vmatprep.subr.bf16.mxu0 0
        %4110 = vmatpush1.bf16.xpose.msra.mxu0 0
        %4111 = vmatprep.subr.bf16.mxu0 0
        %4112 = vmatpush1.bf16.xpose.msra.mxu0 0
        %4113 = vmatprep.subr.bf16.mxu0 0
        %4114 = vmatpush1.bf16.xpose.msra.mxu0 0
        %4115 = vmatprep.subr.bf16.mxu0 0
        %4116 = vmatpush1.bf16.xpose.msra.mxu0 0
        %4117 = vmatprep.subr.bf16.mxu0 0
        %4118 = vmatpush1.bf16.xpose.msra.mxu0 0
        %4119 = vmatprep.subr.bf16.mxu0 0
        %4120 = vmatpush1.bf16.xpose.msra.mxu0 0
        %4121 = vmatprep.subr.bf16.mxu0 0
        %4122 = vmatpush1.bf16.xpose.msra.mxu0 0
        %4123 = vmatprep.subr.bf16.mxu0 0
        %4124 = vmatpush1.bf16.xpose.msra.mxu0 0
        %4125 = vmatprep.subr.bf16.mxu0 0
        %4126 = vmatpush1.bf16.xpose.msra.mxu0 0
        %4127 = vmatprep.subr.bf16.mxu0 0
        %4128 = vmatpush1.bf16.xpose.msra.mxu0 0
        %4129 = vmatprep.subr.bf16.mxu0 0
        %4130 = vmatpush1.bf16.xpose.msra.mxu0 0
        %4131 = vmatprep.mubr.bf16.mxu0 0
        %4132 = vmatmul.mubr.bf16.gmra.mrb[0].mxu0 %v2301
        %v4133 = vpop.f32.mrb[0].mxu0
        %v4134 = vadd.f32 0.0, %v4133
        %v4135 = vpop.f32.mrb[0].mxu0
        %v4136 = vpop.f32.mrb[0].mxu0
        %v4137 = vpop.f32.mrb[0].mxu0
        %4138 = vdwg.mxu0
        %4140 = vrot.lane.b32.xlu0 %v4134, 16
        %v4141 = vpop.permute.xlu0 %4140
        %v4143 = vmul.f32 %v3900, %v4141
        %v4144 = vpack.c.bf16 %v4143, %v4143
        %4146 = vrot.lane.b32.xlu0 %v4144, 112
        %v4147 = vpop.permute.xlu0 %4146
        %v4149 = vsel %vm2190, %v4147, 0
        %4151 = vmatprep.subr.bf16.mxu0 0
        %4152 = vmatpush1.bf16.msra.mxu0 %v2359
        %4153 = vmatprep.subr.bf16.mxu0 0
        %4154 = vmatpush1.bf16.msra.mxu0 0
        %4155 = vmatprep.subr.bf16.mxu0 0
        %4156 = vmatpush1.bf16.msra.mxu0 0
        %4157 = vmatprep.subr.bf16.mxu0 0
        %4158 = vmatpush1.bf16.msra.mxu0 0
        %4159 = vmatprep.subr.bf16.mxu0 0
        %4160 = vmatpush1.bf16.msra.mxu0 0
        %4161 = vmatprep.subr.bf16.mxu0 0
        %4162 = vmatpush1.bf16.msra.mxu0 0
        %4163 = vmatprep.subr.bf16.mxu0 0
        %4164 = vmatpush1.bf16.msra.mxu0 0
        %4165 = vmatprep.subr.bf16.mxu0 0
        %4166 = vmatpush1.bf16.msra.mxu0 0
        %4167 = vmatprep.subr.bf16.mxu0 0
        %4168 = vmatpush1.bf16.msra.mxu0 0
        %4169 = vmatprep.subr.bf16.mxu0 0
        %4170 = vmatpush1.bf16.msra.mxu0 0
        %4171 = vmatprep.subr.bf16.mxu0 0
        %4172 = vmatpush1.bf16.msra.mxu0 0
        %4173 = vmatprep.subr.bf16.mxu0 0
        %4174 = vmatpush1.bf16.msra.mxu0 0
        %4175 = vmatprep.subr.bf16.mxu0 0
        %4176 = vmatpush1.bf16.msra.mxu0 0
        %4177 = vmatprep.subr.bf16.mxu0 0
        %4178 = vmatpush1.bf16.msra.mxu0 0
        %4179 = vmatprep.subr.bf16.mxu0 0
        %4180 = vmatpush1.bf16.msra.mxu0 0
        %4181 = vmatprep.subr.bf16.mxu0 0
        %4182 = vmatpush1.bf16.msra.mxu0 0
        %4183 = vmatprep.mubr.bf16.mxu0 0
        %4184 = vmatmul.mubr.bf16.gmra.mrb[0].mxu0 %v4149
        %v4185 = vpop.f32.mrb[0].mxu0
        %v4186 = vadd.f32 0.0, %v4185
        %v4187 = vpop.f32.mrb[0].mxu0
        %v4188 = vpop.f32.mrb[0].mxu0
        %v4189 = vpop.f32.mrb[0].mxu0
        %4190 = vdwg.mxu0
        %v4191 = vadd.f32 %v4090, %v4186
        %v4192 = vpack.c.bf16 %v3905, %v3905
        %v4194 = vsel %vm1003, %v4192, 0
        %4196 = vmatprep.subr.bf16.mxu0 0
        %4197 = vmatpush1.bf16.xpose.msra.mxu0 %v4194
        %4198 = vmatprep.subr.bf16.mxu0 0
        %4199 = vmatpush1.bf16.xpose.msra.mxu0 0
        %4200 = vmatprep.subr.bf16.mxu0 0
        %4201 = vmatpush1.bf16.xpose.msra.mxu0 0
        %4202 = vmatprep.subr.bf16.mxu0 0
        %4203 = vmatpush1.bf16.xpose.msra.mxu0 0
        %4204 = vmatprep.subr.bf16.mxu0 0
        %4205 = vmatpush1.bf16.xpose.msra.mxu0 0
        %4206 = vmatprep.subr.bf16.mxu0 0
        %4207 = vmatpush1.bf16.xpose.msra.mxu0 0
        %4208 = vmatprep.subr.bf16.mxu0 0
        %4209 = vmatpush1.bf16.xpose.msra.mxu0 0
        %4210 = vmatprep.subr.bf16.mxu0 0
        %4211 = vmatpush1.bf16.xpose.msra.mxu0 0
        %4212 = vmatprep.subr.bf16.mxu0 0
        %4213 = vmatpush1.bf16.xpose.msra.mxu0 0
        %4214 = vmatprep.subr.bf16.mxu0 0
        %4215 = vmatpush1.bf16.xpose.msra.mxu0 0
        %4216 = vmatprep.subr.bf16.mxu0 0
        %4217 = vmatpush1.bf16.xpose.msra.mxu0 0
        %4218 = vmatprep.subr.bf16.mxu0 0
        %4219 = vmatpush1.bf16.xpose.msra.mxu0 0
        %4220 = vmatprep.subr.bf16.mxu0 0
        %4221 = vmatpush1.bf16.xpose.msra.mxu0 0
        %4222 = vmatprep.subr.bf16.mxu0 0
        %4223 = vmatpush1.bf16.xpose.msra.mxu0 0
        %4224 = vmatprep.subr.bf16.mxu0 0
        %4225 = vmatpush1.bf16.xpose.msra.mxu0 0
        %4226 = vmatprep.subr.bf16.mxu0 0
        %4227 = vmatpush1.bf16.xpose.msra.mxu0 0
        %4228 = vmatprep.mubr.bf16.mxu0 0
        %4229 = vmatmul.mubr.bf16.gmra.mrb[0].mxu0 %v2419
        %v4230 = vpop.f32.mrb[0].mxu0
        %v4231 = vadd.f32 0.0, %v4230
        %v4232 = vpop.f32.mrb[0].mxu0
        %v4233 = vpop.f32.mrb[0].mxu0
        %v4234 = vpop.f32.mrb[0].mxu0
        %4235 = vdwg.mxu0
        %4237 = vrot.lane.b32.xlu0 %v4231, 24
        %v4238 = vpop.permute.xlu0 %4237
        %v4240 = vmul.f32 %v3900, %v4238
        %v4241 = vpack.c.bf16 %v4240, %v4240
        %4243 = vrot.lane.b32.xlu0 %v4241, 104
        %v4244 = vpop.permute.xlu0 %4243
        %v4246 = vsel %vm2190, %v4244, 0
        %4248 = vmatprep.subr.bf16.mxu0 0
        %4249 = vmatpush1.bf16.msra.mxu0 %v2477
        %4250 = vmatprep.subr.bf16.mxu0 0
        %4251 = vmatpush1.bf16.msra.mxu0 0
        %4252 = vmatprep.subr.bf16.mxu0 0
        %4253 = vmatpush1.bf16.msra.mxu0 0
        %4254 = vmatprep.subr.bf16.mxu0 0
        %4255 = vmatpush1.bf16.msra.mxu0 0
        %4256 = vmatprep.subr.bf16.mxu0 0
        %4257 = vmatpush1.bf16.msra.mxu0 0
        %4258 = vmatprep.subr.bf16.mxu0 0
        %4259 = vmatpush1.bf16.msra.mxu0 0
        %4260 = vmatprep.subr.bf16.mxu0 0
        %4261 = vmatpush1.bf16.msra.mxu0 0
        %4262 = vmatprep.subr.bf16.mxu0 0
        %4263 = vmatpush1.bf16.msra.mxu0 0
        %4264 = vmatprep.subr.bf16.mxu0 0
        %4265 = vmatpush1.bf16.msra.mxu0 0
        %4266 = vmatprep.subr.bf16.mxu0 0
        %4267 = vmatpush1.bf16.msra.mxu0 0
        %4268 = vmatprep.subr.bf16.mxu0 0
        %4269 = vmatpush1.bf16.msra.mxu0 0
        %4270 = vmatprep.subr.bf16.mxu0 0
        %4271 = vmatpush1.bf16.msra.mxu0 0
        %4272 = vmatprep.subr.bf16.mxu0 0
        %4273 = vmatpush1.bf16.msra.mxu0 0
        %4274 = vmatprep.subr.bf16.mxu0 0
        %4275 = vmatpush1.bf16.msra.mxu0 0
        %4276 = vmatprep.subr.bf16.mxu0 0
        %4277 = vmatpush1.bf16.msra.mxu0 0
        %4278 = vmatprep.subr.bf16.mxu0 0
        %4279 = vmatpush1.bf16.msra.mxu0 0
        %4280 = vmatprep.mubr.bf16.mxu0 0
        %4281 = vmatmul.mubr.bf16.gmra.mrb[0].mxu0 %v4246
        %v4282 = vpop.f32.mrb[0].mxu0
        %v4283 = vadd.f32 0.0, %v4282
        %v4284 = vpop.f32.mrb[0].mxu0
        %v4285 = vpop.f32.mrb[0].mxu0
        %v4286 = vpop.f32.mrb[0].mxu0
        %4287 = vdwg.mxu0
        %v4288 = vadd.f32 %v4191, %v4283
        %v4289 = vpack.c.bf16 %v3906, %v3906
        %v4291 = vsel %vm1003, %v4289, 0
        %4293 = vmatprep.subr.bf16.mxu0 0
        %4294 = vmatpush1.bf16.xpose.msra.mxu0 %v4291
        %4295 = vmatprep.subr.bf16.mxu0 0
        %4296 = vmatpush1.bf16.xpose.msra.mxu0 0
        %4297 = vmatprep.subr.bf16.mxu0 0
        %4298 = vmatpush1.bf16.xpose.msra.mxu0 0
        %4299 = vmatprep.subr.bf16.mxu0 0
        %4300 = vmatpush1.bf16.xpose.msra.mxu0 0
        %4301 = vmatprep.subr.bf16.mxu0 0
        %4302 = vmatpush1.bf16.xpose.msra.mxu0 0
        %4303 = vmatprep.subr.bf16.mxu0 0
        %4304 = vmatpush1.bf16.xpose.msra.mxu0 0
        %4305 = vmatprep.subr.bf16.mxu0 0
        %4306 = vmatpush1.bf16.xpose.msra.mxu0 0
        %4307 = vmatprep.subr.bf16.mxu0 0
        %4308 = vmatpush1.bf16.xpose.msra.mxu0 0
        %4309 = vmatprep.subr.bf16.mxu0 0
        %4310 = vmatpush1.bf16.xpose.msra.mxu0 0
        %4311 = vmatprep.subr.bf16.mxu0 0
        %4312 = vmatpush1.bf16.xpose.msra.mxu0 0
        %4313 = vmatprep.subr.bf16.mxu0 0
        %4314 = vmatpush1.bf16.xpose.msra.mxu0 0
        %4315 = vmatprep.subr.bf16.mxu0 0
        %4316 = vmatpush1.bf16.xpose.msra.mxu0 0
        %4317 = vmatprep.subr.bf16.mxu0 0
        %4318 = vmatpush1.bf16.xpose.msra.mxu0 0
        %4319 = vmatprep.subr.bf16.mxu0 0
        %4320 = vmatpush1.bf16.xpose.msra.mxu0 0
        %4321 = vmatprep.subr.bf16.mxu0 0
        %4322 = vmatpush1.bf16.xpose.msra.mxu0 0
        %4323 = vmatprep.subr.bf16.mxu0 0
        %4324 = vmatpush1.bf16.xpose.msra.mxu0 0
        %4325 = vmatprep.mubr.bf16.mxu0 0
        %4326 = vmatmul.mubr.bf16.gmra.mrb[0].mxu0 %v2537
        %v4327 = vpop.f32.mrb[0].mxu0
        %v4328 = vadd.f32 0.0, %v4327
        %v4329 = vpop.f32.mrb[0].mxu0
        %v4330 = vpop.f32.mrb[0].mxu0
        %v4331 = vpop.f32.mrb[0].mxu0
        %4332 = vdwg.mxu0
        %4334 = vrot.lane.b32.xlu0 %v4328, 32
        %v4335 = vpop.permute.xlu0 %4334
        %v4337 = vmul.f32 %v3900, %v4335
        %v4338 = vpack.c.bf16 %v4337, %v4337
        %4340 = vrot.lane.b32.xlu0 %v4338, 96
        %v4341 = vpop.permute.xlu0 %4340
        %v4343 = vsel %vm2190, %v4341, 0
        %4345 = vmatprep.subr.bf16.mxu0 0
        %4346 = vmatpush1.bf16.msra.mxu0 %v2595
        %4347 = vmatprep.subr.bf16.mxu0 0
        %4348 = vmatpush1.bf16.msra.mxu0 0
        %4349 = vmatprep.subr.bf16.mxu0 0
        %4350 = vmatpush1.bf16.msra.mxu0 0
        %4351 = vmatprep.subr.bf16.mxu0 0
        %4352 = vmatpush1.bf16.msra.mxu0 0
        %4353 = vmatprep.subr.bf16.mxu0 0
        %4354 = vmatpush1.bf16.msra.mxu0 0
        %4355 = vmatprep.subr.bf16.mxu0 0
        %4356 = vmatpush1.bf16.msra.mxu0 0
        %4357 = vmatprep.subr.bf16.mxu0 0
        %4358 = vmatpush1.bf16.msra.mxu0 0
        %4359 = vmatprep.subr.bf16.mxu0 0
        %4360 = vmatpush1.bf16.msra.mxu0 0
        %4361 = vmatprep.subr.bf16.mxu0 0
        %4362 = vmatpush1.bf16.msra.mxu0 0
        %4363 = vmatprep.subr.bf16.mxu0 0
        %4364 = vmatpush1.bf16.msra.mxu0 0
        %4365 = vmatprep.subr.bf16.mxu0 0
        %4366 = vmatpush1.bf16.msra.mxu0 0
        %4367 = vmatprep.subr.bf16.mxu0 0
        %4368 = vmatpush1.bf16.msra.mxu0 0
        %4369 = vmatprep.subr.bf16.mxu0 0
        %4370 = vmatpush1.bf16.msra.mxu0 0
        %4371 = vmatprep.subr.bf16.mxu0 0
        %4372 = vmatpush1.bf16.msra.mxu0 0
        %4373 = vmatprep.subr.bf16.mxu0 0
        %4374 = vmatpush1.bf16.msra.mxu0 0
        %4375 = vmatprep.subr.bf16.mxu0 0
        %4376 = vmatpush1.bf16.msra.mxu0 0
        %4377 = vmatprep.mubr.bf16.mxu0 0
        %4378 = vmatmul.mubr.bf16.gmra.mrb[0].mxu0 %v4343
        %v4379 = vpop.f32.mrb[0].mxu0
        %v4380 = vadd.f32 0.0, %v4379
        %v4381 = vpop.f32.mrb[0].mxu0
        %v4382 = vpop.f32.mrb[0].mxu0
        %v4383 = vpop.f32.mrb[0].mxu0
        %4384 = vdwg.mxu0
        %v4385 = vadd.f32 %v4288, %v4380
        %v4386 = vpack.c.bf16 %v3907, %v3907
        %v4388 = vsel %vm1003, %v4386, 0
        %4390 = vmatprep.subr.bf16.mxu0 0
        %4391 = vmatpush1.bf16.xpose.msra.mxu0 %v4388
        %4392 = vmatprep.subr.bf16.mxu0 0
        %4393 = vmatpush1.bf16.xpose.msra.mxu0 0
        %4394 = vmatprep.subr.bf16.mxu0 0
        %4395 = vmatpush1.bf16.xpose.msra.mxu0 0
        %4396 = vmatprep.subr.bf16.mxu0 0
        %4397 = vmatpush1.bf16.xpose.msra.mxu0 0
        %4398 = vmatprep.subr.bf16.mxu0 0
        %4399 = vmatpush1.bf16.xpose.msra.mxu0 0
        %4400 = vmatprep.subr.bf16.mxu0 0
        %4401 = vmatpush1.bf16.xpose.msra.mxu0 0
        %4402 = vmatprep.subr.bf16.mxu0 0
        %4403 = vmatpush1.bf16.xpose.msra.mxu0 0
        %4404 = vmatprep.subr.bf16.mxu0 0
        %4405 = vmatpush1.bf16.xpose.msra.mxu0 0
        %4406 = vmatprep.subr.bf16.mxu0 0
        %4407 = vmatpush1.bf16.xpose.msra.mxu0 0
        %4408 = vmatprep.subr.bf16.mxu0 0
        %4409 = vmatpush1.bf16.xpose.msra.mxu0 0
        %4410 = vmatprep.subr.bf16.mxu0 0
        %4411 = vmatpush1.bf16.xpose.msra.mxu0 0
        %4412 = vmatprep.subr.bf16.mxu0 0
        %4413 = vmatpush1.bf16.xpose.msra.mxu0 0
        %4414 = vmatprep.subr.bf16.mxu0 0
        %4415 = vmatpush1.bf16.xpose.msra.mxu0 0
        %4416 = vmatprep.subr.bf16.mxu0 0
        %4417 = vmatpush1.bf16.xpose.msra.mxu0 0
        %4418 = vmatprep.subr.bf16.mxu0 0
        %4419 = vmatpush1.bf16.xpose.msra.mxu0 0
        %4420 = vmatprep.subr.bf16.mxu0 0
        %4421 = vmatpush1.bf16.xpose.msra.mxu0 0
        %4422 = vmatprep.mubr.bf16.mxu0 0
        %4423 = vmatmul.mubr.bf16.gmra.mrb[0].mxu0 %v2655
        %v4424 = vpop.f32.mrb[0].mxu0
        %v4425 = vadd.f32 0.0, %v4424
        %v4426 = vpop.f32.mrb[0].mxu0
        %v4427 = vpop.f32.mrb[0].mxu0
        %v4428 = vpop.f32.mrb[0].mxu0
        %4429 = vdwg.mxu0
        %4431 = vrot.lane.b32.xlu0 %v4425, 40
        %v4432 = vpop.permute.xlu0 %4431
        %v4434 = vmul.f32 %v3900, %v4432
        %v4435 = vpack.c.bf16 %v4434, %v4434
        %4437 = vrot.lane.b32.xlu0 %v4435, 88
        %v4438 = vpop.permute.xlu0 %4437
        %v4440 = vsel %vm2190, %v4438, 0
        %4442 = vmatprep.subr.bf16.mxu0 0
        %4443 = vmatpush1.bf16.msra.mxu0 %v2713
        %4444 = vmatprep.subr.bf16.mxu0 0
        %4445 = vmatpush1.bf16.msra.mxu0 0
        %4446 = vmatprep.subr.bf16.mxu0 0
        %4447 = vmatpush1.bf16.msra.mxu0 0
        %4448 = vmatprep.subr.bf16.mxu0 0
        %4449 = vmatpush1.bf16.msra.mxu0 0
        %4450 = vmatprep.subr.bf16.mxu0 0
        %4451 = vmatpush1.bf16.msra.mxu0 0
        %4452 = vmatprep.subr.bf16.mxu0 0
        %4453 = vmatpush1.bf16.msra.mxu0 0
        %4454 = vmatprep.subr.bf16.mxu0 0
        %4455 = vmatpush1.bf16.msra.mxu0 0
        %4456 = vmatprep.subr.bf16.mxu0 0
        %4457 = vmatpush1.bf16.msra.mxu0 0
        %4458 = vmatprep.subr.bf16.mxu0 0
        %4459 = vmatpush1.bf16.msra.mxu0 0
        %4460 = vmatprep.subr.bf16.mxu0 0
        %4461 = vmatpush1.bf16.msra.mxu0 0
        %4462 = vmatprep.subr.bf16.mxu0 0
        %4463 = vmatpush1.bf16.msra.mxu0 0
        %4464 = vmatprep.subr.bf16.mxu0 0
        %4465 = vmatpush1.bf16.msra.mxu0 0
        %4466 = vmatprep.subr.bf16.mxu0 0
        %4467 = vmatpush1.bf16.msra.mxu0 0
        %4468 = vmatprep.subr.bf16.mxu0 0
        %4469 = vmatpush1.bf16.msra.mxu0 0
        %4470 = vmatprep.subr.bf16.mxu0 0
        %4471 = vmatpush1.bf16.msra.mxu0 0
        %4472 = vmatprep.subr.bf16.mxu0 0
        %4473 = vmatpush1.bf16.msra.mxu0 0
        %4474 = vmatprep.mubr.bf16.mxu0 0
        %4475 = vmatmul.mubr.bf16.gmra.mrb[0].mxu0 %v4440
        %v4476 = vpop.f32.mrb[0].mxu0
        %v4477 = vadd.f32 0.0, %v4476
        %v4478 = vpop.f32.mrb[0].mxu0
        %v4479 = vpop.f32.mrb[0].mxu0
        %v4480 = vpop.f32.mrb[0].mxu0
        %4481 = vdwg.mxu0
        %v4482 = vadd.f32 %v4385, %v4477
        %v4483 = vpack.c.bf16 %v3908, %v3908
        %v4485 = vsel %vm1003, %v4483, 0
        %4487 = vmatprep.subr.bf16.mxu0 0
        %4488 = vmatpush1.bf16.xpose.msra.mxu0 %v4485
        %4489 = vmatprep.subr.bf16.mxu0 0
        %4490 = vmatpush1.bf16.xpose.msra.mxu0 0
        %4491 = vmatprep.subr.bf16.mxu0 0
        %4492 = vmatpush1.bf16.xpose.msra.mxu0 0
        %4493 = vmatprep.subr.bf16.mxu0 0
        %4494 = vmatpush1.bf16.xpose.msra.mxu0 0
        %4495 = vmatprep.subr.bf16.mxu0 0
        %4496 = vmatpush1.bf16.xpose.msra.mxu0 0
        %4497 = vmatprep.subr.bf16.mxu0 0
        %4498 = vmatpush1.bf16.xpose.msra.mxu0 0
        %4499 = vmatprep.subr.bf16.mxu0 0
        %4500 = vmatpush1.bf16.xpose.msra.mxu0 0
        %4501 = vmatprep.subr.bf16.mxu0 0
        %4502 = vmatpush1.bf16.xpose.msra.mxu0 0
        %4503 = vmatprep.subr.bf16.mxu0 0
        %4504 = vmatpush1.bf16.xpose.msra.mxu0 0
        %4505 = vmatprep.subr.bf16.mxu0 0
        %4506 = vmatpush1.bf16.xpose.msra.mxu0 0
        %4507 = vmatprep.subr.bf16.mxu0 0
        %4508 = vmatpush1.bf16.xpose.msra.mxu0 0
        %4509 = vmatprep.subr.bf16.mxu0 0
        %4510 = vmatpush1.bf16.xpose.msra.mxu0 0
        %4511 = vmatprep.subr.bf16.mxu0 0
        %4512 = vmatpush1.bf16.xpose.msra.mxu0 0
        %4513 = vmatprep.subr.bf16.mxu0 0
        %4514 = vmatpush1.bf16.xpose.msra.mxu0 0
        %4515 = vmatprep.subr.bf16.mxu0 0
        %4516 = vmatpush1.bf16.xpose.msra.mxu0 0
        %4517 = vmatprep.subr.bf16.mxu0 0
        %4518 = vmatpush1.bf16.xpose.msra.mxu0 0
        %4519 = vmatprep.mubr.bf16.mxu0 0
        %4520 = vmatmul.mubr.bf16.gmra.mrb[0].mxu0 %v2773
        %v4521 = vpop.f32.mrb[0].mxu0
        %v4522 = vadd.f32 0.0, %v4521
        %v4523 = vpop.f32.mrb[0].mxu0
        %v4524 = vpop.f32.mrb[0].mxu0
        %v4525 = vpop.f32.mrb[0].mxu0
        %4526 = vdwg.mxu0
        %4528 = vrot.lane.b32.xlu0 %v4522, 48
        %v4529 = vpop.permute.xlu0 %4528
        %v4531 = vmul.f32 %v3900, %v4529
        %v4532 = vpack.c.bf16 %v4531, %v4531
        %4534 = vrot.lane.b32.xlu0 %v4532, 80
        %v4535 = vpop.permute.xlu0 %4534
        %v4537 = vsel %vm2190, %v4535, 0
        %4539 = vmatprep.subr.bf16.mxu0 0
        %4540 = vmatpush1.bf16.msra.mxu0 %v2831
        %4541 = vmatprep.subr.bf16.mxu0 0
        %4542 = vmatpush1.bf16.msra.mxu0 0
        %4543 = vmatprep.subr.bf16.mxu0 0
        %4544 = vmatpush1.bf16.msra.mxu0 0
        %4545 = vmatprep.subr.bf16.mxu0 0
        %4546 = vmatpush1.bf16.msra.mxu0 0
        %4547 = vmatprep.subr.bf16.mxu0 0
        %4548 = vmatpush1.bf16.msra.mxu0 0
        %4549 = vmatprep.subr.bf16.mxu0 0
        %4550 = vmatpush1.bf16.msra.mxu0 0
        %4551 = vmatprep.subr.bf16.mxu0 0
        %4552 = vmatpush1.bf16.msra.mxu0 0
        %4553 = vmatprep.subr.bf16.mxu0 0
        %4554 = vmatpush1.bf16.msra.mxu0 0
        %4555 = vmatprep.subr.bf16.mxu0 0
        %4556 = vmatpush1.bf16.msra.mxu0 0
        %4557 = vmatprep.subr.bf16.mxu0 0
        %4558 = vmatpush1.bf16.msra.mxu0 0
        %4559 = vmatprep.subr.bf16.mxu0 0
        %4560 = vmatpush1.bf16.msra.mxu0 0
        %4561 = vmatprep.subr.bf16.mxu0 0
        %4562 = vmatpush1.bf16.msra.mxu0 0
        %4563 = vmatprep.subr.bf16.mxu0 0
        %4564 = vmatpush1.bf16.msra.mxu0 0
        %4565 = vmatprep.subr.bf16.mxu0 0
        %4566 = vmatpush1.bf16.msra.mxu0 0
        %4567 = vmatprep.subr.bf16.mxu0 0
        %4568 = vmatpush1.bf16.msra.mxu0 0
        %4569 = vmatprep.subr.bf16.mxu0 0
        %4570 = vmatpush1.bf16.msra.mxu0 0
        %4571 = vmatprep.mubr.bf16.mxu0 0
        %4572 = vmatmul.mubr.bf16.gmra.mrb[0].mxu0 %v4537
        %v4573 = vpop.f32.mrb[0].mxu0
        %v4574 = vadd.f32 0.0, %v4573
        %v4575 = vpop.f32.mrb[0].mxu0
        %v4576 = vpop.f32.mrb[0].mxu0
        %v4577 = vpop.f32.mrb[0].mxu0
        %4578 = vdwg.mxu0
        %v4579 = vadd.f32 %v4482, %v4574
        %v4580 = vpack.c.bf16 %v3909, %v3909
        %v4582 = vsel %vm1003, %v4580, 0
        %4584 = vmatprep.subr.bf16.mxu0 0
        %4585 = vmatpush1.bf16.xpose.msra.mxu0 %v4582
        %4586 = vmatprep.subr.bf16.mxu0 0
        %4587 = vmatpush1.bf16.xpose.msra.mxu0 0
        %4588 = vmatprep.subr.bf16.mxu0 0
        %4589 = vmatpush1.bf16.xpose.msra.mxu0 0
        %4590 = vmatprep.subr.bf16.mxu0 0
        %4591 = vmatpush1.bf16.xpose.msra.mxu0 0
        %4592 = vmatprep.subr.bf16.mxu0 0
        %4593 = vmatpush1.bf16.xpose.msra.mxu0 0
        %4594 = vmatprep.subr.bf16.mxu0 0
        %4595 = vmatpush1.bf16.xpose.msra.mxu0 0
        %4596 = vmatprep.subr.bf16.mxu0 0
        %4597 = vmatpush1.bf16.xpose.msra.mxu0 0
        %4598 = vmatprep.subr.bf16.mxu0 0
        %4599 = vmatpush1.bf16.xpose.msra.mxu0 0
        %4600 = vmatprep.subr.bf16.mxu0 0
        %4601 = vmatpush1.bf16.xpose.msra.mxu0 0
        %4602 = vmatprep.subr.bf16.mxu0 0
        %4603 = vmatpush1.bf16.xpose.msra.mxu0 0
        %4604 = vmatprep.subr.bf16.mxu0 0
        %4605 = vmatpush1.bf16.xpose.msra.mxu0 0
        %4606 = vmatprep.subr.bf16.mxu0 0
        %4607 = vmatpush1.bf16.xpose.msra.mxu0 0
        %4608 = vmatprep.subr.bf16.mxu0 0
        %4609 = vmatpush1.bf16.xpose.msra.mxu0 0
        %4610 = vmatprep.subr.bf16.mxu0 0
        %4611 = vmatpush1.bf16.xpose.msra.mxu0 0
        %4612 = vmatprep.subr.bf16.mxu0 0
        %4613 = vmatpush1.bf16.xpose.msra.mxu0 0
        %4614 = vmatprep.subr.bf16.mxu0 0
        %4615 = vmatpush1.bf16.xpose.msra.mxu0 0
        %4616 = vmatprep.mubr.bf16.mxu0 0
        %4617 = vmatmul.mubr.bf16.gmra.mrb[0].mxu0 %v2891
        %v4618 = vpop.f32.mrb[0].mxu0
        %v4619 = vadd.f32 0.0, %v4618
        %v4620 = vpop.f32.mrb[0].mxu0
        %v4621 = vpop.f32.mrb[0].mxu0
        %v4622 = vpop.f32.mrb[0].mxu0
        %4623 = vdwg.mxu0
        %4625 = vrot.lane.b32.xlu0 %v4619, 56
        %v4626 = vpop.permute.xlu0 %4625
        %v4628 = vmul.f32 %v3900, %v4626
        %v4629 = vpack.c.bf16 %v4628, %v4628
        %4631 = vrot.lane.b32.xlu0 %v4629, 72
        %v4632 = vpop.permute.xlu0 %4631
        %v4634 = vsel %vm2190, %v4632, 0
        %4636 = vmatprep.subr.bf16.mxu0 0
        %4637 = vmatpush1.bf16.msra.mxu0 %v2949
        %4638 = vmatprep.subr.bf16.mxu0 0
        %4639 = vmatpush1.bf16.msra.mxu0 0
        %4640 = vmatprep.subr.bf16.mxu0 0
        %4641 = vmatpush1.bf16.msra.mxu0 0
        %4642 = vmatprep.subr.bf16.mxu0 0
        %4643 = vmatpush1.bf16.msra.mxu0 0
        %4644 = vmatprep.subr.bf16.mxu0 0
        %4645 = vmatpush1.bf16.msra.mxu0 0
        %4646 = vmatprep.subr.bf16.mxu0 0
        %4647 = vmatpush1.bf16.msra.mxu0 0
        %4648 = vmatprep.subr.bf16.mxu0 0
        %4649 = vmatpush1.bf16.msra.mxu0 0
        %4650 = vmatprep.subr.bf16.mxu0 0
        %4651 = vmatpush1.bf16.msra.mxu0 0
        %4652 = vmatprep.subr.bf16.mxu0 0
        %4653 = vmatpush1.bf16.msra.mxu0 0
        %4654 = vmatprep.subr.bf16.mxu0 0
        %4655 = vmatpush1.bf16.msra.mxu0 0
        %4656 = vmatprep.subr.bf16.mxu0 0
        %4657 = vmatpush1.bf16.msra.mxu0 0
        %4658 = vmatprep.subr.bf16.mxu0 0
        %4659 = vmatpush1.bf16.msra.mxu0 0
        %4660 = vmatprep.subr.bf16.mxu0 0
        %4661 = vmatpush1.bf16.msra.mxu0 0
        %4662 = vmatprep.subr.bf16.mxu0 0
        %4663 = vmatpush1.bf16.msra.mxu0 0
        %4664 = vmatprep.subr.bf16.mxu0 0
        %4665 = vmatpush1.bf16.msra.mxu0 0
        %4666 = vmatprep.subr.bf16.mxu0 0
        %4667 = vmatpush1.bf16.msra.mxu0 0
        %4668 = vmatprep.mubr.bf16.mxu0 0
        %4669 = vmatmul.mubr.bf16.gmra.mrb[0].mxu0 %v4634
        %v4670 = vpop.f32.mrb[0].mxu0
        %v4671 = vadd.f32 0.0, %v4670
        %v4672 = vpop.f32.mrb[0].mxu0
        %v4673 = vpop.f32.mrb[0].mxu0
        %v4674 = vpop.f32.mrb[0].mxu0
        %4675 = vdwg.mxu0
        %v4676 = vadd.f32 %v4579, %v4671
        %s4677 = scalar_lea.vmem %s454, 16 [#allocation8]
        %4678 = vst.msk [vmem:[%s4677] sm:$0xff] %vm1933, %v4676
        %s4679 = scalar_lea.vmem %s398, 24 [#allocation3]
        %v4680 = vld [vmem:[%s4679] sm:$0xff]
        %v4681 = vsel %vm1933, %v4680, 0.0
        %4682 = vadd.xlane.f32.xlu0 %v4681
        %v4683 = vpop.xlane.xlu0 %4682
        %v4684 = vmul.f32 %v4683, %v1937
        %v4685 = vsub.f32 %v4680, %v4684
        %v4686 = vmul.f32 %v4685, %v4685
        %v4687 = vsel %vm1933, %v4686, 0.0
        %4688 = vadd.xlane.f32.xlu0 %v4687
        %v4689 = vpop.xlane.xlu0 %4688
        %v4690 = vmul.f32 %v4689, %v1937
        %v4691 = vadd.f32 %v4690, 1e-05
        %v4692 = vrsqrt.pop %v4691
        %v4693 = vmul.f32 %v4685, %v4692
        %v4694 = vpack.c.bf16 %v4693, %v4693
        %v4696 = vsel %vm1933, %v4694, 0
        %4698 = vmatprep.subr.bf16.mxu0 0
        %4699 = vmatpush1.bf16.msra.mxu0 %v1963
        %4700 = vmatprep.subr.bf16.mxu0 0
        %4701 = vmatpush1.bf16.msra.mxu0 %v1964
        %4702 = vmatprep.subr.bf16.mxu0 0
        %4703 = vmatpush1.bf16.msra.mxu0 0
        %4704 = vmatprep.subr.bf16.mxu0 0
        %4705 = vmatpush1.bf16.msra.mxu0 0
        %4706 = vmatprep.subr.bf16.mxu0 0
        %4707 = vmatpush1.bf16.msra.mxu0 0
        %4708 = vmatprep.subr.bf16.mxu0 0
        %4709 = vmatpush1.bf16.msra.mxu0 0
        %4710 = vmatprep.subr.bf16.mxu0 0
        %4711 = vmatpush1.bf16.msra.mxu0 0
        %4712 = vmatprep.subr.bf16.mxu0 0
        %4713 = vmatpush1.bf16.msra.mxu0 0
        %4714 = vmatprep.subr.bf16.mxu0 0
        %4715 = vmatpush1.bf16.msra.mxu0 0
        %4716 = vmatprep.subr.bf16.mxu0 0
        %4717 = vmatpush1.bf16.msra.mxu0 0
        %4718 = vmatprep.subr.bf16.mxu0 0
        %4719 = vmatpush1.bf16.msra.mxu0 0
        %4720 = vmatprep.subr.bf16.mxu0 0
        %4721 = vmatpush1.bf16.msra.mxu0 0
        %4722 = vmatprep.subr.bf16.mxu0 0
        %4723 = vmatpush1.bf16.msra.mxu0 0
        %4724 = vmatprep.subr.bf16.mxu0 0
        %4725 = vmatpush1.bf16.msra.mxu0 0
        %4726 = vmatprep.subr.bf16.mxu0 0
        %4727 = vmatpush1.bf16.msra.mxu0 0
        %4728 = vmatprep.subr.bf16.mxu0 0
        %4729 = vmatpush1.bf16.msra.mxu0 0
        %4730 = vmatprep.mubr.bf16.mxu0 0
        %4731 = vmatmul.mubr.bf16.gmra.mrb[0].mxu0 %v4696
        %v4732 = vpop.f32.mrb[0].mxu0
        %v4733 = vadd.f32 %v1953, %v4732
        %v4734 = vpop.f32.mrb[0].mxu0
        %v4735 = vpop.f32.mrb[0].mxu0
        %v4736 = vpop.f32.mrb[0].mxu0
        %4737 = vdwg.mxu0
        %v4738 = vxor.u32 %v4733, 2147483648
        %v4739 = vmul.f32 %v4738, 1.442695
        %v4740 = vpow.pop %v4739
        %v4741 = vadd.f32 %v4740, 1.0
        %v4742 = vrcp.pop %v4741
        %v4743 = vmul.f32 1.0, %v4742
        %s4744 = scalar_lea.vmem [#allocation2], 192
        %v4745 = vld [vmem:[%s4744] sm:$0xff]
        %v4746 = vld [vmem:[%s4744 + $0x8] sm:$0xff]
        %v4747 = vld [vmem:[%s4744 + $0x10] sm:$0xff]
        %v4748 = vld [vmem:[%s4744 + $0x18] sm:$0xff]
        %v4749 = vld [vmem:[%s4744 + $0x20] sm:$0xff]
        %v4750 = vld [vmem:[%s4744 + $0x28] sm:$0xff]
        %v4751 = vld [vmem:[%s4744 + $0x30] sm:$0xff]
        %v4752 = vld [vmem:[%s4744 + $0x38] sm:$0xff]
        %v4753 = vpack.c.bf16 %v4745, %v4745
        %v4755 = vsel %vm1003, %v4753, 0
        %4757 = vmatprep.subr.bf16.mxu0 0
        %4758 = vmatpush1.bf16.xpose.msra.mxu0 %v4755
        %4759 = vmatprep.subr.bf16.mxu0 0
        %4760 = vmatpush1.bf16.xpose.msra.mxu0 0
        %4761 = vmatprep.subr.bf16.mxu0 0
        %4762 = vmatpush1.bf16.xpose.msra.mxu0 0
        %4763 = vmatprep.subr.bf16.mxu0 0
        %4764 = vmatpush1.bf16.xpose.msra.mxu0 0
        %4765 = vmatprep.subr.bf16.mxu0 0
        %4766 = vmatpush1.bf16.xpose.msra.mxu0 0
        %4767 = vmatprep.subr.bf16.mxu0 0
        %4768 = vmatpush1.bf16.xpose.msra.mxu0 0
        %4769 = vmatprep.subr.bf16.mxu0 0
        %4770 = vmatpush1.bf16.xpose.msra.mxu0 0
        %4771 = vmatprep.subr.bf16.mxu0 0
        %4772 = vmatpush1.bf16.xpose.msra.mxu0 0
        %4773 = vmatprep.subr.bf16.mxu0 0
        %4774 = vmatpush1.bf16.xpose.msra.mxu0 0
        %4775 = vmatprep.subr.bf16.mxu0 0
        %4776 = vmatpush1.bf16.xpose.msra.mxu0 0
        %4777 = vmatprep.subr.bf16.mxu0 0
        %4778 = vmatpush1.bf16.xpose.msra.mxu0 0
        %4779 = vmatprep.subr.bf16.mxu0 0
        %4780 = vmatpush1.bf16.xpose.msra.mxu0 0
        %4781 = vmatprep.subr.bf16.mxu0 0
        %4782 = vmatpush1.bf16.xpose.msra.mxu0 0
        %4783 = vmatprep.subr.bf16.mxu0 0
        %4784 = vmatpush1.bf16.xpose.msra.mxu0 0
        %4785 = vmatprep.subr.bf16.mxu0 0
        %4786 = vmatpush1.bf16.xpose.msra.mxu0 0
        %4787 = vmatprep.subr.bf16.mxu0 0
        %4788 = vmatpush1.bf16.xpose.msra.mxu0 0
        %4789 = vmatprep.mubr.bf16.mxu0 0
        %4790 = vmatmul.mubr.bf16.gmra.mrb[0].mxu0 %v2072
        %v4791 = vpop.f32.mrb[0].mxu0
        %v4792 = vadd.f32 0.0, %v4791
        %v4793 = vpop.f32.mrb[0].mxu0
        %v4794 = vpop.f32.mrb[0].mxu0
        %v4795 = vpop.f32.mrb[0].mxu0
        %4796 = vdwg.mxu0
        %v4797 = vmul.f32 %v4743, %v4792
        %v4798 = vpack.c.bf16 %v4797, %v4797
        %v4799 = vpack.c.bf16 %v4746, %v4746
        %v4801 = vsel %vm1003, %v4799, 0
        %4803 = vmatprep.subr.bf16.mxu0 0
        %4804 = vmatpush1.bf16.xpose.msra.mxu0 %v4801
        %4805 = vmatprep.subr.bf16.mxu0 0
        %4806 = vmatpush1.bf16.xpose.msra.mxu0 0
        %4807 = vmatprep.subr.bf16.mxu0 0
        %4808 = vmatpush1.bf16.xpose.msra.mxu0 0
        %4809 = vmatprep.subr.bf16.mxu0 0
        %4810 = vmatpush1.bf16.xpose.msra.mxu0 0
        %4811 = vmatprep.subr.bf16.mxu0 0
        %4812 = vmatpush1.bf16.xpose.msra.mxu0 0
        %4813 = vmatprep.subr.bf16.mxu0 0
        %4814 = vmatpush1.bf16.xpose.msra.mxu0 0
        %4815 = vmatprep.subr.bf16.mxu0 0
        %4816 = vmatpush1.bf16.xpose.msra.mxu0 0
        %4817 = vmatprep.subr.bf16.mxu0 0
        %4818 = vmatpush1.bf16.xpose.msra.mxu0 0
        %4819 = vmatprep.subr.bf16.mxu0 0
        %4820 = vmatpush1.bf16.xpose.msra.mxu0 0
        %4821 = vmatprep.subr.bf16.mxu0 0
        %4822 = vmatpush1.bf16.xpose.msra.mxu0 0
        %4823 = vmatprep.subr.bf16.mxu0 0
        %4824 = vmatpush1.bf16.xpose.msra.mxu0 0
        %4825 = vmatprep.subr.bf16.mxu0 0
        %4826 = vmatpush1.bf16.xpose.msra.mxu0 0
        %4827 = vmatprep.subr.bf16.mxu0 0
        %4828 = vmatpush1.bf16.xpose.msra.mxu0 0
        %4829 = vmatprep.subr.bf16.mxu0 0
        %4830 = vmatpush1.bf16.xpose.msra.mxu0 0
        %4831 = vmatprep.subr.bf16.mxu0 0
        %4832 = vmatpush1.bf16.xpose.msra.mxu0 0
        %4833 = vmatprep.subr.bf16.mxu0 0
        %4834 = vmatpush1.bf16.xpose.msra.mxu0 0
        %4835 = vmatprep.mubr.bf16.mxu0 0
        %4836 = vmatmul.mubr.bf16.gmra.mrb[0].mxu0 %v2136
        %v4837 = vpop.f32.mrb[0].mxu0
        %v4838 = vadd.f32 0.0, %v4837
        %v4839 = vpop.f32.mrb[0].mxu0
        %v4840 = vpop.f32.mrb[0].mxu0
        %v4841 = vpop.f32.mrb[0].mxu0
        %4842 = vdwg.mxu0
        %4844 = vrot.lane.b32.xlu0 %v4838, 8
        %v4845 = vpop.permute.xlu0 %4844
        %v4847 = vmul.f32 %v4743, %v4845
        %v4848 = vpack.c.bf16 %v4847, %v4847
        %4850 = vrot.lane.b32.xlu0 %v4848, 120
        %v4851 = vpop.permute.xlu0 %4850
        %v4853 = vsel %vm2190, %v4851, 0
        %4855 = vmatprep.subr.bf16.mxu0 0
        %4856 = vmatpush1.bf16.msra.mxu0 %v2196
        %4857 = vmatprep.subr.bf16.mxu0 0
        %4858 = vmatpush1.bf16.msra.mxu0 0
        %4859 = vmatprep.subr.bf16.mxu0 0
        %4860 = vmatpush1.bf16.msra.mxu0 0
        %4861 = vmatprep.subr.bf16.mxu0 0
        %4862 = vmatpush1.bf16.msra.mxu0 0
        %4863 = vmatprep.subr.bf16.mxu0 0
        %4864 = vmatpush1.bf16.msra.mxu0 0
        %4865 = vmatprep.subr.bf16.mxu0 0
        %4866 = vmatpush1.bf16.msra.mxu0 0
        %4867 = vmatprep.subr.bf16.mxu0 0
        %4868 = vmatpush1.bf16.msra.mxu0 0
        %4869 = vmatprep.subr.bf16.mxu0 0
        %4870 = vmatpush1.bf16.msra.mxu0 0
        %4871 = vmatprep.subr.bf16.mxu0 0
        %4872 = vmatpush1.bf16.msra.mxu0 0
        %4873 = vmatprep.subr.bf16.mxu0 0
        %4874 = vmatpush1.bf16.msra.mxu0 0
        %4875 = vmatprep.subr.bf16.mxu0 0
        %4876 = vmatpush1.bf16.msra.mxu0 0
        %4877 = vmatprep.subr.bf16.mxu0 0
        %4878 = vmatpush1.bf16.msra.mxu0 0
        %4879 = vmatprep.subr.bf16.mxu0 0
        %4880 = vmatpush1.bf16.msra.mxu0 0
        %4881 = vmatprep.subr.bf16.mxu0 0
        %4882 = vmatpush1.bf16.msra.mxu0 0
        %4883 = vmatprep.subr.bf16.mxu0 0
        %4884 = vmatpush1.bf16.msra.mxu0 0
        %4885 = vmatprep.subr.bf16.mxu0 0
        %4886 = vmatpush1.bf16.msra.mxu0 0
        %4887 = vmatprep.mubr.bf16.mxu0 0
        %4888 = vmatmul.mubr.bf16.gmra.mrb[0].mxu0 %v4853
        %v4889 = vpop.f32.mrb[0].mxu0
        %v4890 = vadd.f32 0.0, %v4889
        %v4891 = vpop.f32.mrb[0].mxu0
        %v4892 = vpop.f32.mrb[0].mxu0
        %v4893 = vpop.f32.mrb[0].mxu0
        %4894 = vdwg.mxu0
        %v4896 = vsel %vm2190, %v4798, 0
        %4898 = vmatprep.subr.bf16.mxu0 0
        %4899 = vmatpush1.bf16.msra.mxu0 %v2242
        %4900 = vmatprep.subr.bf16.mxu0 0
        %4901 = vmatpush1.bf16.msra.mxu0 0
        %4902 = vmatprep.subr.bf16.mxu0 0
        %4903 = vmatpush1.bf16.msra.mxu0 0
        %4904 = vmatprep.subr.bf16.mxu0 0
        %4905 = vmatpush1.bf16.msra.mxu0 0
        %4906 = vmatprep.subr.bf16.mxu0 0
        %4907 = vmatpush1.bf16.msra.mxu0 0
        %4908 = vmatprep.subr.bf16.mxu0 0
        %4909 = vmatpush1.bf16.msra.mxu0 0
        %4910 = vmatprep.subr.bf16.mxu0 0
        %4911 = vmatpush1.bf16.msra.mxu0 0
        %4912 = vmatprep.subr.bf16.mxu0 0
        %4913 = vmatpush1.bf16.msra.mxu0 0
        %4914 = vmatprep.subr.bf16.mxu0 0
        %4915 = vmatpush1.bf16.msra.mxu0 0
        %4916 = vmatprep.subr.bf16.mxu0 0
        %4917 = vmatpush1.bf16.msra.mxu0 0
        %4918 = vmatprep.subr.bf16.mxu0 0
        %4919 = vmatpush1.bf16.msra.mxu0 0
        %4920 = vmatprep.subr.bf16.mxu0 0
        %4921 = vmatpush1.bf16.msra.mxu0 0
        %4922 = vmatprep.subr.bf16.mxu0 0
        %4923 = vmatpush1.bf16.msra.mxu0 0
        %4924 = vmatprep.subr.bf16.mxu0 0
        %4925 = vmatpush1.bf16.msra.mxu0 0
        %4926 = vmatprep.subr.bf16.mxu0 0
        %4927 = vmatpush1.bf16.msra.mxu0 0
        %4928 = vmatprep.subr.bf16.mxu0 0
        %4929 = vmatpush1.bf16.msra.mxu0 0
        %4930 = vmatprep.mubr.bf16.mxu0 0
        %4931 = vmatmul.mubr.bf16.gmra.mrb[0].mxu0 %v4896
        %v4932 = vpop.f32.mrb[0].mxu0
        %v4933 = vadd.f32 %v4890, %v4932
        %v4934 = vpop.f32.mrb[0].mxu0
        %v4935 = vpop.f32.mrb[0].mxu0
        %v4936 = vpop.f32.mrb[0].mxu0
        %4937 = vdwg.mxu0
        %v4938 = vpack.c.bf16 %v4747, %v4747
        %v4940 = vsel %vm1003, %v4938, 0
        %4942 = vmatprep.subr.bf16.mxu0 0
        %4943 = vmatpush1.bf16.xpose.msra.mxu0 %v4940
        %4944 = vmatprep.subr.bf16.mxu0 0
        %4945 = vmatpush1.bf16.xpose.msra.mxu0 0
        %4946 = vmatprep.subr.bf16.mxu0 0
        %4947 = vmatpush1.bf16.xpose.msra.mxu0 0
        %4948 = vmatprep.subr.bf16.mxu0 0
        %4949 = vmatpush1.bf16.xpose.msra.mxu0 0
        %4950 = vmatprep.subr.bf16.mxu0 0
        %4951 = vmatpush1.bf16.xpose.msra.mxu0 0
        %4952 = vmatprep.subr.bf16.mxu0 0
        %4953 = vmatpush1.bf16.xpose.msra.mxu0 0
        %4954 = vmatprep.subr.bf16.mxu0 0
        %4955 = vmatpush1.bf16.xpose.msra.mxu0 0
        %4956 = vmatprep.subr.bf16.mxu0 0
        %4957 = vmatpush1.bf16.xpose.msra.mxu0 0
        %4958 = vmatprep.subr.bf16.mxu0 0
        %4959 = vmatpush1.bf16.xpose.msra.mxu0 0
        %4960 = vmatprep.subr.bf16.mxu0 0
        %4961 = vmatpush1.bf16.xpose.msra.mxu0 0
        %4962 = vmatprep.subr.bf16.mxu0 0
        %4963 = vmatpush1.bf16.xpose.msra.mxu0 0
        %4964 = vmatprep.subr.bf16.mxu0 0
        %4965 = vmatpush1.bf16.xpose.msra.mxu0 0
        %4966 = vmatprep.subr.bf16.mxu0 0
        %4967 = vmatpush1.bf16.xpose.msra.mxu0 0
        %4968 = vmatprep.subr.bf16.mxu0 0
        %4969 = vmatpush1.bf16.xpose.msra.mxu0 0
        %4970 = vmatprep.subr.bf16.mxu0 0
        %4971 = vmatpush1.bf16.xpose.msra.mxu0 0
        %4972 = vmatprep.subr.bf16.mxu0 0
        %4973 = vmatpush1.bf16.xpose.msra.mxu0 0
        %4974 = vmatprep.mubr.bf16.mxu0 0
        %4975 = vmatmul.mubr.bf16.gmra.mrb[0].mxu0 %v2301
        %v4976 = vpop.f32.mrb[0].mxu0
        %v4977 = vadd.f32 0.0, %v4976
        %v4978 = vpop.f32.mrb[0].mxu0
        %v4979 = vpop.f32.mrb[0].mxu0
        %v4980 = vpop.f32.mrb[0].mxu0
        %4981 = vdwg.mxu0
        %4983 = vrot.lane.b32.xlu0 %v4977, 16
        %v4984 = vpop.permute.xlu0 %4983
        %v4986 = vmul.f32 %v4743, %v4984
        %v4987 = vpack.c.bf16 %v4986, %v4986
        %4989 = vrot.lane.b32.xlu0 %v4987, 112
        %v4990 = vpop.permute.xlu0 %4989
        %v4992 = vsel %vm2190, %v4990, 0
        %4994 = vmatprep.subr.bf16.mxu0 0
        %4995 = vmatpush1.bf16.msra.mxu0 %v2359
        %4996 = vmatprep.subr.bf16.mxu0 0
        %4997 = vmatpush1.bf16.msra.mxu0 0
        %4998 = vmatprep.subr.bf16.mxu0 0
        %4999 = vmatpush1.bf16.msra.mxu0 0
        %5000 = vmatprep.subr.bf16.mxu0 0
        %5001 = vmatpush1.bf16.msra.mxu0 0
        %5002 = vmatprep.subr.bf16.mxu0 0
        %5003 = vmatpush1.bf16.msra.mxu0 0
        %5004 = vmatprep.subr.bf16.mxu0 0
        %5005 = vmatpush1.bf16.msra.mxu0 0
        %5006 = vmatprep.subr.bf16.mxu0 0
        %5007 = vmatpush1.bf16.msra.mxu0 0
        %5008 = vmatprep.subr.bf16.mxu0 0
        %5009 = vmatpush1.bf16.msra.mxu0 0
        %5010 = vmatprep.subr.bf16.mxu0 0
        %5011 = vmatpush1.bf16.msra.mxu0 0
        %5012 = vmatprep.subr.bf16.mxu0 0
        %5013 = vmatpush1.bf16.msra.mxu0 0
        %5014 = vmatprep.subr.bf16.mxu0 0
        %5015 = vmatpush1.bf16.msra.mxu0 0
        %5016 = vmatprep.subr.bf16.mxu0 0
        %5017 = vmatpush1.bf16.msra.mxu0 0
        %5018 = vmatprep.subr.bf16.mxu0 0
        %5019 = vmatpush1.bf16.msra.mxu0 0
        %5020 = vmatprep.subr.bf16.mxu0 0
        %5021 = vmatpush1.bf16.msra.mxu0 0
        %5022 = vmatprep.subr.bf16.mxu0 0
        %5023 = vmatpush1.bf16.msra.mxu0 0
        %5024 = vmatprep.subr.bf16.mxu0 0
        %5025 = vmatpush1.bf16.msra.mxu0 0
        %5026 = vmatprep.mubr.bf16.mxu0 0
        %5027 = vmatmul.mubr.bf16.gmra.mrb[0].mxu0 %v4992
        %v5028 = vpop.f32.mrb[0].mxu0
        %v5029 = vadd.f32 0.0, %v5028
        %v5030 = vpop.f32.mrb[0].mxu0
        %v5031 = vpop.f32.mrb[0].mxu0
        %v5032 = vpop.f32.mrb[0].mxu0
        %5033 = vdwg.mxu0
        %v5034 = vadd.f32 %v4933, %v5029
        %v5035 = vpack.c.bf16 %v4748, %v4748
        %v5037 = vsel %vm1003, %v5035, 0
        %5039 = vmatprep.subr.bf16.mxu0 0
        %5040 = vmatpush1.bf16.xpose.msra.mxu0 %v5037
        %5041 = vmatprep.subr.bf16.mxu0 0
        %5042 = vmatpush1.bf16.xpose.msra.mxu0 0
        %5043 = vmatprep.subr.bf16.mxu0 0
        %5044 = vmatpush1.bf16.xpose.msra.mxu0 0
        %5045 = vmatprep.subr.bf16.mxu0 0
        %5046 = vmatpush1.bf16.xpose.msra.mxu0 0
        %5047 = vmatprep.subr.bf16.mxu0 0
        %5048 = vmatpush1.bf16.xpose.msra.mxu0 0
        %5049 = vmatprep.subr.bf16.mxu0 0
        %5050 = vmatpush1.bf16.xpose.msra.mxu0 0
        %5051 = vmatprep.subr.bf16.mxu0 0
        %5052 = vmatpush1.bf16.xpose.msra.mxu0 0
        %5053 = vmatprep.subr.bf16.mxu0 0
        %5054 = vmatpush1.bf16.xpose.msra.mxu0 0
        %5055 = vmatprep.subr.bf16.mxu0 0
        %5056 = vmatpush1.bf16.xpose.msra.mxu0 0
        %5057 = vmatprep.subr.bf16.mxu0 0
        %5058 = vmatpush1.bf16.xpose.msra.mxu0 0
        %5059 = vmatprep.subr.bf16.mxu0 0
        %5060 = vmatpush1.bf16.xpose.msra.mxu0 0
        %5061 = vmatprep.subr.bf16.mxu0 0
        %5062 = vmatpush1.bf16.xpose.msra.mxu0 0
        %5063 = vmatprep.subr.bf16.mxu0 0
        %5064 = vmatpush1.bf16.xpose.msra.mxu0 0
        %5065 = vmatprep.subr.bf16.mxu0 0
        %5066 = vmatpush1.bf16.xpose.msra.mxu0 0
        %5067 = vmatprep.subr.bf16.mxu0 0
        %5068 = vmatpush1.bf16.xpose.msra.mxu0 0
        %5069 = vmatprep.subr.bf16.mxu0 0
        %5070 = vmatpush1.bf16.xpose.msra.mxu0 0
        %5071 = vmatprep.mubr.bf16.mxu0 0
        %5072 = vmatmul.mubr.bf16.gmra.mrb[0].mxu0 %v2419
        %v5073 = vpop.f32.mrb[0].mxu0
        %v5074 = vadd.f32 0.0, %v5073
        %v5075 = vpop.f32.mrb[0].mxu0
        %v5076 = vpop.f32.mrb[0].mxu0
        %v5077 = vpop.f32.mrb[0].mxu0
        %5078 = vdwg.mxu0
        %5080 = vrot.lane.b32.xlu0 %v5074, 24
        %v5081 = vpop.permute.xlu0 %5080
        %v5083 = vmul.f32 %v4743, %v5081
        %v5084 = vpack.c.bf16 %v5083, %v5083
        %5086 = vrot.lane.b32.xlu0 %v5084, 104
        %v5087 = vpop.permute.xlu0 %5086
        %v5089 = vsel %vm2190, %v5087, 0
        %5091 = vmatprep.subr.bf16.mxu0 0
        %5092 = vmatpush1.bf16.msra.mxu0 %v2477
        %5093 = vmatprep.subr.bf16.mxu0 0
        %5094 = vmatpush1.bf16.msra.mxu0 0
        %5095 = vmatprep.subr.bf16.mxu0 0
        %5096 = vmatpush1.bf16.msra.mxu0 0
        %5097 = vmatprep.subr.bf16.mxu0 0
        %5098 = vmatpush1.bf16.msra.mxu0 0
        %5099 = vmatprep.subr.bf16.mxu0 0
        %5100 = vmatpush1.bf16.msra.mxu0 0
        %5101 = vmatprep.subr.bf16.mxu0 0
        %5102 = vmatpush1.bf16.msra.mxu0 0
        %5103 = vmatprep.subr.bf16.mxu0 0
        %5104 = vmatpush1.bf16.msra.mxu0 0
        %5105 = vmatprep.subr.bf16.mxu0 0
        %5106 = vmatpush1.bf16.msra.mxu0 0
        %5107 = vmatprep.subr.bf16.mxu0 0
        %5108 = vmatpush1.bf16.msra.mxu0 0
        %5109 = vmatprep.subr.bf16.mxu0 0
        %5110 = vmatpush1.bf16.msra.mxu0 0
        %5111 = vmatprep.subr.bf16.mxu0 0
        %5112 = vmatpush1.bf16.msra.mxu0 0
        %5113 = vmatprep.subr.bf16.mxu0 0
        %5114 = vmatpush1.bf16.msra.mxu0 0
        %5115 = vmatprep.subr.bf16.mxu0 0
        %5116 = vmatpush1.bf16.msra.mxu0 0
        %5117 = vmatprep.subr.bf16.mxu0 0
        %5118 = vmatpush1.bf16.msra.mxu0 0
        %5119 = vmatprep.subr.bf16.mxu0 0
        %5120 = vmatpush1.bf16.msra.mxu0 0
        %5121 = vmatprep.subr.bf16.mxu0 0
        %5122 = vmatpush1.bf16.msra.mxu0 0
        %5123 = vmatprep.mubr.bf16.mxu0 0
        %5124 = vmatmul.mubr.bf16.gmra.mrb[0].mxu0 %v5089
        %v5125 = vpop.f32.mrb[0].mxu0
        %v5126 = vadd.f32 0.0, %v5125
        %v5127 = vpop.f32.mrb[0].mxu0
        %v5128 = vpop.f32.mrb[0].mxu0
        %v5129 = vpop.f32.mrb[0].mxu0
        %5130 = vdwg.mxu0
        %v5131 = vadd.f32 %v5034, %v5126
        %v5132 = vpack.c.bf16 %v4749, %v4749
        %v5134 = vsel %vm1003, %v5132, 0
        %5136 = vmatprep.subr.bf16.mxu0 0
        %5137 = vmatpush1.bf16.xpose.msra.mxu0 %v5134
        %5138 = vmatprep.subr.bf16.mxu0 0
        %5139 = vmatpush1.bf16.xpose.msra.mxu0 0
        %5140 = vmatprep.subr.bf16.mxu0 0
        %5141 = vmatpush1.bf16.xpose.msra.mxu0 0
        %5142 = vmatprep.subr.bf16.mxu0 0
        %5143 = vmatpush1.bf16.xpose.msra.mxu0 0
        %5144 = vmatprep.subr.bf16.mxu0 0
        %5145 = vmatpush1.bf16.xpose.msra.mxu0 0
        %5146 = vmatprep.subr.bf16.mxu0 0
        %5147 = vmatpush1.bf16.xpose.msra.mxu0 0
        %5148 = vmatprep.subr.bf16.mxu0 0
        %5149 = vmatpush1.bf16.xpose.msra.mxu0 0
        %5150 = vmatprep.subr.bf16.mxu0 0
        %5151 = vmatpush1.bf16.xpose.msra.mxu0 0
        %5152 = vmatprep.subr.bf16.mxu0 0
        %5153 = vmatpush1.bf16.xpose.msra.mxu0 0
        %5154 = vmatprep.subr.bf16.mxu0 0
        %5155 = vmatpush1.bf16.xpose.msra.mxu0 0
        %5156 = vmatprep.subr.bf16.mxu0 0
        %5157 = vmatpush1.bf16.xpose.msra.mxu0 0
        %5158 = vmatprep.subr.bf16.mxu0 0
        %5159 = vmatpush1.bf16.xpose.msra.mxu0 0
        %5160 = vmatprep.subr.bf16.mxu0 0
        %5161 = vmatpush1.bf16.xpose.msra.mxu0 0
        %5162 = vmatprep.subr.bf16.mxu0 0
        %5163 = vmatpush1.bf16.xpose.msra.mxu0 0
        %5164 = vmatprep.subr.bf16.mxu0 0
        %5165 = vmatpush1.bf16.xpose.msra.mxu0 0
        %5166 = vmatprep.subr.bf16.mxu0 0
        %5167 = vmatpush1.bf16.xpose.msra.mxu0 0
        %5168 = vmatprep.mubr.bf16.mxu0 0
        %5169 = vmatmul.mubr.bf16.gmra.mrb[0].mxu0 %v2537
        %v5170 = vpop.f32.mrb[0].mxu0
        %v5171 = vadd.f32 0.0, %v5170
        %v5172 = vpop.f32.mrb[0].mxu0
        %v5173 = vpop.f32.mrb[0].mxu0
        %v5174 = vpop.f32.mrb[0].mxu0
        %5175 = vdwg.mxu0
        %5177 = vrot.lane.b32.xlu0 %v5171, 32
        %v5178 = vpop.permute.xlu0 %5177
        %v5180 = vmul.f32 %v4743, %v5178
        %v5181 = vpack.c.bf16 %v5180, %v5180
        %5183 = vrot.lane.b32.xlu0 %v5181, 96
        %v5184 = vpop.permute.xlu0 %5183
        %v5186 = vsel %vm2190, %v5184, 0
        %5188 = vmatprep.subr.bf16.mxu0 0
        %5189 = vmatpush1.bf16.msra.mxu0 %v2595
        %5190 = vmatprep.subr.bf16.mxu0 0
        %5191 = vmatpush1.bf16.msra.mxu0 0
        %5192 = vmatprep.subr.bf16.mxu0 0
        %5193 = vmatpush1.bf16.msra.mxu0 0
        %5194 = vmatprep.subr.bf16.mxu0 0
        %5195 = vmatpush1.bf16.msra.mxu0 0
        %5196 = vmatprep.subr.bf16.mxu0 0
        %5197 = vmatpush1.bf16.msra.mxu0 0
        %5198 = vmatprep.subr.bf16.mxu0 0
        %5199 = vmatpush1.bf16.msra.mxu0 0
        %5200 = vmatprep.subr.bf16.mxu0 0
        %5201 = vmatpush1.bf16.msra.mxu0 0
        %5202 = vmatprep.subr.bf16.mxu0 0
        %5203 = vmatpush1.bf16.msra.mxu0 0
        %5204 = vmatprep.subr.bf16.mxu0 0
        %5205 = vmatpush1.bf16.msra.mxu0 0
        %5206 = vmatprep.subr.bf16.mxu0 0
        %5207 = vmatpush1.bf16.msra.mxu0 0
        %5208 = vmatprep.subr.bf16.mxu0 0
        %5209 = vmatpush1.bf16.msra.mxu0 0
        %5210 = vmatprep.subr.bf16.mxu0 0
        %5211 = vmatpush1.bf16.msra.mxu0 0
        %5212 = vmatprep.subr.bf16.mxu0 0
        %5213 = vmatpush1.bf16.msra.mxu0 0
        %5214 = vmatprep.subr.bf16.mxu0 0
        %5215 = vmatpush1.bf16.msra.mxu0 0
        %5216 = vmatprep.subr.bf16.mxu0 0
        %5217 = vmatpush1.bf16.msra.mxu0 0
        %5218 = vmatprep.subr.bf16.mxu0 0
        %5219 = vmatpush1.bf16.msra.mxu0 0
        %5220 = vmatprep.mubr.bf16.mxu0 0
        %5221 = vmatmul.mubr.bf16.gmra.mrb[0].mxu0 %v5186
        %v5222 = vpop.f32.mrb[0].mxu0
        %v5223 = vadd.f32 0.0, %v5222
        %v5224 = vpop.f32.mrb[0].mxu0
        %v5225 = vpop.f32.mrb[0].mxu0
        %v5226 = vpop.f32.mrb[0].mxu0
        %5227 = vdwg.mxu0
        %v5228 = vadd.f32 %v5131, %v5223
        %v5229 = vpack.c.bf16 %v4750, %v4750
        %v5231 = vsel %vm1003, %v5229, 0
        %5233 = vmatprep.subr.bf16.mxu0 0
        %5234 = vmatpush1.bf16.xpose.msra.mxu0 %v5231
        %5235 = vmatprep.subr.bf16.mxu0 0
        %5236 = vmatpush1.bf16.xpose.msra.mxu0 0
        %5237 = vmatprep.subr.bf16.mxu0 0
        %5238 = vmatpush1.bf16.xpose.msra.mxu0 0
        %5239 = vmatprep.subr.bf16.mxu0 0
        %5240 = vmatpush1.bf16.xpose.msra.mxu0 0
        %5241 = vmatprep.subr.bf16.mxu0 0
        %5242 = vmatpush1.bf16.xpose.msra.mxu0 0
        %5243 = vmatprep.subr.bf16.mxu0 0
        %5244 = vmatpush1.bf16.xpose.msra.mxu0 0
        %5245 = vmatprep.subr.bf16.mxu0 0
        %5246 = vmatpush1.bf16.xpose.msra.mxu0 0
        %5247 = vmatprep.subr.bf16.mxu0 0
        %5248 = vmatpush1.bf16.xpose.msra.mxu0 0
        %5249 = vmatprep.subr.bf16.mxu0 0
        %5250 = vmatpush1.bf16.xpose.msra.mxu0 0
        %5251 = vmatprep.subr.bf16.mxu0 0
        %5252 = vmatpush1.bf16.xpose.msra.mxu0 0
        %5253 = vmatprep.subr.bf16.mxu0 0
        %5254 = vmatpush1.bf16.xpose.msra.mxu0 0
        %5255 = vmatprep.subr.bf16.mxu0 0
        %5256 = vmatpush1.bf16.xpose.msra.mxu0 0
        %5257 = vmatprep.subr.bf16.mxu0 0
        %5258 = vmatpush1.bf16.xpose.msra.mxu0 0
        %5259 = vmatprep.subr.bf16.mxu0 0
        %5260 = vmatpush1.bf16.xpose.msra.mxu0 0
        %5261 = vmatprep.subr.bf16.mxu0 0
        %5262 = vmatpush1.bf16.xpose.msra.mxu0 0
        %5263 = vmatprep.subr.bf16.mxu0 0
        %5264 = vmatpush1.bf16.xpose.msra.mxu0 0
        %5265 = vmatprep.mubr.bf16.mxu0 0
        %5266 = vmatmul.mubr.bf16.gmra.mrb[0].mxu0 %v2655
        %v5267 = vpop.f32.mrb[0].mxu0
        %v5268 = vadd.f32 0.0, %v5267
        %v5269 = vpop.f32.mrb[0].mxu0
        %v5270 = vpop.f32.mrb[0].mxu0
        %v5271 = vpop.f32.mrb[0].mxu0
        %5272 = vdwg.mxu0
        %5274 = vrot.lane.b32.xlu0 %v5268, 40
        %v5275 = vpop.permute.xlu0 %5274
        %v5277 = vmul.f32 %v4743, %v5275
        %v5278 = vpack.c.bf16 %v5277, %v5277
        %5280 = vrot.lane.b32.xlu0 %v5278, 88
        %v5281 = vpop.permute.xlu0 %5280
        %v5283 = vsel %vm2190, %v5281, 0
        %5285 = vmatprep.subr.bf16.mxu0 0
        %5286 = vmatpush1.bf16.msra.mxu0 %v2713
        %5287 = vmatprep.subr.bf16.mxu0 0
        %5288 = vmatpush1.bf16.msra.mxu0 0
        %5289 = vmatprep.subr.bf16.mxu0 0
        %5290 = vmatpush1.bf16.msra.mxu0 0
        %5291 = vmatprep.subr.bf16.mxu0 0
        %5292 = vmatpush1.bf16.msra.mxu0 0
        %5293 = vmatprep.subr.bf16.mxu0 0
        %5294 = vmatpush1.bf16.msra.mxu0 0
        %5295 = vmatprep.subr.bf16.mxu0 0
        %5296 = vmatpush1.bf16.msra.mxu0 0
        %5297 = vmatprep.subr.bf16.mxu0 0
        %5298 = vmatpush1.bf16.msra.mxu0 0
        %5299 = vmatprep.subr.bf16.mxu0 0
        %5300 = vmatpush1.bf16.msra.mxu0 0
        %5301 = vmatprep.subr.bf16.mxu0 0
        %5302 = vmatpush1.bf16.msra.mxu0 0
        %5303 = vmatprep.subr.bf16.mxu0 0
        %5304 = vmatpush1.bf16.msra.mxu0 0
        %5305 = vmatprep.subr.bf16.mxu0 0
        %5306 = vmatpush1.bf16.msra.mxu0 0
        %5307 = vmatprep.subr.bf16.mxu0 0
        %5308 = vmatpush1.bf16.msra.mxu0 0
        %5309 = vmatprep.subr.bf16.mxu0 0
        %5310 = vmatpush1.bf16.msra.mxu0 0
        %5311 = vmatprep.subr.bf16.mxu0 0
        %5312 = vmatpush1.bf16.msra.mxu0 0
        %5313 = vmatprep.subr.bf16.mxu0 0
        %5314 = vmatpush1.bf16.msra.mxu0 0
        %5315 = vmatprep.subr.bf16.mxu0 0
        %5316 = vmatpush1.bf16.msra.mxu0 0
        %5317 = vmatprep.mubr.bf16.mxu0 0
        %5318 = vmatmul.mubr.bf16.gmra.mrb[0].mxu0 %v5283
        %v5319 = vpop.f32.mrb[0].mxu0
        %v5320 = vadd.f32 0.0, %v5319
        %v5321 = vpop.f32.mrb[0].mxu0
        %v5322 = vpop.f32.mrb[0].mxu0
        %v5323 = vpop.f32.mrb[0].mxu0
        %5324 = vdwg.mxu0
        %v5325 = vadd.f32 %v5228, %v5320
        %v5326 = vpack.c.bf16 %v4751, %v4751
        %v5328 = vsel %vm1003, %v5326, 0
        %5330 = vmatprep.subr.bf16.mxu0 0
        %5331 = vmatpush1.bf16.xpose.msra.mxu0 %v5328
        %5332 = vmatprep.subr.bf16.mxu0 0
        %5333 = vmatpush1.bf16.xpose.msra.mxu0 0
        %5334 = vmatprep.subr.bf16.mxu0 0
        %5335 = vmatpush1.bf16.xpose.msra.mxu0 0
        %5336 = vmatprep.subr.bf16.mxu0 0
        %5337 = vmatpush1.bf16.xpose.msra.mxu0 0
        %5338 = vmatprep.subr.bf16.mxu0 0
        %5339 = vmatpush1.bf16.xpose.msra.mxu0 0
        %5340 = vmatprep.subr.bf16.mxu0 0
        %5341 = vmatpush1.bf16.xpose.msra.mxu0 0
        %5342 = vmatprep.subr.bf16.mxu0 0
        %5343 = vmatpush1.bf16.xpose.msra.mxu0 0
        %5344 = vmatprep.subr.bf16.mxu0 0
        %5345 = vmatpush1.bf16.xpose.msra.mxu0 0
        %5346 = vmatprep.subr.bf16.mxu0 0
        %5347 = vmatpush1.bf16.xpose.msra.mxu0 0
        %5348 = vmatprep.subr.bf16.mxu0 0
        %5349 = vmatpush1.bf16.xpose.msra.mxu0 0
        %5350 = vmatprep.subr.bf16.mxu0 0
        %5351 = vmatpush1.bf16.xpose.msra.mxu0 0
        %5352 = vmatprep.subr.bf16.mxu0 0
        %5353 = vmatpush1.bf16.xpose.msra.mxu0 0
        %5354 = vmatprep.subr.bf16.mxu0 0
        %5355 = vmatpush1.bf16.xpose.msra.mxu0 0
        %5356 = vmatprep.subr.bf16.mxu0 0
        %5357 = vmatpush1.bf16.xpose.msra.mxu0 0
        %5358 = vmatprep.subr.bf16.mxu0 0
        %5359 = vmatpush1.bf16.xpose.msra.mxu0 0
        %5360 = vmatprep.subr.bf16.mxu0 0
        %5361 = vmatpush1.bf16.xpose.msra.mxu0 0
        %5362 = vmatprep.mubr.bf16.mxu0 0
        %5363 = vmatmul.mubr.bf16.gmra.mrb[0].mxu0 %v2773
        %v5364 = vpop.f32.mrb[0].mxu0
        %v5365 = vadd.f32 0.0, %v5364
        %v5366 = vpop.f32.mrb[0].mxu0
        %v5367 = vpop.f32.mrb[0].mxu0
        %v5368 = vpop.f32.mrb[0].mxu0
        %5369 = vdwg.mxu0
        %5371 = vrot.lane.b32.xlu0 %v5365, 48
        %v5372 = vpop.permute.xlu0 %5371
        %v5374 = vmul.f32 %v4743, %v5372
        %v5375 = vpack.c.bf16 %v5374, %v5374
        %5377 = vrot.lane.b32.xlu0 %v5375, 80
        %v5378 = vpop.permute.xlu0 %5377
        %v5380 = vsel %vm2190, %v5378, 0
        %5382 = vmatprep.subr.bf16.mxu0 0
        %5383 = vmatpush1.bf16.msra.mxu0 %v2831
        %5384 = vmatprep.subr.bf16.mxu0 0
        %5385 = vmatpush1.bf16.msra.mxu0 0
        %5386 = vmatprep.subr.bf16.mxu0 0
        %5387 = vmatpush1.bf16.msra.mxu0 0
        %5388 = vmatprep.subr.bf16.mxu0 0
        %5389 = vmatpush1.bf16.msra.mxu0 0
        %5390 = vmatprep.subr.bf16.mxu0 0
        %5391 = vmatpush1.bf16.msra.mxu0 0
        %5392 = vmatprep.subr.bf16.mxu0 0
        %5393 = vmatpush1.bf16.msra.mxu0 0
        %5394 = vmatprep.subr.bf16.mxu0 0
        %5395 = vmatpush1.bf16.msra.mxu0 0
        %5396 = vmatprep.subr.bf16.mxu0 0
        %5397 = vmatpush1.bf16.msra.mxu0 0
        %5398 = vmatprep.subr.bf16.mxu0 0
        %5399 = vmatpush1.bf16.msra.mxu0 0
        %5400 = vmatprep.subr.bf16.mxu0 0
        %5401 = vmatpush1.bf16.msra.mxu0 0
        %5402 = vmatprep.subr.bf16.mxu0 0
        %5403 = vmatpush1.bf16.msra.mxu0 0
        %5404 = vmatprep.subr.bf16.mxu0 0
        %5405 = vmatpush1.bf16.msra.mxu0 0
        %5406 = vmatprep.subr.bf16.mxu0 0
        %5407 = vmatpush1.bf16.msra.mxu0 0
        %5408 = vmatprep.subr.bf16.mxu0 0
        %5409 = vmatpush1.bf16.msra.mxu0 0
        %5410 = vmatprep.subr.bf16.mxu0 0
        %5411 = vmatpush1.bf16.msra.mxu0 0
        %5412 = vmatprep.subr.bf16.mxu0 0
        %5413 = vmatpush1.bf16.msra.mxu0 0
        %5414 = vmatprep.mubr.bf16.mxu0 0
        %5415 = vmatmul.mubr.bf16.gmra.mrb[0].mxu0 %v5380
        %v5416 = vpop.f32.mrb[0].mxu0
        %v5417 = vadd.f32 0.0, %v5416
        %v5418 = vpop.f32.mrb[0].mxu0
        %v5419 = vpop.f32.mrb[0].mxu0
        %v5420 = vpop.f32.mrb[0].mxu0
        %5421 = vdwg.mxu0
        %v5422 = vadd.f32 %v5325, %v5417
        %v5423 = vpack.c.bf16 %v4752, %v4752
        %v5425 = vsel %vm1003, %v5423, 0
        %5427 = vmatprep.subr.bf16.mxu0 0
        %5428 = vmatpush1.bf16.xpose.msra.mxu0 %v5425
        %5429 = vmatprep.subr.bf16.mxu0 0
        %5430 = vmatpush1.bf16.xpose.msra.mxu0 0
        %5431 = vmatprep.subr.bf16.mxu0 0
        %5432 = vmatpush1.bf16.xpose.msra.mxu0 0
        %5433 = vmatprep.subr.bf16.mxu0 0
        %5434 = vmatpush1.bf16.xpose.msra.mxu0 0
        %5435 = vmatprep.subr.bf16.mxu0 0
        %5436 = vmatpush1.bf16.xpose.msra.mxu0 0
        %5437 = vmatprep.subr.bf16.mxu0 0
        %5438 = vmatpush1.bf16.xpose.msra.mxu0 0
        %5439 = vmatprep.subr.bf16.mxu0 0
        %5440 = vmatpush1.bf16.xpose.msra.mxu0 0
        %5441 = vmatprep.subr.bf16.mxu0 0
        %5442 = vmatpush1.bf16.xpose.msra.mxu0 0
        %5443 = vmatprep.subr.bf16.mxu0 0
        %5444 = vmatpush1.bf16.xpose.msra.mxu0 0
        %5445 = vmatprep.subr.bf16.mxu0 0
        %5446 = vmatpush1.bf16.xpose.msra.mxu0 0
        %5447 = vmatprep.subr.bf16.mxu0 0
        %5448 = vmatpush1.bf16.xpose.msra.mxu0 0
        %5449 = vmatprep.subr.bf16.mxu0 0
        %5450 = vmatpush1.bf16.xpose.msra.mxu0 0
        %5451 = vmatprep.subr.bf16.mxu0 0
        %5452 = vmatpush1.bf16.xpose.msra.mxu0 0
        %5453 = vmatprep.subr.bf16.mxu0 0
        %5454 = vmatpush1.bf16.xpose.msra.mxu0 0
        %5455 = vmatprep.subr.bf16.mxu0 0
        %5456 = vmatpush1.bf16.xpose.msra.mxu0 0
        %5457 = vmatprep.subr.bf16.mxu0 0
        %5458 = vmatpush1.bf16.xpose.msra.mxu0 0
        %5459 = vmatprep.mubr.bf16.mxu0 0
        %5460 = vmatmul.mubr.bf16.gmra.mrb[0].mxu0 %v2891
        %v5461 = vpop.f32.mrb[0].mxu0
        %v5462 = vadd.f32 0.0, %v5461
        %v5463 = vpop.f32.mrb[0].mxu0
        %v5464 = vpop.f32.mrb[0].mxu0
        %v5465 = vpop.f32.mrb[0].mxu0
        %5466 = vdwg.mxu0
        %5468 = vrot.lane.b32.xlu0 %v5462, 56
        %v5469 = vpop.permute.xlu0 %5468
        %v5471 = vmul.f32 %v4743, %v5469
        %v5472 = vpack.c.bf16 %v5471, %v5471
        %5474 = vrot.lane.b32.xlu0 %v5472, 72
        %v5475 = vpop.permute.xlu0 %5474
        %v5477 = vsel %vm2190, %v5475, 0
        %5479 = vmatprep.subr.bf16.mxu0 0
        %5480 = vmatpush1.bf16.msra.mxu0 %v2949
        %5481 = vmatprep.subr.bf16.mxu0 0
        %5482 = vmatpush1.bf16.msra.mxu0 0
        %5483 = vmatprep.subr.bf16.mxu0 0
        %5484 = vmatpush1.bf16.msra.mxu0 0
        %5485 = vmatprep.subr.bf16.mxu0 0
        %5486 = vmatpush1.bf16.msra.mxu0 0
        %5487 = vmatprep.subr.bf16.mxu0 0
        %5488 = vmatpush1.bf16.msra.mxu0 0
        %5489 = vmatprep.subr.bf16.mxu0 0
        %5490 = vmatpush1.bf16.msra.mxu0 0
        %5491 = vmatprep.subr.bf16.mxu0 0
        %5492 = vmatpush1.bf16.msra.mxu0 0
        %5493 = vmatprep.subr.bf16.mxu0 0
        %5494 = vmatpush1.bf16.msra.mxu0 0
        %5495 = vmatprep.subr.bf16.mxu0 0
        %5496 = vmatpush1.bf16.msra.mxu0 0
        %5497 = vmatprep.subr.bf16.mxu0 0
        %5498 = vmatpush1.bf16.msra.mxu0 0
        %5499 = vmatprep.subr.bf16.mxu0 0
        %5500 = vmatpush1.bf16.msra.mxu0 0
        %5501 = vmatprep.subr.bf16.mxu0 0
        %5502 = vmatpush1.bf16.msra.mxu0 0
        %5503 = vmatprep.subr.bf16.mxu0 0
        %5504 = vmatpush1.bf16.msra.mxu0 0
        %5505 = vmatprep.subr.bf16.mxu0 0
        %5506 = vmatpush1.bf16.msra.mxu0 0
        %5507 = vmatprep.subr.bf16.mxu0 0
        %5508 = vmatpush1.bf16.msra.mxu0 0
        %5509 = vmatprep.subr.bf16.mxu0 0
        %5510 = vmatpush1.bf16.msra.mxu0 0
        %5511 = vmatprep.mubr.bf16.mxu0 0
        %5512 = vmatmul.mubr.bf16.gmra.mrb[0].mxu0 %v5477
        %v5513 = vpop.f32.mrb[0].mxu0
        %v5514 = vadd.f32 0.0, %v5513
        %v5515 = vpop.f32.mrb[0].mxu0
        %v5516 = vpop.f32.mrb[0].mxu0
        %v5517 = vpop.f32.mrb[0].mxu0
        %5518 = vdwg.mxu0
        %v5519 = vadd.f32 %v5422, %v5514
        %s5520 = scalar_lea.vmem %s454, 24 [#allocation8]
        %5521 = vst.msk [vmem:[%s5520] sm:$0xff] %vm1933, %v5519
        %s5522 = sand.u32 %s279, 1
        %s5523 = scalar_lea.sflag [#allocation5], %s5522
        %s5524 = sand.u32 %s279, 1
        %s5525 = smul.addr %s5524, 32
        %s5526 = scalar_lea.vmem [#allocation8], %s5525
        // Predicated region
        $region73: #{tpu_custom_call.1} parent=59 // pred_check
          %p5527 = pneg %p289
        $region74: #{tpu_custom_call.1} parent=59 // pred_check_branch
          %5529 = sbr.rel (%p5527) target = $region76
        $region75: #{tpu_custom_call.1} parent=59 // pred_region
          %s5530 = smul.u32 4, %s34
          %s5532 = ssub.s32 512, 512
          %5533 = vsyncadd %s5523, %s5532
          %s5534 = smul.addr %s5530, 2
          %s5535 = sadd.s32 %s35, %s5534
          %s5536 = smul.addr %s5535, 128
          %s5537 = scalar_lea.hbm %s10, %s5536
          %s5538 = sshll.u32 %s5526, 4
          %s5539 = int_to_ptr.vmem [resolvable:$true] %s5538
          %5544 = dma.vmem_to_hbm [thread:$0]  %s5539, 512, %s5537, %s5523, 128, 256, 8
        $region76: #{tpu_custom_call.1} parent=59 // pred_fallthru
          _
      $region60: #{tpu_custom_call.1} parent=5 // pred_fallthru
        _
      %p5545 = scmp.le.s32.totalorder 2, %s25
      // Predicated region
      $region77: #{tpu_custom_call.1} parent=5 // pred_check
        %p5546 = pneg %p5545
      $region78: #{tpu_custom_call.1} parent=5 // pred_check_branch
        %5548 = sbr.rel (%p5546) target = $region80
      $region79: #{tpu_custom_call.1} parent=5 // pred_region
        %s5549 = ssub.s32 %s25, 2
        // Predicated region
        $region81: #{tpu_custom_call.1} parent=79 // pred_check
          %p5550 = pneg %p295
        $region82: #{tpu_custom_call.1} parent=79 // pred_check_branch
          %5552 = sbr.rel (%p5550) target = $region84
        $region83: #{tpu_custom_call.1} parent=79 // pred_region
          %s5553 = sand.u32 %s280, 1
          %s5554 = scalar_lea.sflag [#allocation5], %s5553
          %s5555 = sand.u32 %s280, 1
          %s5556 = smul.addr %s5555, 32
          %s5557 = scalar_lea.vmem [#allocation8], %s5556
          %5558 = dma.done %s5554, 512
        $region84: #{tpu_custom_call.1} parent=79 // pred_fallthru
          _
      $region80: #{tpu_custom_call.1} parent=5 // pred_fallthru
        _
    $region6: #{tpu_custom_call.1} parent=1 // loop_footer
      %s29 = sadd.s32 1, %s25
    $region7: #{tpu_custom_call.1} parent=1 // loop_footer_branch
      %24 = sbr.rel target = $region3
    $region8: #{tpu_custom_call.1} parent=1 // loop_exit
      _
    %5559 = vsyncpa [#allocation4], 1
    %s5560 = scalar_lea.sflag [#allocation4], 1
    %5561 = vsyncpa %s5560, 1
    %5562 = vsyncpa [#allocation7], 1
    %s5563 = scalar_lea.sflag [#allocation7], 1
    %5564 = vsyncpa %s5563, 1
    %5565 = vsyncpa [#allocation5], 1
    %s5566 = scalar_lea.sflag [#allocation5], 1
    %5567 = vsyncpa %s5566, 1

</llo_original>
